<compile_context>
chip_gen: v5e
topology: v5e:2x2
jax: 0.10.0
libtpu: 0.0.40
codegen_flags: <defaults>
</compile_context>

<pallas_src>
import functools

import jax
import jax.numpy as jnp
from jax.experimental import pallas as pl
from jax.experimental.pallas import tpu as pltpu

EPS_WS = 1e-5   # x is float32 -> eps = 1e-5 in WeightStandardizedConv2d
EPS_GN = 1e-5   # nn.GroupNorm default eps


def _silu(z):
    return z * jax.nn.sigmoid(z)


# --------------------------------------------------------------------------
# Fused kernel: one grid step == one batch element.
# Spatial layout inside the kernel: the (H+2, W+2) zero-padded image is
# flattened to R = (H+2)*(W+2) rows with MARG = W+3 extra zero rows on each
# side, so the 3x3 tap (dy, dx) is the contiguous row slice
#   [MARG + (dy-1)*(W+2) + (dx-1),  ... + R)
# Border rows of the padded domain hold garbage after the convs; a (R, 1)
# interior mask keeps them out of the GroupNorm statistics and re-zeroes the
# padding ring before the second conv.  The wrapper discards them at the end.
# --------------------------------------------------------------------------
def _fused_resnet_kernel(ss_ref, x_ref, w1_ref, b1_ref, g1_ref, be1_ref,
                         w2_ref, b2_ref, g2_ref, be2_ref,
                         wres_ref, bres_ref, gavg_ref, mask_ref,
                         o_ref, h1s_ref, *, H, W):
    Hp, Wp = H + 2, W + 2
    R = Hp * Wp                       # padded flat spatial domain
    MARG = Wp + 1                     # margin so every 3x3 tap is a flat slice
    RB = R + 2 * MARG
    inv_n = 1.0 / float(H * W)
    cpad = o_ref.shape[-1]
    cdt = w1_ref.dtype                # matmul operand dtype (f32 or bf16)

    mask = mask_ref[...]              # (R, 1): 1.0 on real pixels, 0.0 on the ring
    gavg = gavg_ref[...]              # (cpad, cpad) tiny group-mean broadcast matrix

    def group_norm(h, gamma, beta):
        # masked, two-pass (centered) GroupNorm over the real H*W pixels
        mean_c = jnp.dot(jnp.sum(h * mask, axis=0, keepdims=True) * inv_n, gavg,
                         preferred_element_type=jnp.float32)
        d = (h - mean_c) * mask
        var_c = jnp.dot(jnp.sum(d * d, axis=0, keepdims=True) * inv_n, gavg,
                        preferred_element_type=jnp.float32)
        return (h - mean_c) * jax.lax.rsqrt(var_c + EPS_GN) * gamma + beta

    # ---- block1: WS-conv3x3 -> GroupNorm -> (scale, shift) -> SiLU ----
    acc = jnp.zeros((R, cpad), jnp.float32)
    for t in range(9):
        dy, dx = t // 3, t % 3
        off = MARG + (dy - 1) * Wp + (dx - 1)
        acc = acc + jnp.dot(x_ref[0, off:off + R, :].astype(cdt), w1_ref[t],
                            preferred_element_type=jnp.float32)
    acc = acc + b1_ref[...]
    h = group_norm(acc, g1_ref[...], be1_ref[...])
    scale = ss_ref[0, :, :cpad]                       # precomputed time-MLP output
    shift = ss_ref[0, :, cpad:]
    h = h * (scale + 1.0) + shift
    h = h * jax.nn.sigmoid(h)                         # SiLU (f32, EUP)
    h = h * mask                                      # exact zero padding ring for conv2

    # h1 never leaves VMEM: stash it (with zero margins) for the second conv.
    h1s_ref[0:MARG, :] = jnp.zeros((MARG, cpad), jnp.float32)
    h1s_ref[MARG + R:RB, :] = jnp.zeros((MARG, cpad), jnp.float32)
    h1s_ref[MARG:MARG + R, :] = h

    # ---- block2: WS-conv3x3 -> GroupNorm -> SiLU ----
    acc2 = jnp.zeros((R, cpad), jnp.float32)
    for t in range(9):
        dy, dx = t // 3, t % 3
        off = MARG + (dy - 1) * Wp + (dx - 1)
        acc2 = acc2 + jnp.dot(h1s_ref[off:off + R, :].astype(cdt), w2_ref[t],
                              preferred_element_type=jnp.float32)
    acc2 = acc2 + b2_ref[...]
    h2 = group_norm(acc2, g2_ref[...], be2_ref[...])
    h2 = h2 * jax.nn.sigmoid(h2)

    # ---- residual 1x1 conv on x (reuses the already-resident x block) ----
    res = jnp.dot(x_ref[0, MARG:MARG + R, :].astype(cdt), wres_ref[...],
                  preferred_element_type=jnp.float32) + bres_ref[...]
    o_ref[0] = h2 + res


# --------------------------------------------------------------------------
# Wrapper
# --------------------------------------------------------------------------
def _std_weight_flat(wt):
    """Weight standardization, matching the module literally:
    (w - mean) / rsqrt(var + eps)  ==  (w - mean) * sqrt(var + eps)."""
    kh, kw, ci, co = wt.shape
    wf = wt.reshape(kh * kw * ci, co)
    m = jnp.mean(wf, axis=0, keepdims=True)
    v = jnp.mean((wf - m) ** 2, axis=0, keepdims=True)
    return ((wf - m) * jnp.sqrt(v + EPS_WS)).reshape(kh * kw, ci, co)


def _pad_lanes(a, axes, cpad):
    pads = [(0, 0)] * a.ndim
    for ax in axes:
        pads[ax] = (0, cpad - a.shape[ax])
    return jnp.pad(a, pads)


def resnet_block(x, t, params, num_groups=8, conv_dtype=jnp.float32):
    """x: (B, H, W, Cin) NHWC, t: (B, Temb).  Returns (B, H, W, Cout) NHWC."""
    b, h, w, cin = x.shape
    cout = params["b1"].shape[-1]
    cpg = cout // num_groups
    cpad = max(128, ((cout + 127) // 128) * 128)      # lane-dense channel dim
    hp, wp = h + 2, w + 2
    r = hp * wp
    marg = wp + 1
    rb = r + 2 * marg

    # ---- batch-invariant preprocessing, hoisted out of the kernel ----
    w1p = _pad_lanes(_std_weight_flat(params["w1"]), [2], cpad).astype(conv_dtype)
    w2p = _pad_lanes(_std_weight_flat(params["w2"]), [1, 2], cpad).astype(conv_dtype)
    wresp = _pad_lanes(params["wres"], [1], cpad).astype(conv_dtype)
    b1p = _pad_lanes(params["b1"], [1], cpad)
    g1p = _pad_lanes(params["g1"], [1], cpad)
    be1p = _pad_lanes(params["be1"], [1], cpad)
    b2p = _pad_lanes(params["b2"], [1], cpad)
    g2p = _pad_lanes(params["g2"], [1], cpad)
    be2p = _pad_lanes(params["be2"], [1], cpad)
    bresp = _pad_lanes(params["bres"], [1], cpad)

    # time-MLP hoisted: one dense (B, Temb) @ (Temb, 2*Cout) matmul in XLA
    ss = jnp.dot(_silu(t), params["wmlp"],
                 precision=jax.lax.Precision.HIGHEST) + params["bmlp"]
    scale = _pad_lanes(ss[:, :cout], [1], cpad)
    shift = _pad_lanes(ss[:, cout:], [1], cpad)
    ss3 = jnp.concatenate([scale, shift], axis=-1).reshape(b, 1, 2 * cpad)

    # tiny (cpad, cpad) group-mean broadcast matrix (64 KiB at cpad=128)
    gi = jnp.arange(cpad)
    grp = jnp.where(gi < cout, gi // cpg, -1)
    gavg = ((grp[:, None] == grp[None, :]) & (grp[:, None] >= 0)
            ).astype(jnp.float32) / cpg

    # interior-pixel mask over the padded flat spatial domain
    row_ok = (jnp.arange(hp) >= 1) & (jnp.arange(hp) <= h)
    col_ok = (jnp.arange(wp) >= 1) & (jnp.arange(wp) <= w)
    mask = (row_ok[:, None] & col_ok[None, :]).astype(jnp.float32).reshape(r, 1)

    # x, spatially zero-padded and flattened, with MARG extra zero rows so every
    # 3x3 tap becomes a contiguous flat slice inside the kernel (no 9x im2col).
    xpf = jnp.pad(x, ((0, 0), (1, 1), (1, 1), (0, 0))).reshape(b, r, cin)
    xbig = jnp.pad(xpf, ((0, 0), (marg, marg), (0, 0)))          # (B, RB, Cin)

    kernel = functools.partial(_fused_resnet_kernel, H=h, W=w)

    def full(a):
        return pl.BlockSpec(a.shape, lambda i, n=a.ndim: (0,) * n)

    inputs = (ss3, xbig, w1p, b1p, g1p, be1p, w2p, b2p, g2p, be2p,
              wresp, bresp, gavg, mask)
    flops = int(b * (2 * r * 9 * cin * cpad          # conv1
                     + 2 * r * 9 * cpad * cpad       # conv2
                     + 2 * r * cin * cpad))          # residual 1x1
    bytes_accessed = int(sum(int(a.size) * a.dtype.itemsize for a in inputs)
                         + b * r * cpad * 4)
    cost = pl.CostEstimate(flops=flops,
                           transcendentals=int(2 * b * r * cpad),
                           bytes_accessed=bytes_accessed)

    out_pad = pl.pallas_call(
        kernel,
        out_shape=jax.ShapeDtypeStruct((b, r, cpad), jnp.float32),
        grid=(b,),
        in_specs=[
            pl.BlockSpec((1, 1, 2 * cpad), lambda i: (i, 0, 0)),   # scale/shift
            pl.BlockSpec((1, rb, cin), lambda i: (i, 0, 0)),       # x (padded/flat)
            full(w1p), full(b1p), full(g1p), full(be1p),
            full(w2p), full(b2p), full(g2p), full(be2p),
            full(wresp), full(bresp), full(gavg), full(mask),
        ],
        out_specs=pl.BlockSpec((1, r, cpad), lambda i: (i, 0, 0)),
        scratch_shapes=[pltpu.VMEM((rb, cpad), jnp.float32)],       # h1 stays in VMEM
        compiler_params=pltpu.CompilerParams(
            dimension_semantics=("parallel",),
            vmem_limit_bytes=32 * 1024 * 1024),
        cost_estimate=cost,
    )(*inputs)

    # drop the padded spatial ring and the padded channels
    return out_pad.reshape(b, hp, wp, cpad)[:, 1:1 + h, 1:1 + w, :cout]


# --------------------------------------------------------------------------
# Pure-JAX reference (same math as the PyTorch module), NHWC.
# --------------------------------------------------------------------------
def resnet_block_ref(x, t, params, num_groups=8):
    hi = jax.lax.Precision.HIGHEST

    def ws_conv(z, wt, bias):
        m = jnp.mean(wt, axis=(0, 1, 2), keepdims=True)
        v = jnp.mean((wt - m) ** 2, axis=(0, 1, 2), keepdims=True)
        wn = (wt - m) * jnp.sqrt(v + EPS_WS)
        y = jax.lax.conv_general_dilated(
            z, wn, (1, 1), "SAME",
            dimension_numbers=("NHWC", "HWIO", "NHWC"), precision=hi)
        return y + bias[0]

    def gn(z, gamma, beta):
        bb, hh, ww, cc = z.shape
        zg = z.reshape(bb, hh, ww, num_groups, cc // num_groups)
        m = zg.mean(axis=(1, 2, 4), keepdims=True)
        v = ((zg - m) ** 2).mean(axis=(1, 2, 4), keepdims=True)
        zn = ((zg - m) / jnp.sqrt(v + EPS_GN)).reshape(bb, hh, ww, cc)
        return zn * gamma[0] + beta[0]

    cout = params["b1"].shape[-1]
    ss = jnp.dot(_silu(t), params["wmlp"], precision=hi) + params["bmlp"]
    scale, shift = ss[:, :cout], ss[:, cout:]
    h = ws_conv(x, params["w1"], params["b1"])
    h = gn(h, params["g1"], params["be1"])
    h = h * (scale[:, None, None, :] + 1.0) + shift[:, None, None, :]
    h = _silu(h)
    h = ws_conv(h, params["w2"], params["b2"])
    h = gn(h, params["g2"], params["be2"])
    h = _silu(h)
    res = jnp.einsum("bhwc,co->bhwo", x, params["wres"],
                     precision=hi) + params["bres"][0]
    return h + res


if __name__ == "__main__":
    B, H, W = 2, 16, 16
    CIN, COUT, TEMB, GROUPS = 4, 16, 32, 8

    key = jax.random.PRNGKey(0)
    ks = jax.random.split(key, 16)
    params = dict(
        wmlp=0.1 * jax.random.normal(ks[0], (TEMB, 2 * COUT), jnp.float32),
        bmlp=0.1 * jax.random.normal(ks[1], (1, 2 * COUT), jnp.float32),
        w1=0.2 * jax.random.normal(ks[2], (3, 3, CIN, COUT), jnp.float32),
        b1=0.1 * jax.random.normal(ks[3], (1, COUT), jnp.float32),
        g1=1.0 + 0.1 * jax.random.normal(ks[4], (1, COUT), jnp.float32),
        be1=0.1 * jax.random.normal(ks[5], (1, COUT), jnp.float32),
        w2=0.2 * jax.random.normal(ks[6], (3, 3, COUT, COUT), jnp.float32),
        b2=0.1 * jax.random.normal(ks[7], (1, COUT), jnp.float32),
        g2=1.0 + 0.1 * jax.random.normal(ks[8], (1, COUT), jnp.float32),
        be2=0.1 * jax.random.normal(ks[9], (1, COUT), jnp.float32),
        wres=0.2 * jax.random.normal(ks[10], (CIN, COUT), jnp.float32),
        bres=0.1 * jax.random.normal(ks[11], (1, COUT), jnp.float32),
    )

    # NHWC input; corresponds to a PyTorch NCHW input of shape (2, 4, 16, 16).
    x = jax.random.normal(ks[12], (B, H, W, CIN), jnp.float32)
    temporal_embedding = jax.random.normal(ks[13], (B, TEMB), jnp.float32)

    ref = resnet_block_ref(x, temporal_embedding, params, num_groups=GROUPS)

    # f32 matmul path (tight check)
    out = resnet_block(x, temporal_embedding, params, num_groups=GROUPS)
    out = jax.block_until_ready(out)
    assert out.shape == (B, H, W, COUT)
    assert jnp.allclose(out, ref, atol=1e-2, rtol=1e-2), (
        f"f32 max abs err = {jnp.max(jnp.abs(out - ref))}")

    # bf16-operand / f32-accumulate MXU path (v6e/v7x peak rate); looser check.
    out_bf16 = resnet_block(x, temporal_embedding, params, num_groups=GROUPS,
                            conv_dtype=jnp.bfloat16)
    out_bf16 = jax.block_until_ready(out_bf16)
    assert jnp.allclose(out_bf16, ref, atol=0.15, rtol=0.15), (
        f"bf16 max abs err = {jnp.max(jnp.abs(out_bf16 - ref))}")

    print("KERNEL_OK")
</pallas_src>

<mosaic_0001>
module attributes {stable_mosaic.version = 11 : i64} {
  func.func @_fused_resnet_kernel(%arg0: i32, %arg1: memref<1x1x256xf32, #tpu.memory_space<vmem>>, %arg2: memref<1x362x4xf32, #tpu.memory_space<vmem>>, %arg3: memref<9x4x128xf32, #tpu.memory_space<vmem>>, %arg4: memref<1x128xf32, #tpu.memory_space<vmem>>, %arg5: memref<1x128xf32, #tpu.memory_space<vmem>>, %arg6: memref<1x128xf32, #tpu.memory_space<vmem>>, %arg7: memref<9x128x128xf32, #tpu.memory_space<vmem>>, %arg8: memref<1x128xf32, #tpu.memory_space<vmem>>, %arg9: memref<1x128xf32, #tpu.memory_space<vmem>>, %arg10: memref<1x128xf32, #tpu.memory_space<vmem>>, %arg11: memref<4x128xf32, #tpu.memory_space<vmem>>, %arg12: memref<1x128xf32, #tpu.memory_space<vmem>>, %arg13: memref<128x128xf32, #tpu.memory_space<vmem>>, %arg14: memref<324x1xf32, #tpu.memory_space<vmem>>, %arg15: memref<1x324x128xf32, #tpu.memory_space<vmem>>, %arg16: memref<362x128xf32, #tpu.memory_space<vmem>>) attributes {dimension_semantics = [#tpu.dimension_semantics<parallel>], iteration_bounds = array<i64: 2>, scalar_prefetch = 0 : i64, scratch_operands = 1 : i64, tpu.core_type = #tpu.core_type<tc>, window_params = [{transform_indices = @transform_0, window_bounds = array<i64: 1, 1, 256>}, {transform_indices = @transform_1, window_bounds = array<i64: 1, 362, 4>}, {pipeline_mode = #tpu.pipeline_mode<synchronous>, transform_indices = @transform_2, window_bounds = array<i64: 9, 4, 128>}, {pipeline_mode = #tpu.pipeline_mode<synchronous>, transform_indices = @transform_3, window_bounds = array<i64: 1, 128>}, {pipeline_mode = #tpu.pipeline_mode<synchronous>, transform_indices = @transform_4, window_bounds = array<i64: 1, 128>}, {pipeline_mode = #tpu.pipeline_mode<synchronous>, transform_indices = @transform_5, window_bounds = array<i64: 1, 128>}, {pipeline_mode = #tpu.pipeline_mode<synchronous>, transform_indices = @transform_6, window_bounds = array<i64: 9, 128, 128>}, {pipeline_mode = #tpu.pipeline_mode<synchronous>, transform_indices = @transform_7, window_bounds = array<i64: 1, 128>}, {pipeline_mode = #tpu.pipeline_mode<synchronous>, transform_indices = @transform_8, window_bounds = array<i64: 1, 128>}, {pipeline_mode = #tpu.pipeline_mode<synchronous>, transform_indices = @transform_9, window_bounds = array<i64: 1, 128>}, {pipeline_mode = #tpu.pipeline_mode<synchronous>, transform_indices = @transform_10, window_bounds = array<i64: 4, 128>}, {pipeline_mode = #tpu.pipeline_mode<synchronous>, transform_indices = @transform_11, window_bounds = array<i64: 1, 128>}, {pipeline_mode = #tpu.pipeline_mode<synchronous>, transform_indices = @transform_12, window_bounds = array<i64: 128, 128>}, {pipeline_mode = #tpu.pipeline_mode<synchronous>, transform_indices = @transform_13, window_bounds = array<i64: 324, 1>}, {transform_indices = @transform_14, window_bounds = array<i64: 1, 324, 128>}]} {
    %c0 = arith.constant 0 : index
    %c0_0 = arith.constant 0 : index
    %0 = vector.load %arg14[%c0, %c0_0] : memref<324x1xf32, #tpu.memory_space<vmem>>, vector<324x1xf32>
    %c0_1 = arith.constant 0 : index
    %c0_2 = arith.constant 0 : index
    %1 = vector.load %arg13[%c0_1, %c0_2] : memref<128x128xf32, #tpu.memory_space<vmem>>, vector<128x128xf32>
    %cst = arith.constant 0.000000e+00 : f32
    %2 = vector.broadcast %cst : f32 to vector<324x128xf32>
    %c0_3 = arith.constant 0 : index
    %c0_4 = arith.constant 0 : index
    %c0_5 = arith.constant 0 : index
    %3 = vector.load %arg2[%c0_3, %c0_4, %c0_5] : memref<1x362x4xf32, #tpu.memory_space<vmem>>, vector<1x324x4xf32>
    %4 = vector.shape_cast %3 : vector<1x324x4xf32> to vector<324x4xf32>
    %c0_6 = arith.constant 0 : index
    %c0_7 = arith.constant 0 : index
    %c0_8 = arith.constant 0 : index
    %5 = vector.load %arg3[%c0_6, %c0_7, %c0_8] : memref<9x4x128xf32, #tpu.memory_space<vmem>>, vector<1x4x128xf32>
    %6 = vector.shape_cast %5 : vector<1x4x128xf32> to vector<4x128xf32>
    %cst_9 = arith.constant dense<0.000000e+00> : vector<324x128xf32>
    %7 = tpu.matmul %4, %6, %cst_9 {dimension_numbers = #tpu.dot_dimension_numbers<[1], [0], [0], [1], [0, 0, 1, 1], [], []>} : vector<324x4xf32>, vector<4x128xf32>, vector<324x128xf32> -> vector<324x128xf32>
    %8 = arith.addf %2, %7 : vector<324x128xf32>
    %c0_10 = arith.constant 0 : index
    %c1 = arith.constant 1 : index
    %c0_11 = arith.constant 0 : index
    %9 = vector.load %arg2[%c0_10, %c1, %c0_11] : memref<1x362x4xf32, #tpu.memory_space<vmem>>, vector<1x324x4xf32>
    %10 = vector.shape_cast %9 : vector<1x324x4xf32> to vector<324x4xf32>
    %c1_12 = arith.constant 1 : index
    %c0_13 = arith.constant 0 : index
    %c0_14 = arith.constant 0 : index
    %11 = vector.load %arg3[%c1_12, %c0_13, %c0_14] : memref<9x4x128xf32, #tpu.memory_space<vmem>>, vector<1x4x128xf32>
    %12 = vector.shape_cast %11 : vector<1x4x128xf32> to vector<4x128xf32>
    %cst_15 = arith.constant dense<0.000000e+00> : vector<324x128xf32>
    %13 = tpu.matmul %10, %12, %cst_15 {dimension_numbers = #tpu.dot_dimension_numbers<[1], [0], [0], [1], [0, 0, 1, 1], [], []>} : vector<324x4xf32>, vector<4x128xf32>, vector<324x128xf32> -> vector<324x128xf32>
    %14 = arith.addf %8, %13 : vector<324x128xf32>
    %c0_16 = arith.constant 0 : index
    %c2 = arith.constant 2 : index
    %c0_17 = arith.constant 0 : index
    %15 = vector.load %arg2[%c0_16, %c2, %c0_17] : memref<1x362x4xf32, #tpu.memory_space<vmem>>, vector<1x324x4xf32>
    %16 = vector.shape_cast %15 : vector<1x324x4xf32> to vector<324x4xf32>
    %c2_18 = arith.constant 2 : index
    %c0_19 = arith.constant 0 : index
    %c0_20 = arith.constant 0 : index
    %17 = vector.load %arg3[%c2_18, %c0_19, %c0_20] : memref<9x4x128xf32, #tpu.memory_space<vmem>>, vector<1x4x128xf32>
    %18 = vector.shape_cast %17 : vector<1x4x128xf32> to vector<4x128xf32>
    %cst_21 = arith.constant dense<0.000000e+00> : vector<324x128xf32>
    %19 = tpu.matmul %16, %18, %cst_21 {dimension_numbers = #tpu.dot_dimension_numbers<[1], [0], [0], [1], [0, 0, 1, 1], [], []>} : vector<324x4xf32>, vector<4x128xf32>, vector<324x128xf32> -> vector<324x128xf32>
    %20 = arith.addf %14, %19 : vector<324x128xf32>
    %c0_22 = arith.constant 0 : index
    %c18 = arith.constant 18 : index
    %c0_23 = arith.constant 0 : index
    %21 = vector.load %arg2[%c0_22, %c18, %c0_23] : memref<1x362x4xf32, #tpu.memory_space<vmem>>, vector<1x324x4xf32>
    %22 = vector.shape_cast %21 : vector<1x324x4xf32> to vector<324x4xf32>
    %c3 = arith.constant 3 : index
    %c0_24 = arith.constant 0 : index
    %c0_25 = arith.constant 0 : index
    %23 = vector.load %arg3[%c3, %c0_24, %c0_25] : memref<9x4x128xf32, #tpu.memory_space<vmem>>, vector<1x4x128xf32>
    %24 = vector.shape_cast %23 : vector<1x4x128xf32> to vector<4x128xf32>
    %cst_26 = arith.constant dense<0.000000e+00> : vector<324x128xf32>
    %25 = tpu.matmul %22, %24, %cst_26 {dimension_numbers = #tpu.dot_dimension_numbers<[1], [0], [0], [1], [0, 0, 1, 1], [], []>} : vector<324x4xf32>, vector<4x128xf32>, vector<324x128xf32> -> vector<324x128xf32>
    %26 = arith.addf %20, %25 : vector<324x128xf32>
    %c0_27 = arith.constant 0 : index
    %c19 = arith.constant 19 : index
    %c0_28 = arith.constant 0 : index
    %27 = vector.load %arg2[%c0_27, %c19, %c0_28] : memref<1x362x4xf32, #tpu.memory_space<vmem>>, vector<1x324x4xf32>
    %28 = vector.shape_cast %27 : vector<1x324x4xf32> to vector<324x4xf32>
    %c4 = arith.constant 4 : index
    %c0_29 = arith.constant 0 : index
    %c0_30 = arith.constant 0 : index
    %29 = vector.load %arg3[%c4, %c0_29, %c0_30] : memref<9x4x128xf32, #tpu.memory_space<vmem>>, vector<1x4x128xf32>
    %30 = vector.shape_cast %29 : vector<1x4x128xf32> to vector<4x128xf32>
    %cst_31 = arith.constant dense<0.000000e+00> : vector<324x128xf32>
    %31 = tpu.matmul %28, %30, %cst_31 {dimension_numbers = #tpu.dot_dimension_numbers<[1], [0], [0], [1], [0, 0, 1, 1], [], []>} : vector<324x4xf32>, vector<4x128xf32>, vector<324x128xf32> -> vector<324x128xf32>
    %32 = arith.addf %26, %31 : vector<324x128xf32>
    %c0_32 = arith.constant 0 : index
    %c20 = arith.constant 20 : index
    %c0_33 = arith.constant 0 : index
    %33 = vector.load %arg2[%c0_32, %c20, %c0_33] : memref<1x362x4xf32, #tpu.memory_space<vmem>>, vector<1x324x4xf32>
    %34 = vector.shape_cast %33 : vector<1x324x4xf32> to vector<324x4xf32>
    %c5 = arith.constant 5 : index
    %c0_34 = arith.constant 0 : index
    %c0_35 = arith.constant 0 : index
    %35 = vector.load %arg3[%c5, %c0_34, %c0_35] : memref<9x4x128xf32, #tpu.memory_space<vmem>>, vector<1x4x128xf32>
    %36 = vector.shape_cast %35 : vector<1x4x128xf32> to vector<4x128xf32>
    %cst_36 = arith.constant dense<0.000000e+00> : vector<324x128xf32>
    %37 = tpu.matmul %34, %36, %cst_36 {dimension_numbers = #tpu.dot_dimension_numbers<[1], [0], [0], [1], [0, 0, 1, 1], [], []>} : vector<324x4xf32>, vector<4x128xf32>, vector<324x128xf32> -> vector<324x128xf32>
    %38 = arith.addf %32, %37 : vector<324x128xf32>
    %c0_37 = arith.constant 0 : index
    %c36 = arith.constant 36 : index
    %c0_38 = arith.constant 0 : index
    %39 = vector.load %arg2[%c0_37, %c36, %c0_38] : memref<1x362x4xf32, #tpu.memory_space<vmem>>, vector<1x324x4xf32>
    %40 = vector.shape_cast %39 : vector<1x324x4xf32> to vector<324x4xf32>
    %c6 = arith.constant 6 : index
    %c0_39 = arith.constant 0 : index
    %c0_40 = arith.constant 0 : index
    %41 = vector.load %arg3[%c6, %c0_39, %c0_40] : memref<9x4x128xf32, #tpu.memory_space<vmem>>, vector<1x4x128xf32>
    %42 = vector.shape_cast %41 : vector<1x4x128xf32> to vector<4x128xf32>
    %cst_41 = arith.constant dense<0.000000e+00> : vector<324x128xf32>
    %43 = tpu.matmul %40, %42, %cst_41 {dimension_numbers = #tpu.dot_dimension_numbers<[1], [0], [0], [1], [0, 0, 1, 1], [], []>} : vector<324x4xf32>, vector<4x128xf32>, vector<324x128xf32> -> vector<324x128xf32>
    %44 = arith.addf %38, %43 : vector<324x128xf32>
    %c0_42 = arith.constant 0 : index
    %c37 = arith.constant 37 : index
    %c0_43 = arith.constant 0 : index
    %45 = vector.load %arg2[%c0_42, %c37, %c0_43] : memref<1x362x4xf32, #tpu.memory_space<vmem>>, vector<1x324x4xf32>
    %46 = vector.shape_cast %45 : vector<1x324x4xf32> to vector<324x4xf32>
    %c7 = arith.constant 7 : index
    %c0_44 = arith.constant 0 : index
    %c0_45 = arith.constant 0 : index
    %47 = vector.load %arg3[%c7, %c0_44, %c0_45] : memref<9x4x128xf32, #tpu.memory_space<vmem>>, vector<1x4x128xf32>
    %48 = vector.shape_cast %47 : vector<1x4x128xf32> to vector<4x128xf32>
    %cst_46 = arith.constant dense<0.000000e+00> : vector<324x128xf32>
    %49 = tpu.matmul %46, %48, %cst_46 {dimension_numbers = #tpu.dot_dimension_numbers<[1], [0], [0], [1], [0, 0, 1, 1], [], []>} : vector<324x4xf32>, vector<4x128xf32>, vector<324x128xf32> -> vector<324x128xf32>
    %50 = arith.addf %44, %49 : vector<324x128xf32>
    %c0_47 = arith.constant 0 : index
    %c38 = arith.constant 38 : index
    %c0_48 = arith.constant 0 : index
    %51 = vector.load %arg2[%c0_47, %c38, %c0_48] : memref<1x362x4xf32, #tpu.memory_space<vmem>>, vector<1x324x4xf32>
    %52 = vector.shape_cast %51 : vector<1x324x4xf32> to vector<324x4xf32>
    %c8 = arith.constant 8 : index
    %c0_49 = arith.constant 0 : index
    %c0_50 = arith.constant 0 : index
    %53 = vector.load %arg3[%c8, %c0_49, %c0_50] : memref<9x4x128xf32, #tpu.memory_space<vmem>>, vector<1x4x128xf32>
    %54 = vector.shape_cast %53 : vector<1x4x128xf32> to vector<4x128xf32>
    %cst_51 = arith.constant dense<0.000000e+00> : vector<324x128xf32>
    %55 = tpu.matmul %52, %54, %cst_51 {dimension_numbers = #tpu.dot_dimension_numbers<[1], [0], [0], [1], [0, 0, 1, 1], [], []>} : vector<324x4xf32>, vector<4x128xf32>, vector<324x128xf32> -> vector<324x128xf32>
    %56 = arith.addf %50, %55 : vector<324x128xf32>
    %c0_52 = arith.constant 0 : index
    %c0_53 = arith.constant 0 : index
    %57 = vector.load %arg4[%c0_52, %c0_53] : memref<1x128xf32, #tpu.memory_space<vmem>>, vector<1x128xf32>
    %58 = vector.broadcast %57 : vector<1x128xf32> to vector<324x128xf32>
    %59 = arith.addf %56, %58 : vector<324x128xf32>
    %c0_54 = arith.constant 0 : index
    %c0_55 = arith.constant 0 : index
    %60 = vector.load %arg5[%c0_54, %c0_55] : memref<1x128xf32, #tpu.memory_space<vmem>>, vector<1x128xf32>
    %c0_56 = arith.constant 0 : index
    %c0_57 = arith.constant 0 : index
    %61 = vector.load %arg6[%c0_56, %c0_57] : memref<1x128xf32, #tpu.memory_space<vmem>>, vector<1x128xf32>
    %62 = vector.broadcast %0 : vector<324x1xf32> to vector<324x128xf32>
    %63 = arith.mulf %59, %62 : vector<324x128xf32>
    %cst_58 = arith.constant dense<0.000000e+00> : vector<128xf32>
    %64 = vector.multi_reduction <add>, %63, %cst_58 [0] : vector<324x128xf32> to vector<128xf32>
    %65 = vector.shape_cast %64 : vector<128xf32> to vector<1x128xf32>
    %cst_59 = arith.constant 3.906250e-03 : f32
    %66 = vector.broadcast %cst_59 : f32 to vector<1x128xf32>
    %67 = arith.mulf %65, %66 : vector<1x128xf32>
    %cst_60 = arith.constant dense<0.000000e+00> : vector<1x128xf32>
    %68 = tpu.matmul %67, %1, %cst_60 {dimension_numbers = #tpu.dot_dimension_numbers<[1], [0], [0], [1], [0, 0, 1, 1], [], []>} : vector<1x128xf32>, vector<128x128xf32>, vector<1x128xf32> -> vector<1x128xf32>
    %69 = vector.broadcast %68 : vector<1x128xf32> to vector<324x128xf32>
    %70 = arith.subf %59, %69 : vector<324x128xf32>
    %71 = vector.broadcast %0 : vector<324x1xf32> to vector<324x128xf32>
    %72 = arith.mulf %70, %71 : vector<324x128xf32>
    %73 = arith.mulf %72, %72 : vector<324x128xf32>
    %cst_61 = arith.constant dense<0.000000e+00> : vector<128xf32>
    %74 = vector.multi_reduction <add>, %73, %cst_61 [0] : vector<324x128xf32> to vector<128xf32>
    %75 = vector.shape_cast %74 : vector<128xf32> to vector<1x128xf32>
    %cst_62 = arith.constant 3.906250e-03 : f32
    %76 = vector.broadcast %cst_62 : f32 to vector<1x128xf32>
    %77 = arith.mulf %75, %76 : vector<1x128xf32>
    %cst_63 = arith.constant dense<0.000000e+00> : vector<1x128xf32>
    %78 = tpu.matmul %77, %1, %cst_63 {dimension_numbers = #tpu.dot_dimension_numbers<[1], [0], [0], [1], [0, 0, 1, 1], [], []>} : vector<1x128xf32>, vector<128x128xf32>, vector<1x128xf32> -> vector<1x128xf32>
    %79 = vector.broadcast %68 : vector<1x128xf32> to vector<324x128xf32>
    %80 = arith.subf %59, %79 : vector<324x128xf32>
    %cst_64 = arith.constant 9.99999974E-6 : f32
    %81 = vector.broadcast %cst_64 : f32 to vector<1x128xf32>
    %82 = arith.addf %78, %81 : vector<1x128xf32>
    %83 = math.rsqrt %82 : vector<1x128xf32>
    %84 = vector.broadcast %83 : vector<1x128xf32> to vector<324x128xf32>
    %85 = arith.mulf %80, %84 : vector<324x128xf32>
    %86 = vector.broadcast %60 : vector<1x128xf32> to vector<324x128xf32>
    %87 = arith.mulf %85, %86 : vector<324x128xf32>
    %88 = vector.broadcast %61 : vector<1x128xf32> to vector<324x128xf32>
    %89 = arith.addf %87, %88 : vector<324x128xf32>
    %c0_65 = arith.constant 0 : index
    %c0_66 = arith.constant 0 : index
    %c0_67 = arith.constant 0 : index
    %90 = vector.load %arg1[%c0_65, %c0_66, %c0_67] : memref<1x1x256xf32, #tpu.memory_space<vmem>>, vector<1x1x128xf32>
    %91 = vector.shape_cast %90 : vector<1x1x128xf32> to vector<1x128xf32>
    %c0_68 = arith.constant 0 : index
    %c0_69 = arith.constant 0 : index
    %c128 = arith.constant 128 : index
    %92 = vector.load %arg1[%c0_68, %c0_69, %c128] : memref<1x1x256xf32, #tpu.memory_space<vmem>>, vector<1x1x128xf32>
    %93 = vector.shape_cast %92 : vector<1x1x128xf32> to vector<1x128xf32>
    %cst_70 = arith.constant 1.000000e+00 : f32
    %94 = vector.broadcast %cst_70 : f32 to vector<1x128xf32>
    %95 = arith.addf %91, %94 : vector<1x128xf32>
    %96 = vector.broadcast %95 : vector<1x128xf32> to vector<324x128xf32>
    %97 = arith.mulf %89, %96 : vector<324x128xf32>
    %98 = vector.broadcast %93 : vector<1x128xf32> to vector<324x128xf32>
    %99 = arith.addf %97, %98 : vector<324x128xf32>
    %100 = arith.negf %99 : vector<324x128xf32>
    %101 = math.exp %100 : vector<324x128xf32>
    %cst_71 = arith.constant 1.000000e+00 : f32
    %102 = vector.broadcast %cst_71 : f32 to vector<324x128xf32>
    %103 = arith.addf %102, %101 : vector<324x128xf32>
    %104 = arith.divf %102, %103 : vector<324x128xf32>
    %105 = arith.mulf %99, %104 : vector<324x128xf32>
    %106 = vector.broadcast %0 : vector<324x1xf32> to vector<324x128xf32>
    %107 = arith.mulf %105, %106 : vector<324x128xf32>
    %cst_72 = arith.constant 0.000000e+00 : f32
    %108 = vector.broadcast %cst_72 : f32 to vector<19x128xf32>
    %c0_73 = arith.constant 0 : index
    %c0_74 = arith.constant 0 : index
    %109 = vector.load %arg16[%c0_73, %c0_74] : memref<362x128xf32, #tpu.memory_space<vmem>>, vector<19x128xf32>
    tpu.vector_store %arg16[%c0_73, %c0_74], %108 {strides = array<i32>} : memref<362x128xf32, #tpu.memory_space<vmem>>, vector<19x128xf32>,
    %cst_75 = arith.constant 0.000000e+00 : f32
    %110 = vector.broadcast %cst_75 : f32 to vector<19x128xf32>
    %c343 = arith.constant 343 : index
    %c0_76 = arith.constant 0 : index
    %111 = vector.load %arg16[%c343, %c0_76] : memref<362x128xf32, #tpu.memory_space<vmem>>, vector<19x128xf32>
    tpu.vector_store %arg16[%c343, %c0_76], %110 {strides = array<i32>} : memref<362x128xf32, #tpu.memory_space<vmem>>, vector<19x128xf32>,
    %c19_77 = arith.constant 19 : index
    %c0_78 = arith.constant 0 : index
    %112 = vector.load %arg16[%c19_77, %c0_78] : memref<362x128xf32, #tpu.memory_space<vmem>>, vector<324x128xf32>
    tpu.vector_store %arg16[%c19_77, %c0_78], %107 {strides = array<i32>} : memref<362x128xf32, #tpu.memory_space<vmem>>, vector<324x128xf32>,
    %cst_79 = arith.constant 0.000000e+00 : f32
    %113 = vector.broadcast %cst_79 : f32 to vector<324x128xf32>
    %c0_80 = arith.constant 0 : index
    %c0_81 = arith.constant 0 : index
    %114 = vector.load %arg16[%c0_80, %c0_81] : memref<362x128xf32, #tpu.memory_space<vmem>>, vector<324x128xf32>
    %c0_82 = arith.constant 0 : index
    %c0_83 = arith.constant 0 : index
    %c0_84 = arith.constant 0 : index
    %115 = vector.load %arg7[%c0_82, %c0_83, %c0_84] : memref<9x128x128xf32, #tpu.memory_space<vmem>>, vector<1x128x128xf32>
    %116 = vector.shape_cast %115 : vector<1x128x128xf32> to vector<128x128xf32>
    %cst_85 = arith.constant dense<0.000000e+00> : vector<324x128xf32>
    %117 = tpu.matmul %114, %116, %cst_85 {dimension_numbers = #tpu.dot_dimension_numbers<[1], [0], [0], [1], [0, 0, 1, 1], [], []>} : vector<324x128xf32>, vector<128x128xf32>, vector<324x128xf32> -> vector<324x128xf32>
    %118 = arith.addf %113, %117 : vector<324x128xf32>
    %c1_86 = arith.constant 1 : index
    %c0_87 = arith.constant 0 : index
    %119 = vector.load %arg16[%c1_86, %c0_87] : memref<362x128xf32, #tpu.memory_space<vmem>>, vector<324x128xf32>
    %c1_88 = arith.constant 1 : index
    %c0_89 = arith.constant 0 : index
    %c0_90 = arith.constant 0 : index
    %120 = vector.load %arg7[%c1_88, %c0_89, %c0_90] : memref<9x128x128xf32, #tpu.memory_space<vmem>>, vector<1x128x128xf32>
    %121 = vector.shape_cast %120 : vector<1x128x128xf32> to vector<128x128xf32>
    %cst_91 = arith.constant dense<0.000000e+00> : vector<324x128xf32>
    %122 = tpu.matmul %119, %121, %cst_91 {dimension_numbers = #tpu.dot_dimension_numbers<[1], [0], [0], [1], [0, 0, 1, 1], [], []>} : vector<324x128xf32>, vector<128x128xf32>, vector<324x128xf32> -> vector<324x128xf32>
    %123 = arith.addf %118, %122 : vector<324x128xf32>
    %c2_92 = arith.constant 2 : index
    %c0_93 = arith.constant 0 : index
    %124 = vector.load %arg16[%c2_92, %c0_93] : memref<362x128xf32, #tpu.memory_space<vmem>>, vector<324x128xf32>
    %c2_94 = arith.constant 2 : index
    %c0_95 = arith.constant 0 : index
    %c0_96 = arith.constant 0 : index
    %125 = vector.load %arg7[%c2_94, %c0_95, %c0_96] : memref<9x128x128xf32, #tpu.memory_space<vmem>>, vector<1x128x128xf32>
    %126 = vector.shape_cast %125 : vector<1x128x128xf32> to vector<128x128xf32>
    %cst_97 = arith.constant dense<0.000000e+00> : vector<324x128xf32>
    %127 = tpu.matmul %124, %126, %cst_97 {dimension_numbers = #tpu.dot_dimension_numbers<[1], [0], [0], [1], [0, 0, 1, 1], [], []>} : vector<324x128xf32>, vector<128x128xf32>, vector<324x128xf32> -> vector<324x128xf32>
    %128 = arith.addf %123, %127 : vector<324x128xf32>
    %c18_98 = arith.constant 18 : index
    %c0_99 = arith.constant 0 : index
    %129 = vector.load %arg16[%c18_98, %c0_99] : memref<362x128xf32, #tpu.memory_space<vmem>>, vector<324x128xf32>
    %c3_100 = arith.constant 3 : index
    %c0_101 = arith.constant 0 : index
    %c0_102 = arith.constant 0 : index
    %130 = vector.load %arg7[%c3_100, %c0_101, %c0_102] : memref<9x128x128xf32, #tpu.memory_space<vmem>>, vector<1x128x128xf32>
    %131 = vector.shape_cast %130 : vector<1x128x128xf32> to vector<128x128xf32>
    %cst_103 = arith.constant dense<0.000000e+00> : vector<324x128xf32>
    %132 = tpu.matmul %129, %131, %cst_103 {dimension_numbers = #tpu.dot_dimension_numbers<[1], [0], [0], [1], [0, 0, 1, 1], [], []>} : vector<324x128xf32>, vector<128x128xf32>, vector<324x128xf32> -> vector<324x128xf32>
    %133 = arith.addf %128, %132 : vector<324x128xf32>
    %c19_104 = arith.constant 19 : index
    %c0_105 = arith.constant 0 : index
    %134 = vector.load %arg16[%c19_104, %c0_105] : memref<362x128xf32, #tpu.memory_space<vmem>>, vector<324x128xf32>
    %c4_106 = arith.constant 4 : index
    %c0_107 = arith.constant 0 : index
    %c0_108 = arith.constant 0 : index
    %135 = vector.load %arg7[%c4_106, %c0_107, %c0_108] : memref<9x128x128xf32, #tpu.memory_space<vmem>>, vector<1x128x128xf32>
    %136 = vector.shape_cast %135 : vector<1x128x128xf32> to vector<128x128xf32>
    %cst_109 = arith.constant dense<0.000000e+00> : vector<324x128xf32>
    %137 = tpu.matmul %134, %136, %cst_109 {dimension_numbers = #tpu.dot_dimension_numbers<[1], [0], [0], [1], [0, 0, 1, 1], [], []>} : vector<324x128xf32>, vector<128x128xf32>, vector<324x128xf32> -> vector<324x128xf32>
    %138 = arith.addf %133, %137 : vector<324x128xf32>
    %c20_110 = arith.constant 20 : index
    %c0_111 = arith.constant 0 : index
    %139 = vector.load %arg16[%c20_110, %c0_111] : memref<362x128xf32, #tpu.memory_space<vmem>>, vector<324x128xf32>
    %c5_112 = arith.constant 5 : index
    %c0_113 = arith.constant 0 : index
    %c0_114 = arith.constant 0 : index
    %140 = vector.load %arg7[%c5_112, %c0_113, %c0_114] : memref<9x128x128xf32, #tpu.memory_space<vmem>>, vector<1x128x128xf32>
    %141 = vector.shape_cast %140 : vector<1x128x128xf32> to vector<128x128xf32>
    %cst_115 = arith.constant dense<0.000000e+00> : vector<324x128xf32>
    %142 = tpu.matmul %139, %141, %cst_115 {dimension_numbers = #tpu.dot_dimension_numbers<[1], [0], [0], [1], [0, 0, 1, 1], [], []>} : vector<324x128xf32>, vector<128x128xf32>, vector<324x128xf32> -> vector<324x128xf32>
    %143 = arith.addf %138, %142 : vector<324x128xf32>
    %c36_116 = arith.constant 36 : index
    %c0_117 = arith.constant 0 : index
    %144 = vector.load %arg16[%c36_116, %c0_117] : memref<362x128xf32, #tpu.memory_space<vmem>>, vector<324x128xf32>
    %c6_118 = arith.constant 6 : index
    %c0_119 = arith.constant 0 : index
    %c0_120 = arith.constant 0 : index
    %145 = vector.load %arg7[%c6_118, %c0_119, %c0_120] : memref<9x128x128xf32, #tpu.memory_space<vmem>>, vector<1x128x128xf32>
    %146 = vector.shape_cast %145 : vector<1x128x128xf32> to vector<128x128xf32>
    %cst_121 = arith.constant dense<0.000000e+00> : vector<324x128xf32>
    %147 = tpu.matmul %144, %146, %cst_121 {dimension_numbers = #tpu.dot_dimension_numbers<[1], [0], [0], [1], [0, 0, 1, 1], [], []>} : vector<324x128xf32>, vector<128x128xf32>, vector<324x128xf32> -> vector<324x128xf32>
    %148 = arith.addf %143, %147 : vector<324x128xf32>
    %c37_122 = arith.constant 37 : index
    %c0_123 = arith.constant 0 : index
    %149 = vector.load %arg16[%c37_122, %c0_123] : memref<362x128xf32, #tpu.memory_space<vmem>>, vector<324x128xf32>
    %c7_124 = arith.constant 7 : index
    %c0_125 = arith.constant 0 : index
    %c0_126 = arith.constant 0 : index
    %150 = vector.load %arg7[%c7_124, %c0_125, %c0_126] : memref<9x128x128xf32, #tpu.memory_space<vmem>>, vector<1x128x128xf32>
    %151 = vector.shape_cast %150 : vector<1x128x128xf32> to vector<128x128xf32>
    %cst_127 = arith.constant dense<0.000000e+00> : vector<324x128xf32>
    %152 = tpu.matmul %149, %151, %cst_127 {dimension_numbers = #tpu.dot_dimension_numbers<[1], [0], [0], [1], [0, 0, 1, 1], [], []>} : vector<324x128xf32>, vector<128x128xf32>, vector<324x128xf32> -> vector<324x128xf32>
    %153 = arith.addf %148, %152 : vector<324x128xf32>
    %c38_128 = arith.constant 38 : index
    %c0_129 = arith.constant 0 : index
    %154 = vector.load %arg16[%c38_128, %c0_129] : memref<362x128xf32, #tpu.memory_space<vmem>>, vector<324x128xf32>
    %c8_130 = arith.constant 8 : index
    %c0_131 = arith.constant 0 : index
    %c0_132 = arith.constant 0 : index
    %155 = vector.load %arg7[%c8_130, %c0_131, %c0_132] : memref<9x128x128xf32, #tpu.memory_space<vmem>>, vector<1x128x128xf32>
    %156 = vector.shape_cast %155 : vector<1x128x128xf32> to vector<128x128xf32>
    %cst_133 = arith.constant dense<0.000000e+00> : vector<324x128xf32>
    %157 = tpu.matmul %154, %156, %cst_133 {dimension_numbers = #tpu.dot_dimension_numbers<[1], [0], [0], [1], [0, 0, 1, 1], [], []>} : vector<324x128xf32>, vector<128x128xf32>, vector<324x128xf32> -> vector<324x128xf32>
    %158 = arith.addf %153, %157 : vector<324x128xf32>
    %c0_134 = arith.constant 0 : index
    %c0_135 = arith.constant 0 : index
    %159 = vector.load %arg8[%c0_134, %c0_135] : memref<1x128xf32, #tpu.memory_space<vmem>>, vector<1x128xf32>
    %160 = vector.broadcast %159 : vector<1x128xf32> to vector<324x128xf32>
    %161 = arith.addf %158, %160 : vector<324x128xf32>
    %c0_136 = arith.constant 0 : index
    %c0_137 = arith.constant 0 : index
    %162 = vector.load %arg9[%c0_136, %c0_137] : memref<1x128xf32, #tpu.memory_space<vmem>>, vector<1x128xf32>
    %c0_138 = arith.constant 0 : index
    %c0_139 = arith.constant 0 : index
    %163 = vector.load %arg10[%c0_138, %c0_139] : memref<1x128xf32, #tpu.memory_space<vmem>>, vector<1x128xf32>
    %164 = vector.broadcast %0 : vector<324x1xf32> to vector<324x128xf32>
    %165 = arith.mulf %161, %164 : vector<324x128xf32>
    %cst_140 = arith.constant dense<0.000000e+00> : vector<128xf32>
    %166 = vector.multi_reduction <add>, %165, %cst_140 [0] : vector<324x128xf32> to vector<128xf32>
    %167 = vector.shape_cast %166 : vector<128xf32> to vector<1x128xf32>
    %cst_141 = arith.constant 3.906250e-03 : f32
    %168 = vector.broadcast %cst_141 : f32 to vector<1x128xf32>
    %169 = arith.mulf %167, %168 : vector<1x128xf32>
    %cst_142 = arith.constant dense<0.000000e+00> : vector<1x128xf32>
    %170 = tpu.matmul %169, %1, %cst_142 {dimension_numbers = #tpu.dot_dimension_numbers<[1], [0], [0], [1], [0, 0, 1, 1], [], []>} : vector<1x128xf32>, vector<128x128xf32>, vector<1x128xf32> -> vector<1x128xf32>
    %171 = vector.broadcast %170 : vector<1x128xf32> to vector<324x128xf32>
    %172 = arith.subf %161, %171 : vector<324x128xf32>
    %173 = vector.broadcast %0 : vector<324x1xf32> to vector<324x128xf32>
    %174 = arith.mulf %172, %173 : vector<324x128xf32>
    %175 = arith.mulf %174, %174 : vector<324x128xf32>
    %cst_143 = arith.constant dense<0.000000e+00> : vector<128xf32>
    %176 = vector.multi_reduction <add>, %175, %cst_143 [0] : vector<324x128xf32> to vector<128xf32>
    %177 = vector.shape_cast %176 : vector<128xf32> to vector<1x128xf32>
    %cst_144 = arith.constant 3.906250e-03 : f32
    %178 = vector.broadcast %cst_144 : f32 to vector<1x128xf32>
    %179 = arith.mulf %177, %178 : vector<1x128xf32>
    %cst_145 = arith.constant dense<0.000000e+00> : vector<1x128xf32>
    %180 = tpu.matmul %179, %1, %cst_145 {dimension_numbers = #tpu.dot_dimension_numbers<[1], [0], [0], [1], [0, 0, 1, 1], [], []>} : vector<1x128xf32>, vector<128x128xf32>, vector<1x128xf32> -> vector<1x128xf32>
    %181 = vector.broadcast %170 : vector<1x128xf32> to vector<324x128xf32>
    %182 = arith.subf %161, %181 : vector<324x128xf32>
    %cst_146 = arith.constant 9.99999974E-6 : f32
    %183 = vector.broadcast %cst_146 : f32 to vector<1x128xf32>
    %184 = arith.addf %180, %183 : vector<1x128xf32>
    %185 = math.rsqrt %184 : vector<1x128xf32>
    %186 = vector.broadcast %185 : vector<1x128xf32> to vector<324x128xf32>
    %187 = arith.mulf %182, %186 : vector<324x128xf32>
    %188 = vector.broadcast %162 : vector<1x128xf32> to vector<324x128xf32>
    %189 = arith.mulf %187, %188 : vector<324x128xf32>
    %190 = vector.broadcast %163 : vector<1x128xf32> to vector<324x128xf32>
    %191 = arith.addf %189, %190 : vector<324x128xf32>
    %192 = arith.negf %191 : vector<324x128xf32>
    %193 = math.exp %192 : vector<324x128xf32>
    %cst_147 = arith.constant 1.000000e+00 : f32
    %194 = vector.broadcast %cst_147 : f32 to vector<324x128xf32>
    %195 = arith.addf %194, %193 : vector<324x128xf32>
    %196 = arith.divf %194, %195 : vector<324x128xf32>
    %197 = arith.mulf %191, %196 : vector<324x128xf32>
    %c0_148 = arith.constant 0 : index
    %c19_149 = arith.constant 19 : index
    %c0_150 = arith.constant 0 : index
    %198 = vector.load %arg2[%c0_148, %c19_149, %c0_150] : memref<1x362x4xf32, #tpu.memory_space<vmem>>, vector<1x324x4xf32>
    %199 = vector.shape_cast %198 : vector<1x324x4xf32> to vector<324x4xf32>
    %c0_151 = arith.constant 0 : index
    %c0_152 = arith.constant 0 : index
    %200 = vector.load %arg11[%c0_151, %c0_152] : memref<4x128xf32, #tpu.memory_space<vmem>>, vector<4x128xf32>
    %cst_153 = arith.constant dense<0.000000e+00> : vector<324x128xf32>
    %201 = tpu.matmul %199, %200, %cst_153 {dimension_numbers = #tpu.dot_dimension_numbers<[1], [0], [0], [1], [0, 0, 1, 1], [], []>} : vector<324x4xf32>, vector<4x128xf32>, vector<324x128xf32> -> vector<324x128xf32>
    %c0_154 = arith.constant 0 : index
    %c0_155 = arith.constant 0 : index
    %202 = vector.load %arg12[%c0_154, %c0_155] : memref<1x128xf32, #tpu.memory_space<vmem>>, vector<1x128xf32>
    %203 = vector.broadcast %202 : vector<1x128xf32> to vector<324x128xf32>
    %204 = arith.addf %201, %203 : vector<324x128xf32>
    %205 = arith.addf %197, %204 : vector<324x128xf32>
    %c0_156 = arith.constant 0 : index
    %c0_157 = arith.constant 0 : index
    %c0_158 = arith.constant 0 : index
    %206 = vector.load %arg15[%c0_156, %c0_157, %c0_158] : memref<1x324x128xf32, #tpu.memory_space<vmem>>, vector<1x324x128xf32>
    %207 = vector.shape_cast %206 : vector<1x324x128xf32> to vector<324x128xf32>
    %208 = vector.shape_cast %205 : vector<324x128xf32> to vector<1x324x128xf32>
    tpu.vector_store %arg15[%c0_156, %c0_157, %c0_158], %208 {strides = array<i32>} : memref<1x324x128xf32, #tpu.memory_space<vmem>>, vector<1x324x128xf32>,
    return
  }
  func.func @transform_0(%arg0: i32) -> (i32, i32, i32) {
    %c0_i32 = arith.constant 0 : i32
    %c0_i32_0 = arith.constant 0 : i32
    %c0_i32_1 = arith.constant 0 : i32
    return %arg0, %c0_i32, %c0_i32_0 : i32, i32, i32
  }
  func.func @transform_1(%arg0: i32) -> (i32, i32, i32) {
    %c0_i32 = arith.constant 0 : i32
    %c0_i32_0 = arith.constant 0 : i32
    %c0_i32_1 = arith.constant 0 : i32
    return %arg0, %c0_i32, %c0_i32_0 : i32, i32, i32
  }
  func.func @transform_2(%arg0: i32) -> (i32, i32, i32) {
    %c0_i32 = arith.constant 0 : i32
    %c0_i32_0 = arith.constant 0 : i32
    %c0_i32_1 = arith.constant 0 : i32
    %c0_i32_2 = arith.constant 0 : i32
    return %c0_i32, %c0_i32_0, %c0_i32_1 : i32, i32, i32
  }
  func.func @transform_3(%arg0: i32) -> (i32, i32) {
    %c0_i32 = arith.constant 0 : i32
    %c0_i32_0 = arith.constant 0 : i32
    %c0_i32_1 = arith.constant 0 : i32
    return %c0_i32, %c0_i32_0 : i32, i32
  }
  func.func @transform_4(%arg0: i32) -> (i32, i32) {
    %c0_i32 = arith.constant 0 : i32
    %c0_i32_0 = arith.constant 0 : i32
    %c0_i32_1 = arith.constant 0 : i32
    return %c0_i32, %c0_i32_0 : i32, i32
  }
  func.func @transform_5(%arg0: i32) -> (i32, i32) {
    %c0_i32 = arith.constant 0 : i32
    %c0_i32_0 = arith.constant 0 : i32
    %c0_i32_1 = arith.constant 0 : i32
    return %c0_i32, %c0_i32_0 : i32, i32
  }
  func.func @transform_6(%arg0: i32) -> (i32, i32, i32) {
    %c0_i32 = arith.constant 0 : i32
    %c0_i32_0 = arith.constant 0 : i32
    %c0_i32_1 = arith.constant 0 : i32
    %c0_i32_2 = arith.constant 0 : i32
    return %c0_i32, %c0_i32_0, %c0_i32_1 : i32, i32, i32
  }
  func.func @transform_7(%arg0: i32) -> (i32, i32) {
    %c0_i32 = arith.constant 0 : i32
    %c0_i32_0 = arith.constant 0 : i32
    %c0_i32_1 = arith.constant 0 : i32
    return %c0_i32, %c0_i32_0 : i32, i32
  }
  func.func @transform_8(%arg0: i32) -> (i32, i32) {
    %c0_i32 = arith.constant 0 : i32
    %c0_i32_0 = arith.constant 0 : i32
    %c0_i32_1 = arith.constant 0 : i32
    return %c0_i32, %c0_i32_0 : i32, i32
  }
  func.func @transform_9(%arg0: i32) -> (i32, i32) {
    %c0_i32 = arith.constant 0 : i32
    %c0_i32_0 = arith.constant 0 : i32
    %c0_i32_1 = arith.constant 0 : i32
    return %c0_i32, %c0_i32_0 : i32, i32
  }
  func.func @transform_10(%arg0: i32) -> (i32, i32) {
    %c0_i32 = arith.constant 0 : i32
    %c0_i32_0 = arith.constant 0 : i32
    %c0_i32_1 = arith.constant 0 : i32
    return %c0_i32, %c0_i32_0 : i32, i32
  }
  func.func @transform_11(%arg0: i32) -> (i32, i32) {
    %c0_i32 = arith.constant 0 : i32
    %c0_i32_0 = arith.constant 0 : i32
    %c0_i32_1 = arith.constant 0 : i32
    return %c0_i32, %c0_i32_0 : i32, i32
  }
  func.func @transform_12(%arg0: i32) -> (i32, i32) {
    %c0_i32 = arith.constant 0 : i32
    %c0_i32_0 = arith.constant 0 : i32
    %c0_i32_1 = arith.constant 0 : i32
    return %c0_i32, %c0_i32_0 : i32, i32
  }
  func.func @transform_13(%arg0: i32) -> (i32, i32) {
    %c0_i32 = arith.constant 0 : i32
    %c0_i32_0 = arith.constant 0 : i32
    %c0_i32_1 = arith.constant 0 : i32
    return %c0_i32, %c0_i32_0 : i32, i32
  }
  func.func @transform_14(%arg0: i32) -> (i32, i32, i32) {
    %c0_i32 = arith.constant 0 : i32
    %c0_i32_0 = arith.constant 0 : i32
    %c0_i32_1 = arith.constant 0 : i32
    return %arg0, %c0_i32, %c0_i32_0 : i32, i32, i32
  }
}

</mosaic_0001>

<llo_original>
// kernel: tpu_custom_call.1
$region0: #{tpu_custom_call.1}
  #allocation0 [shape = 'u32[]', space=smem, size = 0x4, offset = 0x4, fixed_abs, tag = 'smem constant byte address 0x4 - core index']
  #allocation1 [shape = 'u32[72,128]{1,0:T(1,128)}', space=vmem, size = 0x9000, scoped, tag = 'internal scratch']
  #allocation2 [shape = 'f32[362,128]{1,0:T(8,128)}', space=vmem, size = 0x2e000, scoped, tag = 'scratch operand']
  %s0 = inlined_call_operand.vmem [shape: f32[2,1,256], index: 0, kind: input, shape index: {}]
  %s1 = inlined_call_operand.vmem [shape: f32[2,362,4], index: 1, kind: input, shape index: {}]
  %s2 = inlined_call_operand.vmem [shape: f32[9,4,128], index: 2, kind: input, shape index: {}]
  %s3 = inlined_call_operand.vmem [shape: f32[1,128], index: 3, kind: input, shape index: {}]
  %s4 = inlined_call_operand.vmem [shape: f32[1,128], index: 4, kind: input, shape index: {}]
  %s5 = inlined_call_operand.vmem [shape: f32[1,128], index: 5, kind: input, shape index: {}]
  %s6 = inlined_call_operand.hbm [shape: f32[9,128,128], index: 6, kind: input, shape index: {}]
  %s7 = inlined_call_operand.vmem [shape: f32[1,128], index: 7, kind: input, shape index: {}]
  %s8 = inlined_call_operand.vmem [shape: f32[1,128], index: 8, kind: input, shape index: {}]
  %s9 = inlined_call_operand.vmem [shape: f32[1,128], index: 9, kind: input, shape index: {}]
  %s10 = inlined_call_operand.vmem [shape: f32[4,128], index: 10, kind: input, shape index: {}]
  %s11 = inlined_call_operand.vmem [shape: f32[1,128], index: 11, kind: input, shape index: {}]
  %s12 = inlined_call_operand.vmem [shape: f32[128,128], index: 12, kind: input, shape index: {}]
  %s13 = inlined_call_operand.vmem [shape: f32[324,1], index: 13, kind: input, shape index: {}]
  %s14 = inlined_call_operand.vmem [shape: f32[2,324,128], index: 14, kind: output, shape index: {}]
  %s15 = sld [smem:[#allocation0]]
  $region93: #{tpu_custom_call.1} parent=0
    _
  %s17 = ssub.s32 1, %s15
  %s18 = scalar_select 0, %s17, %s15
  $region1: #{tpu_custom_call.1} parent=0
    #allocation3 [shape = 'u8[589824]{0}', space=vmem, size = 0x90000, scoped, tag = 'input window, operand 6, single buffered']
    #allocation4 [shape = 's32[2]{0}', space=sflag, size = 0x8, scoped, tag = 'scoped memory for tpu_custom_call.1']
    %19 = vsyncpa [#allocation4], 0
    loop: start=0, step=1, limit=4
    $region2: #{tpu_custom_call.1} parent=1 // loop_pre_header
      _
    $region3: #{tpu_custom_call.1} parent=1 // loop_header
      %s21 = sphi 0, %s25
      %p22 = scmp.ge.s32.totalorder %s21, 4
      %s31 = sphi 0, %s33
      %s34 = sphi 0, %s31
      %s35 = sphi 0, %s34
      %s51 = sphi 0, %s35
      %s57 = sphi 0, %s59
      %s60 = sphi 0, %s57
      %s61 = sphi 0, %s60
      %s77 = sphi 0, %s61
      %s81 = sphi 0, %s81
      %s83 = sphi 0, %s81
      %s84 = sphi 0, %s83
      %s98 = sphi 0, %s84
      %s102 = sphi 0, %s102
      %s104 = sphi 0, %s102
      %s105 = sphi 0, %s104
      %s119 = sphi 0, %s105
      %s123 = sphi 0, %s123
      %s125 = sphi 0, %s123
      %s126 = sphi 0, %s125
      %s140 = sphi 0, %s126
      %s144 = sphi 0, %s144
      %s146 = sphi 0, %s144
      %s147 = sphi 0, %s146
      %s161 = sphi 0, %s147
      %s165 = sphi 0, %s165
      %s167 = sphi 0, %s165
      %s168 = sphi 0, %s167
      %s182 = sphi 0, %s168
      %s186 = sphi 0, %s186
      %s188 = sphi 0, %s186
      %s189 = sphi 0, %s188
      %s203 = sphi 0, %s189
      %s207 = sphi 0, %s207
      %s209 = sphi 0, %s207
      %s210 = sphi 0, %s209
      %s224 = sphi 0, %s210
      %s228 = sphi 0, %s228
      %s230 = sphi 0, %s228
      %s231 = sphi 0, %s230
      %s245 = sphi 0, %s231
      %s249 = sphi 0, %s249
      %s251 = sphi 0, %s249
      %s252 = sphi 0, %s251
      %s266 = sphi 0, %s252
      %s270 = sphi 0, %s270
      %s272 = sphi 0, %s270
      %s273 = sphi 0, %s272
      %s287 = sphi 0, %s273
      %s291 = sphi 0, %s291
      %s293 = sphi 0, %s291
      %s294 = sphi 0, %s293
      %s308 = sphi 0, %s294
      %s312 = sphi 0, %s312
      %s314 = sphi 0, %s312
      %s315 = sphi 0, %s314
      %s329 = sphi 0, %s315
      %s335 = sphi 0, %s337
      %s338 = sphi 0, %s335
      %s339 = sphi 0, %s338
      %s355 = sphi 0, %s339
    $region4: #{tpu_custom_call.1} parent=1 // loop_header_branch
      %24 = sbr.rel (%p22) target = $region8
    $region5: #{tpu_custom_call.1} parent=1 // loop_body
      %s26 = ssub.s32 %s21, 1
      %s27 = ssub.s32 %s21, 2
      %s28 = sadd.s32 %s21, 1
      %s29 = ssub.s32 %s21, %s28
      %p30 = scmp.eq.s32.totalorder %s29, 0
      %s32 = sadd.s32 %s31, 1
      %s33 = scalar_select %p30, %s31, %s32
      %p36 = pneg %p30
      %p37 = scmp.eq.s32.totalorder %s21, 1
      %p38 = por %p36, %p37
      %p39 = scmp.ne.s32.totalorder %s31, %s34
      %p40 = scmp.eq.s32.totalorder %s21, 0
      %p41 = por %p39, %p40
      %p42 = scmp.ne.s32.totalorder %s31, %s34
      %p43 = scmp.eq.s32.totalorder %s26, 1
      %p44 = por %p42, %p43
      %p45 = scmp.ne.s32.totalorder %s34, %s35
      %p46 = scmp.eq.s32.totalorder %s26, 0
      %p47 = por %p45, %p46
      %p48 = scmp.ne.s32.totalorder %s34, %s35
      %p49 = scmp.eq.s32.totalorder %s27, 1
      %p50 = por %p48, %p49
      %p52 = scmp.ne.s32.totalorder %s35, %s51
      %p53 = scmp.eq.s32.totalorder %s27, 0
      %p54 = por %p52, %p53
      %s55 = ssub.s32 %s21, %s28
      %p56 = scmp.eq.s32.totalorder %s55, 0
      %s58 = sadd.s32 %s57, 1
      %s59 = scalar_select %p56, %s57, %s58
      %p62 = pneg %p56
      %p63 = scmp.eq.s32.totalorder %s21, 1
      %p64 = por %p62, %p63
      %p65 = scmp.ne.s32.totalorder %s57, %s60
      %p66 = scmp.eq.s32.totalorder %s21, 0
      %p67 = por %p65, %p66
      %p68 = scmp.ne.s32.totalorder %s57, %s60
      %p69 = scmp.eq.s32.totalorder %s26, 1
      %p70 = por %p68, %p69
      %p71 = scmp.ne.s32.totalorder %s60, %s61
      %p72 = scmp.eq.s32.totalorder %s26, 0
      %p73 = por %p71, %p72
      %p74 = scmp.ne.s32.totalorder %s60, %s61
      %p75 = scmp.eq.s32.totalorder %s27, 1
      %p76 = por %p74, %p75
      %p78 = scmp.ne.s32.totalorder %s61, %s77
      %p79 = scmp.eq.s32.totalorder %s27, 0
      %p80 = por %p78, %p79
      %s82 = sadd.s32 %s81, 1
      %p85 = scmp.eq.s32.totalorder %s21, 1
      %p86 = scmp.ne.s32.totalorder %s81, %s83
      %p87 = scmp.eq.s32.totalorder %s21, 0
      %p88 = por %p86, %p87
      %p89 = scmp.ne.s32.totalorder %s81, %s83
      %p90 = scmp.eq.s32.totalorder %s26, 1
      %p91 = por %p89, %p90
      %p92 = scmp.ne.s32.totalorder %s83, %s84
      %p93 = scmp.eq.s32.totalorder %s26, 0
      %p94 = por %p92, %p93
      %p95 = scmp.ne.s32.totalorder %s83, %s84
      %p96 = scmp.eq.s32.totalorder %s27, 1
      %p97 = por %p95, %p96
      %p99 = scmp.ne.s32.totalorder %s84, %s98
      %p100 = scmp.eq.s32.totalorder %s27, 0
      %p101 = por %p99, %p100
      %s103 = sadd.s32 %s102, 1
      %p106 = scmp.eq.s32.totalorder %s21, 1
      %p107 = scmp.ne.s32.totalorder %s102, %s104
      %p108 = scmp.eq.s32.totalorder %s21, 0
      %p109 = por %p107, %p108
      %p110 = scmp.ne.s32.totalorder %s102, %s104
      %p111 = scmp.eq.s32.totalorder %s26, 1
      %p112 = por %p110, %p111
      %p113 = scmp.ne.s32.totalorder %s104, %s105
      %p114 = scmp.eq.s32.totalorder %s26, 0
      %p115 = por %p113, %p114
      %p116 = scmp.ne.s32.totalorder %s104, %s105
      %p117 = scmp.eq.s32.totalorder %s27, 1
      %p118 = por %p116, %p117
      %p120 = scmp.ne.s32.totalorder %s105, %s119
      %p121 = scmp.eq.s32.totalorder %s27, 0
      %p122 = por %p120, %p121
      %s124 = sadd.s32 %s123, 1
      %p127 = scmp.eq.s32.totalorder %s21, 1
      %p128 = scmp.ne.s32.totalorder %s123, %s125
      %p129 = scmp.eq.s32.totalorder %s21, 0
      %p130 = por %p128, %p129
      %p131 = scmp.ne.s32.totalorder %s123, %s125
      %p132 = scmp.eq.s32.totalorder %s26, 1
      %p133 = por %p131, %p132
      %p134 = scmp.ne.s32.totalorder %s125, %s126
      %p135 = scmp.eq.s32.totalorder %s26, 0
      %p136 = por %p134, %p135
      %p137 = scmp.ne.s32.totalorder %s125, %s126
      %p138 = scmp.eq.s32.totalorder %s27, 1
      %p139 = por %p137, %p138
      %p141 = scmp.ne.s32.totalorder %s126, %s140
      %p142 = scmp.eq.s32.totalorder %s27, 0
      %p143 = por %p141, %p142
      %s145 = sadd.s32 %s144, 1
      %p148 = scmp.eq.s32.totalorder %s21, 1
      %p149 = scmp.ne.s32.totalorder %s144, %s146
      %p150 = scmp.eq.s32.totalorder %s21, 0
      %p151 = por %p149, %p150
      %p152 = scmp.ne.s32.totalorder %s144, %s146
      %p153 = scmp.eq.s32.totalorder %s26, 1
      %p154 = por %p152, %p153
      %p155 = scmp.ne.s32.totalorder %s146, %s147
      %p156 = scmp.eq.s32.totalorder %s26, 0
      %p157 = por %p155, %p156
      %p158 = scmp.ne.s32.totalorder %s146, %s147
      %p159 = scmp.eq.s32.totalorder %s27, 1
      %p160 = por %p158, %p159
      %p162 = scmp.ne.s32.totalorder %s147, %s161
      %p163 = scmp.eq.s32.totalorder %s27, 0
      %p164 = por %p162, %p163
      %s166 = sadd.s32 %s165, 1
      %p169 = scmp.eq.s32.totalorder %s21, 1
      %p170 = scmp.ne.s32.totalorder %s165, %s167
      %p171 = scmp.eq.s32.totalorder %s21, 0
      %p172 = por %p170, %p171
      %p173 = scmp.ne.s32.totalorder %s165, %s167
      %p174 = scmp.eq.s32.totalorder %s26, 1
      %p175 = por %p173, %p174
      %p176 = scmp.ne.s32.totalorder %s167, %s168
      %p177 = scmp.eq.s32.totalorder %s26, 0
      %p178 = por %p176, %p177
      %p179 = scmp.ne.s32.totalorder %s167, %s168
      %p180 = scmp.eq.s32.totalorder %s27, 1
      %p181 = por %p179, %p180
      %p183 = scmp.ne.s32.totalorder %s168, %s182
      %p184 = scmp.eq.s32.totalorder %s27, 0
      %p185 = por %p183, %p184
      %s187 = sadd.s32 %s186, 1
      %p190 = scmp.eq.s32.totalorder %s21, 1
      %p191 = scmp.ne.s32.totalorder %s186, %s188
      %p192 = scmp.eq.s32.totalorder %s21, 0
      %p193 = por %p191, %p192
      %p194 = scmp.ne.s32.totalorder %s186, %s188
      %p195 = scmp.eq.s32.totalorder %s26, 1
      %p196 = por %p194, %p195
      %p197 = scmp.ne.s32.totalorder %s188, %s189
      %p198 = scmp.eq.s32.totalorder %s26, 0
      %p199 = por %p197, %p198
      %p200 = scmp.ne.s32.totalorder %s188, %s189
      %p201 = scmp.eq.s32.totalorder %s27, 1
      %p202 = por %p200, %p201
      %p204 = scmp.ne.s32.totalorder %s189, %s203
      %p205 = scmp.eq.s32.totalorder %s27, 0
      %p206 = por %p204, %p205
      %s208 = sadd.s32 %s207, 1
      %p211 = scmp.eq.s32.totalorder %s21, 1
      %p212 = scmp.ne.s32.totalorder %s207, %s209
      %p213 = scmp.eq.s32.totalorder %s21, 0
      %p214 = por %p212, %p213
      %p215 = scmp.ne.s32.totalorder %s207, %s209
      %p216 = scmp.eq.s32.totalorder %s26, 1
      %p217 = por %p215, %p216
      %p218 = scmp.ne.s32.totalorder %s209, %s210
      %p219 = scmp.eq.s32.totalorder %s26, 0
      %p220 = por %p218, %p219
      %p221 = scmp.ne.s32.totalorder %s209, %s210
      %p222 = scmp.eq.s32.totalorder %s27, 1
      %p223 = por %p221, %p222
      %p225 = scmp.ne.s32.totalorder %s210, %s224
      %p226 = scmp.eq.s32.totalorder %s27, 0
      %p227 = por %p225, %p226
      %s229 = sadd.s32 %s228, 1
      %p232 = scmp.eq.s32.totalorder %s21, 1
      %p233 = scmp.ne.s32.totalorder %s228, %s230
      %p234 = scmp.eq.s32.totalorder %s21, 0
      %p235 = por %p233, %p234
      %p236 = scmp.ne.s32.totalorder %s228, %s230
      %p237 = scmp.eq.s32.totalorder %s26, 1
      %p238 = por %p236, %p237
      %p239 = scmp.ne.s32.totalorder %s230, %s231
      %p240 = scmp.eq.s32.totalorder %s26, 0
      %p241 = por %p239, %p240
      %p242 = scmp.ne.s32.totalorder %s230, %s231
      %p243 = scmp.eq.s32.totalorder %s27, 1
      %p244 = por %p242, %p243
      %p246 = scmp.ne.s32.totalorder %s231, %s245
      %p247 = scmp.eq.s32.totalorder %s27, 0
      %p248 = por %p246, %p247
      %s250 = sadd.s32 %s249, 1
      %p253 = scmp.eq.s32.totalorder %s21, 1
      %p254 = scmp.ne.s32.totalorder %s249, %s251
      %p255 = scmp.eq.s32.totalorder %s21, 0
      %p256 = por %p254, %p255
      %p257 = scmp.ne.s32.totalorder %s249, %s251
      %p258 = scmp.eq.s32.totalorder %s26, 1
      %p259 = por %p257, %p258
      %p260 = scmp.ne.s32.totalorder %s251, %s252
      %p261 = scmp.eq.s32.totalorder %s26, 0
      %p262 = por %p260, %p261
      %p263 = scmp.ne.s32.totalorder %s251, %s252
      %p264 = scmp.eq.s32.totalorder %s27, 1
      %p265 = por %p263, %p264
      %p267 = scmp.ne.s32.totalorder %s252, %s266
      %p268 = scmp.eq.s32.totalorder %s27, 0
      %p269 = por %p267, %p268
      %s271 = sadd.s32 %s270, 1
      %p274 = scmp.eq.s32.totalorder %s21, 1
      %p275 = scmp.ne.s32.totalorder %s270, %s272
      %p276 = scmp.eq.s32.totalorder %s21, 0
      %p277 = por %p275, %p276
      %p278 = scmp.ne.s32.totalorder %s270, %s272
      %p279 = scmp.eq.s32.totalorder %s26, 1
      %p280 = por %p278, %p279
      %p281 = scmp.ne.s32.totalorder %s272, %s273
      %p282 = scmp.eq.s32.totalorder %s26, 0
      %p283 = por %p281, %p282
      %p284 = scmp.ne.s32.totalorder %s272, %s273
      %p285 = scmp.eq.s32.totalorder %s27, 1
      %p286 = por %p284, %p285
      %p288 = scmp.ne.s32.totalorder %s273, %s287
      %p289 = scmp.eq.s32.totalorder %s27, 0
      %p290 = por %p288, %p289
      %s292 = sadd.s32 %s291, 1
      %p295 = scmp.eq.s32.totalorder %s21, 1
      %p296 = scmp.ne.s32.totalorder %s291, %s293
      %p297 = scmp.eq.s32.totalorder %s21, 0
      %p298 = por %p296, %p297
      %p299 = scmp.ne.s32.totalorder %s291, %s293
      %p300 = scmp.eq.s32.totalorder %s26, 1
      %p301 = por %p299, %p300
      %p302 = scmp.ne.s32.totalorder %s293, %s294
      %p303 = scmp.eq.s32.totalorder %s26, 0
      %p304 = por %p302, %p303
      %p305 = scmp.ne.s32.totalorder %s293, %s294
      %p306 = scmp.eq.s32.totalorder %s27, 1
      %p307 = por %p305, %p306
      %p309 = scmp.ne.s32.totalorder %s294, %s308
      %p310 = scmp.eq.s32.totalorder %s27, 0
      %p311 = por %p309, %p310
      %s313 = sadd.s32 %s312, 1
      %p316 = scmp.eq.s32.totalorder %s21, 1
      %p317 = scmp.ne.s32.totalorder %s312, %s314
      %p318 = scmp.eq.s32.totalorder %s21, 0
      %p319 = por %p317, %p318
      %p320 = scmp.ne.s32.totalorder %s312, %s314
      %p321 = scmp.eq.s32.totalorder %s26, 1
      %p322 = por %p320, %p321
      %p323 = scmp.ne.s32.totalorder %s314, %s315
      %p324 = scmp.eq.s32.totalorder %s26, 0
      %p325 = por %p323, %p324
      %p326 = scmp.ne.s32.totalorder %s314, %s315
      %p327 = scmp.eq.s32.totalorder %s27, 1
      %p328 = por %p326, %p327
      %p330 = scmp.ne.s32.totalorder %s315, %s329
      %p331 = scmp.eq.s32.totalorder %s27, 0
      %p332 = por %p330, %p331
      %s333 = ssub.s32 %s21, %s28
      %p334 = scmp.eq.s32.totalorder %s333, 0
      %s336 = sadd.s32 %s335, 1
      %s337 = scalar_select %p334, %s335, %s336
      %p340 = pneg %p334
      %p341 = scmp.eq.s32.totalorder %s21, 1
      %p342 = por %p340, %p341
      %p343 = scmp.ne.s32.totalorder %s335, %s338
      %p344 = scmp.eq.s32.totalorder %s21, 0
      %p345 = por %p343, %p344
      %p346 = scmp.ne.s32.totalorder %s335, %s338
      %p347 = scmp.eq.s32.totalorder %s26, 1
      %p348 = por %p346, %p347
      %p349 = scmp.ne.s32.totalorder %s338, %s339
      %p350 = scmp.eq.s32.totalorder %s26, 0
      %p351 = por %p349, %p350
      %p352 = scmp.ne.s32.totalorder %s338, %s339
      %p353 = scmp.eq.s32.totalorder %s27, 1
      %p354 = por %p352, %p353
      %p356 = scmp.ne.s32.totalorder %s339, %s355
      %p357 = scmp.eq.s32.totalorder %s27, 0
      %p358 = por %p356, %p357
      %p359 = scmp.le.s32.totalorder 1, %s21
      %p360 = scmp.lt.s32.totalorder %s21, 3
      %p361 = pnand %p359, %p360
      %p362 = pneg %p361
      // Predicated region
      $region9: #{tpu_custom_call.1} parent=5 // pred_check
        _
      $region10: #{tpu_custom_call.1} parent=5 // pred_check_branch
        %364 = sbr.rel (%p361) target = $region12
      $region11: #{tpu_custom_call.1} parent=5 // pred_region
        %s365 = ssub.s32 %s21, 1
        // Predicated region
        $region13: #{tpu_custom_call.1} parent=11 // pred_check
          %p366 = pneg %p94
        $region14: #{tpu_custom_call.1} parent=11 // pred_check_branch
          %368 = sbr.rel (%p366) target = $region16
        $region15: #{tpu_custom_call.1} parent=11 // pred_region
          _
        $region16: #{tpu_custom_call.1} parent=11 // pred_fallthru
          _
        // Predicated region
        $region17: #{tpu_custom_call.1} parent=11 // pred_check
          %p369 = pneg %p115
        $region18: #{tpu_custom_call.1} parent=11 // pred_check_branch
          %371 = sbr.rel (%p369) target = $region20
        $region19: #{tpu_custom_call.1} parent=11 // pred_region
          _
        $region20: #{tpu_custom_call.1} parent=11 // pred_fallthru
          _
        // Predicated region
        $region21: #{tpu_custom_call.1} parent=11 // pred_check
          %p372 = pneg %p136
        $region22: #{tpu_custom_call.1} parent=11 // pred_check_branch
          %374 = sbr.rel (%p372) target = $region24
        $region23: #{tpu_custom_call.1} parent=11 // pred_region
          _
        $region24: #{tpu_custom_call.1} parent=11 // pred_fallthru
          _
        // Predicated region
        $region25: #{tpu_custom_call.1} parent=11 // pred_check
          %p375 = pneg %p157
        $region26: #{tpu_custom_call.1} parent=11 // pred_check_branch
          %377 = sbr.rel (%p375) target = $region28
        $region27: #{tpu_custom_call.1} parent=11 // pred_region
          _
        $region28: #{tpu_custom_call.1} parent=11 // pred_fallthru
          _
        // Predicated region
        $region29: #{tpu_custom_call.1} parent=11 // pred_check
          %p378 = pneg %p178
        $region30: #{tpu_custom_call.1} parent=11 // pred_check_branch
          %380 = sbr.rel (%p378) target = $region32
        $region31: #{tpu_custom_call.1} parent=11 // pred_region
          %382 = vsyncadd [#allocation4], 0
          %s383 = sshll.u32 %s6, 4
          %s384 = int_to_ptr.hbm [resolvable:$true] %s383
          %s385 = sshll.u32 [#allocation3], 4
          %s386 = int_to_ptr.vmem [resolvable:$true] %s385
          %391 = dma.hbm_to_vmem [thread:$0]  %s384, 18432, %s386, [#allocation4], 128, 128, 8
        $region32: #{tpu_custom_call.1} parent=11 // pred_fallthru
          _
        // Predicated region
        $region33: #{tpu_custom_call.1} parent=11 // pred_check
          %p392 = pneg %p199
        $region34: #{tpu_custom_call.1} parent=11 // pred_check_branch
          %394 = sbr.rel (%p392) target = $region36
        $region35: #{tpu_custom_call.1} parent=11 // pred_region
          _
        $region36: #{tpu_custom_call.1} parent=11 // pred_fallthru
          _
        // Predicated region
        $region37: #{tpu_custom_call.1} parent=11 // pred_check
          %p395 = pneg %p220
        $region38: #{tpu_custom_call.1} parent=11 // pred_check_branch
          %397 = sbr.rel (%p395) target = $region40
        $region39: #{tpu_custom_call.1} parent=11 // pred_region
          _
        $region40: #{tpu_custom_call.1} parent=11 // pred_fallthru
          _
        // Predicated region
        $region41: #{tpu_custom_call.1} parent=11 // pred_check
          %p398 = pneg %p241
        $region42: #{tpu_custom_call.1} parent=11 // pred_check_branch
          %400 = sbr.rel (%p398) target = $region44
        $region43: #{tpu_custom_call.1} parent=11 // pred_region
          _
        $region44: #{tpu_custom_call.1} parent=11 // pred_fallthru
          _
        // Predicated region
        $region45: #{tpu_custom_call.1} parent=11 // pred_check
          %p401 = pneg %p262
        $region46: #{tpu_custom_call.1} parent=11 // pred_check_branch
          %403 = sbr.rel (%p401) target = $region48
        $region47: #{tpu_custom_call.1} parent=11 // pred_region
          _
        $region48: #{tpu_custom_call.1} parent=11 // pred_fallthru
          _
        // Predicated region
        $region49: #{tpu_custom_call.1} parent=11 // pred_check
          %p404 = pneg %p283
        $region50: #{tpu_custom_call.1} parent=11 // pred_check_branch
          %406 = sbr.rel (%p404) target = $region52
        $region51: #{tpu_custom_call.1} parent=11 // pred_region
          _
        $region52: #{tpu_custom_call.1} parent=11 // pred_fallthru
          _
        // Predicated region
        $region53: #{tpu_custom_call.1} parent=11 // pred_check
          %p407 = pneg %p304
        $region54: #{tpu_custom_call.1} parent=11 // pred_check_branch
          %409 = sbr.rel (%p407) target = $region56
        $region55: #{tpu_custom_call.1} parent=11 // pred_region
          _
        $region56: #{tpu_custom_call.1} parent=11 // pred_fallthru
          _
        // Predicated region
        $region57: #{tpu_custom_call.1} parent=11 // pred_check
          %p410 = pneg %p325
        $region58: #{tpu_custom_call.1} parent=11 // pred_check_branch
          %412 = sbr.rel (%p410) target = $region60
        $region59: #{tpu_custom_call.1} parent=11 // pred_region
          _
        $region60: #{tpu_custom_call.1} parent=11 // pred_fallthru
          _
      $region12: #{tpu_custom_call.1} parent=5 // pred_fallthru
        _
      %p413 = scmp.lt.s32.totalorder %s21, 2
      // Predicated region
      $region61: #{tpu_custom_call.1} parent=5 // pred_check
        %p414 = pneg %p413
      $region62: #{tpu_custom_call.1} parent=5 // pred_check_branch
        %416 = sbr.rel (%p414) target = $region64
      $region63: #{tpu_custom_call.1} parent=5 // pred_region
        // Predicated region
        $region65: #{tpu_custom_call.1} parent=63 // pred_check
          %p417 = pneg %p41
        $region66: #{tpu_custom_call.1} parent=63 // pred_check_branch
          %419 = sbr.rel (%p417) target = $region68
        $region67: #{tpu_custom_call.1} parent=63 // pred_region
          %p420 = scmp.lt.s32.totalorder %s21, 1
          %s421 = scalar_select %p420, %s21, 1
          %s422 = smul.addr %s421, 2
          %s423 = scalar_lea.vmem %s0, %s422
        $region68: #{tpu_custom_call.1} parent=63 // pred_fallthru
          _
        // Predicated region
        $region69: #{tpu_custom_call.1} parent=63 // pred_check
          %p424 = pneg %p67
        $region70: #{tpu_custom_call.1} parent=63 // pred_check_branch
          %426 = sbr.rel (%p424) target = $region72
        $region71: #{tpu_custom_call.1} parent=63 // pred_region
          %p427 = scmp.lt.s32.totalorder %s21, 1
          %s428 = scalar_select %p427, %s21, 1
          %s429 = smul.addr %s428, 46
          %s430 = smul.addr %s429, 8
          %s431 = scalar_lea.vmem %s1, %s430
        $region72: #{tpu_custom_call.1} parent=63 // pred_fallthru
          _
      $region64: #{tpu_custom_call.1} parent=5 // pred_fallthru
        _
      %p432 = scmp.le.s32.totalorder 1, %s21
      %p433 = scmp.lt.s32.totalorder %s21, 3
      %p434 = pnand %p432, %p433
      %p435 = pneg %p434
      // Predicated region
      $region73: #{tpu_custom_call.1} parent=5 // pred_check
        _
      $region74: #{tpu_custom_call.1} parent=5 // pred_check_branch
        %437 = sbr.rel (%p434) target = $region76
      $region75: #{tpu_custom_call.1} parent=5 // pred_region
        %s438 = ssub.s32 %s21, 1
        // Predicated region
        $region77: #{tpu_custom_call.1} parent=75 // pred_check
          %p439 = pneg %p178
        $region78: #{tpu_custom_call.1} parent=75 // pred_check_branch
          %441 = sbr.rel (%p439) target = $region80
        $region79: #{tpu_custom_call.1} parent=75 // pred_region
          %443 = dma.done [#allocation4], 18432
        $region80: #{tpu_custom_call.1} parent=75 // pred_fallthru
          _
        %p444 = scmp.lt.s32.totalorder %s26, 1
        %s445 = scalar_select %p444, %s26, 1
        %s446 = smul.addr %s445, 2
        %s447 = scalar_lea.vmem %s0, %s446
        %p448 = pneg %p47
        %p449 = pneg %p44
        %p450 = scmp.lt.s32.totalorder %s26, 1
        %s451 = scalar_select %p450, %s26, 1
        %s452 = smul.addr %s451, 46
        %s453 = smul.addr %s452, 8
        %s454 = scalar_lea.vmem %s1, %s453
        %p455 = pneg %p73
        %p456 = pneg %p70
        %p457 = pneg %p94
        %p458 = pneg %p91
        %p459 = pneg %p115
        %p460 = pneg %p112
        %p461 = pneg %p136
        %p462 = pneg %p133
        %p463 = pneg %p157
        %p464 = pneg %p154
        %p465 = pneg %p178
        %p466 = pneg %p175
        %p467 = pneg %p199
        %p468 = pneg %p196
        %p469 = pneg %p220
        %p470 = pneg %p217
        %p471 = pneg %p241
        %p472 = pneg %p238
        %p473 = pneg %p262
        %p474 = pneg %p259
        %p475 = pneg %p283
        %p476 = pneg %p280
        %p477 = pneg %p304
        %p478 = pneg %p301
        %p479 = pneg %p325
        %p480 = pneg %p322
        %p481 = pneg %p351
        %p482 = pneg %p348
        %p483 = scmp.lt.s32.totalorder %s26, 1
        %s484 = scalar_select %p483, %s26, 1
        %s485 = smul.addr %s484, 41
        %s486 = smul.addr %s485, 8
        %s487 = scalar_lea.vmem %s14, %s486
        %p488 = scmp.lt.s32.totalorder %s26, 1
        %s489 = scalar_select %p488, %s26, 1
        %s490 = smul.addr %s489, 2
        %s491 = scalar_lea.vmem %s0, %s490
        %p492 = scmp.lt.s32.totalorder %s26, 1
        %s493 = scalar_select %p492, %s26, 1
        %s494 = smul.addr %s493, 46
        %s495 = smul.addr %s494, 8
        %s496 = scalar_lea.vmem %s1, %s495
        %p497 = scmp.lt.s32.totalorder %s26, 1
        %s498 = scalar_select %p497, %s26, 1
        %s499 = smul.addr %s498, 41
        %s500 = smul.addr %s499, 8
        %s501 = scalar_lea.vmem %s14, %s500
        %v502 = vld [vmem:[%s13] sm:$0xff]
        %v503 = vld [vmem:[%s13 + $0x8] sm:$0xff]
        %v504 = vld [vmem:[%s13 + $0x10] sm:$0xff]
        %v505 = vld [vmem:[%s13 + $0x18] sm:$0xff]
        %v506 = vld [vmem:[%s13 + $0x20] sm:$0xff]
        %v507 = vld [vmem:[%s13 + $0x28] sm:$0xff]
        %v508 = vld [vmem:[%s13 + $0x30] sm:$0xff]
        %v509 = vld [vmem:[%s13 + $0x38] sm:$0xff]
        %v510 = vld [vmem:[%s13 + $0x40] sm:$0xff]
        %v511 = vld [vmem:[%s13 + $0x48] sm:$0xff]
        %v512 = vld [vmem:[%s13 + $0x50] sm:$0xff]
        %v513 = vld [vmem:[%s13 + $0x58] sm:$0xff]
        %v514 = vld [vmem:[%s13 + $0x60] sm:$0xff]
        %v515 = vld [vmem:[%s13 + $0x68] sm:$0xff]
        %v516 = vld [vmem:[%s13 + $0x70] sm:$0xff]
        %v517 = vld [vmem:[%s13 + $0x78] sm:$0xff]
        %v518 = vld [vmem:[%s13 + $0x80] sm:$0xff]
        %v519 = vld [vmem:[%s13 + $0x88] sm:$0xff]
        %v520 = vld [vmem:[%s13 + $0x90] sm:$0xff]
        %v521 = vld [vmem:[%s13 + $0x98] sm:$0xff]
        %v522 = vld [vmem:[%s13 + $0xa0] sm:$0xff]
        %v523 = vld [vmem:[%s13 + $0xa8] sm:$0xff]
        %v524 = vld [vmem:[%s13 + $0xb0] sm:$0xff]
        %v525 = vld [vmem:[%s13 + $0xb8] sm:$0xff]
        %v526 = vld [vmem:[%s13 + $0xc0] sm:$0xff]
        %v527 = vld [vmem:[%s13 + $0xc8] sm:$0xff]
        %v528 = vld [vmem:[%s13 + $0xd0] sm:$0xff]
        %v529 = vld [vmem:[%s13 + $0xd8] sm:$0xff]
        %v530 = vld [vmem:[%s13 + $0xe0] sm:$0xff]
        %v531 = vld [vmem:[%s13 + $0xe8] sm:$0xff]
        %v532 = vld [vmem:[%s13 + $0xf0] sm:$0xff]
        %v533 = vld [vmem:[%s13 + $0xf8] sm:$0xff]
        %v534 = vld [vmem:[%s13 + $0x100] sm:$0xff]
        %v535 = vld [vmem:[%s13 + $0x108] sm:$0xff]
        %v536 = vld [vmem:[%s13 + $0x110] sm:$0xff]
        %v537 = vld [vmem:[%s13 + $0x118] sm:$0xff]
        %v538 = vld [vmem:[%s13 + $0x120] sm:$0xff]
        %v539 = vld [vmem:[%s13 + $0x128] sm:$0xff]
        %v540 = vld [vmem:[%s13 + $0x130] sm:$0xff]
        %v541 = vld [vmem:[%s13 + $0x138] sm:$0xff]
        %v542 = vld [vmem:[%s13 + $0x140] sm:$0xf]
        %v543 = vld [vmem:[%s12] sm:$0xff]
        %v544 = vld [vmem:[%s12 + $0x8] sm:$0xff]
        %v545 = vld [vmem:[%s12 + $0x10] sm:$0xff]
        %v546 = vld [vmem:[%s12 + $0x18] sm:$0xff]
        %v547 = vld [vmem:[%s12 + $0x20] sm:$0xff]
        %v548 = vld [vmem:[%s12 + $0x28] sm:$0xff]
        %v549 = vld [vmem:[%s12 + $0x30] sm:$0xff]
        %v550 = vld [vmem:[%s12 + $0x38] sm:$0xff]
        %v551 = vld [vmem:[%s12 + $0x40] sm:$0xff]
        %v552 = vld [vmem:[%s12 + $0x48] sm:$0xff]
        %v553 = vld [vmem:[%s12 + $0x50] sm:$0xff]
        %v554 = vld [vmem:[%s12 + $0x58] sm:$0xff]
        %v555 = vld [vmem:[%s12 + $0x60] sm:$0xff]
        %v556 = vld [vmem:[%s12 + $0x68] sm:$0xff]
        %v557 = vld [vmem:[%s12 + $0x70] sm:$0xff]
        %v558 = vld [vmem:[%s12 + $0x78] sm:$0xff]
        %v559 = vld [vmem:[%s496] sm:$0xff]
        %v560 = vld [vmem:[%s496 + $0x8] sm:$0xff]
        %v561 = vld [vmem:[%s496 + $0x10] sm:$0xff]
        %v562 = vld [vmem:[%s496 + $0x18] sm:$0xff]
        %v563 = vld [vmem:[%s496 + $0x20] sm:$0xff]
        %v564 = vld [vmem:[%s496 + $0x28] sm:$0xff]
        %v565 = vld [vmem:[%s496 + $0x30] sm:$0xff]
        %v566 = vld [vmem:[%s496 + $0x38] sm:$0xff]
        %v567 = vld [vmem:[%s496 + $0x40] sm:$0xff]
        %v568 = vld [vmem:[%s496 + $0x48] sm:$0xff]
        %v569 = vld [vmem:[%s496 + $0x50] sm:$0xff]
        %v570 = vld [vmem:[%s496 + $0x58] sm:$0xff]
        %v571 = vld [vmem:[%s496 + $0x60] sm:$0xff]
        %v572 = vld [vmem:[%s496 + $0x68] sm:$0xff]
        %v573 = vld [vmem:[%s496 + $0x70] sm:$0xff]
        %v574 = vld [vmem:[%s496 + $0x78] sm:$0xff]
        %v575 = vld [vmem:[%s496 + $0x80] sm:$0xff]
        %v576 = vld [vmem:[%s496 + $0x88] sm:$0xff]
        %v577 = vld [vmem:[%s496 + $0x90] sm:$0xff]
        %v578 = vld [vmem:[%s496 + $0x98] sm:$0xff]
        %v579 = vld [vmem:[%s496 + $0xa0] sm:$0xff]
        %v580 = vld [vmem:[%s496 + $0xa8] sm:$0xff]
        %v581 = vld [vmem:[%s496 + $0xb0] sm:$0xff]
        %v582 = vld [vmem:[%s496 + $0xb8] sm:$0xff]
        %v583 = vld [vmem:[%s496 + $0xc0] sm:$0xff]
        %v584 = vld [vmem:[%s496 + $0xc8] sm:$0xff]
        %v585 = vld [vmem:[%s496 + $0xd0] sm:$0xff]
        %v586 = vld [vmem:[%s496 + $0xd8] sm:$0xff]
        %v587 = vld [vmem:[%s496 + $0xe0] sm:$0xff]
        %v588 = vld [vmem:[%s496 + $0xe8] sm:$0xff]
        %v589 = vld [vmem:[%s496 + $0xf0] sm:$0xff]
        %v590 = vld [vmem:[%s496 + $0xf8] sm:$0xff]
        %v591 = vld [vmem:[%s496 + $0x100] sm:$0xff]
        %v592 = vld [vmem:[%s496 + $0x108] sm:$0xff]
        %v593 = vld [vmem:[%s496 + $0x110] sm:$0xff]
        %v594 = vld [vmem:[%s496 + $0x118] sm:$0xff]
        %v595 = vld [vmem:[%s496 + $0x120] sm:$0xff]
        %v596 = vld [vmem:[%s496 + $0x128] sm:$0xff]
        %v597 = vld [vmem:[%s496 + $0x130] sm:$0xff]
        %v598 = vld [vmem:[%s496 + $0x138] sm:$0xff]
        %v599 = vld [vmem:[%s496 + $0x140] sm:$0xf]
        %v600 = vld [vmem:[%s2] sm:$0xf]
        %v601 = vld [vmem:[%s496 + $0x1] sm:$0xff]
        %v602 = vld [vmem:[%s496 + $0x9] sm:$0xff]
        %v603 = vld [vmem:[%s496 + $0x11] sm:$0xff]
        %v604 = vld [vmem:[%s496 + $0x19] sm:$0xff]
        %v605 = vld [vmem:[%s496 + $0x21] sm:$0xff]
        %v606 = vld [vmem:[%s496 + $0x29] sm:$0xff]
        %v607 = vld [vmem:[%s496 + $0x31] sm:$0xff]
        %v608 = vld [vmem:[%s496 + $0x39] sm:$0xff]
        %v609 = vld [vmem:[%s496 + $0x41] sm:$0xff]
        %v610 = vld [vmem:[%s496 + $0x49] sm:$0xff]
        %v611 = vld [vmem:[%s496 + $0x51] sm:$0xff]
        %v612 = vld [vmem:[%s496 + $0x59] sm:$0xff]
        %v613 = vld [vmem:[%s496 + $0x61] sm:$0xff]
        %v614 = vld [vmem:[%s496 + $0x69] sm:$0xff]
        %v615 = vld [vmem:[%s496 + $0x71] sm:$0xff]
        %v616 = vld [vmem:[%s496 + $0x79] sm:$0xff]
        %v617 = vld [vmem:[%s496 + $0x81] sm:$0xff]
        %v618 = vld [vmem:[%s496 + $0x89] sm:$0xff]
        %v619 = vld [vmem:[%s496 + $0x91] sm:$0xff]
        %v620 = vld [vmem:[%s496 + $0x99] sm:$0xff]
        %v621 = vld [vmem:[%s496 + $0xa1] sm:$0xff]
        %v622 = vld [vmem:[%s496 + $0xa9] sm:$0xff]
        %v623 = vld [vmem:[%s496 + $0xb1] sm:$0xff]
        %v624 = vld [vmem:[%s496 + $0xb9] sm:$0xff]
        %v625 = vld [vmem:[%s496 + $0xc1] sm:$0xff]
        %v626 = vld [vmem:[%s496 + $0xc9] sm:$0xff]
        %v627 = vld [vmem:[%s496 + $0xd1] sm:$0xff]
        %v628 = vld [vmem:[%s496 + $0xd9] sm:$0xff]
        %v629 = vld [vmem:[%s496 + $0xe1] sm:$0xff]
        %v630 = vld [vmem:[%s496 + $0xe9] sm:$0xff]
        %v631 = vld [vmem:[%s496 + $0xf1] sm:$0xff]
        %v632 = vld [vmem:[%s496 + $0xf9] sm:$0xff]
        %v633 = vld [vmem:[%s496 + $0x101] sm:$0xff]
        %v634 = vld [vmem:[%s496 + $0x109] sm:$0xff]
        %v635 = vld [vmem:[%s496 + $0x111] sm:$0xff]
        %v636 = vld [vmem:[%s496 + $0x119] sm:$0xff]
        %v637 = vld [vmem:[%s496 + $0x121] sm:$0xff]
        %v638 = vld [vmem:[%s496 + $0x129] sm:$0xff]
        %v639 = vld [vmem:[%s496 + $0x131] sm:$0xff]
        %v640 = vld [vmem:[%s496 + $0x139] sm:$0xff]
        %v641 = vld [vmem:[%s496 + $0x141] sm:$0xf]
        %s642 = scalar_lea.vmem %s2, 4
        %v643 = vld [vmem:[%s642] sm:$0xf]
        %vm644 = vcmask 31744
        %v646 = vsel %vm644, %v601, 0
        %v649 = vsel %vm644, %v602, 0
        %v652 = vsel %vm644, %v603, 0
        %v655 = vsel %vm644, %v604, 0
        %v658 = vsel %vm644, %v605, 0
        %v661 = vsel %vm644, %v606, 0
        %v664 = vsel %vm644, %v607, 0
        %v667 = vsel %vm644, %v608, 0
        %v670 = vsel %vm644, %v609, 0
        %v673 = vsel %vm644, %v610, 0
        %v676 = vsel %vm644, %v611, 0
        %v679 = vsel %vm644, %v612, 0
        %v682 = vsel %vm644, %v613, 0
        %v685 = vsel %vm644, %v614, 0
        %v688 = vsel %vm644, %v615, 0
        %v691 = vsel %vm644, %v616, 0
        %v694 = vsel %vm644, %v617, 0
        %v697 = vsel %vm644, %v618, 0
        %v700 = vsel %vm644, %v619, 0
        %v703 = vsel %vm644, %v620, 0
        %v706 = vsel %vm644, %v621, 0
        %v709 = vsel %vm644, %v622, 0
        %v712 = vsel %vm644, %v623, 0
        %v715 = vsel %vm644, %v624, 0
        %v718 = vsel %vm644, %v625, 0
        %v721 = vsel %vm644, %v626, 0
        %v724 = vsel %vm644, %v627, 0
        %v727 = vsel %vm644, %v628, 0
        %v730 = vsel %vm644, %v629, 0
        %v733 = vsel %vm644, %v630, 0
        %v736 = vsel %vm644, %v631, 0
        %v739 = vsel %vm644, %v632, 0
        %v742 = vsel %vm644, %v633, 0
        %v745 = vsel %vm644, %v634, 0
        %v748 = vsel %vm644, %v635, 0
        %v751 = vsel %vm644, %v636, 0
        %v754 = vsel %vm644, %v637, 0
        %v757 = vsel %vm644, %v638, 0
        %v760 = vsel %vm644, %v639, 0
        %v763 = vsel %vm644, %v640, 0
        %v766 = vsel %vm644, %v641, 0
        %vm768 = vcmask 1043456
        %v770 = vsel %vm768, %v643, 0
        %772 = vmatpush.msra.mxu0 0.0
        %773 = vmatpush.msra.mxu0 0.0
        %774 = vmatpush.msra.mxu0 0.0
        %775 = vmatpush.msra.mxu0 0.0
        %776 = vmatpush.msra.mxu0 0.0
        %777 = vmatpush.msra.mxu0 0.0
        %778 = vmatpush.msra.mxu0 0.0
        %779 = vmatpush.msra.mxu0 0.0
        %780 = vmatpush.msra.mxu0 0.0
        %781 = vmatpush.msra.mxu0 0.0
        %782 = vmatpush.msra.mxu0 0.0
        %783 = vmatpush.msra.mxu0 0.0
        %784 = vmatpush.msra.mxu0 0.0
        %785 = vmatpush.msra.mxu0 0.0
        %786 = vmatpush.msra.mxu0 0.0
        %787 = vmatpush.msra.mxu0 %v770
        %788 = vmatmul.f32.gmra.mxu0 %v646
        %v789 = vpop.f32.mrf.mxu0
        %v790 = vadd.f32 0.0, %v789
        %791 = vmatmul.f32.gmra.mxu0 %v649
        %v792 = vpop.f32.mrf.mxu0
        %v793 = vadd.f32 0.0, %v792
        %794 = vmatmul.f32.gmra.mxu0 %v652
        %v795 = vpop.f32.mrf.mxu0
        %v796 = vadd.f32 0.0, %v795
        %797 = vmatmul.f32.gmra.mxu0 %v655
        %v798 = vpop.f32.mrf.mxu0
        %v799 = vadd.f32 0.0, %v798
        %800 = vmatmul.f32.gmra.mxu0 %v658
        %v801 = vpop.f32.mrf.mxu0
        %v802 = vadd.f32 0.0, %v801
        %803 = vmatmul.f32.gmra.mxu0 %v661
        %v804 = vpop.f32.mrf.mxu0
        %v805 = vadd.f32 0.0, %v804
        %806 = vmatmul.f32.gmra.mxu0 %v664
        %v807 = vpop.f32.mrf.mxu0
        %v808 = vadd.f32 0.0, %v807
        %809 = vmatmul.f32.gmra.mxu0 %v667
        %v810 = vpop.f32.mrf.mxu0
        %v811 = vadd.f32 0.0, %v810
        %812 = vmatmul.f32.gmra.mxu0 %v670
        %v813 = vpop.f32.mrf.mxu0
        %v814 = vadd.f32 0.0, %v813
        %815 = vmatmul.f32.gmra.mxu0 %v673
        %v816 = vpop.f32.mrf.mxu0
        %v817 = vadd.f32 0.0, %v816
        %818 = vmatmul.f32.gmra.mxu0 %v676
        %v819 = vpop.f32.mrf.mxu0
        %v820 = vadd.f32 0.0, %v819
        %821 = vmatmul.f32.gmra.mxu0 %v679
        %v822 = vpop.f32.mrf.mxu0
        %v823 = vadd.f32 0.0, %v822
        %824 = vmatmul.f32.gmra.mxu0 %v682
        %v825 = vpop.f32.mrf.mxu0
        %v826 = vadd.f32 0.0, %v825
        %827 = vmatmul.f32.gmra.mxu0 %v685
        %v828 = vpop.f32.mrf.mxu0
        %v829 = vadd.f32 0.0, %v828
        %830 = vmatmul.f32.gmra.mxu0 %v688
        %v831 = vpop.f32.mrf.mxu0
        %v832 = vadd.f32 0.0, %v831
        %833 = vmatmul.f32.gmra.mxu0 %v691
        %v834 = vpop.f32.mrf.mxu0
        %v835 = vadd.f32 0.0, %v834
        %836 = vmatmul.f32.gmra.mxu0 %v694
        %v837 = vpop.f32.mrf.mxu0
        %v838 = vadd.f32 0.0, %v837
        %839 = vmatmul.f32.gmra.mxu0 %v697
        %v840 = vpop.f32.mrf.mxu0
        %v841 = vadd.f32 0.0, %v840
        %842 = vmatmul.f32.gmra.mxu0 %v700
        %v843 = vpop.f32.mrf.mxu0
        %v844 = vadd.f32 0.0, %v843
        %845 = vmatmul.f32.gmra.mxu0 %v703
        %v846 = vpop.f32.mrf.mxu0
        %v847 = vadd.f32 0.0, %v846
        %848 = vmatmul.f32.gmra.mxu0 %v706
        %v849 = vpop.f32.mrf.mxu0
        %v850 = vadd.f32 0.0, %v849
        %851 = vmatmul.f32.gmra.mxu0 %v709
        %v852 = vpop.f32.mrf.mxu0
        %v853 = vadd.f32 0.0, %v852
        %854 = vmatmul.f32.gmra.mxu0 %v712
        %v855 = vpop.f32.mrf.mxu0
        %v856 = vadd.f32 0.0, %v855
        %857 = vmatmul.f32.gmra.mxu0 %v715
        %v858 = vpop.f32.mrf.mxu0
        %v859 = vadd.f32 0.0, %v858
        %860 = vmatmul.f32.gmra.mxu0 %v718
        %v861 = vpop.f32.mrf.mxu0
        %v862 = vadd.f32 0.0, %v861
        %863 = vmatmul.f32.gmra.mxu0 %v721
        %v864 = vpop.f32.mrf.mxu0
        %v865 = vadd.f32 0.0, %v864
        %866 = vmatmul.f32.gmra.mxu0 %v724
        %v867 = vpop.f32.mrf.mxu0
        %v868 = vadd.f32 0.0, %v867
        %869 = vmatmul.f32.gmra.mxu0 %v727
        %v870 = vpop.f32.mrf.mxu0
        %v871 = vadd.f32 0.0, %v870
        %872 = vmatmul.f32.gmra.mxu0 %v730
        %v873 = vpop.f32.mrf.mxu0
        %v874 = vadd.f32 0.0, %v873
        %875 = vmatmul.f32.gmra.mxu0 %v733
        %v876 = vpop.f32.mrf.mxu0
        %v877 = vadd.f32 0.0, %v876
        %878 = vmatmul.f32.gmra.mxu0 %v736
        %v879 = vpop.f32.mrf.mxu0
        %v880 = vadd.f32 0.0, %v879
        %881 = vmatmul.f32.gmra.mxu0 %v739
        %v882 = vpop.f32.mrf.mxu0
        %v883 = vadd.f32 0.0, %v882
        %884 = vmatmul.f32.gmra.mxu0 %v742
        %v885 = vpop.f32.mrf.mxu0
        %v886 = vadd.f32 0.0, %v885
        %887 = vmatmul.f32.gmra.mxu0 %v745
        %v888 = vpop.f32.mrf.mxu0
        %v889 = vadd.f32 0.0, %v888
        %890 = vmatmul.f32.gmra.mxu0 %v748
        %v891 = vpop.f32.mrf.mxu0
        %v892 = vadd.f32 0.0, %v891
        %893 = vmatmul.f32.gmra.mxu0 %v751
        %v894 = vpop.f32.mrf.mxu0
        %v895 = vadd.f32 0.0, %v894
        %896 = vmatmul.f32.gmra.mxu0 %v754
        %v897 = vpop.f32.mrf.mxu0
        %v898 = vadd.f32 0.0, %v897
        %899 = vmatmul.f32.gmra.mxu0 %v757
        %v900 = vpop.f32.mrf.mxu0
        %v901 = vadd.f32 0.0, %v900
        %902 = vmatmul.f32.gmra.mxu0 %v760
        %v903 = vpop.f32.mrf.mxu0
        %v904 = vadd.f32 0.0, %v903
        %905 = vmatmul.f32.gmra.mxu0 %v763
        %v906 = vpop.f32.mrf.mxu0
        %v907 = vadd.f32 0.0, %v906
        %908 = vmatmul.f32.gmra.mxu0 %v766
        %v909 = vpop.f32.mrf.mxu0
        %v910 = vadd.f32 0.0, %v909
        %911 = vdwg.mxu0
        %v913 = vsel %vm644, %v559, 0
        %v916 = vsel %vm644, %v560, 0
        %v919 = vsel %vm644, %v561, 0
        %v922 = vsel %vm644, %v562, 0
        %v925 = vsel %vm644, %v563, 0
        %v928 = vsel %vm644, %v564, 0
        %v931 = vsel %vm644, %v565, 0
        %v934 = vsel %vm644, %v566, 0
        %v937 = vsel %vm644, %v567, 0
        %v940 = vsel %vm644, %v568, 0
        %v943 = vsel %vm644, %v569, 0
        %v946 = vsel %vm644, %v570, 0
        %v949 = vsel %vm644, %v571, 0
        %v952 = vsel %vm644, %v572, 0
        %v955 = vsel %vm644, %v573, 0
        %v958 = vsel %vm644, %v574, 0
        %v961 = vsel %vm644, %v575, 0
        %v964 = vsel %vm644, %v576, 0
        %v967 = vsel %vm644, %v577, 0
        %v970 = vsel %vm644, %v578, 0
        %v973 = vsel %vm644, %v579, 0
        %v976 = vsel %vm644, %v580, 0
        %v979 = vsel %vm644, %v581, 0
        %v982 = vsel %vm644, %v582, 0
        %v985 = vsel %vm644, %v583, 0
        %v988 = vsel %vm644, %v584, 0
        %v991 = vsel %vm644, %v585, 0
        %v994 = vsel %vm644, %v586, 0
        %v997 = vsel %vm644, %v587, 0
        %v1000 = vsel %vm644, %v588, 0
        %v1003 = vsel %vm644, %v589, 0
        %v1006 = vsel %vm644, %v590, 0
        %v1009 = vsel %vm644, %v591, 0
        %v1012 = vsel %vm644, %v592, 0
        %v1015 = vsel %vm644, %v593, 0
        %v1018 = vsel %vm644, %v594, 0
        %v1021 = vsel %vm644, %v595, 0
        %v1024 = vsel %vm644, %v596, 0
        %v1027 = vsel %vm644, %v597, 0
        %v1030 = vsel %vm644, %v598, 0
        %v1033 = vsel %vm644, %v599, 0
        %v1036 = vsel %vm768, %v600, 0
        %1038 = vmatpush.msra.mxu0 0.0
        %1039 = vmatpush.msra.mxu0 0.0
        %1040 = vmatpush.msra.mxu0 0.0
        %1041 = vmatpush.msra.mxu0 0.0
        %1042 = vmatpush.msra.mxu0 0.0
        %1043 = vmatpush.msra.mxu0 0.0
        %1044 = vmatpush.msra.mxu0 0.0
        %1045 = vmatpush.msra.mxu0 0.0
        %1046 = vmatpush.msra.mxu0 0.0
        %1047 = vmatpush.msra.mxu0 0.0
        %1048 = vmatpush.msra.mxu0 0.0
        %1049 = vmatpush.msra.mxu0 0.0
        %1050 = vmatpush.msra.mxu0 0.0
        %1051 = vmatpush.msra.mxu0 0.0
        %1052 = vmatpush.msra.mxu0 0.0
        %1053 = vmatpush.msra.mxu0 %v1036
        %1054 = vmatmul.f32.gmra.mxu0 %v913
        %v1055 = vpop.f32.mrf.mxu0
        %v1056 = vadd.f32 %v790, %v1055
        %1057 = vmatmul.f32.gmra.mxu0 %v916
        %v1058 = vpop.f32.mrf.mxu0
        %v1059 = vadd.f32 %v793, %v1058
        %1060 = vmatmul.f32.gmra.mxu0 %v919
        %v1061 = vpop.f32.mrf.mxu0
        %v1062 = vadd.f32 %v796, %v1061
        %1063 = vmatmul.f32.gmra.mxu0 %v922
        %v1064 = vpop.f32.mrf.mxu0
        %v1065 = vadd.f32 %v799, %v1064
        %1066 = vmatmul.f32.gmra.mxu0 %v925
        %v1067 = vpop.f32.mrf.mxu0
        %v1068 = vadd.f32 %v802, %v1067
        %1069 = vmatmul.f32.gmra.mxu0 %v928
        %v1070 = vpop.f32.mrf.mxu0
        %v1071 = vadd.f32 %v805, %v1070
        %1072 = vmatmul.f32.gmra.mxu0 %v931
        %v1073 = vpop.f32.mrf.mxu0
        %v1074 = vadd.f32 %v808, %v1073
        %1075 = vmatmul.f32.gmra.mxu0 %v934
        %v1076 = vpop.f32.mrf.mxu0
        %v1077 = vadd.f32 %v811, %v1076
        %1078 = vmatmul.f32.gmra.mxu0 %v937
        %v1079 = vpop.f32.mrf.mxu0
        %v1080 = vadd.f32 %v814, %v1079
        %1081 = vmatmul.f32.gmra.mxu0 %v940
        %v1082 = vpop.f32.mrf.mxu0
        %v1083 = vadd.f32 %v817, %v1082
        %1084 = vmatmul.f32.gmra.mxu0 %v943
        %v1085 = vpop.f32.mrf.mxu0
        %v1086 = vadd.f32 %v820, %v1085
        %1087 = vmatmul.f32.gmra.mxu0 %v946
        %v1088 = vpop.f32.mrf.mxu0
        %v1089 = vadd.f32 %v823, %v1088
        %1090 = vmatmul.f32.gmra.mxu0 %v949
        %v1091 = vpop.f32.mrf.mxu0
        %v1092 = vadd.f32 %v826, %v1091
        %1093 = vmatmul.f32.gmra.mxu0 %v952
        %v1094 = vpop.f32.mrf.mxu0
        %v1095 = vadd.f32 %v829, %v1094
        %1096 = vmatmul.f32.gmra.mxu0 %v955
        %v1097 = vpop.f32.mrf.mxu0
        %v1098 = vadd.f32 %v832, %v1097
        %1099 = vmatmul.f32.gmra.mxu0 %v958
        %v1100 = vpop.f32.mrf.mxu0
        %v1101 = vadd.f32 %v835, %v1100
        %1102 = vmatmul.f32.gmra.mxu0 %v961
        %v1103 = vpop.f32.mrf.mxu0
        %v1104 = vadd.f32 %v838, %v1103
        %1105 = vmatmul.f32.gmra.mxu0 %v964
        %v1106 = vpop.f32.mrf.mxu0
        %v1107 = vadd.f32 %v841, %v1106
        %1108 = vmatmul.f32.gmra.mxu0 %v967
        %v1109 = vpop.f32.mrf.mxu0
        %v1110 = vadd.f32 %v844, %v1109
        %1111 = vmatmul.f32.gmra.mxu0 %v970
        %v1112 = vpop.f32.mrf.mxu0
        %v1113 = vadd.f32 %v847, %v1112
        %1114 = vmatmul.f32.gmra.mxu0 %v973
        %v1115 = vpop.f32.mrf.mxu0
        %v1116 = vadd.f32 %v850, %v1115
        %1117 = vmatmul.f32.gmra.mxu0 %v976
        %v1118 = vpop.f32.mrf.mxu0
        %v1119 = vadd.f32 %v853, %v1118
        %1120 = vmatmul.f32.gmra.mxu0 %v979
        %v1121 = vpop.f32.mrf.mxu0
        %v1122 = vadd.f32 %v856, %v1121
        %1123 = vmatmul.f32.gmra.mxu0 %v982
        %v1124 = vpop.f32.mrf.mxu0
        %v1125 = vadd.f32 %v859, %v1124
        %1126 = vmatmul.f32.gmra.mxu0 %v985
        %v1127 = vpop.f32.mrf.mxu0
        %v1128 = vadd.f32 %v862, %v1127
        %1129 = vmatmul.f32.gmra.mxu0 %v988
        %v1130 = vpop.f32.mrf.mxu0
        %v1131 = vadd.f32 %v865, %v1130
        %1132 = vmatmul.f32.gmra.mxu0 %v991
        %v1133 = vpop.f32.mrf.mxu0
        %v1134 = vadd.f32 %v868, %v1133
        %1135 = vmatmul.f32.gmra.mxu0 %v994
        %v1136 = vpop.f32.mrf.mxu0
        %v1137 = vadd.f32 %v871, %v1136
        %1138 = vmatmul.f32.gmra.mxu0 %v997
        %v1139 = vpop.f32.mrf.mxu0
        %v1140 = vadd.f32 %v874, %v1139
        %1141 = vmatmul.f32.gmra.mxu0 %v1000
        %v1142 = vpop.f32.mrf.mxu0
        %v1143 = vadd.f32 %v877, %v1142
        %1144 = vmatmul.f32.gmra.mxu0 %v1003
        %v1145 = vpop.f32.mrf.mxu0
        %v1146 = vadd.f32 %v880, %v1145
        %1147 = vmatmul.f32.gmra.mxu0 %v1006
        %v1148 = vpop.f32.mrf.mxu0
        %v1149 = vadd.f32 %v883, %v1148
        %1150 = vmatmul.f32.gmra.mxu0 %v1009
        %v1151 = vpop.f32.mrf.mxu0
        %v1152 = vadd.f32 %v886, %v1151
        %1153 = vmatmul.f32.gmra.mxu0 %v1012
        %v1154 = vpop.f32.mrf.mxu0
        %v1155 = vadd.f32 %v889, %v1154
        %1156 = vmatmul.f32.gmra.mxu0 %v1015
        %v1157 = vpop.f32.mrf.mxu0
        %v1158 = vadd.f32 %v892, %v1157
        %1159 = vmatmul.f32.gmra.mxu0 %v1018
        %v1160 = vpop.f32.mrf.mxu0
        %v1161 = vadd.f32 %v895, %v1160
        %1162 = vmatmul.f32.gmra.mxu0 %v1021
        %v1163 = vpop.f32.mrf.mxu0
        %v1164 = vadd.f32 %v898, %v1163
        %1165 = vmatmul.f32.gmra.mxu0 %v1024
        %v1166 = vpop.f32.mrf.mxu0
        %v1167 = vadd.f32 %v901, %v1166
        %1168 = vmatmul.f32.gmra.mxu0 %v1027
        %v1169 = vpop.f32.mrf.mxu0
        %v1170 = vadd.f32 %v904, %v1169
        %1171 = vmatmul.f32.gmra.mxu0 %v1030
        %v1172 = vpop.f32.mrf.mxu0
        %v1173 = vadd.f32 %v907, %v1172
        %1174 = vmatmul.f32.gmra.mxu0 %v1033
        %v1175 = vpop.f32.mrf.mxu0
        %v1176 = vadd.f32 %v910, %v1175
        %1177 = vdwg.mxu0
        %v1178 = vld [vmem:[%s496 + $0x2] sm:$0xff]
        %v1179 = vld [vmem:[%s496 + $0xa] sm:$0xff]
        %v1180 = vld [vmem:[%s496 + $0x12] sm:$0xff]
        %v1181 = vld [vmem:[%s496 + $0x1a] sm:$0xff]
        %v1182 = vld [vmem:[%s496 + $0x22] sm:$0xff]
        %v1183 = vld [vmem:[%s496 + $0x2a] sm:$0xff]
        %v1184 = vld [vmem:[%s496 + $0x32] sm:$0xff]
        %v1185 = vld [vmem:[%s496 + $0x3a] sm:$0xff]
        %v1186 = vld [vmem:[%s496 + $0x42] sm:$0xff]
        %v1187 = vld [vmem:[%s496 + $0x4a] sm:$0xff]
        %v1188 = vld [vmem:[%s496 + $0x52] sm:$0xff]
        %v1189 = vld [vmem:[%s496 + $0x5a] sm:$0xff]
        %v1190 = vld [vmem:[%s496 + $0x62] sm:$0xff]
        %v1191 = vld [vmem:[%s496 + $0x6a] sm:$0xff]
        %v1192 = vld [vmem:[%s496 + $0x72] sm:$0xff]
        %v1193 = vld [vmem:[%s496 + $0x7a] sm:$0xff]
        %v1194 = vld [vmem:[%s496 + $0x82] sm:$0xff]
        %v1195 = vld [vmem:[%s496 + $0x8a] sm:$0xff]
        %v1196 = vld [vmem:[%s496 + $0x92] sm:$0xff]
        %v1197 = vld [vmem:[%s496 + $0x9a] sm:$0xff]
        %v1198 = vld [vmem:[%s496 + $0xa2] sm:$0xff]
        %v1199 = vld [vmem:[%s496 + $0xaa] sm:$0xff]
        %v1200 = vld [vmem:[%s496 + $0xb2] sm:$0xff]
        %v1201 = vld [vmem:[%s496 + $0xba] sm:$0xff]
        %v1202 = vld [vmem:[%s496 + $0xc2] sm:$0xff]
        %v1203 = vld [vmem:[%s496 + $0xca] sm:$0xff]
        %v1204 = vld [vmem:[%s496 + $0xd2] sm:$0xff]
        %v1205 = vld [vmem:[%s496 + $0xda] sm:$0xff]
        %v1206 = vld [vmem:[%s496 + $0xe2] sm:$0xff]
        %v1207 = vld [vmem:[%s496 + $0xea] sm:$0xff]
        %v1208 = vld [vmem:[%s496 + $0xf2] sm:$0xff]
        %v1209 = vld [vmem:[%s496 + $0xfa] sm:$0xff]
        %v1210 = vld [vmem:[%s496 + $0x102] sm:$0xff]
        %v1211 = vld [vmem:[%s496 + $0x10a] sm:$0xff]
        %v1212 = vld [vmem:[%s496 + $0x112] sm:$0xff]
        %v1213 = vld [vmem:[%s496 + $0x11a] sm:$0xff]
        %v1214 = vld [vmem:[%s496 + $0x122] sm:$0xff]
        %v1215 = vld [vmem:[%s496 + $0x12a] sm:$0xff]
        %v1216 = vld [vmem:[%s496 + $0x132] sm:$0xff]
        %v1217 = vld [vmem:[%s496 + $0x13a] sm:$0xff]
        %v1218 = vld [vmem:[%s496 + $0x142] sm:$0xf]
        %s1219 = scalar_lea.vmem %s2, 8
        %v1220 = vld [vmem:[%s1219] sm:$0xf]
        %v1222 = vsel %vm644, %v1178, 0
        %v1225 = vsel %vm644, %v1179, 0
        %v1228 = vsel %vm644, %v1180, 0
        %v1231 = vsel %vm644, %v1181, 0
        %v1234 = vsel %vm644, %v1182, 0
        %v1237 = vsel %vm644, %v1183, 0
        %v1240 = vsel %vm644, %v1184, 0
        %v1243 = vsel %vm644, %v1185, 0
        %v1246 = vsel %vm644, %v1186, 0
        %v1249 = vsel %vm644, %v1187, 0
        %v1252 = vsel %vm644, %v1188, 0
        %v1255 = vsel %vm644, %v1189, 0
        %v1258 = vsel %vm644, %v1190, 0
        %v1261 = vsel %vm644, %v1191, 0
        %v1264 = vsel %vm644, %v1192, 0
        %v1267 = vsel %vm644, %v1193, 0
        %v1270 = vsel %vm644, %v1194, 0
        %v1273 = vsel %vm644, %v1195, 0
        %v1276 = vsel %vm644, %v1196, 0
        %v1279 = vsel %vm644, %v1197, 0
        %v1282 = vsel %vm644, %v1198, 0
        %v1285 = vsel %vm644, %v1199, 0
        %v1288 = vsel %vm644, %v1200, 0
        %v1291 = vsel %vm644, %v1201, 0
        %v1294 = vsel %vm644, %v1202, 0
        %v1297 = vsel %vm644, %v1203, 0
        %v1300 = vsel %vm644, %v1204, 0
        %v1303 = vsel %vm644, %v1205, 0
        %v1306 = vsel %vm644, %v1206, 0
        %v1309 = vsel %vm644, %v1207, 0
        %v1312 = vsel %vm644, %v1208, 0
        %v1315 = vsel %vm644, %v1209, 0
        %v1318 = vsel %vm644, %v1210, 0
        %v1321 = vsel %vm644, %v1211, 0
        %v1324 = vsel %vm644, %v1212, 0
        %v1327 = vsel %vm644, %v1213, 0
        %v1330 = vsel %vm644, %v1214, 0
        %v1333 = vsel %vm644, %v1215, 0
        %v1336 = vsel %vm644, %v1216, 0
        %v1339 = vsel %vm644, %v1217, 0
        %v1342 = vsel %vm644, %v1218, 0
        %v1345 = vsel %vm768, %v1220, 0
        %1347 = vmatpush.msra.mxu0 0.0
        %1348 = vmatpush.msra.mxu0 0.0
        %1349 = vmatpush.msra.mxu0 0.0
        %1350 = vmatpush.msra.mxu0 0.0
        %1351 = vmatpush.msra.mxu0 0.0
        %1352 = vmatpush.msra.mxu0 0.0
        %1353 = vmatpush.msra.mxu0 0.0
        %1354 = vmatpush.msra.mxu0 0.0
        %1355 = vmatpush.msra.mxu0 0.0
        %1356 = vmatpush.msra.mxu0 0.0
        %1357 = vmatpush.msra.mxu0 0.0
        %1358 = vmatpush.msra.mxu0 0.0
        %1359 = vmatpush.msra.mxu0 0.0
        %1360 = vmatpush.msra.mxu0 0.0
        %1361 = vmatpush.msra.mxu0 0.0
        %1362 = vmatpush.msra.mxu0 %v1345
        %1363 = vmatmul.f32.gmra.mxu0 %v1222
        %v1364 = vpop.f32.mrf.mxu0
        %v1365 = vadd.f32 0.0, %v1364
        %1366 = vmatmul.f32.gmra.mxu0 %v1225
        %v1367 = vpop.f32.mrf.mxu0
        %v1368 = vadd.f32 0.0, %v1367
        %1369 = vmatmul.f32.gmra.mxu0 %v1228
        %v1370 = vpop.f32.mrf.mxu0
        %v1371 = vadd.f32 0.0, %v1370
        %1372 = vmatmul.f32.gmra.mxu0 %v1231
        %v1373 = vpop.f32.mrf.mxu0
        %v1374 = vadd.f32 0.0, %v1373
        %1375 = vmatmul.f32.gmra.mxu0 %v1234
        %v1376 = vpop.f32.mrf.mxu0
        %v1377 = vadd.f32 0.0, %v1376
        %1378 = vmatmul.f32.gmra.mxu0 %v1237
        %v1379 = vpop.f32.mrf.mxu0
        %v1380 = vadd.f32 0.0, %v1379
        %1381 = vmatmul.f32.gmra.mxu0 %v1240
        %v1382 = vpop.f32.mrf.mxu0
        %v1383 = vadd.f32 0.0, %v1382
        %1384 = vmatmul.f32.gmra.mxu0 %v1243
        %v1385 = vpop.f32.mrf.mxu0
        %v1386 = vadd.f32 0.0, %v1385
        %1387 = vmatmul.f32.gmra.mxu0 %v1246
        %v1388 = vpop.f32.mrf.mxu0
        %v1389 = vadd.f32 0.0, %v1388
        %1390 = vmatmul.f32.gmra.mxu0 %v1249
        %v1391 = vpop.f32.mrf.mxu0
        %v1392 = vadd.f32 0.0, %v1391
        %1393 = vmatmul.f32.gmra.mxu0 %v1252
        %v1394 = vpop.f32.mrf.mxu0
        %v1395 = vadd.f32 0.0, %v1394
        %1396 = vmatmul.f32.gmra.mxu0 %v1255
        %v1397 = vpop.f32.mrf.mxu0
        %v1398 = vadd.f32 0.0, %v1397
        %1399 = vmatmul.f32.gmra.mxu0 %v1258
        %v1400 = vpop.f32.mrf.mxu0
        %v1401 = vadd.f32 0.0, %v1400
        %1402 = vmatmul.f32.gmra.mxu0 %v1261
        %v1403 = vpop.f32.mrf.mxu0
        %v1404 = vadd.f32 0.0, %v1403
        %1405 = vmatmul.f32.gmra.mxu0 %v1264
        %v1406 = vpop.f32.mrf.mxu0
        %v1407 = vadd.f32 0.0, %v1406
        %1408 = vmatmul.f32.gmra.mxu0 %v1267
        %v1409 = vpop.f32.mrf.mxu0
        %v1410 = vadd.f32 0.0, %v1409
        %1411 = vmatmul.f32.gmra.mxu0 %v1270
        %v1412 = vpop.f32.mrf.mxu0
        %v1413 = vadd.f32 0.0, %v1412
        %1414 = vmatmul.f32.gmra.mxu0 %v1273
        %v1415 = vpop.f32.mrf.mxu0
        %v1416 = vadd.f32 0.0, %v1415
        %1417 = vmatmul.f32.gmra.mxu0 %v1276
        %v1418 = vpop.f32.mrf.mxu0
        %v1419 = vadd.f32 0.0, %v1418
        %1420 = vmatmul.f32.gmra.mxu0 %v1279
        %v1421 = vpop.f32.mrf.mxu0
        %v1422 = vadd.f32 0.0, %v1421
        %1423 = vmatmul.f32.gmra.mxu0 %v1282
        %v1424 = vpop.f32.mrf.mxu0
        %v1425 = vadd.f32 0.0, %v1424
        %1426 = vmatmul.f32.gmra.mxu0 %v1285
        %v1427 = vpop.f32.mrf.mxu0
        %v1428 = vadd.f32 0.0, %v1427
        %1429 = vmatmul.f32.gmra.mxu0 %v1288
        %v1430 = vpop.f32.mrf.mxu0
        %v1431 = vadd.f32 0.0, %v1430
        %1432 = vmatmul.f32.gmra.mxu0 %v1291
        %v1433 = vpop.f32.mrf.mxu0
        %v1434 = vadd.f32 0.0, %v1433
        %1435 = vmatmul.f32.gmra.mxu0 %v1294
        %v1436 = vpop.f32.mrf.mxu0
        %v1437 = vadd.f32 0.0, %v1436
        %1438 = vmatmul.f32.gmra.mxu0 %v1297
        %v1439 = vpop.f32.mrf.mxu0
        %v1440 = vadd.f32 0.0, %v1439
        %1441 = vmatmul.f32.gmra.mxu0 %v1300
        %v1442 = vpop.f32.mrf.mxu0
        %v1443 = vadd.f32 0.0, %v1442
        %1444 = vmatmul.f32.gmra.mxu0 %v1303
        %v1445 = vpop.f32.mrf.mxu0
        %v1446 = vadd.f32 0.0, %v1445
        %1447 = vmatmul.f32.gmra.mxu0 %v1306
        %v1448 = vpop.f32.mrf.mxu0
        %v1449 = vadd.f32 0.0, %v1448
        %1450 = vmatmul.f32.gmra.mxu0 %v1309
        %v1451 = vpop.f32.mrf.mxu0
        %v1452 = vadd.f32 0.0, %v1451
        %1453 = vmatmul.f32.gmra.mxu0 %v1312
        %v1454 = vpop.f32.mrf.mxu0
        %v1455 = vadd.f32 0.0, %v1454
        %1456 = vmatmul.f32.gmra.mxu0 %v1315
        %v1457 = vpop.f32.mrf.mxu0
        %v1458 = vadd.f32 0.0, %v1457
        %1459 = vmatmul.f32.gmra.mxu0 %v1318
        %v1460 = vpop.f32.mrf.mxu0
        %v1461 = vadd.f32 0.0, %v1460
        %1462 = vmatmul.f32.gmra.mxu0 %v1321
        %v1463 = vpop.f32.mrf.mxu0
        %v1464 = vadd.f32 0.0, %v1463
        %1465 = vmatmul.f32.gmra.mxu0 %v1324
        %v1466 = vpop.f32.mrf.mxu0
        %v1467 = vadd.f32 0.0, %v1466
        %1468 = vmatmul.f32.gmra.mxu0 %v1327
        %v1469 = vpop.f32.mrf.mxu0
        %v1470 = vadd.f32 0.0, %v1469
        %1471 = vmatmul.f32.gmra.mxu0 %v1330
        %v1472 = vpop.f32.mrf.mxu0
        %v1473 = vadd.f32 0.0, %v1472
        %1474 = vmatmul.f32.gmra.mxu0 %v1333
        %v1475 = vpop.f32.mrf.mxu0
        %v1476 = vadd.f32 0.0, %v1475
        %1477 = vmatmul.f32.gmra.mxu0 %v1336
        %v1478 = vpop.f32.mrf.mxu0
        %v1479 = vadd.f32 0.0, %v1478
        %1480 = vmatmul.f32.gmra.mxu0 %v1339
        %v1481 = vpop.f32.mrf.mxu0
        %v1482 = vadd.f32 0.0, %v1481
        %1483 = vmatmul.f32.gmra.mxu0 %v1342
        %v1484 = vpop.f32.mrf.mxu0
        %v1485 = vadd.f32 0.0, %v1484
        %1486 = vdwg.mxu0
        %v1487 = vadd.f32 %v1056, %v1365
        %v1488 = vadd.f32 %v1059, %v1368
        %v1489 = vadd.f32 %v1062, %v1371
        %v1490 = vadd.f32 %v1065, %v1374
        %v1491 = vadd.f32 %v1068, %v1377
        %v1492 = vadd.f32 %v1071, %v1380
        %v1493 = vadd.f32 %v1074, %v1383
        %v1494 = vadd.f32 %v1077, %v1386
        %v1495 = vadd.f32 %v1080, %v1389
        %v1496 = vadd.f32 %v1083, %v1392
        %v1497 = vadd.f32 %v1086, %v1395
        %v1498 = vadd.f32 %v1089, %v1398
        %v1499 = vadd.f32 %v1092, %v1401
        %v1500 = vadd.f32 %v1095, %v1404
        %v1501 = vadd.f32 %v1098, %v1407
        %v1502 = vadd.f32 %v1101, %v1410
        %v1503 = vadd.f32 %v1104, %v1413
        %v1504 = vadd.f32 %v1107, %v1416
        %v1505 = vadd.f32 %v1110, %v1419
        %v1506 = vadd.f32 %v1113, %v1422
        %v1507 = vadd.f32 %v1116, %v1425
        %v1508 = vadd.f32 %v1119, %v1428
        %v1509 = vadd.f32 %v1122, %v1431
        %v1510 = vadd.f32 %v1125, %v1434
        %v1511 = vadd.f32 %v1128, %v1437
        %v1512 = vadd.f32 %v1131, %v1440
        %v1513 = vadd.f32 %v1134, %v1443
        %v1514 = vadd.f32 %v1137, %v1446
        %v1515 = vadd.f32 %v1140, %v1449
        %v1516 = vadd.f32 %v1143, %v1452
        %v1517 = vadd.f32 %v1146, %v1455
        %v1518 = vadd.f32 %v1149, %v1458
        %v1519 = vadd.f32 %v1152, %v1461
        %v1520 = vadd.f32 %v1155, %v1464
        %v1521 = vadd.f32 %v1158, %v1467
        %v1522 = vadd.f32 %v1161, %v1470
        %v1523 = vadd.f32 %v1164, %v1473
        %v1524 = vadd.f32 %v1167, %v1476
        %v1525 = vadd.f32 %v1170, %v1479
        %v1526 = vadd.f32 %v1173, %v1482
        %v1527 = vadd.f32 %v1176, %v1485
        %v1528 = vld [vmem:[%s496 + $0x12] sm:$0xff]
        %v1529 = vld [vmem:[%s496 + $0x1a] sm:$0xff]
        %v1530 = vld [vmem:[%s496 + $0x22] sm:$0xff]
        %v1531 = vld [vmem:[%s496 + $0x2a] sm:$0xff]
        %v1532 = vld [vmem:[%s496 + $0x32] sm:$0xff]
        %v1533 = vld [vmem:[%s496 + $0x3a] sm:$0xff]
        %v1534 = vld [vmem:[%s496 + $0x42] sm:$0xff]
        %v1535 = vld [vmem:[%s496 + $0x4a] sm:$0xff]
        %v1536 = vld [vmem:[%s496 + $0x52] sm:$0xff]
        %v1537 = vld [vmem:[%s496 + $0x5a] sm:$0xff]
        %v1538 = vld [vmem:[%s496 + $0x62] sm:$0xff]
        %v1539 = vld [vmem:[%s496 + $0x6a] sm:$0xff]
        %v1540 = vld [vmem:[%s496 + $0x72] sm:$0xff]
        %v1541 = vld [vmem:[%s496 + $0x7a] sm:$0xff]
        %v1542 = vld [vmem:[%s496 + $0x82] sm:$0xff]
        %v1543 = vld [vmem:[%s496 + $0x8a] sm:$0xff]
        %v1544 = vld [vmem:[%s496 + $0x92] sm:$0xff]
        %v1545 = vld [vmem:[%s496 + $0x9a] sm:$0xff]
        %v1546 = vld [vmem:[%s496 + $0xa2] sm:$0xff]
        %v1547 = vld [vmem:[%s496 + $0xaa] sm:$0xff]
        %v1548 = vld [vmem:[%s496 + $0xb2] sm:$0xff]
        %v1549 = vld [vmem:[%s496 + $0xba] sm:$0xff]
        %v1550 = vld [vmem:[%s496 + $0xc2] sm:$0xff]
        %v1551 = vld [vmem:[%s496 + $0xca] sm:$0xff]
        %v1552 = vld [vmem:[%s496 + $0xd2] sm:$0xff]
        %v1553 = vld [vmem:[%s496 + $0xda] sm:$0xff]
        %v1554 = vld [vmem:[%s496 + $0xe2] sm:$0xff]
        %v1555 = vld [vmem:[%s496 + $0xea] sm:$0xff]
        %v1556 = vld [vmem:[%s496 + $0xf2] sm:$0xff]
        %v1557 = vld [vmem:[%s496 + $0xfa] sm:$0xff]
        %v1558 = vld [vmem:[%s496 + $0x102] sm:$0xff]
        %v1559 = vld [vmem:[%s496 + $0x10a] sm:$0xff]
        %v1560 = vld [vmem:[%s496 + $0x112] sm:$0xff]
        %v1561 = vld [vmem:[%s496 + $0x11a] sm:$0xff]
        %v1562 = vld [vmem:[%s496 + $0x122] sm:$0xff]
        %v1563 = vld [vmem:[%s496 + $0x12a] sm:$0xff]
        %v1564 = vld [vmem:[%s496 + $0x132] sm:$0xff]
        %v1565 = vld [vmem:[%s496 + $0x13a] sm:$0xff]
        %v1566 = vld [vmem:[%s496 + $0x142] sm:$0xff]
        %v1567 = vld [vmem:[%s496 + $0x14a] sm:$0xff]
        %v1568 = vld [vmem:[%s496 + $0x152] sm:$0xf]
        %s1569 = scalar_lea.vmem %s2, 12
        %v1570 = vld [vmem:[%s1569] sm:$0xf]
        %v1572 = vsel %vm644, %v1528, 0
        %v1575 = vsel %vm644, %v1529, 0
        %v1578 = vsel %vm644, %v1530, 0
        %v1581 = vsel %vm644, %v1531, 0
        %v1584 = vsel %vm644, %v1532, 0
        %v1587 = vsel %vm644, %v1533, 0
        %v1590 = vsel %vm644, %v1534, 0
        %v1593 = vsel %vm644, %v1535, 0
        %v1596 = vsel %vm644, %v1536, 0
        %v1599 = vsel %vm644, %v1537, 0
        %v1602 = vsel %vm644, %v1538, 0
        %v1605 = vsel %vm644, %v1539, 0
        %v1608 = vsel %vm644, %v1540, 0
        %v1611 = vsel %vm644, %v1541, 0
        %v1614 = vsel %vm644, %v1542, 0
        %v1617 = vsel %vm644, %v1543, 0
        %v1620 = vsel %vm644, %v1544, 0
        %v1623 = vsel %vm644, %v1545, 0
        %v1626 = vsel %vm644, %v1546, 0
        %v1629 = vsel %vm644, %v1547, 0
        %v1632 = vsel %vm644, %v1548, 0
        %v1635 = vsel %vm644, %v1549, 0
        %v1638 = vsel %vm644, %v1550, 0
        %v1641 = vsel %vm644, %v1551, 0
        %v1644 = vsel %vm644, %v1552, 0
        %v1647 = vsel %vm644, %v1553, 0
        %v1650 = vsel %vm644, %v1554, 0
        %v1653 = vsel %vm644, %v1555, 0
        %v1656 = vsel %vm644, %v1556, 0
        %v1659 = vsel %vm644, %v1557, 0
        %v1662 = vsel %vm644, %v1558, 0
        %v1665 = vsel %vm644, %v1559, 0
        %v1668 = vsel %vm644, %v1560, 0
        %v1671 = vsel %vm644, %v1561, 0
        %v1674 = vsel %vm644, %v1562, 0
        %v1677 = vsel %vm644, %v1563, 0
        %v1680 = vsel %vm644, %v1564, 0
        %v1683 = vsel %vm644, %v1565, 0
        %v1686 = vsel %vm644, %v1566, 0
        %v1689 = vsel %vm644, %v1567, 0
        %v1692 = vsel %vm644, %v1568, 0
        %v1695 = vsel %vm768, %v1570, 0
        %1697 = vmatpush.msra.mxu0 0.0
        %1698 = vmatpush.msra.mxu0 0.0
        %1699 = vmatpush.msra.mxu0 0.0
        %1700 = vmatpush.msra.mxu0 0.0
        %1701 = vmatpush.msra.mxu0 0.0
        %1702 = vmatpush.msra.mxu0 0.0
        %1703 = vmatpush.msra.mxu0 0.0
        %1704 = vmatpush.msra.mxu0 0.0
        %1705 = vmatpush.msra.mxu0 0.0
        %1706 = vmatpush.msra.mxu0 0.0
        %1707 = vmatpush.msra.mxu0 0.0
        %1708 = vmatpush.msra.mxu0 0.0
        %1709 = vmatpush.msra.mxu0 0.0
        %1710 = vmatpush.msra.mxu0 0.0
        %1711 = vmatpush.msra.mxu0 0.0
        %1712 = vmatpush.msra.mxu0 %v1695
        %1713 = vmatmul.f32.gmra.mxu0 %v1572
        %v1714 = vpop.f32.mrf.mxu0
        %v1715 = vadd.f32 0.0, %v1714
        %1716 = vmatmul.f32.gmra.mxu0 %v1575
        %v1717 = vpop.f32.mrf.mxu0
        %v1718 = vadd.f32 0.0, %v1717
        %1719 = vmatmul.f32.gmra.mxu0 %v1578
        %v1720 = vpop.f32.mrf.mxu0
        %v1721 = vadd.f32 0.0, %v1720
        %1722 = vmatmul.f32.gmra.mxu0 %v1581
        %v1723 = vpop.f32.mrf.mxu0
        %v1724 = vadd.f32 0.0, %v1723
        %1725 = vmatmul.f32.gmra.mxu0 %v1584
        %v1726 = vpop.f32.mrf.mxu0
        %v1727 = vadd.f32 0.0, %v1726
        %1728 = vmatmul.f32.gmra.mxu0 %v1587
        %v1729 = vpop.f32.mrf.mxu0
        %v1730 = vadd.f32 0.0, %v1729
        %1731 = vmatmul.f32.gmra.mxu0 %v1590
        %v1732 = vpop.f32.mrf.mxu0
        %v1733 = vadd.f32 0.0, %v1732
        %1734 = vmatmul.f32.gmra.mxu0 %v1593
        %v1735 = vpop.f32.mrf.mxu0
        %v1736 = vadd.f32 0.0, %v1735
        %1737 = vmatmul.f32.gmra.mxu0 %v1596
        %v1738 = vpop.f32.mrf.mxu0
        %v1739 = vadd.f32 0.0, %v1738
        %1740 = vmatmul.f32.gmra.mxu0 %v1599
        %v1741 = vpop.f32.mrf.mxu0
        %v1742 = vadd.f32 0.0, %v1741
        %1743 = vmatmul.f32.gmra.mxu0 %v1602
        %v1744 = vpop.f32.mrf.mxu0
        %v1745 = vadd.f32 0.0, %v1744
        %1746 = vmatmul.f32.gmra.mxu0 %v1605
        %v1747 = vpop.f32.mrf.mxu0
        %v1748 = vadd.f32 0.0, %v1747
        %1749 = vmatmul.f32.gmra.mxu0 %v1608
        %v1750 = vpop.f32.mrf.mxu0
        %v1751 = vadd.f32 0.0, %v1750
        %1752 = vmatmul.f32.gmra.mxu0 %v1611
        %v1753 = vpop.f32.mrf.mxu0
        %v1754 = vadd.f32 0.0, %v1753
        %1755 = vmatmul.f32.gmra.mxu0 %v1614
        %v1756 = vpop.f32.mrf.mxu0
        %v1757 = vadd.f32 0.0, %v1756
        %1758 = vmatmul.f32.gmra.mxu0 %v1617
        %v1759 = vpop.f32.mrf.mxu0
        %v1760 = vadd.f32 0.0, %v1759
        %1761 = vmatmul.f32.gmra.mxu0 %v1620
        %v1762 = vpop.f32.mrf.mxu0
        %v1763 = vadd.f32 0.0, %v1762
        %1764 = vmatmul.f32.gmra.mxu0 %v1623
        %v1765 = vpop.f32.mrf.mxu0
        %v1766 = vadd.f32 0.0, %v1765
        %1767 = vmatmul.f32.gmra.mxu0 %v1626
        %v1768 = vpop.f32.mrf.mxu0
        %v1769 = vadd.f32 0.0, %v1768
        %1770 = vmatmul.f32.gmra.mxu0 %v1629
        %v1771 = vpop.f32.mrf.mxu0
        %v1772 = vadd.f32 0.0, %v1771
        %1773 = vmatmul.f32.gmra.mxu0 %v1632
        %v1774 = vpop.f32.mrf.mxu0
        %v1775 = vadd.f32 0.0, %v1774
        %1776 = vmatmul.f32.gmra.mxu0 %v1635
        %v1777 = vpop.f32.mrf.mxu0
        %v1778 = vadd.f32 0.0, %v1777
        %1779 = vmatmul.f32.gmra.mxu0 %v1638
        %v1780 = vpop.f32.mrf.mxu0
        %v1781 = vadd.f32 0.0, %v1780
        %1782 = vmatmul.f32.gmra.mxu0 %v1641
        %v1783 = vpop.f32.mrf.mxu0
        %v1784 = vadd.f32 0.0, %v1783
        %1785 = vmatmul.f32.gmra.mxu0 %v1644
        %v1786 = vpop.f32.mrf.mxu0
        %v1787 = vadd.f32 0.0, %v1786
        %1788 = vmatmul.f32.gmra.mxu0 %v1647
        %v1789 = vpop.f32.mrf.mxu0
        %v1790 = vadd.f32 0.0, %v1789
        %1791 = vmatmul.f32.gmra.mxu0 %v1650
        %v1792 = vpop.f32.mrf.mxu0
        %v1793 = vadd.f32 0.0, %v1792
        %1794 = vmatmul.f32.gmra.mxu0 %v1653
        %v1795 = vpop.f32.mrf.mxu0
        %v1796 = vadd.f32 0.0, %v1795
        %1797 = vmatmul.f32.gmra.mxu0 %v1656
        %v1798 = vpop.f32.mrf.mxu0
        %v1799 = vadd.f32 0.0, %v1798
        %1800 = vmatmul.f32.gmra.mxu0 %v1659
        %v1801 = vpop.f32.mrf.mxu0
        %v1802 = vadd.f32 0.0, %v1801
        %1803 = vmatmul.f32.gmra.mxu0 %v1662
        %v1804 = vpop.f32.mrf.mxu0
        %v1805 = vadd.f32 0.0, %v1804
        %1806 = vmatmul.f32.gmra.mxu0 %v1665
        %v1807 = vpop.f32.mrf.mxu0
        %v1808 = vadd.f32 0.0, %v1807
        %1809 = vmatmul.f32.gmra.mxu0 %v1668
        %v1810 = vpop.f32.mrf.mxu0
        %v1811 = vadd.f32 0.0, %v1810
        %1812 = vmatmul.f32.gmra.mxu0 %v1671
        %v1813 = vpop.f32.mrf.mxu0
        %v1814 = vadd.f32 0.0, %v1813
        %1815 = vmatmul.f32.gmra.mxu0 %v1674
        %v1816 = vpop.f32.mrf.mxu0
        %v1817 = vadd.f32 0.0, %v1816
        %1818 = vmatmul.f32.gmra.mxu0 %v1677
        %v1819 = vpop.f32.mrf.mxu0
        %v1820 = vadd.f32 0.0, %v1819
        %1821 = vmatmul.f32.gmra.mxu0 %v1680
        %v1822 = vpop.f32.mrf.mxu0
        %v1823 = vadd.f32 0.0, %v1822
        %1824 = vmatmul.f32.gmra.mxu0 %v1683
        %v1825 = vpop.f32.mrf.mxu0
        %v1826 = vadd.f32 0.0, %v1825
        %1827 = vmatmul.f32.gmra.mxu0 %v1686
        %v1828 = vpop.f32.mrf.mxu0
        %v1829 = vadd.f32 0.0, %v1828
        %1830 = vmatmul.f32.gmra.mxu0 %v1689
        %v1831 = vpop.f32.mrf.mxu0
        %v1832 = vadd.f32 0.0, %v1831
        %1833 = vmatmul.f32.gmra.mxu0 %v1692
        %v1834 = vpop.f32.mrf.mxu0
        %v1835 = vadd.f32 0.0, %v1834
        %1836 = vdwg.mxu0
        %v1837 = vadd.f32 %v1487, %v1715
        %v1838 = vadd.f32 %v1488, %v1718
        %v1839 = vadd.f32 %v1489, %v1721
        %v1840 = vadd.f32 %v1490, %v1724
        %v1841 = vadd.f32 %v1491, %v1727
        %v1842 = vadd.f32 %v1492, %v1730
        %v1843 = vadd.f32 %v1493, %v1733
        %v1844 = vadd.f32 %v1494, %v1736
        %v1845 = vadd.f32 %v1495, %v1739
        %v1846 = vadd.f32 %v1496, %v1742
        %v1847 = vadd.f32 %v1497, %v1745
        %v1848 = vadd.f32 %v1498, %v1748
        %v1849 = vadd.f32 %v1499, %v1751
        %v1850 = vadd.f32 %v1500, %v1754
        %v1851 = vadd.f32 %v1501, %v1757
        %v1852 = vadd.f32 %v1502, %v1760
        %v1853 = vadd.f32 %v1503, %v1763
        %v1854 = vadd.f32 %v1504, %v1766
        %v1855 = vadd.f32 %v1505, %v1769
        %v1856 = vadd.f32 %v1506, %v1772
        %v1857 = vadd.f32 %v1507, %v1775
        %v1858 = vadd.f32 %v1508, %v1778
        %v1859 = vadd.f32 %v1509, %v1781
        %v1860 = vadd.f32 %v1510, %v1784
        %v1861 = vadd.f32 %v1511, %v1787
        %v1862 = vadd.f32 %v1512, %v1790
        %v1863 = vadd.f32 %v1513, %v1793
        %v1864 = vadd.f32 %v1514, %v1796
        %v1865 = vadd.f32 %v1515, %v1799
        %v1866 = vadd.f32 %v1516, %v1802
        %v1867 = vadd.f32 %v1517, %v1805
        %v1868 = vadd.f32 %v1518, %v1808
        %v1869 = vadd.f32 %v1519, %v1811
        %v1870 = vadd.f32 %v1520, %v1814
        %v1871 = vadd.f32 %v1521, %v1817
        %v1872 = vadd.f32 %v1522, %v1820
        %v1873 = vadd.f32 %v1523, %v1823
        %v1874 = vadd.f32 %v1524, %v1826
        %v1875 = vadd.f32 %v1525, %v1829
        %v1876 = vadd.f32 %v1526, %v1832
        %v1877 = vadd.f32 %v1527, %v1835
        %v1878 = vld [vmem:[%s496 + $0x13] sm:$0xff]
        %v1879 = vld [vmem:[%s496 + $0x1b] sm:$0xff]
        %v1880 = vld [vmem:[%s496 + $0x23] sm:$0xff]
        %v1881 = vld [vmem:[%s496 + $0x2b] sm:$0xff]
        %v1882 = vld [vmem:[%s496 + $0x33] sm:$0xff]
        %v1883 = vld [vmem:[%s496 + $0x3b] sm:$0xff]
        %v1884 = vld [vmem:[%s496 + $0x43] sm:$0xff]
        %v1885 = vld [vmem:[%s496 + $0x4b] sm:$0xff]
        %v1886 = vld [vmem:[%s496 + $0x53] sm:$0xff]
        %v1887 = vld [vmem:[%s496 + $0x5b] sm:$0xff]
        %v1888 = vld [vmem:[%s496 + $0x63] sm:$0xff]
        %v1889 = vld [vmem:[%s496 + $0x6b] sm:$0xff]
        %v1890 = vld [vmem:[%s496 + $0x73] sm:$0xff]
        %v1891 = vld [vmem:[%s496 + $0x7b] sm:$0xff]
        %v1892 = vld [vmem:[%s496 + $0x83] sm:$0xff]
        %v1893 = vld [vmem:[%s496 + $0x8b] sm:$0xff]
        %v1894 = vld [vmem:[%s496 + $0x93] sm:$0xff]
        %v1895 = vld [vmem:[%s496 + $0x9b] sm:$0xff]
        %v1896 = vld [vmem:[%s496 + $0xa3] sm:$0xff]
        %v1897 = vld [vmem:[%s496 + $0xab] sm:$0xff]
        %v1898 = vld [vmem:[%s496 + $0xb3] sm:$0xff]
        %v1899 = vld [vmem:[%s496 + $0xbb] sm:$0xff]
        %v1900 = vld [vmem:[%s496 + $0xc3] sm:$0xff]
        %v1901 = vld [vmem:[%s496 + $0xcb] sm:$0xff]
        %v1902 = vld [vmem:[%s496 + $0xd3] sm:$0xff]
        %v1903 = vld [vmem:[%s496 + $0xdb] sm:$0xff]
        %v1904 = vld [vmem:[%s496 + $0xe3] sm:$0xff]
        %v1905 = vld [vmem:[%s496 + $0xeb] sm:$0xff]
        %v1906 = vld [vmem:[%s496 + $0xf3] sm:$0xff]
        %v1907 = vld [vmem:[%s496 + $0xfb] sm:$0xff]
        %v1908 = vld [vmem:[%s496 + $0x103] sm:$0xff]
        %v1909 = vld [vmem:[%s496 + $0x10b] sm:$0xff]
        %v1910 = vld [vmem:[%s496 + $0x113] sm:$0xff]
        %v1911 = vld [vmem:[%s496 + $0x11b] sm:$0xff]
        %v1912 = vld [vmem:[%s496 + $0x123] sm:$0xff]
        %v1913 = vld [vmem:[%s496 + $0x12b] sm:$0xff]
        %v1914 = vld [vmem:[%s496 + $0x133] sm:$0xff]
        %v1915 = vld [vmem:[%s496 + $0x13b] sm:$0xff]
        %v1916 = vld [vmem:[%s496 + $0x143] sm:$0xff]
        %v1917 = vld [vmem:[%s496 + $0x14b] sm:$0xff]
        %v1918 = vld [vmem:[%s496 + $0x153] sm:$0xf]
        %s1919 = scalar_lea.vmem %s2, 16
        %v1920 = vld [vmem:[%s1919] sm:$0xf]
        %v1922 = vsel %vm644, %v1878, 0
        %v1925 = vsel %vm644, %v1879, 0
        %v1928 = vsel %vm644, %v1880, 0
        %v1931 = vsel %vm644, %v1881, 0
        %v1934 = vsel %vm644, %v1882, 0
        %v1937 = vsel %vm644, %v1883, 0
        %v1940 = vsel %vm644, %v1884, 0
        %v1943 = vsel %vm644, %v1885, 0
        %v1946 = vsel %vm644, %v1886, 0
        %v1949 = vsel %vm644, %v1887, 0
        %v1952 = vsel %vm644, %v1888, 0
        %v1955 = vsel %vm644, %v1889, 0
        %v1958 = vsel %vm644, %v1890, 0
        %v1961 = vsel %vm644, %v1891, 0
        %v1964 = vsel %vm644, %v1892, 0
        %v1967 = vsel %vm644, %v1893, 0
        %v1970 = vsel %vm644, %v1894, 0
        %v1973 = vsel %vm644, %v1895, 0
        %v1976 = vsel %vm644, %v1896, 0
        %v1979 = vsel %vm644, %v1897, 0
        %v1982 = vsel %vm644, %v1898, 0
        %v1985 = vsel %vm644, %v1899, 0
        %v1988 = vsel %vm644, %v1900, 0
        %v1991 = vsel %vm644, %v1901, 0
        %v1994 = vsel %vm644, %v1902, 0
        %v1997 = vsel %vm644, %v1903, 0
        %v2000 = vsel %vm644, %v1904, 0
        %v2003 = vsel %vm644, %v1905, 0
        %v2006 = vsel %vm644, %v1906, 0
        %v2009 = vsel %vm644, %v1907, 0
        %v2012 = vsel %vm644, %v1908, 0
        %v2015 = vsel %vm644, %v1909, 0
        %v2018 = vsel %vm644, %v1910, 0
        %v2021 = vsel %vm644, %v1911, 0
        %v2024 = vsel %vm644, %v1912, 0
        %v2027 = vsel %vm644, %v1913, 0
        %v2030 = vsel %vm644, %v1914, 0
        %v2033 = vsel %vm644, %v1915, 0
        %v2036 = vsel %vm644, %v1916, 0
        %v2039 = vsel %vm644, %v1917, 0
        %v2042 = vsel %vm644, %v1918, 0
        %v2045 = vsel %vm768, %v1920, 0
        %2047 = vmatpush.msra.mxu0 0.0
        %2048 = vmatpush.msra.mxu0 0.0
        %2049 = vmatpush.msra.mxu0 0.0
        %2050 = vmatpush.msra.mxu0 0.0
        %2051 = vmatpush.msra.mxu0 0.0
        %2052 = vmatpush.msra.mxu0 0.0
        %2053 = vmatpush.msra.mxu0 0.0
        %2054 = vmatpush.msra.mxu0 0.0
        %2055 = vmatpush.msra.mxu0 0.0
        %2056 = vmatpush.msra.mxu0 0.0
        %2057 = vmatpush.msra.mxu0 0.0
        %2058 = vmatpush.msra.mxu0 0.0
        %2059 = vmatpush.msra.mxu0 0.0
        %2060 = vmatpush.msra.mxu0 0.0
        %2061 = vmatpush.msra.mxu0 0.0
        %2062 = vmatpush.msra.mxu0 %v2045
        %2063 = vmatmul.f32.gmra.mxu0 %v1922
        %v2064 = vpop.f32.mrf.mxu0
        %v2065 = vadd.f32 0.0, %v2064
        %2066 = vmatmul.f32.gmra.mxu0 %v1925
        %v2067 = vpop.f32.mrf.mxu0
        %v2068 = vadd.f32 0.0, %v2067
        %2069 = vmatmul.f32.gmra.mxu0 %v1928
        %v2070 = vpop.f32.mrf.mxu0
        %v2071 = vadd.f32 0.0, %v2070
        %2072 = vmatmul.f32.gmra.mxu0 %v1931
        %v2073 = vpop.f32.mrf.mxu0
        %v2074 = vadd.f32 0.0, %v2073
        %2075 = vmatmul.f32.gmra.mxu0 %v1934
        %v2076 = vpop.f32.mrf.mxu0
        %v2077 = vadd.f32 0.0, %v2076
        %2078 = vmatmul.f32.gmra.mxu0 %v1937
        %v2079 = vpop.f32.mrf.mxu0
        %v2080 = vadd.f32 0.0, %v2079
        %2081 = vmatmul.f32.gmra.mxu0 %v1940
        %v2082 = vpop.f32.mrf.mxu0
        %v2083 = vadd.f32 0.0, %v2082
        %2084 = vmatmul.f32.gmra.mxu0 %v1943
        %v2085 = vpop.f32.mrf.mxu0
        %v2086 = vadd.f32 0.0, %v2085
        %2087 = vmatmul.f32.gmra.mxu0 %v1946
        %v2088 = vpop.f32.mrf.mxu0
        %v2089 = vadd.f32 0.0, %v2088
        %2090 = vmatmul.f32.gmra.mxu0 %v1949
        %v2091 = vpop.f32.mrf.mxu0
        %v2092 = vadd.f32 0.0, %v2091
        %2093 = vmatmul.f32.gmra.mxu0 %v1952
        %v2094 = vpop.f32.mrf.mxu0
        %v2095 = vadd.f32 0.0, %v2094
        %2096 = vmatmul.f32.gmra.mxu0 %v1955
        %v2097 = vpop.f32.mrf.mxu0
        %v2098 = vadd.f32 0.0, %v2097
        %2099 = vmatmul.f32.gmra.mxu0 %v1958
        %v2100 = vpop.f32.mrf.mxu0
        %v2101 = vadd.f32 0.0, %v2100
        %2102 = vmatmul.f32.gmra.mxu0 %v1961
        %v2103 = vpop.f32.mrf.mxu0
        %v2104 = vadd.f32 0.0, %v2103
        %2105 = vmatmul.f32.gmra.mxu0 %v1964
        %v2106 = vpop.f32.mrf.mxu0
        %v2107 = vadd.f32 0.0, %v2106
        %2108 = vmatmul.f32.gmra.mxu0 %v1967
        %v2109 = vpop.f32.mrf.mxu0
        %v2110 = vadd.f32 0.0, %v2109
        %2111 = vmatmul.f32.gmra.mxu0 %v1970
        %v2112 = vpop.f32.mrf.mxu0
        %v2113 = vadd.f32 0.0, %v2112
        %2114 = vmatmul.f32.gmra.mxu0 %v1973
        %v2115 = vpop.f32.mrf.mxu0
        %v2116 = vadd.f32 0.0, %v2115
        %2117 = vmatmul.f32.gmra.mxu0 %v1976
        %v2118 = vpop.f32.mrf.mxu0
        %v2119 = vadd.f32 0.0, %v2118
        %2120 = vmatmul.f32.gmra.mxu0 %v1979
        %v2121 = vpop.f32.mrf.mxu0
        %v2122 = vadd.f32 0.0, %v2121
        %2123 = vmatmul.f32.gmra.mxu0 %v1982
        %v2124 = vpop.f32.mrf.mxu0
        %v2125 = vadd.f32 0.0, %v2124
        %2126 = vmatmul.f32.gmra.mxu0 %v1985
        %v2127 = vpop.f32.mrf.mxu0
        %v2128 = vadd.f32 0.0, %v2127
        %2129 = vmatmul.f32.gmra.mxu0 %v1988
        %v2130 = vpop.f32.mrf.mxu0
        %v2131 = vadd.f32 0.0, %v2130
        %2132 = vmatmul.f32.gmra.mxu0 %v1991
        %v2133 = vpop.f32.mrf.mxu0
        %v2134 = vadd.f32 0.0, %v2133
        %2135 = vmatmul.f32.gmra.mxu0 %v1994
        %v2136 = vpop.f32.mrf.mxu0
        %v2137 = vadd.f32 0.0, %v2136
        %2138 = vmatmul.f32.gmra.mxu0 %v1997
        %v2139 = vpop.f32.mrf.mxu0
        %v2140 = vadd.f32 0.0, %v2139
        %2141 = vmatmul.f32.gmra.mxu0 %v2000
        %v2142 = vpop.f32.mrf.mxu0
        %v2143 = vadd.f32 0.0, %v2142
        %2144 = vmatmul.f32.gmra.mxu0 %v2003
        %v2145 = vpop.f32.mrf.mxu0
        %v2146 = vadd.f32 0.0, %v2145
        %2147 = vmatmul.f32.gmra.mxu0 %v2006
        %v2148 = vpop.f32.mrf.mxu0
        %v2149 = vadd.f32 0.0, %v2148
        %2150 = vmatmul.f32.gmra.mxu0 %v2009
        %v2151 = vpop.f32.mrf.mxu0
        %v2152 = vadd.f32 0.0, %v2151
        %2153 = vmatmul.f32.gmra.mxu0 %v2012
        %v2154 = vpop.f32.mrf.mxu0
        %v2155 = vadd.f32 0.0, %v2154
        %2156 = vmatmul.f32.gmra.mxu0 %v2015
        %v2157 = vpop.f32.mrf.mxu0
        %v2158 = vadd.f32 0.0, %v2157
        %2159 = vmatmul.f32.gmra.mxu0 %v2018
        %v2160 = vpop.f32.mrf.mxu0
        %v2161 = vadd.f32 0.0, %v2160
        %2162 = vmatmul.f32.gmra.mxu0 %v2021
        %v2163 = vpop.f32.mrf.mxu0
        %v2164 = vadd.f32 0.0, %v2163
        %2165 = vmatmul.f32.gmra.mxu0 %v2024
        %v2166 = vpop.f32.mrf.mxu0
        %v2167 = vadd.f32 0.0, %v2166
        %2168 = vmatmul.f32.gmra.mxu0 %v2027
        %v2169 = vpop.f32.mrf.mxu0
        %v2170 = vadd.f32 0.0, %v2169
        %2171 = vmatmul.f32.gmra.mxu0 %v2030
        %v2172 = vpop.f32.mrf.mxu0
        %v2173 = vadd.f32 0.0, %v2172
        %2174 = vmatmul.f32.gmra.mxu0 %v2033
        %v2175 = vpop.f32.mrf.mxu0
        %v2176 = vadd.f32 0.0, %v2175
        %2177 = vmatmul.f32.gmra.mxu0 %v2036
        %v2178 = vpop.f32.mrf.mxu0
        %v2179 = vadd.f32 0.0, %v2178
        %2180 = vmatmul.f32.gmra.mxu0 %v2039
        %v2181 = vpop.f32.mrf.mxu0
        %v2182 = vadd.f32 0.0, %v2181
        %2183 = vmatmul.f32.gmra.mxu0 %v2042
        %v2184 = vpop.f32.mrf.mxu0
        %v2185 = vadd.f32 0.0, %v2184
        %2186 = vdwg.mxu0
        %v2187 = vadd.f32 %v1837, %v2065
        %v2188 = vadd.f32 %v1838, %v2068
        %v2189 = vadd.f32 %v1839, %v2071
        %v2190 = vadd.f32 %v1840, %v2074
        %v2191 = vadd.f32 %v1841, %v2077
        %v2192 = vadd.f32 %v1842, %v2080
        %v2193 = vadd.f32 %v1843, %v2083
        %v2194 = vadd.f32 %v1844, %v2086
        %v2195 = vadd.f32 %v1845, %v2089
        %v2196 = vadd.f32 %v1846, %v2092
        %v2197 = vadd.f32 %v1847, %v2095
        %v2198 = vadd.f32 %v1848, %v2098
        %v2199 = vadd.f32 %v1849, %v2101
        %v2200 = vadd.f32 %v1850, %v2104
        %v2201 = vadd.f32 %v1851, %v2107
        %v2202 = vadd.f32 %v1852, %v2110
        %v2203 = vadd.f32 %v1853, %v2113
        %v2204 = vadd.f32 %v1854, %v2116
        %v2205 = vadd.f32 %v1855, %v2119
        %v2206 = vadd.f32 %v1856, %v2122
        %v2207 = vadd.f32 %v1857, %v2125
        %v2208 = vadd.f32 %v1858, %v2128
        %v2209 = vadd.f32 %v1859, %v2131
        %v2210 = vadd.f32 %v1860, %v2134
        %v2211 = vadd.f32 %v1861, %v2137
        %v2212 = vadd.f32 %v1862, %v2140
        %v2213 = vadd.f32 %v1863, %v2143
        %v2214 = vadd.f32 %v1864, %v2146
        %v2215 = vadd.f32 %v1865, %v2149
        %v2216 = vadd.f32 %v1866, %v2152
        %v2217 = vadd.f32 %v1867, %v2155
        %v2218 = vadd.f32 %v1868, %v2158
        %v2219 = vadd.f32 %v1869, %v2161
        %v2220 = vadd.f32 %v1870, %v2164
        %v2221 = vadd.f32 %v1871, %v2167
        %v2222 = vadd.f32 %v1872, %v2170
        %v2223 = vadd.f32 %v1873, %v2173
        %v2224 = vadd.f32 %v1874, %v2176
        %v2225 = vadd.f32 %v1875, %v2179
        %v2226 = vadd.f32 %v1876, %v2182
        %v2227 = vadd.f32 %v1877, %v2185
        %v2228 = vld [vmem:[%s496 + $0x14] sm:$0xff]
        %v2229 = vld [vmem:[%s496 + $0x1c] sm:$0xff]
        %v2230 = vld [vmem:[%s496 + $0x24] sm:$0xff]
        %v2231 = vld [vmem:[%s496 + $0x2c] sm:$0xff]
        %v2232 = vld [vmem:[%s496 + $0x34] sm:$0xff]
        %v2233 = vld [vmem:[%s496 + $0x3c] sm:$0xff]
        %v2234 = vld [vmem:[%s496 + $0x44] sm:$0xff]
        %v2235 = vld [vmem:[%s496 + $0x4c] sm:$0xff]
        %v2236 = vld [vmem:[%s496 + $0x54] sm:$0xff]
        %v2237 = vld [vmem:[%s496 + $0x5c] sm:$0xff]
        %v2238 = vld [vmem:[%s496 + $0x64] sm:$0xff]
        %v2239 = vld [vmem:[%s496 + $0x6c] sm:$0xff]
        %v2240 = vld [vmem:[%s496 + $0x74] sm:$0xff]
        %v2241 = vld [vmem:[%s496 + $0x7c] sm:$0xff]
        %v2242 = vld [vmem:[%s496 + $0x84] sm:$0xff]
        %v2243 = vld [vmem:[%s496 + $0x8c] sm:$0xff]
        %v2244 = vld [vmem:[%s496 + $0x94] sm:$0xff]
        %v2245 = vld [vmem:[%s496 + $0x9c] sm:$0xff]
        %v2246 = vld [vmem:[%s496 + $0xa4] sm:$0xff]
        %v2247 = vld [vmem:[%s496 + $0xac] sm:$0xff]
        %v2248 = vld [vmem:[%s496 + $0xb4] sm:$0xff]
        %v2249 = vld [vmem:[%s496 + $0xbc] sm:$0xff]
        %v2250 = vld [vmem:[%s496 + $0xc4] sm:$0xff]
        %v2251 = vld [vmem:[%s496 + $0xcc] sm:$0xff]
        %v2252 = vld [vmem:[%s496 + $0xd4] sm:$0xff]
        %v2253 = vld [vmem:[%s496 + $0xdc] sm:$0xff]
        %v2254 = vld [vmem:[%s496 + $0xe4] sm:$0xff]
        %v2255 = vld [vmem:[%s496 + $0xec] sm:$0xff]
        %v2256 = vld [vmem:[%s496 + $0xf4] sm:$0xff]
        %v2257 = vld [vmem:[%s496 + $0xfc] sm:$0xff]
        %v2258 = vld [vmem:[%s496 + $0x104] sm:$0xff]
        %v2259 = vld [vmem:[%s496 + $0x10c] sm:$0xff]
        %v2260 = vld [vmem:[%s496 + $0x114] sm:$0xff]
        %v2261 = vld [vmem:[%s496 + $0x11c] sm:$0xff]
        %v2262 = vld [vmem:[%s496 + $0x124] sm:$0xff]
        %v2263 = vld [vmem:[%s496 + $0x12c] sm:$0xff]
        %v2264 = vld [vmem:[%s496 + $0x134] sm:$0xff]
        %v2265 = vld [vmem:[%s496 + $0x13c] sm:$0xff]
        %v2266 = vld [vmem:[%s496 + $0x144] sm:$0xff]
        %v2267 = vld [vmem:[%s496 + $0x14c] sm:$0xff]
        %v2268 = vld [vmem:[%s496 + $0x154] sm:$0xf]
        %s2269 = scalar_lea.vmem %s2, 20
        %v2270 = vld [vmem:[%s2269] sm:$0xf]
        %v2272 = vsel %vm644, %v2228, 0
        %v2275 = vsel %vm644, %v2229, 0
        %v2278 = vsel %vm644, %v2230, 0
        %v2281 = vsel %vm644, %v2231, 0
        %v2284 = vsel %vm644, %v2232, 0
        %v2287 = vsel %vm644, %v2233, 0
        %v2290 = vsel %vm644, %v2234, 0
        %v2293 = vsel %vm644, %v2235, 0
        %v2296 = vsel %vm644, %v2236, 0
        %v2299 = vsel %vm644, %v2237, 0
        %v2302 = vsel %vm644, %v2238, 0
        %v2305 = vsel %vm644, %v2239, 0
        %v2308 = vsel %vm644, %v2240, 0
        %v2311 = vsel %vm644, %v2241, 0
        %v2314 = vsel %vm644, %v2242, 0
        %v2317 = vsel %vm644, %v2243, 0
        %v2320 = vsel %vm644, %v2244, 0
        %v2323 = vsel %vm644, %v2245, 0
        %v2326 = vsel %vm644, %v2246, 0
        %v2329 = vsel %vm644, %v2247, 0
        %v2332 = vsel %vm644, %v2248, 0
        %v2335 = vsel %vm644, %v2249, 0
        %v2338 = vsel %vm644, %v2250, 0
        %v2341 = vsel %vm644, %v2251, 0
        %v2344 = vsel %vm644, %v2252, 0
        %v2347 = vsel %vm644, %v2253, 0
        %v2350 = vsel %vm644, %v2254, 0
        %v2353 = vsel %vm644, %v2255, 0
        %v2356 = vsel %vm644, %v2256, 0
        %v2359 = vsel %vm644, %v2257, 0
        %v2362 = vsel %vm644, %v2258, 0
        %v2365 = vsel %vm644, %v2259, 0
        %v2368 = vsel %vm644, %v2260, 0
        %v2371 = vsel %vm644, %v2261, 0
        %v2374 = vsel %vm644, %v2262, 0
        %v2377 = vsel %vm644, %v2263, 0
        %v2380 = vsel %vm644, %v2264, 0
        %v2383 = vsel %vm644, %v2265, 0
        %v2386 = vsel %vm644, %v2266, 0
        %v2389 = vsel %vm644, %v2267, 0
        %v2392 = vsel %vm644, %v2268, 0
        %v2395 = vsel %vm768, %v2270, 0
        %2397 = vmatpush.msra.mxu0 0.0
        %2398 = vmatpush.msra.mxu0 0.0
        %2399 = vmatpush.msra.mxu0 0.0
        %2400 = vmatpush.msra.mxu0 0.0
        %2401 = vmatpush.msra.mxu0 0.0
        %2402 = vmatpush.msra.mxu0 0.0
        %2403 = vmatpush.msra.mxu0 0.0
        %2404 = vmatpush.msra.mxu0 0.0
        %2405 = vmatpush.msra.mxu0 0.0
        %2406 = vmatpush.msra.mxu0 0.0
        %2407 = vmatpush.msra.mxu0 0.0
        %2408 = vmatpush.msra.mxu0 0.0
        %2409 = vmatpush.msra.mxu0 0.0
        %2410 = vmatpush.msra.mxu0 0.0
        %2411 = vmatpush.msra.mxu0 0.0
        %2412 = vmatpush.msra.mxu0 %v2395
        %2413 = vmatmul.f32.gmra.mxu0 %v2272
        %v2414 = vpop.f32.mrf.mxu0
        %v2415 = vadd.f32 0.0, %v2414
        %2416 = vmatmul.f32.gmra.mxu0 %v2275
        %v2417 = vpop.f32.mrf.mxu0
        %v2418 = vadd.f32 0.0, %v2417
        %2419 = vmatmul.f32.gmra.mxu0 %v2278
        %v2420 = vpop.f32.mrf.mxu0
        %v2421 = vadd.f32 0.0, %v2420
        %2422 = vmatmul.f32.gmra.mxu0 %v2281
        %v2423 = vpop.f32.mrf.mxu0
        %v2424 = vadd.f32 0.0, %v2423
        %2425 = vmatmul.f32.gmra.mxu0 %v2284
        %v2426 = vpop.f32.mrf.mxu0
        %v2427 = vadd.f32 0.0, %v2426
        %2428 = vmatmul.f32.gmra.mxu0 %v2287
        %v2429 = vpop.f32.mrf.mxu0
        %v2430 = vadd.f32 0.0, %v2429
        %2431 = vmatmul.f32.gmra.mxu0 %v2290
        %v2432 = vpop.f32.mrf.mxu0
        %v2433 = vadd.f32 0.0, %v2432
        %2434 = vmatmul.f32.gmra.mxu0 %v2293
        %v2435 = vpop.f32.mrf.mxu0
        %v2436 = vadd.f32 0.0, %v2435
        %2437 = vmatmul.f32.gmra.mxu0 %v2296
        %v2438 = vpop.f32.mrf.mxu0
        %v2439 = vadd.f32 0.0, %v2438
        %2440 = vmatmul.f32.gmra.mxu0 %v2299
        %v2441 = vpop.f32.mrf.mxu0
        %v2442 = vadd.f32 0.0, %v2441
        %2443 = vmatmul.f32.gmra.mxu0 %v2302
        %v2444 = vpop.f32.mrf.mxu0
        %v2445 = vadd.f32 0.0, %v2444
        %2446 = vmatmul.f32.gmra.mxu0 %v2305
        %v2447 = vpop.f32.mrf.mxu0
        %v2448 = vadd.f32 0.0, %v2447
        %2449 = vmatmul.f32.gmra.mxu0 %v2308
        %v2450 = vpop.f32.mrf.mxu0
        %v2451 = vadd.f32 0.0, %v2450
        %2452 = vmatmul.f32.gmra.mxu0 %v2311
        %v2453 = vpop.f32.mrf.mxu0
        %v2454 = vadd.f32 0.0, %v2453
        %2455 = vmatmul.f32.gmra.mxu0 %v2314
        %v2456 = vpop.f32.mrf.mxu0
        %v2457 = vadd.f32 0.0, %v2456
        %2458 = vmatmul.f32.gmra.mxu0 %v2317
        %v2459 = vpop.f32.mrf.mxu0
        %v2460 = vadd.f32 0.0, %v2459
        %2461 = vmatmul.f32.gmra.mxu0 %v2320
        %v2462 = vpop.f32.mrf.mxu0
        %v2463 = vadd.f32 0.0, %v2462
        %2464 = vmatmul.f32.gmra.mxu0 %v2323
        %v2465 = vpop.f32.mrf.mxu0
        %v2466 = vadd.f32 0.0, %v2465
        %2467 = vmatmul.f32.gmra.mxu0 %v2326
        %v2468 = vpop.f32.mrf.mxu0
        %v2469 = vadd.f32 0.0, %v2468
        %2470 = vmatmul.f32.gmra.mxu0 %v2329
        %v2471 = vpop.f32.mrf.mxu0
        %v2472 = vadd.f32 0.0, %v2471
        %2473 = vmatmul.f32.gmra.mxu0 %v2332
        %v2474 = vpop.f32.mrf.mxu0
        %v2475 = vadd.f32 0.0, %v2474
        %2476 = vmatmul.f32.gmra.mxu0 %v2335
        %v2477 = vpop.f32.mrf.mxu0
        %v2478 = vadd.f32 0.0, %v2477
        %2479 = vmatmul.f32.gmra.mxu0 %v2338
        %v2480 = vpop.f32.mrf.mxu0
        %v2481 = vadd.f32 0.0, %v2480
        %2482 = vmatmul.f32.gmra.mxu0 %v2341
        %v2483 = vpop.f32.mrf.mxu0
        %v2484 = vadd.f32 0.0, %v2483
        %2485 = vmatmul.f32.gmra.mxu0 %v2344
        %v2486 = vpop.f32.mrf.mxu0
        %v2487 = vadd.f32 0.0, %v2486
        %2488 = vmatmul.f32.gmra.mxu0 %v2347
        %v2489 = vpop.f32.mrf.mxu0
        %v2490 = vadd.f32 0.0, %v2489
        %2491 = vmatmul.f32.gmra.mxu0 %v2350
        %v2492 = vpop.f32.mrf.mxu0
        %v2493 = vadd.f32 0.0, %v2492
        %2494 = vmatmul.f32.gmra.mxu0 %v2353
        %v2495 = vpop.f32.mrf.mxu0
        %v2496 = vadd.f32 0.0, %v2495
        %2497 = vmatmul.f32.gmra.mxu0 %v2356
        %v2498 = vpop.f32.mrf.mxu0
        %v2499 = vadd.f32 0.0, %v2498
        %2500 = vmatmul.f32.gmra.mxu0 %v2359
        %v2501 = vpop.f32.mrf.mxu0
        %v2502 = vadd.f32 0.0, %v2501
        %2503 = vmatmul.f32.gmra.mxu0 %v2362
        %v2504 = vpop.f32.mrf.mxu0
        %v2505 = vadd.f32 0.0, %v2504
        %2506 = vmatmul.f32.gmra.mxu0 %v2365
        %v2507 = vpop.f32.mrf.mxu0
        %v2508 = vadd.f32 0.0, %v2507
        %2509 = vmatmul.f32.gmra.mxu0 %v2368
        %v2510 = vpop.f32.mrf.mxu0
        %v2511 = vadd.f32 0.0, %v2510
        %2512 = vmatmul.f32.gmra.mxu0 %v2371
        %v2513 = vpop.f32.mrf.mxu0
        %v2514 = vadd.f32 0.0, %v2513
        %2515 = vmatmul.f32.gmra.mxu0 %v2374
        %v2516 = vpop.f32.mrf.mxu0
        %v2517 = vadd.f32 0.0, %v2516
        %2518 = vmatmul.f32.gmra.mxu0 %v2377
        %v2519 = vpop.f32.mrf.mxu0
        %v2520 = vadd.f32 0.0, %v2519
        %2521 = vmatmul.f32.gmra.mxu0 %v2380
        %v2522 = vpop.f32.mrf.mxu0
        %v2523 = vadd.f32 0.0, %v2522
        %2524 = vmatmul.f32.gmra.mxu0 %v2383
        %v2525 = vpop.f32.mrf.mxu0
        %v2526 = vadd.f32 0.0, %v2525
        %2527 = vmatmul.f32.gmra.mxu0 %v2386
        %v2528 = vpop.f32.mrf.mxu0
        %v2529 = vadd.f32 0.0, %v2528
        %2530 = vmatmul.f32.gmra.mxu0 %v2389
        %v2531 = vpop.f32.mrf.mxu0
        %v2532 = vadd.f32 0.0, %v2531
        %2533 = vmatmul.f32.gmra.mxu0 %v2392
        %v2534 = vpop.f32.mrf.mxu0
        %v2535 = vadd.f32 0.0, %v2534
        %2536 = vdwg.mxu0
        %v2537 = vadd.f32 %v2187, %v2415
        %v2538 = vadd.f32 %v2188, %v2418
        %v2539 = vadd.f32 %v2189, %v2421
        %v2540 = vadd.f32 %v2190, %v2424
        %v2541 = vadd.f32 %v2191, %v2427
        %v2542 = vadd.f32 %v2192, %v2430
        %v2543 = vadd.f32 %v2193, %v2433
        %v2544 = vadd.f32 %v2194, %v2436
        %v2545 = vadd.f32 %v2195, %v2439
        %v2546 = vadd.f32 %v2196, %v2442
        %v2547 = vadd.f32 %v2197, %v2445
        %v2548 = vadd.f32 %v2198, %v2448
        %v2549 = vadd.f32 %v2199, %v2451
        %v2550 = vadd.f32 %v2200, %v2454
        %v2551 = vadd.f32 %v2201, %v2457
        %v2552 = vadd.f32 %v2202, %v2460
        %v2553 = vadd.f32 %v2203, %v2463
        %v2554 = vadd.f32 %v2204, %v2466
        %v2555 = vadd.f32 %v2205, %v2469
        %v2556 = vadd.f32 %v2206, %v2472
        %v2557 = vadd.f32 %v2207, %v2475
        %v2558 = vadd.f32 %v2208, %v2478
        %v2559 = vadd.f32 %v2209, %v2481
        %v2560 = vadd.f32 %v2210, %v2484
        %v2561 = vadd.f32 %v2211, %v2487
        %v2562 = vadd.f32 %v2212, %v2490
        %v2563 = vadd.f32 %v2213, %v2493
        %v2564 = vadd.f32 %v2214, %v2496
        %v2565 = vadd.f32 %v2215, %v2499
        %v2566 = vadd.f32 %v2216, %v2502
        %v2567 = vadd.f32 %v2217, %v2505
        %v2568 = vadd.f32 %v2218, %v2508
        %v2569 = vadd.f32 %v2219, %v2511
        %v2570 = vadd.f32 %v2220, %v2514
        %v2571 = vadd.f32 %v2221, %v2517
        %v2572 = vadd.f32 %v2222, %v2520
        %v2573 = vadd.f32 %v2223, %v2523
        %v2574 = vadd.f32 %v2224, %v2526
        %v2575 = vadd.f32 %v2225, %v2529
        %v2576 = vadd.f32 %v2226, %v2532
        %v2577 = vadd.f32 %v2227, %v2535
        %v2578 = vld [vmem:[%s496 + $0x24] sm:$0xff]
        %v2579 = vld [vmem:[%s496 + $0x2c] sm:$0xff]
        %v2580 = vld [vmem:[%s496 + $0x34] sm:$0xff]
        %v2581 = vld [vmem:[%s496 + $0x3c] sm:$0xff]
        %v2582 = vld [vmem:[%s496 + $0x44] sm:$0xff]
        %v2583 = vld [vmem:[%s496 + $0x4c] sm:$0xff]
        %v2584 = vld [vmem:[%s496 + $0x54] sm:$0xff]
        %v2585 = vld [vmem:[%s496 + $0x5c] sm:$0xff]
        %v2586 = vld [vmem:[%s496 + $0x64] sm:$0xff]
        %v2587 = vld [vmem:[%s496 + $0x6c] sm:$0xff]
        %v2588 = vld [vmem:[%s496 + $0x74] sm:$0xff]
        %v2589 = vld [vmem:[%s496 + $0x7c] sm:$0xff]
        %v2590 = vld [vmem:[%s496 + $0x84] sm:$0xff]
        %v2591 = vld [vmem:[%s496 + $0x8c] sm:$0xff]
        %v2592 = vld [vmem:[%s496 + $0x94] sm:$0xff]
        %v2593 = vld [vmem:[%s496 + $0x9c] sm:$0xff]
        %v2594 = vld [vmem:[%s496 + $0xa4] sm:$0xff]
        %v2595 = vld [vmem:[%s496 + $0xac] sm:$0xff]
        %v2596 = vld [vmem:[%s496 + $0xb4] sm:$0xff]
        %v2597 = vld [vmem:[%s496 + $0xbc] sm:$0xff]
        %v2598 = vld [vmem:[%s496 + $0xc4] sm:$0xff]
        %v2599 = vld [vmem:[%s496 + $0xcc] sm:$0xff]
        %v2600 = vld [vmem:[%s496 + $0xd4] sm:$0xff]
        %v2601 = vld [vmem:[%s496 + $0xdc] sm:$0xff]
        %v2602 = vld [vmem:[%s496 + $0xe4] sm:$0xff]
        %v2603 = vld [vmem:[%s496 + $0xec] sm:$0xff]
        %v2604 = vld [vmem:[%s496 + $0xf4] sm:$0xff]
        %v2605 = vld [vmem:[%s496 + $0xfc] sm:$0xff]
        %v2606 = vld [vmem:[%s496 + $0x104] sm:$0xff]
        %v2607 = vld [vmem:[%s496 + $0x10c] sm:$0xff]
        %v2608 = vld [vmem:[%s496 + $0x114] sm:$0xff]
        %v2609 = vld [vmem:[%s496 + $0x11c] sm:$0xff]
        %v2610 = vld [vmem:[%s496 + $0x124] sm:$0xff]
        %v2611 = vld [vmem:[%s496 + $0x12c] sm:$0xff]
        %v2612 = vld [vmem:[%s496 + $0x134] sm:$0xff]
        %v2613 = vld [vmem:[%s496 + $0x13c] sm:$0xff]
        %v2614 = vld [vmem:[%s496 + $0x144] sm:$0xff]
        %v2615 = vld [vmem:[%s496 + $0x14c] sm:$0xff]
        %v2616 = vld [vmem:[%s496 + $0x154] sm:$0xff]
        %v2617 = vld [vmem:[%s496 + $0x15c] sm:$0xff]
        %v2618 = vld [vmem:[%s496 + $0x164] sm:$0xf]
        %s2619 = scalar_lea.vmem %s2, 24
        %v2620 = vld [vmem:[%s2619] sm:$0xf]
        %v2622 = vsel %vm644, %v2578, 0
        %v2625 = vsel %vm644, %v2579, 0
        %v2628 = vsel %vm644, %v2580, 0
        %v2631 = vsel %vm644, %v2581, 0
        %v2634 = vsel %vm644, %v2582, 0
        %v2637 = vsel %vm644, %v2583, 0
        %v2640 = vsel %vm644, %v2584, 0
        %v2643 = vsel %vm644, %v2585, 0
        %v2646 = vsel %vm644, %v2586, 0
        %v2649 = vsel %vm644, %v2587, 0
        %v2652 = vsel %vm644, %v2588, 0
        %v2655 = vsel %vm644, %v2589, 0
        %v2658 = vsel %vm644, %v2590, 0
        %v2661 = vsel %vm644, %v2591, 0
        %v2664 = vsel %vm644, %v2592, 0
        %v2667 = vsel %vm644, %v2593, 0
        %v2670 = vsel %vm644, %v2594, 0
        %v2673 = vsel %vm644, %v2595, 0
        %v2676 = vsel %vm644, %v2596, 0
        %v2679 = vsel %vm644, %v2597, 0
        %v2682 = vsel %vm644, %v2598, 0
        %v2685 = vsel %vm644, %v2599, 0
        %v2688 = vsel %vm644, %v2600, 0
        %v2691 = vsel %vm644, %v2601, 0
        %v2694 = vsel %vm644, %v2602, 0
        %v2697 = vsel %vm644, %v2603, 0
        %v2700 = vsel %vm644, %v2604, 0
        %v2703 = vsel %vm644, %v2605, 0
        %v2706 = vsel %vm644, %v2606, 0
        %v2709 = vsel %vm644, %v2607, 0
        %v2712 = vsel %vm644, %v2608, 0
        %v2715 = vsel %vm644, %v2609, 0
        %v2718 = vsel %vm644, %v2610, 0
        %v2721 = vsel %vm644, %v2611, 0
        %v2724 = vsel %vm644, %v2612, 0
        %v2727 = vsel %vm644, %v2613, 0
        %v2730 = vsel %vm644, %v2614, 0
        %v2733 = vsel %vm644, %v2615, 0
        %v2736 = vsel %vm644, %v2616, 0
        %v2739 = vsel %vm644, %v2617, 0
        %v2742 = vsel %vm644, %v2618, 0
        %v2745 = vsel %vm768, %v2620, 0
        %2747 = vmatpush.msra.mxu0 0.0
        %2748 = vmatpush.msra.mxu0 0.0
        %2749 = vmatpush.msra.mxu0 0.0
        %2750 = vmatpush.msra.mxu0 0.0
        %2751 = vmatpush.msra.mxu0 0.0
        %2752 = vmatpush.msra.mxu0 0.0
        %2753 = vmatpush.msra.mxu0 0.0
        %2754 = vmatpush.msra.mxu0 0.0
        %2755 = vmatpush.msra.mxu0 0.0
        %2756 = vmatpush.msra.mxu0 0.0
        %2757 = vmatpush.msra.mxu0 0.0
        %2758 = vmatpush.msra.mxu0 0.0
        %2759 = vmatpush.msra.mxu0 0.0
        %2760 = vmatpush.msra.mxu0 0.0
        %2761 = vmatpush.msra.mxu0 0.0
        %2762 = vmatpush.msra.mxu0 %v2745
        %2763 = vmatmul.f32.gmra.mxu0 %v2622
        %v2764 = vpop.f32.mrf.mxu0
        %v2765 = vadd.f32 0.0, %v2764
        %2766 = vmatmul.f32.gmra.mxu0 %v2625
        %v2767 = vpop.f32.mrf.mxu0
        %v2768 = vadd.f32 0.0, %v2767
        %2769 = vmatmul.f32.gmra.mxu0 %v2628
        %v2770 = vpop.f32.mrf.mxu0
        %v2771 = vadd.f32 0.0, %v2770
        %2772 = vmatmul.f32.gmra.mxu0 %v2631
        %v2773 = vpop.f32.mrf.mxu0
        %v2774 = vadd.f32 0.0, %v2773
        %2775 = vmatmul.f32.gmra.mxu0 %v2634
        %v2776 = vpop.f32.mrf.mxu0
        %v2777 = vadd.f32 0.0, %v2776
        %2778 = vmatmul.f32.gmra.mxu0 %v2637
        %v2779 = vpop.f32.mrf.mxu0
        %v2780 = vadd.f32 0.0, %v2779
        %2781 = vmatmul.f32.gmra.mxu0 %v2640
        %v2782 = vpop.f32.mrf.mxu0
        %v2783 = vadd.f32 0.0, %v2782
        %2784 = vmatmul.f32.gmra.mxu0 %v2643
        %v2785 = vpop.f32.mrf.mxu0
        %v2786 = vadd.f32 0.0, %v2785
        %2787 = vmatmul.f32.gmra.mxu0 %v2646
        %v2788 = vpop.f32.mrf.mxu0
        %v2789 = vadd.f32 0.0, %v2788
        %2790 = vmatmul.f32.gmra.mxu0 %v2649
        %v2791 = vpop.f32.mrf.mxu0
        %v2792 = vadd.f32 0.0, %v2791
        %2793 = vmatmul.f32.gmra.mxu0 %v2652
        %v2794 = vpop.f32.mrf.mxu0
        %v2795 = vadd.f32 0.0, %v2794
        %2796 = vmatmul.f32.gmra.mxu0 %v2655
        %v2797 = vpop.f32.mrf.mxu0
        %v2798 = vadd.f32 0.0, %v2797
        %2799 = vmatmul.f32.gmra.mxu0 %v2658
        %v2800 = vpop.f32.mrf.mxu0
        %v2801 = vadd.f32 0.0, %v2800
        %2802 = vmatmul.f32.gmra.mxu0 %v2661
        %v2803 = vpop.f32.mrf.mxu0
        %v2804 = vadd.f32 0.0, %v2803
        %2805 = vmatmul.f32.gmra.mxu0 %v2664
        %v2806 = vpop.f32.mrf.mxu0
        %v2807 = vadd.f32 0.0, %v2806
        %2808 = vmatmul.f32.gmra.mxu0 %v2667
        %v2809 = vpop.f32.mrf.mxu0
        %v2810 = vadd.f32 0.0, %v2809
        %2811 = vmatmul.f32.gmra.mxu0 %v2670
        %v2812 = vpop.f32.mrf.mxu0
        %v2813 = vadd.f32 0.0, %v2812
        %2814 = vmatmul.f32.gmra.mxu0 %v2673
        %v2815 = vpop.f32.mrf.mxu0
        %v2816 = vadd.f32 0.0, %v2815
        %2817 = vmatmul.f32.gmra.mxu0 %v2676
        %v2818 = vpop.f32.mrf.mxu0
        %v2819 = vadd.f32 0.0, %v2818
        %2820 = vmatmul.f32.gmra.mxu0 %v2679
        %v2821 = vpop.f32.mrf.mxu0
        %v2822 = vadd.f32 0.0, %v2821
        %2823 = vmatmul.f32.gmra.mxu0 %v2682
        %v2824 = vpop.f32.mrf.mxu0
        %v2825 = vadd.f32 0.0, %v2824
        %2826 = vmatmul.f32.gmra.mxu0 %v2685
        %v2827 = vpop.f32.mrf.mxu0
        %v2828 = vadd.f32 0.0, %v2827
        %2829 = vmatmul.f32.gmra.mxu0 %v2688
        %v2830 = vpop.f32.mrf.mxu0
        %v2831 = vadd.f32 0.0, %v2830
        %2832 = vmatmul.f32.gmra.mxu0 %v2691
        %v2833 = vpop.f32.mrf.mxu0
        %v2834 = vadd.f32 0.0, %v2833
        %2835 = vmatmul.f32.gmra.mxu0 %v2694
        %v2836 = vpop.f32.mrf.mxu0
        %v2837 = vadd.f32 0.0, %v2836
        %2838 = vmatmul.f32.gmra.mxu0 %v2697
        %v2839 = vpop.f32.mrf.mxu0
        %v2840 = vadd.f32 0.0, %v2839
        %2841 = vmatmul.f32.gmra.mxu0 %v2700
        %v2842 = vpop.f32.mrf.mxu0
        %v2843 = vadd.f32 0.0, %v2842
        %2844 = vmatmul.f32.gmra.mxu0 %v2703
        %v2845 = vpop.f32.mrf.mxu0
        %v2846 = vadd.f32 0.0, %v2845
        %2847 = vmatmul.f32.gmra.mxu0 %v2706
        %v2848 = vpop.f32.mrf.mxu0
        %v2849 = vadd.f32 0.0, %v2848
        %2850 = vmatmul.f32.gmra.mxu0 %v2709
        %v2851 = vpop.f32.mrf.mxu0
        %v2852 = vadd.f32 0.0, %v2851
        %2853 = vmatmul.f32.gmra.mxu0 %v2712
        %v2854 = vpop.f32.mrf.mxu0
        %v2855 = vadd.f32 0.0, %v2854
        %2856 = vmatmul.f32.gmra.mxu0 %v2715
        %v2857 = vpop.f32.mrf.mxu0
        %v2858 = vadd.f32 0.0, %v2857
        %2859 = vmatmul.f32.gmra.mxu0 %v2718
        %v2860 = vpop.f32.mrf.mxu0
        %v2861 = vadd.f32 0.0, %v2860
        %2862 = vmatmul.f32.gmra.mxu0 %v2721
        %v2863 = vpop.f32.mrf.mxu0
        %v2864 = vadd.f32 0.0, %v2863
        %2865 = vmatmul.f32.gmra.mxu0 %v2724
        %v2866 = vpop.f32.mrf.mxu0
        %v2867 = vadd.f32 0.0, %v2866
        %2868 = vmatmul.f32.gmra.mxu0 %v2727
        %v2869 = vpop.f32.mrf.mxu0
        %v2870 = vadd.f32 0.0, %v2869
        %2871 = vmatmul.f32.gmra.mxu0 %v2730
        %v2872 = vpop.f32.mrf.mxu0
        %v2873 = vadd.f32 0.0, %v2872
        %2874 = vmatmul.f32.gmra.mxu0 %v2733
        %v2875 = vpop.f32.mrf.mxu0
        %v2876 = vadd.f32 0.0, %v2875
        %2877 = vmatmul.f32.gmra.mxu0 %v2736
        %v2878 = vpop.f32.mrf.mxu0
        %v2879 = vadd.f32 0.0, %v2878
        %2880 = vmatmul.f32.gmra.mxu0 %v2739
        %v2881 = vpop.f32.mrf.mxu0
        %v2882 = vadd.f32 0.0, %v2881
        %2883 = vmatmul.f32.gmra.mxu0 %v2742
        %v2884 = vpop.f32.mrf.mxu0
        %v2885 = vadd.f32 0.0, %v2884
        %2886 = vdwg.mxu0
        %v2887 = vadd.f32 %v2537, %v2765
        %v2888 = vadd.f32 %v2538, %v2768
        %v2889 = vadd.f32 %v2539, %v2771
        %v2890 = vadd.f32 %v2540, %v2774
        %v2891 = vadd.f32 %v2541, %v2777
        %v2892 = vadd.f32 %v2542, %v2780
        %v2893 = vadd.f32 %v2543, %v2783
        %v2894 = vadd.f32 %v2544, %v2786
        %v2895 = vadd.f32 %v2545, %v2789
        %v2896 = vadd.f32 %v2546, %v2792
        %v2897 = vadd.f32 %v2547, %v2795
        %v2898 = vadd.f32 %v2548, %v2798
        %v2899 = vadd.f32 %v2549, %v2801
        %v2900 = vadd.f32 %v2550, %v2804
        %v2901 = vadd.f32 %v2551, %v2807
        %v2902 = vadd.f32 %v2552, %v2810
        %v2903 = vadd.f32 %v2553, %v2813
        %v2904 = vadd.f32 %v2554, %v2816
        %v2905 = vadd.f32 %v2555, %v2819
        %v2906 = vadd.f32 %v2556, %v2822
        %v2907 = vadd.f32 %v2557, %v2825
        %v2908 = vadd.f32 %v2558, %v2828
        %v2909 = vadd.f32 %v2559, %v2831
        %v2910 = vadd.f32 %v2560, %v2834
        %v2911 = vadd.f32 %v2561, %v2837
        %v2912 = vadd.f32 %v2562, %v2840
        %v2913 = vadd.f32 %v2563, %v2843
        %v2914 = vadd.f32 %v2564, %v2846
        %v2915 = vadd.f32 %v2565, %v2849
        %v2916 = vadd.f32 %v2566, %v2852
        %v2917 = vadd.f32 %v2567, %v2855
        %v2918 = vadd.f32 %v2568, %v2858
        %v2919 = vadd.f32 %v2569, %v2861
        %v2920 = vadd.f32 %v2570, %v2864
        %v2921 = vadd.f32 %v2571, %v2867
        %v2922 = vadd.f32 %v2572, %v2870
        %v2923 = vadd.f32 %v2573, %v2873
        %v2924 = vadd.f32 %v2574, %v2876
        %v2925 = vadd.f32 %v2575, %v2879
        %v2926 = vadd.f32 %v2576, %v2882
        %v2927 = vadd.f32 %v2577, %v2885
        %v2928 = vld [vmem:[%s496 + $0x25] sm:$0xff]
        %v2929 = vld [vmem:[%s496 + $0x2d] sm:$0xff]
        %v2930 = vld [vmem:[%s496 + $0x35] sm:$0xff]
        %v2931 = vld [vmem:[%s496 + $0x3d] sm:$0xff]
        %v2932 = vld [vmem:[%s496 + $0x45] sm:$0xff]
        %v2933 = vld [vmem:[%s496 + $0x4d] sm:$0xff]
        %v2934 = vld [vmem:[%s496 + $0x55] sm:$0xff]
        %v2935 = vld [vmem:[%s496 + $0x5d] sm:$0xff]
        %v2936 = vld [vmem:[%s496 + $0x65] sm:$0xff]
        %v2937 = vld [vmem:[%s496 + $0x6d] sm:$0xff]
        %v2938 = vld [vmem:[%s496 + $0x75] sm:$0xff]
        %v2939 = vld [vmem:[%s496 + $0x7d] sm:$0xff]
        %v2940 = vld [vmem:[%s496 + $0x85] sm:$0xff]
        %v2941 = vld [vmem:[%s496 + $0x8d] sm:$0xff]
        %v2942 = vld [vmem:[%s496 + $0x95] sm:$0xff]
        %v2943 = vld [vmem:[%s496 + $0x9d] sm:$0xff]
        %v2944 = vld [vmem:[%s496 + $0xa5] sm:$0xff]
        %v2945 = vld [vmem:[%s496 + $0xad] sm:$0xff]
        %v2946 = vld [vmem:[%s496 + $0xb5] sm:$0xff]
        %v2947 = vld [vmem:[%s496 + $0xbd] sm:$0xff]
        %v2948 = vld [vmem:[%s496 + $0xc5] sm:$0xff]
        %v2949 = vld [vmem:[%s496 + $0xcd] sm:$0xff]
        %v2950 = vld [vmem:[%s496 + $0xd5] sm:$0xff]
        %v2951 = vld [vmem:[%s496 + $0xdd] sm:$0xff]
        %v2952 = vld [vmem:[%s496 + $0xe5] sm:$0xff]
        %v2953 = vld [vmem:[%s496 + $0xed] sm:$0xff]
        %v2954 = vld [vmem:[%s496 + $0xf5] sm:$0xff]
        %v2955 = vld [vmem:[%s496 + $0xfd] sm:$0xff]
        %v2956 = vld [vmem:[%s496 + $0x105] sm:$0xff]
        %v2957 = vld [vmem:[%s496 + $0x10d] sm:$0xff]
        %v2958 = vld [vmem:[%s496 + $0x115] sm:$0xff]
        %v2959 = vld [vmem:[%s496 + $0x11d] sm:$0xff]
        %v2960 = vld [vmem:[%s496 + $0x125] sm:$0xff]
        %v2961 = vld [vmem:[%s496 + $0x12d] sm:$0xff]
        %v2962 = vld [vmem:[%s496 + $0x135] sm:$0xff]
        %v2963 = vld [vmem:[%s496 + $0x13d] sm:$0xff]
        %v2964 = vld [vmem:[%s496 + $0x145] sm:$0xff]
        %v2965 = vld [vmem:[%s496 + $0x14d] sm:$0xff]
        %v2966 = vld [vmem:[%s496 + $0x155] sm:$0xff]
        %v2967 = vld [vmem:[%s496 + $0x15d] sm:$0xff]
        %v2968 = vld [vmem:[%s496 + $0x165] sm:$0xf]
        %s2969 = scalar_lea.vmem %s2, 28
        %v2970 = vld [vmem:[%s2969] sm:$0xf]
        %v2972 = vsel %vm644, %v2928, 0
        %v2975 = vsel %vm644, %v2929, 0
        %v2978 = vsel %vm644, %v2930, 0
        %v2981 = vsel %vm644, %v2931, 0
        %v2984 = vsel %vm644, %v2932, 0
        %v2987 = vsel %vm644, %v2933, 0
        %v2990 = vsel %vm644, %v2934, 0
        %v2993 = vsel %vm644, %v2935, 0
        %v2996 = vsel %vm644, %v2936, 0
        %v2999 = vsel %vm644, %v2937, 0
        %v3002 = vsel %vm644, %v2938, 0
        %v3005 = vsel %vm644, %v2939, 0
        %v3008 = vsel %vm644, %v2940, 0
        %v3011 = vsel %vm644, %v2941, 0
        %v3014 = vsel %vm644, %v2942, 0
        %v3017 = vsel %vm644, %v2943, 0
        %v3020 = vsel %vm644, %v2944, 0
        %v3023 = vsel %vm644, %v2945, 0
        %v3026 = vsel %vm644, %v2946, 0
        %v3029 = vsel %vm644, %v2947, 0
        %v3032 = vsel %vm644, %v2948, 0
        %v3035 = vsel %vm644, %v2949, 0
        %v3038 = vsel %vm644, %v2950, 0
        %v3041 = vsel %vm644, %v2951, 0
        %v3044 = vsel %vm644, %v2952, 0
        %v3047 = vsel %vm644, %v2953, 0
        %v3050 = vsel %vm644, %v2954, 0
        %v3053 = vsel %vm644, %v2955, 0
        %v3056 = vsel %vm644, %v2956, 0
        %v3059 = vsel %vm644, %v2957, 0
        %v3062 = vsel %vm644, %v2958, 0
        %v3065 = vsel %vm644, %v2959, 0
        %v3068 = vsel %vm644, %v2960, 0
        %v3071 = vsel %vm644, %v2961, 0
        %v3074 = vsel %vm644, %v2962, 0
        %v3077 = vsel %vm644, %v2963, 0
        %v3080 = vsel %vm644, %v2964, 0
        %v3083 = vsel %vm644, %v2965, 0
        %v3086 = vsel %vm644, %v2966, 0
        %v3089 = vsel %vm644, %v2967, 0
        %v3092 = vsel %vm644, %v2968, 0
        %v3095 = vsel %vm768, %v2970, 0
        %3097 = vmatpush.msra.mxu0 0.0
        %3098 = vmatpush.msra.mxu0 0.0
        %3099 = vmatpush.msra.mxu0 0.0
        %3100 = vmatpush.msra.mxu0 0.0
        %3101 = vmatpush.msra.mxu0 0.0
        %3102 = vmatpush.msra.mxu0 0.0
        %3103 = vmatpush.msra.mxu0 0.0
        %3104 = vmatpush.msra.mxu0 0.0
        %3105 = vmatpush.msra.mxu0 0.0
        %3106 = vmatpush.msra.mxu0 0.0
        %3107 = vmatpush.msra.mxu0 0.0
        %3108 = vmatpush.msra.mxu0 0.0
        %3109 = vmatpush.msra.mxu0 0.0
        %3110 = vmatpush.msra.mxu0 0.0
        %3111 = vmatpush.msra.mxu0 0.0
        %3112 = vmatpush.msra.mxu0 %v3095
        %3113 = vmatmul.f32.gmra.mxu0 %v2972
        %v3114 = vpop.f32.mrf.mxu0
        %v3115 = vadd.f32 0.0, %v3114
        %3116 = vmatmul.f32.gmra.mxu0 %v2975
        %v3117 = vpop.f32.mrf.mxu0
        %v3118 = vadd.f32 0.0, %v3117
        %3119 = vmatmul.f32.gmra.mxu0 %v2978
        %v3120 = vpop.f32.mrf.mxu0
        %v3121 = vadd.f32 0.0, %v3120
        %3122 = vmatmul.f32.gmra.mxu0 %v2981
        %v3123 = vpop.f32.mrf.mxu0
        %v3124 = vadd.f32 0.0, %v3123
        %3125 = vmatmul.f32.gmra.mxu0 %v2984
        %v3126 = vpop.f32.mrf.mxu0
        %v3127 = vadd.f32 0.0, %v3126
        %3128 = vmatmul.f32.gmra.mxu0 %v2987
        %v3129 = vpop.f32.mrf.mxu0
        %v3130 = vadd.f32 0.0, %v3129
        %3131 = vmatmul.f32.gmra.mxu0 %v2990
        %v3132 = vpop.f32.mrf.mxu0
        %v3133 = vadd.f32 0.0, %v3132
        %3134 = vmatmul.f32.gmra.mxu0 %v2993
        %v3135 = vpop.f32.mrf.mxu0
        %v3136 = vadd.f32 0.0, %v3135
        %3137 = vmatmul.f32.gmra.mxu0 %v2996
        %v3138 = vpop.f32.mrf.mxu0
        %v3139 = vadd.f32 0.0, %v3138
        %3140 = vmatmul.f32.gmra.mxu0 %v2999
        %v3141 = vpop.f32.mrf.mxu0
        %v3142 = vadd.f32 0.0, %v3141
        %3143 = vmatmul.f32.gmra.mxu0 %v3002
        %v3144 = vpop.f32.mrf.mxu0
        %v3145 = vadd.f32 0.0, %v3144
        %3146 = vmatmul.f32.gmra.mxu0 %v3005
        %v3147 = vpop.f32.mrf.mxu0
        %v3148 = vadd.f32 0.0, %v3147
        %3149 = vmatmul.f32.gmra.mxu0 %v3008
        %v3150 = vpop.f32.mrf.mxu0
        %v3151 = vadd.f32 0.0, %v3150
        %3152 = vmatmul.f32.gmra.mxu0 %v3011
        %v3153 = vpop.f32.mrf.mxu0
        %v3154 = vadd.f32 0.0, %v3153
        %3155 = vmatmul.f32.gmra.mxu0 %v3014
        %v3156 = vpop.f32.mrf.mxu0
        %v3157 = vadd.f32 0.0, %v3156
        %3158 = vmatmul.f32.gmra.mxu0 %v3017
        %v3159 = vpop.f32.mrf.mxu0
        %v3160 = vadd.f32 0.0, %v3159
        %3161 = vmatmul.f32.gmra.mxu0 %v3020
        %v3162 = vpop.f32.mrf.mxu0
        %v3163 = vadd.f32 0.0, %v3162
        %3164 = vmatmul.f32.gmra.mxu0 %v3023
        %v3165 = vpop.f32.mrf.mxu0
        %v3166 = vadd.f32 0.0, %v3165
        %3167 = vmatmul.f32.gmra.mxu0 %v3026
        %v3168 = vpop.f32.mrf.mxu0
        %v3169 = vadd.f32 0.0, %v3168
        %3170 = vmatmul.f32.gmra.mxu0 %v3029
        %v3171 = vpop.f32.mrf.mxu0
        %v3172 = vadd.f32 0.0, %v3171
        %3173 = vmatmul.f32.gmra.mxu0 %v3032
        %v3174 = vpop.f32.mrf.mxu0
        %v3175 = vadd.f32 0.0, %v3174
        %3176 = vmatmul.f32.gmra.mxu0 %v3035
        %v3177 = vpop.f32.mrf.mxu0
        %v3178 = vadd.f32 0.0, %v3177
        %3179 = vmatmul.f32.gmra.mxu0 %v3038
        %v3180 = vpop.f32.mrf.mxu0
        %v3181 = vadd.f32 0.0, %v3180
        %3182 = vmatmul.f32.gmra.mxu0 %v3041
        %v3183 = vpop.f32.mrf.mxu0
        %v3184 = vadd.f32 0.0, %v3183
        %3185 = vmatmul.f32.gmra.mxu0 %v3044
        %v3186 = vpop.f32.mrf.mxu0
        %v3187 = vadd.f32 0.0, %v3186
        %3188 = vmatmul.f32.gmra.mxu0 %v3047
        %v3189 = vpop.f32.mrf.mxu0
        %v3190 = vadd.f32 0.0, %v3189
        %3191 = vmatmul.f32.gmra.mxu0 %v3050
        %v3192 = vpop.f32.mrf.mxu0
        %v3193 = vadd.f32 0.0, %v3192
        %3194 = vmatmul.f32.gmra.mxu0 %v3053
        %v3195 = vpop.f32.mrf.mxu0
        %v3196 = vadd.f32 0.0, %v3195
        %3197 = vmatmul.f32.gmra.mxu0 %v3056
        %v3198 = vpop.f32.mrf.mxu0
        %v3199 = vadd.f32 0.0, %v3198
        %3200 = vmatmul.f32.gmra.mxu0 %v3059
        %v3201 = vpop.f32.mrf.mxu0
        %v3202 = vadd.f32 0.0, %v3201
        %3203 = vmatmul.f32.gmra.mxu0 %v3062
        %v3204 = vpop.f32.mrf.mxu0
        %v3205 = vadd.f32 0.0, %v3204
        %3206 = vmatmul.f32.gmra.mxu0 %v3065
        %v3207 = vpop.f32.mrf.mxu0
        %v3208 = vadd.f32 0.0, %v3207
        %3209 = vmatmul.f32.gmra.mxu0 %v3068
        %v3210 = vpop.f32.mrf.mxu0
        %v3211 = vadd.f32 0.0, %v3210
        %3212 = vmatmul.f32.gmra.mxu0 %v3071
        %v3213 = vpop.f32.mrf.mxu0
        %v3214 = vadd.f32 0.0, %v3213
        %3215 = vmatmul.f32.gmra.mxu0 %v3074
        %v3216 = vpop.f32.mrf.mxu0
        %v3217 = vadd.f32 0.0, %v3216
        %3218 = vmatmul.f32.gmra.mxu0 %v3077
        %v3219 = vpop.f32.mrf.mxu0
        %v3220 = vadd.f32 0.0, %v3219
        %3221 = vmatmul.f32.gmra.mxu0 %v3080
        %v3222 = vpop.f32.mrf.mxu0
        %v3223 = vadd.f32 0.0, %v3222
        %3224 = vmatmul.f32.gmra.mxu0 %v3083
        %v3225 = vpop.f32.mrf.mxu0
        %v3226 = vadd.f32 0.0, %v3225
        %3227 = vmatmul.f32.gmra.mxu0 %v3086
        %v3228 = vpop.f32.mrf.mxu0
        %v3229 = vadd.f32 0.0, %v3228
        %3230 = vmatmul.f32.gmra.mxu0 %v3089
        %v3231 = vpop.f32.mrf.mxu0
        %v3232 = vadd.f32 0.0, %v3231
        %3233 = vmatmul.f32.gmra.mxu0 %v3092
        %v3234 = vpop.f32.mrf.mxu0
        %v3235 = vadd.f32 0.0, %v3234
        %3236 = vdwg.mxu0
        %v3237 = vadd.f32 %v2887, %v3115
        %v3238 = vadd.f32 %v2888, %v3118
        %v3239 = vadd.f32 %v2889, %v3121
        %v3240 = vadd.f32 %v2890, %v3124
        %v3241 = vadd.f32 %v2891, %v3127
        %v3242 = vadd.f32 %v2892, %v3130
        %v3243 = vadd.f32 %v2893, %v3133
        %v3244 = vadd.f32 %v2894, %v3136
        %v3245 = vadd.f32 %v2895, %v3139
        %v3246 = vadd.f32 %v2896, %v3142
        %v3247 = vadd.f32 %v2897, %v3145
        %v3248 = vadd.f32 %v2898, %v3148
        %v3249 = vadd.f32 %v2899, %v3151
        %v3250 = vadd.f32 %v2900, %v3154
        %v3251 = vadd.f32 %v2901, %v3157
        %v3252 = vadd.f32 %v2902, %v3160
        %v3253 = vadd.f32 %v2903, %v3163
        %v3254 = vadd.f32 %v2904, %v3166
        %v3255 = vadd.f32 %v2905, %v3169
        %v3256 = vadd.f32 %v2906, %v3172
        %v3257 = vadd.f32 %v2907, %v3175
        %v3258 = vadd.f32 %v2908, %v3178
        %v3259 = vadd.f32 %v2909, %v3181
        %v3260 = vadd.f32 %v2910, %v3184
        %v3261 = vadd.f32 %v2911, %v3187
        %v3262 = vadd.f32 %v2912, %v3190
        %v3263 = vadd.f32 %v2913, %v3193
        %v3264 = vadd.f32 %v2914, %v3196
        %v3265 = vadd.f32 %v2915, %v3199
        %v3266 = vadd.f32 %v2916, %v3202
        %v3267 = vadd.f32 %v2917, %v3205
        %v3268 = vadd.f32 %v2918, %v3208
        %v3269 = vadd.f32 %v2919, %v3211
        %v3270 = vadd.f32 %v2920, %v3214
        %v3271 = vadd.f32 %v2921, %v3217
        %v3272 = vadd.f32 %v2922, %v3220
        %v3273 = vadd.f32 %v2923, %v3223
        %v3274 = vadd.f32 %v2924, %v3226
        %v3275 = vadd.f32 %v2925, %v3229
        %v3276 = vadd.f32 %v2926, %v3232
        %v3277 = vadd.f32 %v2927, %v3235
        %v3278 = vld [vmem:[%s496 + $0x26] sm:$0xff]
        %v3279 = vld [vmem:[%s496 + $0x2e] sm:$0xff]
        %v3280 = vld [vmem:[%s496 + $0x36] sm:$0xff]
        %v3281 = vld [vmem:[%s496 + $0x3e] sm:$0xff]
        %v3282 = vld [vmem:[%s496 + $0x46] sm:$0xff]
        %v3283 = vld [vmem:[%s496 + $0x4e] sm:$0xff]
        %v3284 = vld [vmem:[%s496 + $0x56] sm:$0xff]
        %v3285 = vld [vmem:[%s496 + $0x5e] sm:$0xff]
        %v3286 = vld [vmem:[%s496 + $0x66] sm:$0xff]
        %v3287 = vld [vmem:[%s496 + $0x6e] sm:$0xff]
        %v3288 = vld [vmem:[%s496 + $0x76] sm:$0xff]
        %v3289 = vld [vmem:[%s496 + $0x7e] sm:$0xff]
        %v3290 = vld [vmem:[%s496 + $0x86] sm:$0xff]
        %v3291 = vld [vmem:[%s496 + $0x8e] sm:$0xff]
        %v3292 = vld [vmem:[%s496 + $0x96] sm:$0xff]
        %v3293 = vld [vmem:[%s496 + $0x9e] sm:$0xff]
        %v3294 = vld [vmem:[%s496 + $0xa6] sm:$0xff]
        %v3295 = vld [vmem:[%s496 + $0xae] sm:$0xff]
        %v3296 = vld [vmem:[%s496 + $0xb6] sm:$0xff]
        %v3297 = vld [vmem:[%s496 + $0xbe] sm:$0xff]
        %v3298 = vld [vmem:[%s496 + $0xc6] sm:$0xff]
        %v3299 = vld [vmem:[%s496 + $0xce] sm:$0xff]
        %v3300 = vld [vmem:[%s496 + $0xd6] sm:$0xff]
        %v3301 = vld [vmem:[%s496 + $0xde] sm:$0xff]
        %v3302 = vld [vmem:[%s496 + $0xe6] sm:$0xff]
        %v3303 = vld [vmem:[%s496 + $0xee] sm:$0xff]
        %v3304 = vld [vmem:[%s496 + $0xf6] sm:$0xff]
        %v3305 = vld [vmem:[%s496 + $0xfe] sm:$0xff]
        %v3306 = vld [vmem:[%s496 + $0x106] sm:$0xff]
        %v3307 = vld [vmem:[%s496 + $0x10e] sm:$0xff]
        %v3308 = vld [vmem:[%s496 + $0x116] sm:$0xff]
        %v3309 = vld [vmem:[%s496 + $0x11e] sm:$0xff]
        %v3310 = vld [vmem:[%s496 + $0x126] sm:$0xff]
        %v3311 = vld [vmem:[%s496 + $0x12e] sm:$0xff]
        %v3312 = vld [vmem:[%s496 + $0x136] sm:$0xff]
        %v3313 = vld [vmem:[%s496 + $0x13e] sm:$0xff]
        %v3314 = vld [vmem:[%s496 + $0x146] sm:$0xff]
        %v3315 = vld [vmem:[%s496 + $0x14e] sm:$0xff]
        %v3316 = vld [vmem:[%s496 + $0x156] sm:$0xff]
        %v3317 = vld [vmem:[%s496 + $0x15e] sm:$0xff]
        %v3318 = vld [vmem:[%s496 + $0x166] sm:$0xf]
        %s3319 = scalar_lea.vmem %s2, 32
        %v3320 = vld [vmem:[%s3319] sm:$0xf]
        %v3322 = vsel %vm644, %v3278, 0
        %v3325 = vsel %vm644, %v3279, 0
        %v3328 = vsel %vm644, %v3280, 0
        %v3331 = vsel %vm644, %v3281, 0
        %v3334 = vsel %vm644, %v3282, 0
        %v3337 = vsel %vm644, %v3283, 0
        %v3340 = vsel %vm644, %v3284, 0
        %v3343 = vsel %vm644, %v3285, 0
        %v3346 = vsel %vm644, %v3286, 0
        %v3349 = vsel %vm644, %v3287, 0
        %v3352 = vsel %vm644, %v3288, 0
        %v3355 = vsel %vm644, %v3289, 0
        %v3358 = vsel %vm644, %v3290, 0
        %v3361 = vsel %vm644, %v3291, 0
        %v3364 = vsel %vm644, %v3292, 0
        %v3367 = vsel %vm644, %v3293, 0
        %v3370 = vsel %vm644, %v3294, 0
        %v3373 = vsel %vm644, %v3295, 0
        %v3376 = vsel %vm644, %v3296, 0
        %v3379 = vsel %vm644, %v3297, 0
        %v3382 = vsel %vm644, %v3298, 0
        %v3385 = vsel %vm644, %v3299, 0
        %v3388 = vsel %vm644, %v3300, 0
        %v3391 = vsel %vm644, %v3301, 0
        %v3394 = vsel %vm644, %v3302, 0
        %v3397 = vsel %vm644, %v3303, 0
        %v3400 = vsel %vm644, %v3304, 0
        %v3403 = vsel %vm644, %v3305, 0
        %v3406 = vsel %vm644, %v3306, 0
        %v3409 = vsel %vm644, %v3307, 0
        %v3412 = vsel %vm644, %v3308, 0
        %v3415 = vsel %vm644, %v3309, 0
        %v3418 = vsel %vm644, %v3310, 0
        %v3421 = vsel %vm644, %v3311, 0
        %v3424 = vsel %vm644, %v3312, 0
        %v3427 = vsel %vm644, %v3313, 0
        %v3430 = vsel %vm644, %v3314, 0
        %v3433 = vsel %vm644, %v3315, 0
        %v3436 = vsel %vm644, %v3316, 0
        %v3439 = vsel %vm644, %v3317, 0
        %v3442 = vsel %vm644, %v3318, 0
        %v3445 = vsel %vm768, %v3320, 0
        %3447 = vmatpush.msra.mxu0 0.0
        %3448 = vmatpush.msra.mxu0 0.0
        %3449 = vmatpush.msra.mxu0 0.0
        %3450 = vmatpush.msra.mxu0 0.0
        %3451 = vmatpush.msra.mxu0 0.0
        %3452 = vmatpush.msra.mxu0 0.0
        %3453 = vmatpush.msra.mxu0 0.0
        %3454 = vmatpush.msra.mxu0 0.0
        %3455 = vmatpush.msra.mxu0 0.0
        %3456 = vmatpush.msra.mxu0 0.0
        %3457 = vmatpush.msra.mxu0 0.0
        %3458 = vmatpush.msra.mxu0 0.0
        %3459 = vmatpush.msra.mxu0 0.0
        %3460 = vmatpush.msra.mxu0 0.0
        %3461 = vmatpush.msra.mxu0 0.0
        %3462 = vmatpush.msra.mxu0 %v3445
        %3463 = vmatmul.f32.gmra.mxu0 %v3322
        %v3464 = vpop.f32.mrf.mxu0
        %v3465 = vadd.f32 0.0, %v3464
        %3466 = vmatmul.f32.gmra.mxu0 %v3325
        %v3467 = vpop.f32.mrf.mxu0
        %v3468 = vadd.f32 0.0, %v3467
        %3469 = vmatmul.f32.gmra.mxu0 %v3328
        %v3470 = vpop.f32.mrf.mxu0
        %v3471 = vadd.f32 0.0, %v3470
        %3472 = vmatmul.f32.gmra.mxu0 %v3331
        %v3473 = vpop.f32.mrf.mxu0
        %v3474 = vadd.f32 0.0, %v3473
        %3475 = vmatmul.f32.gmra.mxu0 %v3334
        %v3476 = vpop.f32.mrf.mxu0
        %v3477 = vadd.f32 0.0, %v3476
        %3478 = vmatmul.f32.gmra.mxu0 %v3337
        %v3479 = vpop.f32.mrf.mxu0
        %v3480 = vadd.f32 0.0, %v3479
        %3481 = vmatmul.f32.gmra.mxu0 %v3340
        %v3482 = vpop.f32.mrf.mxu0
        %v3483 = vadd.f32 0.0, %v3482
        %3484 = vmatmul.f32.gmra.mxu0 %v3343
        %v3485 = vpop.f32.mrf.mxu0
        %v3486 = vadd.f32 0.0, %v3485
        %3487 = vmatmul.f32.gmra.mxu0 %v3346
        %v3488 = vpop.f32.mrf.mxu0
        %v3489 = vadd.f32 0.0, %v3488
        %3490 = vmatmul.f32.gmra.mxu0 %v3349
        %v3491 = vpop.f32.mrf.mxu0
        %v3492 = vadd.f32 0.0, %v3491
        %3493 = vmatmul.f32.gmra.mxu0 %v3352
        %v3494 = vpop.f32.mrf.mxu0
        %v3495 = vadd.f32 0.0, %v3494
        %3496 = vmatmul.f32.gmra.mxu0 %v3355
        %v3497 = vpop.f32.mrf.mxu0
        %v3498 = vadd.f32 0.0, %v3497
        %3499 = vmatmul.f32.gmra.mxu0 %v3358
        %v3500 = vpop.f32.mrf.mxu0
        %v3501 = vadd.f32 0.0, %v3500
        %3502 = vmatmul.f32.gmra.mxu0 %v3361
        %v3503 = vpop.f32.mrf.mxu0
        %v3504 = vadd.f32 0.0, %v3503
        %3505 = vmatmul.f32.gmra.mxu0 %v3364
        %v3506 = vpop.f32.mrf.mxu0
        %v3507 = vadd.f32 0.0, %v3506
        %3508 = vmatmul.f32.gmra.mxu0 %v3367
        %v3509 = vpop.f32.mrf.mxu0
        %v3510 = vadd.f32 0.0, %v3509
        %3511 = vmatmul.f32.gmra.mxu0 %v3370
        %v3512 = vpop.f32.mrf.mxu0
        %v3513 = vadd.f32 0.0, %v3512
        %3514 = vmatmul.f32.gmra.mxu0 %v3373
        %v3515 = vpop.f32.mrf.mxu0
        %v3516 = vadd.f32 0.0, %v3515
        %3517 = vmatmul.f32.gmra.mxu0 %v3376
        %v3518 = vpop.f32.mrf.mxu0
        %v3519 = vadd.f32 0.0, %v3518
        %3520 = vmatmul.f32.gmra.mxu0 %v3379
        %v3521 = vpop.f32.mrf.mxu0
        %v3522 = vadd.f32 0.0, %v3521
        %3523 = vmatmul.f32.gmra.mxu0 %v3382
        %v3524 = vpop.f32.mrf.mxu0
        %v3525 = vadd.f32 0.0, %v3524
        %3526 = vmatmul.f32.gmra.mxu0 %v3385
        %v3527 = vpop.f32.mrf.mxu0
        %v3528 = vadd.f32 0.0, %v3527
        %3529 = vmatmul.f32.gmra.mxu0 %v3388
        %v3530 = vpop.f32.mrf.mxu0
        %v3531 = vadd.f32 0.0, %v3530
        %3532 = vmatmul.f32.gmra.mxu0 %v3391
        %v3533 = vpop.f32.mrf.mxu0
        %v3534 = vadd.f32 0.0, %v3533
        %3535 = vmatmul.f32.gmra.mxu0 %v3394
        %v3536 = vpop.f32.mrf.mxu0
        %v3537 = vadd.f32 0.0, %v3536
        %3538 = vmatmul.f32.gmra.mxu0 %v3397
        %v3539 = vpop.f32.mrf.mxu0
        %v3540 = vadd.f32 0.0, %v3539
        %3541 = vmatmul.f32.gmra.mxu0 %v3400
        %v3542 = vpop.f32.mrf.mxu0
        %v3543 = vadd.f32 0.0, %v3542
        %3544 = vmatmul.f32.gmra.mxu0 %v3403
        %v3545 = vpop.f32.mrf.mxu0
        %v3546 = vadd.f32 0.0, %v3545
        %3547 = vmatmul.f32.gmra.mxu0 %v3406
        %v3548 = vpop.f32.mrf.mxu0
        %v3549 = vadd.f32 0.0, %v3548
        %3550 = vmatmul.f32.gmra.mxu0 %v3409
        %v3551 = vpop.f32.mrf.mxu0
        %v3552 = vadd.f32 0.0, %v3551
        %3553 = vmatmul.f32.gmra.mxu0 %v3412
        %v3554 = vpop.f32.mrf.mxu0
        %v3555 = vadd.f32 0.0, %v3554
        %3556 = vmatmul.f32.gmra.mxu0 %v3415
        %v3557 = vpop.f32.mrf.mxu0
        %v3558 = vadd.f32 0.0, %v3557
        %3559 = vmatmul.f32.gmra.mxu0 %v3418
        %v3560 = vpop.f32.mrf.mxu0
        %v3561 = vadd.f32 0.0, %v3560
        %3562 = vmatmul.f32.gmra.mxu0 %v3421
        %v3563 = vpop.f32.mrf.mxu0
        %v3564 = vadd.f32 0.0, %v3563
        %3565 = vmatmul.f32.gmra.mxu0 %v3424
        %v3566 = vpop.f32.mrf.mxu0
        %v3567 = vadd.f32 0.0, %v3566
        %3568 = vmatmul.f32.gmra.mxu0 %v3427
        %v3569 = vpop.f32.mrf.mxu0
        %v3570 = vadd.f32 0.0, %v3569
        %3571 = vmatmul.f32.gmra.mxu0 %v3430
        %v3572 = vpop.f32.mrf.mxu0
        %v3573 = vadd.f32 0.0, %v3572
        %3574 = vmatmul.f32.gmra.mxu0 %v3433
        %v3575 = vpop.f32.mrf.mxu0
        %v3576 = vadd.f32 0.0, %v3575
        %3577 = vmatmul.f32.gmra.mxu0 %v3436
        %v3578 = vpop.f32.mrf.mxu0
        %v3579 = vadd.f32 0.0, %v3578
        %3580 = vmatmul.f32.gmra.mxu0 %v3439
        %v3581 = vpop.f32.mrf.mxu0
        %v3582 = vadd.f32 0.0, %v3581
        %3583 = vmatmul.f32.gmra.mxu0 %v3442
        %v3584 = vpop.f32.mrf.mxu0
        %v3585 = vadd.f32 0.0, %v3584
        %3586 = vdwg.mxu0
        %v3587 = vadd.f32 %v3237, %v3465
        %v3588 = vadd.f32 %v3238, %v3468
        %v3589 = vadd.f32 %v3239, %v3471
        %v3590 = vadd.f32 %v3240, %v3474
        %v3591 = vadd.f32 %v3241, %v3477
        %v3592 = vadd.f32 %v3242, %v3480
        %v3593 = vadd.f32 %v3243, %v3483
        %v3594 = vadd.f32 %v3244, %v3486
        %v3595 = vadd.f32 %v3245, %v3489
        %v3596 = vadd.f32 %v3246, %v3492
        %v3597 = vadd.f32 %v3247, %v3495
        %v3598 = vadd.f32 %v3248, %v3498
        %v3599 = vadd.f32 %v3249, %v3501
        %v3600 = vadd.f32 %v3250, %v3504
        %v3601 = vadd.f32 %v3251, %v3507
        %v3602 = vadd.f32 %v3252, %v3510
        %v3603 = vadd.f32 %v3253, %v3513
        %v3604 = vadd.f32 %v3254, %v3516
        %v3605 = vadd.f32 %v3255, %v3519
        %v3606 = vadd.f32 %v3256, %v3522
        %v3607 = vadd.f32 %v3257, %v3525
        %v3608 = vadd.f32 %v3258, %v3528
        %v3609 = vadd.f32 %v3259, %v3531
        %v3610 = vadd.f32 %v3260, %v3534
        %v3611 = vadd.f32 %v3261, %v3537
        %v3612 = vadd.f32 %v3262, %v3540
        %v3613 = vadd.f32 %v3263, %v3543
        %v3614 = vadd.f32 %v3264, %v3546
        %v3615 = vadd.f32 %v3265, %v3549
        %v3616 = vadd.f32 %v3266, %v3552
        %v3617 = vadd.f32 %v3267, %v3555
        %v3618 = vadd.f32 %v3268, %v3558
        %v3619 = vadd.f32 %v3269, %v3561
        %v3620 = vadd.f32 %v3270, %v3564
        %v3621 = vadd.f32 %v3271, %v3567
        %v3622 = vadd.f32 %v3272, %v3570
        %v3623 = vadd.f32 %v3273, %v3573
        %v3624 = vadd.f32 %v3274, %v3576
        %v3625 = vadd.f32 %v3275, %v3579
        %v3626 = vadd.f32 %v3276, %v3582
        %v3627 = vadd.f32 %v3277, %v3585
        %v3628 = vld [vmem:[%s3] sm:$0x1]
        %v3630 = vperm.slane %v3628, 0
        %v3632 = vadd.f32 %v3587, %v3630
        %v3633 = vadd.f32 %v3588, %v3630
        %v3634 = vadd.f32 %v3589, %v3630
        %v3635 = vadd.f32 %v3590, %v3630
        %v3636 = vadd.f32 %v3591, %v3630
        %v3637 = vadd.f32 %v3592, %v3630
        %v3638 = vadd.f32 %v3593, %v3630
        %v3639 = vadd.f32 %v3594, %v3630
        %v3640 = vadd.f32 %v3595, %v3630
        %v3641 = vadd.f32 %v3596, %v3630
        %v3642 = vadd.f32 %v3597, %v3630
        %v3643 = vadd.f32 %v3598, %v3630
        %v3644 = vadd.f32 %v3599, %v3630
        %v3645 = vadd.f32 %v3600, %v3630
        %v3646 = vadd.f32 %v3601, %v3630
        %v3647 = vadd.f32 %v3602, %v3630
        %v3648 = vadd.f32 %v3603, %v3630
        %v3649 = vadd.f32 %v3604, %v3630
        %v3650 = vadd.f32 %v3605, %v3630
        %v3651 = vadd.f32 %v3606, %v3630
        %v3652 = vadd.f32 %v3607, %v3630
        %v3653 = vadd.f32 %v3608, %v3630
        %v3654 = vadd.f32 %v3609, %v3630
        %v3655 = vadd.f32 %v3610, %v3630
        %v3656 = vadd.f32 %v3611, %v3630
        %v3657 = vadd.f32 %v3612, %v3630
        %v3658 = vadd.f32 %v3613, %v3630
        %v3659 = vadd.f32 %v3614, %v3630
        %v3660 = vadd.f32 %v3615, %v3630
        %v3661 = vadd.f32 %v3616, %v3630
        %v3662 = vadd.f32 %v3617, %v3630
        %v3663 = vadd.f32 %v3618, %v3630
        %v3664 = vadd.f32 %v3619, %v3630
        %v3665 = vadd.f32 %v3620, %v3630
        %v3666 = vadd.f32 %v3621, %v3630
        %v3667 = vadd.f32 %v3622, %v3630
        %v3668 = vadd.f32 %v3623, %v3630
        %v3669 = vadd.f32 %v3624, %v3630
        %v3670 = vadd.f32 %v3625, %v3630
        %v3671 = vadd.f32 %v3626, %v3630
        %v3672 = vadd.f32 %v3627, %v3630
        %v3673 = vld [vmem:[%s4] sm:$0x1]
        %v3674 = vld [vmem:[%s5] sm:$0x1]
        %3676 = vset.pattern.permute.xlu0 0
        %3677 = vperm.xlu0 %3676, %v502
        %v3678 = vpop.permute.xlu0 %3677
        %3681 = vset.pattern.permute.xlu0 0
        %3682 = vperm.xlu0 %3681, %v503
        %v3683 = vpop.permute.xlu0 %3682
        %3686 = vset.pattern.permute.xlu0 0
        %3687 = vperm.xlu0 %3686, %v504
        %v3688 = vpop.permute.xlu0 %3687
        %3691 = vset.pattern.permute.xlu0 0
        %3692 = vperm.xlu0 %3691, %v505
        %v3693 = vpop.permute.xlu0 %3692
        %3696 = vset.pattern.permute.xlu0 0
        %3697 = vperm.xlu0 %3696, %v506
        %v3698 = vpop.permute.xlu0 %3697
        %3701 = vset.pattern.permute.xlu0 0
        %3702 = vperm.xlu0 %3701, %v507
        %v3703 = vpop.permute.xlu0 %3702
        %3706 = vset.pattern.permute.xlu0 0
        %3707 = vperm.xlu0 %3706, %v508
        %v3708 = vpop.permute.xlu0 %3707
        %3711 = vset.pattern.permute.xlu0 0
        %3712 = vperm.xlu0 %3711, %v509
        %v3713 = vpop.permute.xlu0 %3712
        %3716 = vset.pattern.permute.xlu0 0
        %3717 = vperm.xlu0 %3716, %v510
        %v3718 = vpop.permute.xlu0 %3717
        %3721 = vset.pattern.permute.xlu0 0
        %3722 = vperm.xlu0 %3721, %v511
        %v3723 = vpop.permute.xlu0 %3722
        %3726 = vset.pattern.permute.xlu0 0
        %3727 = vperm.xlu0 %3726, %v512
        %v3728 = vpop.permute.xlu0 %3727
        %3731 = vset.pattern.permute.xlu0 0
        %3732 = vperm.xlu0 %3731, %v513
        %v3733 = vpop.permute.xlu0 %3732
        %3736 = vset.pattern.permute.xlu0 0
        %3737 = vperm.xlu0 %3736, %v514
        %v3738 = vpop.permute.xlu0 %3737
        %3741 = vset.pattern.permute.xlu0 0
        %3742 = vperm.xlu0 %3741, %v515
        %v3743 = vpop.permute.xlu0 %3742
        %3746 = vset.pattern.permute.xlu0 0
        %3747 = vperm.xlu0 %3746, %v516
        %v3748 = vpop.permute.xlu0 %3747
        %3751 = vset.pattern.permute.xlu0 0
        %3752 = vperm.xlu0 %3751, %v517
        %v3753 = vpop.permute.xlu0 %3752
        %3756 = vset.pattern.permute.xlu0 0
        %3757 = vperm.xlu0 %3756, %v518
        %v3758 = vpop.permute.xlu0 %3757
        %3761 = vset.pattern.permute.xlu0 0
        %3762 = vperm.xlu0 %3761, %v519
        %v3763 = vpop.permute.xlu0 %3762
        %3766 = vset.pattern.permute.xlu0 0
        %3767 = vperm.xlu0 %3766, %v520
        %v3768 = vpop.permute.xlu0 %3767
        %3771 = vset.pattern.permute.xlu0 0
        %3772 = vperm.xlu0 %3771, %v521
        %v3773 = vpop.permute.xlu0 %3772
        %3776 = vset.pattern.permute.xlu0 0
        %3777 = vperm.xlu0 %3776, %v522
        %v3778 = vpop.permute.xlu0 %3777
        %3781 = vset.pattern.permute.xlu0 0
        %3782 = vperm.xlu0 %3781, %v523
        %v3783 = vpop.permute.xlu0 %3782
        %3786 = vset.pattern.permute.xlu0 0
        %3787 = vperm.xlu0 %3786, %v524
        %v3788 = vpop.permute.xlu0 %3787
        %3791 = vset.pattern.permute.xlu0 0
        %3792 = vperm.xlu0 %3791, %v525
        %v3793 = vpop.permute.xlu0 %3792
        %3796 = vset.pattern.permute.xlu0 0
        %3797 = vperm.xlu0 %3796, %v526
        %v3798 = vpop.permute.xlu0 %3797
        %3801 = vset.pattern.permute.xlu0 0
        %3802 = vperm.xlu0 %3801, %v527
        %v3803 = vpop.permute.xlu0 %3802
        %3806 = vset.pattern.permute.xlu0 0
        %3807 = vperm.xlu0 %3806, %v528
        %v3808 = vpop.permute.xlu0 %3807
        %3811 = vset.pattern.permute.xlu0 0
        %3812 = vperm.xlu0 %3811, %v529
        %v3813 = vpop.permute.xlu0 %3812
        %3816 = vset.pattern.permute.xlu0 0
        %3817 = vperm.xlu0 %3816, %v530
        %v3818 = vpop.permute.xlu0 %3817
        %3821 = vset.pattern.permute.xlu0 0
        %3822 = vperm.xlu0 %3821, %v531
        %v3823 = vpop.permute.xlu0 %3822
        %3826 = vset.pattern.permute.xlu0 0
        %3827 = vperm.xlu0 %3826, %v532
        %v3828 = vpop.permute.xlu0 %3827
        %3831 = vset.pattern.permute.xlu0 0
        %3832 = vperm.xlu0 %3831, %v533
        %v3833 = vpop.permute.xlu0 %3832
        %3836 = vset.pattern.permute.xlu0 0
        %3837 = vperm.xlu0 %3836, %v534
        %v3838 = vpop.permute.xlu0 %3837
        %3841 = vset.pattern.permute.xlu0 0
        %3842 = vperm.xlu0 %3841, %v535
        %v3843 = vpop.permute.xlu0 %3842
        %3846 = vset.pattern.permute.xlu0 0
        %3847 = vperm.xlu0 %3846, %v536
        %v3848 = vpop.permute.xlu0 %3847
        %3851 = vset.pattern.permute.xlu0 0
        %3852 = vperm.xlu0 %3851, %v537
        %v3853 = vpop.permute.xlu0 %3852
        %3856 = vset.pattern.permute.xlu0 0
        %3857 = vperm.xlu0 %3856, %v538
        %v3858 = vpop.permute.xlu0 %3857
        %3861 = vset.pattern.permute.xlu0 0
        %3862 = vperm.xlu0 %3861, %v539
        %v3863 = vpop.permute.xlu0 %3862
        %3866 = vset.pattern.permute.xlu0 0
        %3867 = vperm.xlu0 %3866, %v540
        %v3868 = vpop.permute.xlu0 %3867
        %3871 = vset.pattern.permute.xlu0 0
        %3872 = vperm.xlu0 %3871, %v541
        %v3873 = vpop.permute.xlu0 %3872
        %3876 = vset.pattern.permute.xlu0 0
        %3877 = vperm.xlu0 %3876, %v542
        %v3878 = vpop.permute.xlu0 %3877
        %v3880 = vmul.f32 %v3632, %v3678
        %v3881 = vmul.f32 %v3633, %v3683
        %v3882 = vmul.f32 %v3634, %v3688
        %v3883 = vmul.f32 %v3635, %v3693
        %v3884 = vmul.f32 %v3636, %v3698
        %v3885 = vmul.f32 %v3637, %v3703
        %v3886 = vmul.f32 %v3638, %v3708
        %v3887 = vmul.f32 %v3639, %v3713
        %v3888 = vmul.f32 %v3640, %v3718
        %v3889 = vmul.f32 %v3641, %v3723
        %v3890 = vmul.f32 %v3642, %v3728
        %v3891 = vmul.f32 %v3643, %v3733
        %v3892 = vmul.f32 %v3644, %v3738
        %v3893 = vmul.f32 %v3645, %v3743
        %v3894 = vmul.f32 %v3646, %v3748
        %v3895 = vmul.f32 %v3647, %v3753
        %v3896 = vmul.f32 %v3648, %v3758
        %v3897 = vmul.f32 %v3649, %v3763
        %v3898 = vmul.f32 %v3650, %v3768
        %v3899 = vmul.f32 %v3651, %v3773
        %v3900 = vmul.f32 %v3652, %v3778
        %v3901 = vmul.f32 %v3653, %v3783
        %v3902 = vmul.f32 %v3654, %v3788
        %v3903 = vmul.f32 %v3655, %v3793
        %v3904 = vmul.f32 %v3656, %v3798
        %v3905 = vmul.f32 %v3657, %v3803
        %v3906 = vmul.f32 %v3658, %v3808
        %v3907 = vmul.f32 %v3659, %v3813
        %v3908 = vmul.f32 %v3660, %v3818
        %v3909 = vmul.f32 %v3661, %v3823
        %v3910 = vmul.f32 %v3662, %v3828
        %v3911 = vmul.f32 %v3663, %v3833
        %v3912 = vmul.f32 %v3664, %v3838
        %v3913 = vmul.f32 %v3665, %v3843
        %v3914 = vmul.f32 %v3666, %v3848
        %v3915 = vmul.f32 %v3667, %v3853
        %v3916 = vmul.f32 %v3668, %v3858
        %v3917 = vmul.f32 %v3669, %v3863
        %v3918 = vmul.f32 %v3670, %v3868
        %v3919 = vmul.f32 %v3671, %v3873
        %v3920 = vmul.f32 %v3672, %v3878
        %v3921 = vadd.f32 %v3880, %v3881
        %v3922 = vadd.f32 %v3921, %v3882
        %v3923 = vadd.f32 %v3922, %v3883
        %v3924 = vadd.f32 %v3923, %v3884
        %v3925 = vadd.f32 %v3924, %v3885
        %v3926 = vadd.f32 %v3925, %v3886
        %v3927 = vadd.f32 %v3926, %v3887
        %v3928 = vadd.f32 %v3927, %v3888
        %v3929 = vadd.f32 %v3928, %v3889
        %v3930 = vadd.f32 %v3929, %v3890
        %v3931 = vadd.f32 %v3930, %v3891
        %v3932 = vadd.f32 %v3931, %v3892
        %v3933 = vadd.f32 %v3932, %v3893
        %v3934 = vadd.f32 %v3933, %v3894
        %v3935 = vadd.f32 %v3934, %v3895
        %v3936 = vadd.f32 %v3935, %v3896
        %v3937 = vadd.f32 %v3936, %v3897
        %v3938 = vadd.f32 %v3937, %v3898
        %v3939 = vadd.f32 %v3938, %v3899
        %v3940 = vadd.f32 %v3939, %v3900
        %v3941 = vadd.f32 %v3940, %v3901
        %v3942 = vadd.f32 %v3941, %v3902
        %v3943 = vadd.f32 %v3942, %v3903
        %v3944 = vadd.f32 %v3943, %v3904
        %v3945 = vadd.f32 %v3944, %v3905
        %v3946 = vadd.f32 %v3945, %v3906
        %v3947 = vadd.f32 %v3946, %v3907
        %v3948 = vadd.f32 %v3947, %v3908
        %v3949 = vadd.f32 %v3948, %v3909
        %v3950 = vadd.f32 %v3949, %v3910
        %v3951 = vadd.f32 %v3950, %v3911
        %v3952 = vadd.f32 %v3951, %v3912
        %v3953 = vadd.f32 %v3952, %v3913
        %v3954 = vadd.f32 %v3953, %v3914
        %v3955 = vadd.f32 %v3954, %v3915
        %v3956 = vadd.f32 %v3955, %v3916
        %v3957 = vadd.f32 %v3956, %v3917
        %v3958 = vadd.f32 %v3957, %v3918
        %v3959 = vadd.f32 %v3958, %v3919
        %v3960 = vsel %vm768, %v3920, 0.0
        %v3961 = vadd.f32 %v3959, %v3960
        %v3962 = vrot.slane %v3961, 4
        %v3963 = vadd.f32 %v3961, %v3962
        %v3964 = vrot.slane %v3963, 2
        %v3965 = vadd.f32 %v3963, %v3964
        %v3966 = vrot.slane %v3965, 1
        %v3967 = vadd.f32 %v3965, %v3966
        %v3968 = vmul.f32 %v3967, 0.00390625
        %3969 = vmatpush.msra.mxu0 %v558
        %3970 = vmatpush.msra.mxu0 %v557
        %3971 = vmatpush.msra.mxu0 %v556
        %3972 = vmatpush.msra.mxu0 %v555
        %3973 = vmatpush.msra.mxu0 %v554
        %3974 = vmatpush.msra.mxu0 %v553
        %3975 = vmatpush.msra.mxu0 %v552
        %3976 = vmatpush.msra.mxu0 %v551
        %3977 = vmatpush.msra.mxu0 %v550
        %3978 = vmatpush.msra.mxu0 %v549
        %3979 = vmatpush.msra.mxu0 %v548
        %3980 = vmatpush.msra.mxu0 %v547
        %3981 = vmatpush.msra.mxu0 %v546
        %3982 = vmatpush.msra.mxu0 %v545
        %3983 = vmatpush.msra.mxu0 %v544
        %3984 = vmatpush.msra.mxu0 %v543
        %3985 = vmatmul.f32.gmra.mxu0 %v3968
        %v3986 = vpop.f32.mrf.mxu0
        %v3987 = vadd.f32 0.0, %v3986
        %3988 = vdwg.mxu0
        %v3989 = vperm.slane %v3987, 0
        %v3990 = vsub.f32 %v3632, %v3989
        %v3991 = vsub.f32 %v3633, %v3989
        %v3992 = vsub.f32 %v3634, %v3989
        %v3993 = vsub.f32 %v3635, %v3989
        %v3994 = vsub.f32 %v3636, %v3989
        %v3995 = vsub.f32 %v3637, %v3989
        %v3996 = vsub.f32 %v3638, %v3989
        %v3997 = vsub.f32 %v3639, %v3989
        %v3998 = vsub.f32 %v3640, %v3989
        %v3999 = vsub.f32 %v3641, %v3989
        %v4000 = vsub.f32 %v3642, %v3989
        %v4001 = vsub.f32 %v3643, %v3989
        %v4002 = vsub.f32 %v3644, %v3989
        %v4003 = vsub.f32 %v3645, %v3989
        %v4004 = vsub.f32 %v3646, %v3989
        %v4005 = vsub.f32 %v3647, %v3989
        %v4006 = vsub.f32 %v3648, %v3989
        %v4007 = vsub.f32 %v3649, %v3989
        %v4008 = vsub.f32 %v3650, %v3989
        %v4009 = vsub.f32 %v3651, %v3989
        %v4010 = vsub.f32 %v3652, %v3989
        %v4011 = vsub.f32 %v3653, %v3989
        %v4012 = vsub.f32 %v3654, %v3989
        %v4013 = vsub.f32 %v3655, %v3989
        %v4014 = vsub.f32 %v3656, %v3989
        %v4015 = vsub.f32 %v3657, %v3989
        %v4016 = vsub.f32 %v3658, %v3989
        %v4017 = vsub.f32 %v3659, %v3989
        %v4018 = vsub.f32 %v3660, %v3989
        %v4019 = vsub.f32 %v3661, %v3989
        %v4020 = vsub.f32 %v3662, %v3989
        %v4021 = vsub.f32 %v3663, %v3989
        %v4022 = vsub.f32 %v3664, %v3989
        %v4023 = vsub.f32 %v3665, %v3989
        %v4024 = vsub.f32 %v3666, %v3989
        %v4025 = vsub.f32 %v3667, %v3989
        %v4026 = vsub.f32 %v3668, %v3989
        %v4027 = vsub.f32 %v3669, %v3989
        %v4028 = vsub.f32 %v3670, %v3989
        %v4029 = vsub.f32 %v3671, %v3989
        %v4030 = vsub.f32 %v3672, %v3989
        %v4031 = vmul.f32 %v3990, %v3678
        %v4032 = vmul.f32 %v3991, %v3683
        %v4033 = vmul.f32 %v3992, %v3688
        %v4034 = vmul.f32 %v3993, %v3693
        %v4035 = vmul.f32 %v3994, %v3698
        %v4036 = vmul.f32 %v3995, %v3703
        %v4037 = vmul.f32 %v3996, %v3708
        %v4038 = vmul.f32 %v3997, %v3713
        %v4039 = vmul.f32 %v3998, %v3718
        %v4040 = vmul.f32 %v3999, %v3723
        %v4041 = vmul.f32 %v4000, %v3728
        %v4042 = vmul.f32 %v4001, %v3733
        %v4043 = vmul.f32 %v4002, %v3738
        %v4044 = vmul.f32 %v4003, %v3743
        %v4045 = vmul.f32 %v4004, %v3748
        %v4046 = vmul.f32 %v4005, %v3753
        %v4047 = vmul.f32 %v4006, %v3758
        %v4048 = vmul.f32 %v4007, %v3763
        %v4049 = vmul.f32 %v4008, %v3768
        %v4050 = vmul.f32 %v4009, %v3773
        %v4051 = vmul.f32 %v4010, %v3778
        %v4052 = vmul.f32 %v4011, %v3783
        %v4053 = vmul.f32 %v4012, %v3788
        %v4054 = vmul.f32 %v4013, %v3793
        %v4055 = vmul.f32 %v4014, %v3798
        %v4056 = vmul.f32 %v4015, %v3803
        %v4057 = vmul.f32 %v4016, %v3808
        %v4058 = vmul.f32 %v4017, %v3813
        %v4059 = vmul.f32 %v4018, %v3818
        %v4060 = vmul.f32 %v4019, %v3823
        %v4061 = vmul.f32 %v4020, %v3828
        %v4062 = vmul.f32 %v4021, %v3833
        %v4063 = vmul.f32 %v4022, %v3838
        %v4064 = vmul.f32 %v4023, %v3843
        %v4065 = vmul.f32 %v4024, %v3848
        %v4066 = vmul.f32 %v4025, %v3853
        %v4067 = vmul.f32 %v4026, %v3858
        %v4068 = vmul.f32 %v4027, %v3863
        %v4069 = vmul.f32 %v4028, %v3868
        %v4070 = vmul.f32 %v4029, %v3873
        %v4071 = vmul.f32 %v4030, %v3878
        %v4072 = vmul.f32 %v4031, %v4031
        %v4073 = vmul.f32 %v4032, %v4032
        %v4074 = vmul.f32 %v4033, %v4033
        %v4075 = vmul.f32 %v4034, %v4034
        %v4076 = vmul.f32 %v4035, %v4035
        %v4077 = vmul.f32 %v4036, %v4036
        %v4078 = vmul.f32 %v4037, %v4037
        %v4079 = vmul.f32 %v4038, %v4038
        %v4080 = vmul.f32 %v4039, %v4039
        %v4081 = vmul.f32 %v4040, %v4040
        %v4082 = vmul.f32 %v4041, %v4041
        %v4083 = vmul.f32 %v4042, %v4042
        %v4084 = vmul.f32 %v4043, %v4043
        %v4085 = vmul.f32 %v4044, %v4044
        %v4086 = vmul.f32 %v4045, %v4045
        %v4087 = vmul.f32 %v4046, %v4046
        %v4088 = vmul.f32 %v4047, %v4047
        %v4089 = vmul.f32 %v4048, %v4048
        %v4090 = vmul.f32 %v4049, %v4049
        %v4091 = vmul.f32 %v4050, %v4050
        %v4092 = vmul.f32 %v4051, %v4051
        %v4093 = vmul.f32 %v4052, %v4052
        %v4094 = vmul.f32 %v4053, %v4053
        %v4095 = vmul.f32 %v4054, %v4054
        %v4096 = vmul.f32 %v4055, %v4055
        %v4097 = vmul.f32 %v4056, %v4056
        %v4098 = vmul.f32 %v4057, %v4057
        %v4099 = vmul.f32 %v4058, %v4058
        %v4100 = vmul.f32 %v4059, %v4059
        %v4101 = vmul.f32 %v4060, %v4060
        %v4102 = vmul.f32 %v4061, %v4061
        %v4103 = vmul.f32 %v4062, %v4062
        %v4104 = vmul.f32 %v4063, %v4063
        %v4105 = vmul.f32 %v4064, %v4064
        %v4106 = vmul.f32 %v4065, %v4065
        %v4107 = vmul.f32 %v4066, %v4066
        %v4108 = vmul.f32 %v4067, %v4067
        %v4109 = vmul.f32 %v4068, %v4068
        %v4110 = vmul.f32 %v4069, %v4069
        %v4111 = vmul.f32 %v4070, %v4070
        %v4112 = vmul.f32 %v4071, %v4071
        %v4113 = vadd.f32 %v4072, %v4073
        %v4114 = vadd.f32 %v4113, %v4074
        %v4115 = vadd.f32 %v4114, %v4075
        %v4116 = vadd.f32 %v4115, %v4076
        %v4117 = vadd.f32 %v4116, %v4077
        %v4118 = vadd.f32 %v4117, %v4078
        %v4119 = vadd.f32 %v4118, %v4079
        %v4120 = vadd.f32 %v4119, %v4080
        %v4121 = vadd.f32 %v4120, %v4081
        %v4122 = vadd.f32 %v4121, %v4082
        %v4123 = vadd.f32 %v4122, %v4083
        %v4124 = vadd.f32 %v4123, %v4084
        %v4125 = vadd.f32 %v4124, %v4085
        %v4126 = vadd.f32 %v4125, %v4086
        %v4127 = vadd.f32 %v4126, %v4087
        %v4128 = vadd.f32 %v4127, %v4088
        %v4129 = vadd.f32 %v4128, %v4089
        %v4130 = vadd.f32 %v4129, %v4090
        %v4131 = vadd.f32 %v4130, %v4091
        %v4132 = vadd.f32 %v4131, %v4092
        %v4133 = vadd.f32 %v4132, %v4093
        %v4134 = vadd.f32 %v4133, %v4094
        %v4135 = vadd.f32 %v4134, %v4095
        %v4136 = vadd.f32 %v4135, %v4096
        %v4137 = vadd.f32 %v4136, %v4097
        %v4138 = vadd.f32 %v4137, %v4098
        %v4139 = vadd.f32 %v4138, %v4099
        %v4140 = vadd.f32 %v4139, %v4100
        %v4141 = vadd.f32 %v4140, %v4101
        %v4142 = vadd.f32 %v4141, %v4102
        %v4143 = vadd.f32 %v4142, %v4103
        %v4144 = vadd.f32 %v4143, %v4104
        %v4145 = vadd.f32 %v4144, %v4105
        %v4146 = vadd.f32 %v4145, %v4106
        %v4147 = vadd.f32 %v4146, %v4107
        %v4148 = vadd.f32 %v4147, %v4108
        %v4149 = vadd.f32 %v4148, %v4109
        %v4150 = vadd.f32 %v4149, %v4110
        %v4151 = vadd.f32 %v4150, %v4111
        %v4152 = vsel %vm768, %v4112, 0.0
        %v4153 = vadd.f32 %v4151, %v4152
        %v4154 = vrot.slane %v4153, 4
        %v4155 = vadd.f32 %v4153, %v4154
        %v4156 = vrot.slane %v4155, 2
        %v4157 = vadd.f32 %v4155, %v4156
        %v4158 = vrot.slane %v4157, 1
        %v4159 = vadd.f32 %v4157, %v4158
        %v4160 = vmul.f32 %v4159, 0.00390625
        %4161 = vmatpush.msra.mxu0 %v558
        %4162 = vmatpush.msra.mxu0 %v557
        %4163 = vmatpush.msra.mxu0 %v556
        %4164 = vmatpush.msra.mxu0 %v555
        %4165 = vmatpush.msra.mxu0 %v554
        %4166 = vmatpush.msra.mxu0 %v553
        %4167 = vmatpush.msra.mxu0 %v552
        %4168 = vmatpush.msra.mxu0 %v551
        %4169 = vmatpush.msra.mxu0 %v550
        %4170 = vmatpush.msra.mxu0 %v549
        %4171 = vmatpush.msra.mxu0 %v548
        %4172 = vmatpush.msra.mxu0 %v547
        %4173 = vmatpush.msra.mxu0 %v546
        %4174 = vmatpush.msra.mxu0 %v545
        %4175 = vmatpush.msra.mxu0 %v544
        %4176 = vmatpush.msra.mxu0 %v543
        %4177 = vmatmul.f32.gmra.mxu0 %v4160
        %v4178 = vpop.f32.mrf.mxu0
        %v4179 = vadd.f32 1e-05, %v4178
        %4180 = vdwg.mxu0
        %v4181 = vrsqrt.pop %v4179
        %v4182 = vmul.f32 %v4181, %v4179
        %v4183 = vmul.f32 %v4182, %v4181
        %v4184 = vmul.f32 0.5, %v4183
        %v4185 = vsub.f32 1.5, %v4184
        %v4186 = vmul.f32 %v4181, %v4185
        %vm4187 = vweird.f32 %v4179
        %vm4188 = vweird.f32 %v4181
        %vm4189 = vmor %vm4187, %vm4188
        %v4190 = vsel %vm4189, %v4181, %v4186
        %v4191 = vperm.slane %v4190, 0
        %v4192 = vmul.f32 %v3990, %v4191
        %v4193 = vmul.f32 %v3991, %v4191
        %v4194 = vmul.f32 %v3992, %v4191
        %v4195 = vmul.f32 %v3993, %v4191
        %v4196 = vmul.f32 %v3994, %v4191
        %v4197 = vmul.f32 %v3995, %v4191
        %v4198 = vmul.f32 %v3996, %v4191
        %v4199 = vmul.f32 %v3997, %v4191
        %v4200 = vmul.f32 %v3998, %v4191
        %v4201 = vmul.f32 %v3999, %v4191
        %v4202 = vmul.f32 %v4000, %v4191
        %v4203 = vmul.f32 %v4001, %v4191
        %v4204 = vmul.f32 %v4002, %v4191
        %v4205 = vmul.f32 %v4003, %v4191
        %v4206 = vmul.f32 %v4004, %v4191
        %v4207 = vmul.f32 %v4005, %v4191
        %v4208 = vmul.f32 %v4006, %v4191
        %v4209 = vmul.f32 %v4007, %v4191
        %v4210 = vmul.f32 %v4008, %v4191
        %v4211 = vmul.f32 %v4009, %v4191
        %v4212 = vmul.f32 %v4010, %v4191
        %v4213 = vmul.f32 %v4011, %v4191
        %v4214 = vmul.f32 %v4012, %v4191
        %v4215 = vmul.f32 %v4013, %v4191
        %v4216 = vmul.f32 %v4014, %v4191
        %v4217 = vmul.f32 %v4015, %v4191
        %v4218 = vmul.f32 %v4016, %v4191
        %v4219 = vmul.f32 %v4017, %v4191
        %v4220 = vmul.f32 %v4018, %v4191
        %v4221 = vmul.f32 %v4019, %v4191
        %v4222 = vmul.f32 %v4020, %v4191
        %v4223 = vmul.f32 %v4021, %v4191
        %v4224 = vmul.f32 %v4022, %v4191
        %v4225 = vmul.f32 %v4023, %v4191
        %v4226 = vmul.f32 %v4024, %v4191
        %v4227 = vmul.f32 %v4025, %v4191
        %v4228 = vmul.f32 %v4026, %v4191
        %v4229 = vmul.f32 %v4027, %v4191
        %v4230 = vmul.f32 %v4028, %v4191
        %v4231 = vmul.f32 %v4029, %v4191
        %v4232 = vmul.f32 %v4030, %v4191
        %v4234 = vperm.slane %v3673, 0
        %v4236 = vmul.f32 %v4192, %v4234
        %v4237 = vmul.f32 %v4193, %v4234
        %v4238 = vmul.f32 %v4194, %v4234
        %v4239 = vmul.f32 %v4195, %v4234
        %v4240 = vmul.f32 %v4196, %v4234
        %v4241 = vmul.f32 %v4197, %v4234
        %v4242 = vmul.f32 %v4198, %v4234
        %v4243 = vmul.f32 %v4199, %v4234
        %v4244 = vmul.f32 %v4200, %v4234
        %v4245 = vmul.f32 %v4201, %v4234
        %v4246 = vmul.f32 %v4202, %v4234
        %v4247 = vmul.f32 %v4203, %v4234
        %v4248 = vmul.f32 %v4204, %v4234
        %v4249 = vmul.f32 %v4205, %v4234
        %v4250 = vmul.f32 %v4206, %v4234
        %v4251 = vmul.f32 %v4207, %v4234
        %v4252 = vmul.f32 %v4208, %v4234
        %v4253 = vmul.f32 %v4209, %v4234
        %v4254 = vmul.f32 %v4210, %v4234
        %v4255 = vmul.f32 %v4211, %v4234
        %v4256 = vmul.f32 %v4212, %v4234
        %v4257 = vmul.f32 %v4213, %v4234
        %v4258 = vmul.f32 %v4214, %v4234
        %v4259 = vmul.f32 %v4215, %v4234
        %v4260 = vmul.f32 %v4216, %v4234
        %v4261 = vmul.f32 %v4217, %v4234
        %v4262 = vmul.f32 %v4218, %v4234
        %v4263 = vmul.f32 %v4219, %v4234
        %v4264 = vmul.f32 %v4220, %v4234
        %v4265 = vmul.f32 %v4221, %v4234
        %v4266 = vmul.f32 %v4222, %v4234
        %v4267 = vmul.f32 %v4223, %v4234
        %v4268 = vmul.f32 %v4224, %v4234
        %v4269 = vmul.f32 %v4225, %v4234
        %v4270 = vmul.f32 %v4226, %v4234
        %v4271 = vmul.f32 %v4227, %v4234
        %v4272 = vmul.f32 %v4228, %v4234
        %v4273 = vmul.f32 %v4229, %v4234
        %v4274 = vmul.f32 %v4230, %v4234
        %v4275 = vmul.f32 %v4231, %v4234
        %v4276 = vmul.f32 %v4232, %v4234
        %v4278 = vperm.slane %v3674, 0
        %v4280 = vadd.f32 %v4236, %v4278
        %v4281 = vadd.f32 %v4237, %v4278
        %v4282 = vadd.f32 %v4238, %v4278
        %v4283 = vadd.f32 %v4239, %v4278
        %v4284 = vadd.f32 %v4240, %v4278
        %v4285 = vadd.f32 %v4241, %v4278
        %v4286 = vadd.f32 %v4242, %v4278
        %v4287 = vadd.f32 %v4243, %v4278
        %v4288 = vadd.f32 %v4244, %v4278
        %v4289 = vadd.f32 %v4245, %v4278
        %v4290 = vadd.f32 %v4246, %v4278
        %v4291 = vadd.f32 %v4247, %v4278
        %v4292 = vadd.f32 %v4248, %v4278
        %v4293 = vadd.f32 %v4249, %v4278
        %v4294 = vadd.f32 %v4250, %v4278
        %v4295 = vadd.f32 %v4251, %v4278
        %v4296 = vadd.f32 %v4252, %v4278
        %v4297 = vadd.f32 %v4253, %v4278
        %v4298 = vadd.f32 %v4254, %v4278
        %v4299 = vadd.f32 %v4255, %v4278
        %v4300 = vadd.f32 %v4256, %v4278
        %v4301 = vadd.f32 %v4257, %v4278
        %v4302 = vadd.f32 %v4258, %v4278
        %v4303 = vadd.f32 %v4259, %v4278
        %v4304 = vadd.f32 %v4260, %v4278
        %v4305 = vadd.f32 %v4261, %v4278
        %v4306 = vadd.f32 %v4262, %v4278
        %v4307 = vadd.f32 %v4263, %v4278
        %v4308 = vadd.f32 %v4264, %v4278
        %v4309 = vadd.f32 %v4265, %v4278
        %v4310 = vadd.f32 %v4266, %v4278
        %v4311 = vadd.f32 %v4267, %v4278
        %v4312 = vadd.f32 %v4268, %v4278
        %v4313 = vadd.f32 %v4269, %v4278
        %v4314 = vadd.f32 %v4270, %v4278
        %v4315 = vadd.f32 %v4271, %v4278
        %v4316 = vadd.f32 %v4272, %v4278
        %v4317 = vadd.f32 %v4273, %v4278
        %v4318 = vadd.f32 %v4274, %v4278
        %v4319 = vadd.f32 %v4275, %v4278
        %v4320 = vadd.f32 %v4276, %v4278
        %v4321 = vld [vmem:[%s491] sm:$0x1]
        %v4322 = vld [vmem:[%s491 + $0x1] sm:$0x1]
        %v4323 = vadd.f32 %v4321, 1.0
        %v4325 = vperm.slane %v4323, 0
        %v4327 = vmul.f32 %v4280, %v4325
        %v4328 = vmul.f32 %v4281, %v4325
        %v4329 = vmul.f32 %v4282, %v4325
        %v4330 = vmul.f32 %v4283, %v4325
        %v4331 = vmul.f32 %v4284, %v4325
        %v4332 = vmul.f32 %v4285, %v4325
        %v4333 = vmul.f32 %v4286, %v4325
        %v4334 = vmul.f32 %v4287, %v4325
        %v4335 = vmul.f32 %v4288, %v4325
        %v4336 = vmul.f32 %v4289, %v4325
        %v4337 = vmul.f32 %v4290, %v4325
        %v4338 = vmul.f32 %v4291, %v4325
        %v4339 = vmul.f32 %v4292, %v4325
        %v4340 = vmul.f32 %v4293, %v4325
        %v4341 = vmul.f32 %v4294, %v4325
        %v4342 = vmul.f32 %v4295, %v4325
        %v4343 = vmul.f32 %v4296, %v4325
        %v4344 = vmul.f32 %v4297, %v4325
        %v4345 = vmul.f32 %v4298, %v4325
        %v4346 = vmul.f32 %v4299, %v4325
        %v4347 = vmul.f32 %v4300, %v4325
        %v4348 = vmul.f32 %v4301, %v4325
        %v4349 = vmul.f32 %v4302, %v4325
        %v4350 = vmul.f32 %v4303, %v4325
        %v4351 = vmul.f32 %v4304, %v4325
        %v4352 = vmul.f32 %v4305, %v4325
        %v4353 = vmul.f32 %v4306, %v4325
        %v4354 = vmul.f32 %v4307, %v4325
        %v4355 = vmul.f32 %v4308, %v4325
        %v4356 = vmul.f32 %v4309, %v4325
        %v4357 = vmul.f32 %v4310, %v4325
        %v4358 = vmul.f32 %v4311, %v4325
        %v4359 = vmul.f32 %v4312, %v4325
        %v4360 = vmul.f32 %v4313, %v4325
        %v4361 = vmul.f32 %v4314, %v4325
        %v4362 = vmul.f32 %v4315, %v4325
        %v4363 = vmul.f32 %v4316, %v4325
        %v4364 = vmul.f32 %v4317, %v4325
        %v4365 = vmul.f32 %v4318, %v4325
        %v4366 = vmul.f32 %v4319, %v4325
        %v4367 = vmul.f32 %v4320, %v4325
        %v4369 = vperm.slane %v4322, 0
        %v4371 = vadd.f32 %v4327, %v4369
        %v4372 = vadd.f32 %v4328, %v4369
        %v4373 = vadd.f32 %v4329, %v4369
        %v4374 = vadd.f32 %v4330, %v4369
        %v4375 = vadd.f32 %v4331, %v4369
        %v4376 = vadd.f32 %v4332, %v4369
        %v4377 = vadd.f32 %v4333, %v4369
        %v4378 = vadd.f32 %v4334, %v4369
        %v4379 = vadd.f32 %v4335, %v4369
        %v4380 = vadd.f32 %v4336, %v4369
        %v4381 = vadd.f32 %v4337, %v4369
        %v4382 = vadd.f32 %v4338, %v4369
        %v4383 = vadd.f32 %v4339, %v4369
        %v4384 = vadd.f32 %v4340, %v4369
        %v4385 = vadd.f32 %v4341, %v4369
        %v4386 = vadd.f32 %v4342, %v4369
        %v4387 = vadd.f32 %v4343, %v4369
        %v4388 = vadd.f32 %v4344, %v4369
        %v4389 = vadd.f32 %v4345, %v4369
        %v4390 = vadd.f32 %v4346, %v4369
        %v4391 = vadd.f32 %v4347, %v4369
        %v4392 = vadd.f32 %v4348, %v4369
        %v4393 = vadd.f32 %v4349, %v4369
        %v4394 = vadd.f32 %v4350, %v4369
        %v4395 = vadd.f32 %v4351, %v4369
        %v4396 = vadd.f32 %v4352, %v4369
        %v4397 = vadd.f32 %v4353, %v4369
        %v4398 = vadd.f32 %v4354, %v4369
        %v4399 = vadd.f32 %v4355, %v4369
        %v4400 = vadd.f32 %v4356, %v4369
        %v4401 = vadd.f32 %v4357, %v4369
        %v4402 = vadd.f32 %v4358, %v4369
        %v4403 = vadd.f32 %v4359, %v4369
        %v4404 = vadd.f32 %v4360, %v4369
        %v4405 = vadd.f32 %v4361, %v4369
        %v4406 = vadd.f32 %v4362, %v4369
        %v4407 = vadd.f32 %v4363, %v4369
        %v4408 = vadd.f32 %v4364, %v4369
        %v4409 = vadd.f32 %v4365, %v4369
        %v4410 = vadd.f32 %v4366, %v4369
        %v4411 = vadd.f32 %v4367, %v4369
        %v4412 = vxor.u32 %v4371, 2147483648
        %v4413 = vxor.u32 %v4372, 2147483648
        %v4414 = vxor.u32 %v4373, 2147483648
        %v4415 = vxor.u32 %v4374, 2147483648
        %v4416 = vxor.u32 %v4375, 2147483648
        %v4417 = vxor.u32 %v4376, 2147483648
        %v4418 = vxor.u32 %v4377, 2147483648
        %v4419 = vxor.u32 %v4378, 2147483648
        %v4420 = vxor.u32 %v4379, 2147483648
        %v4421 = vxor.u32 %v4380, 2147483648
        %v4422 = vxor.u32 %v4381, 2147483648
        %v4423 = vxor.u32 %v4382, 2147483648
        %v4424 = vxor.u32 %v4383, 2147483648
        %v4425 = vxor.u32 %v4384, 2147483648
        %v4426 = vxor.u32 %v4385, 2147483648
        %v4427 = vxor.u32 %v4386, 2147483648
        %v4428 = vxor.u32 %v4387, 2147483648
        %v4429 = vxor.u32 %v4388, 2147483648
        %v4430 = vxor.u32 %v4389, 2147483648
        %v4431 = vxor.u32 %v4390, 2147483648
        %v4432 = vxor.u32 %v4391, 2147483648
        %v4433 = vxor.u32 %v4392, 2147483648
        %v4434 = vxor.u32 %v4393, 2147483648
        %v4435 = vxor.u32 %v4394, 2147483648
        %v4436 = vxor.u32 %v4395, 2147483648
        %v4437 = vxor.u32 %v4396, 2147483648
        %v4438 = vxor.u32 %v4397, 2147483648
        %v4439 = vxor.u32 %v4398, 2147483648
        %v4440 = vxor.u32 %v4399, 2147483648
        %v4441 = vxor.u32 %v4400, 2147483648
        %v4442 = vxor.u32 %v4401, 2147483648
        %v4443 = vxor.u32 %v4402, 2147483648
        %v4444 = vxor.u32 %v4403, 2147483648
        %v4445 = vxor.u32 %v4404, 2147483648
        %v4446 = vxor.u32 %v4405, 2147483648
        %v4447 = vxor.u32 %v4406, 2147483648
        %v4448 = vxor.u32 %v4407, 2147483648
        %v4449 = vxor.u32 %v4408, 2147483648
        %v4450 = vxor.u32 %v4409, 2147483648
        %v4451 = vxor.u32 %v4410, 2147483648
        %v4452 = vxor.u32 %v4411, 2147483648
        %v4453 = vmul.f32 %v4412, 1.442695
        %v4454 = vpow.pop %v4453
        %v4455 = vmul.f32 %v4413, 1.442695
        %v4456 = vpow.pop %v4455
        %v4457 = vmul.f32 %v4414, 1.442695
        %v4458 = vpow.pop %v4457
        %v4459 = vmul.f32 %v4415, 1.442695
        %v4460 = vpow.pop %v4459
        %v4461 = vmul.f32 %v4416, 1.442695
        %v4462 = vpow.pop %v4461
        %v4463 = vmul.f32 %v4417, 1.442695
        %v4464 = vpow.pop %v4463
        %v4465 = vmul.f32 %v4418, 1.442695
        %v4466 = vpow.pop %v4465
        %v4467 = vmul.f32 %v4419, 1.442695
        %v4468 = vpow.pop %v4467
        %v4469 = vmul.f32 %v4420, 1.442695
        %v4470 = vpow.pop %v4469
        %v4471 = vmul.f32 %v4421, 1.442695
        %v4472 = vpow.pop %v4471
        %v4473 = vmul.f32 %v4422, 1.442695
        %v4474 = vpow.pop %v4473
        %v4475 = vmul.f32 %v4423, 1.442695
        %v4476 = vpow.pop %v4475
        %v4477 = vmul.f32 %v4424, 1.442695
        %v4478 = vpow.pop %v4477
        %v4479 = vmul.f32 %v4425, 1.442695
        %v4480 = vpow.pop %v4479
        %v4481 = vmul.f32 %v4426, 1.442695
        %v4482 = vpow.pop %v4481
        %v4483 = vmul.f32 %v4427, 1.442695
        %v4484 = vpow.pop %v4483
        %v4485 = vmul.f32 %v4428, 1.442695
        %v4486 = vpow.pop %v4485
        %v4487 = vmul.f32 %v4429, 1.442695
        %v4488 = vpow.pop %v4487
        %v4489 = vmul.f32 %v4430, 1.442695
        %v4490 = vpow.pop %v4489
        %v4491 = vmul.f32 %v4431, 1.442695
        %v4492 = vpow.pop %v4491
        %v4493 = vmul.f32 %v4432, 1.442695
        %v4494 = vpow.pop %v4493
        %v4495 = vmul.f32 %v4433, 1.442695
        %v4496 = vpow.pop %v4495
        %v4497 = vmul.f32 %v4434, 1.442695
        %v4498 = vpow.pop %v4497
        %v4499 = vmul.f32 %v4435, 1.442695
        %v4500 = vpow.pop %v4499
        %v4501 = vmul.f32 %v4436, 1.442695
        %v4502 = vpow.pop %v4501
        %v4503 = vmul.f32 %v4437, 1.442695
        %v4504 = vpow.pop %v4503
        %v4505 = vmul.f32 %v4438, 1.442695
        %v4506 = vpow.pop %v4505
        %v4507 = vmul.f32 %v4439, 1.442695
        %v4508 = vpow.pop %v4507
        %v4509 = vmul.f32 %v4440, 1.442695
        %v4510 = vpow.pop %v4509
        %v4511 = vmul.f32 %v4441, 1.442695
        %v4512 = vpow.pop %v4511
        %v4513 = vmul.f32 %v4442, 1.442695
        %v4514 = vpow.pop %v4513
        %v4515 = vmul.f32 %v4443, 1.442695
        %v4516 = vpow.pop %v4515
        %v4517 = vmul.f32 %v4444, 1.442695
        %v4518 = vpow.pop %v4517
        %v4519 = vmul.f32 %v4445, 1.442695
        %v4520 = vpow.pop %v4519
        %v4521 = vmul.f32 %v4446, 1.442695
        %v4522 = vpow.pop %v4521
        %v4523 = vmul.f32 %v4447, 1.442695
        %v4524 = vpow.pop %v4523
        %v4525 = vmul.f32 %v4448, 1.442695
        %v4526 = vpow.pop %v4525
        %v4527 = vmul.f32 %v4449, 1.442695
        %v4528 = vpow.pop %v4527
        %v4529 = vmul.f32 %v4450, 1.442695
        %v4530 = vpow.pop %v4529
        %v4531 = vmul.f32 %v4451, 1.442695
        %v4532 = vpow.pop %v4531
        %v4533 = vmul.f32 %v4452, 1.442695
        %v4534 = vpow.pop %v4533
        %v4535 = vadd.f32 %v4454, 1.0
        %v4536 = vadd.f32 %v4456, 1.0
        %v4537 = vadd.f32 %v4458, 1.0
        %v4538 = vadd.f32 %v4460, 1.0
        %v4539 = vadd.f32 %v4462, 1.0
        %v4540 = vadd.f32 %v4464, 1.0
        %v4541 = vadd.f32 %v4466, 1.0
        %v4542 = vadd.f32 %v4468, 1.0
        %v4543 = vadd.f32 %v4470, 1.0
        %v4544 = vadd.f32 %v4472, 1.0
        %v4545 = vadd.f32 %v4474, 1.0
        %v4546 = vadd.f32 %v4476, 1.0
        %v4547 = vadd.f32 %v4478, 1.0
        %v4548 = vadd.f32 %v4480, 1.0
        %v4549 = vadd.f32 %v4482, 1.0
        %v4550 = vadd.f32 %v4484, 1.0
        %v4551 = vadd.f32 %v4486, 1.0
        %v4552 = vadd.f32 %v4488, 1.0
        %v4553 = vadd.f32 %v4490, 1.0
        %v4554 = vadd.f32 %v4492, 1.0
        %v4555 = vadd.f32 %v4494, 1.0
        %v4556 = vadd.f32 %v4496, 1.0
        %v4557 = vadd.f32 %v4498, 1.0
        %v4558 = vadd.f32 %v4500, 1.0
        %v4559 = vadd.f32 %v4502, 1.0
        %v4560 = vadd.f32 %v4504, 1.0
        %v4561 = vadd.f32 %v4506, 1.0
        %v4562 = vadd.f32 %v4508, 1.0
        %v4563 = vadd.f32 %v4510, 1.0
        %v4564 = vadd.f32 %v4512, 1.0
        %v4565 = vadd.f32 %v4514, 1.0
        %v4566 = vadd.f32 %v4516, 1.0
        %v4567 = vadd.f32 %v4518, 1.0
        %v4568 = vadd.f32 %v4520, 1.0
        %v4569 = vadd.f32 %v4522, 1.0
        %v4570 = vadd.f32 %v4524, 1.0
        %v4571 = vadd.f32 %v4526, 1.0
        %v4572 = vadd.f32 %v4528, 1.0
        %v4573 = vadd.f32 %v4530, 1.0
        %v4574 = vadd.f32 %v4532, 1.0
        %v4575 = vadd.f32 %v4534, 1.0
        %v4576 = vrcp.pop %v4535
        %v4577 = vmul.f32 %v4535, %v4576
        %v4578 = vsub.f32 1.0, %v4577
        %v4579 = vmul.f32 %v4576, %v4578
        %v4580 = vadd.f32 %v4576, %v4579
        %vm4581 = vweird.f32 %v4535
        %vm4582 = vweird.f32 %v4576
        %vm4583 = vmor %vm4581, %vm4582
        %v4584 = vsel %vm4583, %v4576, %v4580
        %v4585 = vand.u32 2147483647, %v4535
        %vm4586 = vcmp.eq.f32.partialorder %v4585, 8.507059e+37
        %v4587 = vand.u32 %v4535, 2147483648
        %v4588 = vor.u32 1.1754944e-38, %v4587
        %v4589 = vsel %vm4586, %v4588, %v4584
        %v4590 = vmul.f32 1.0, %v4589
        %v4591 = vrcp.pop %v4536
        %v4592 = vmul.f32 %v4536, %v4591
        %v4593 = vsub.f32 1.0, %v4592
        %v4594 = vmul.f32 %v4591, %v4593
        %v4595 = vadd.f32 %v4591, %v4594
        %vm4596 = vweird.f32 %v4536
        %vm4597 = vweird.f32 %v4591
        %vm4598 = vmor %vm4596, %vm4597
        %v4599 = vsel %vm4598, %v4591, %v4595
        %v4600 = vand.u32 2147483647, %v4536
        %vm4601 = vcmp.eq.f32.partialorder %v4600, 8.507059e+37
        %v4602 = vand.u32 %v4536, 2147483648
        %v4603 = vor.u32 1.1754944e-38, %v4602
        %v4604 = vsel %vm4601, %v4603, %v4599
        %v4605 = vmul.f32 1.0, %v4604
        %v4606 = vrcp.pop %v4537
        %v4607 = vmul.f32 %v4537, %v4606
        %v4608 = vsub.f32 1.0, %v4607
        %v4609 = vmul.f32 %v4606, %v4608
        %v4610 = vadd.f32 %v4606, %v4609
        %vm4611 = vweird.f32 %v4537
        %vm4612 = vweird.f32 %v4606
        %vm4613 = vmor %vm4611, %vm4612
        %v4614 = vsel %vm4613, %v4606, %v4610
        %v4615 = vand.u32 2147483647, %v4537
        %vm4616 = vcmp.eq.f32.partialorder %v4615, 8.507059e+37
        %v4617 = vand.u32 %v4537, 2147483648
        %v4618 = vor.u32 1.1754944e-38, %v4617
        %v4619 = vsel %vm4616, %v4618, %v4614
        %v4620 = vmul.f32 1.0, %v4619
        %v4621 = vrcp.pop %v4538
        %v4622 = vmul.f32 %v4538, %v4621
        %v4623 = vsub.f32 1.0, %v4622
        %v4624 = vmul.f32 %v4621, %v4623
        %v4625 = vadd.f32 %v4621, %v4624
        %vm4626 = vweird.f32 %v4538
        %vm4627 = vweird.f32 %v4621
        %vm4628 = vmor %vm4626, %vm4627
        %v4629 = vsel %vm4628, %v4621, %v4625
        %v4630 = vand.u32 2147483647, %v4538
        %vm4631 = vcmp.eq.f32.partialorder %v4630, 8.507059e+37
        %v4632 = vand.u32 %v4538, 2147483648
        %v4633 = vor.u32 1.1754944e-38, %v4632
        %v4634 = vsel %vm4631, %v4633, %v4629
        %v4635 = vmul.f32 1.0, %v4634
        %v4636 = vrcp.pop %v4539
        %v4637 = vmul.f32 %v4539, %v4636
        %v4638 = vsub.f32 1.0, %v4637
        %v4639 = vmul.f32 %v4636, %v4638
        %v4640 = vadd.f32 %v4636, %v4639
        %vm4641 = vweird.f32 %v4539
        %vm4642 = vweird.f32 %v4636
        %vm4643 = vmor %vm4641, %vm4642
        %v4644 = vsel %vm4643, %v4636, %v4640
        %v4645 = vand.u32 2147483647, %v4539
        %vm4646 = vcmp.eq.f32.partialorder %v4645, 8.507059e+37
        %v4647 = vand.u32 %v4539, 2147483648
        %v4648 = vor.u32 1.1754944e-38, %v4647
        %v4649 = vsel %vm4646, %v4648, %v4644
        %v4650 = vmul.f32 1.0, %v4649
        %v4651 = vrcp.pop %v4540
        %v4652 = vmul.f32 %v4540, %v4651
        %v4653 = vsub.f32 1.0, %v4652
        %v4654 = vmul.f32 %v4651, %v4653
        %v4655 = vadd.f32 %v4651, %v4654
        %vm4656 = vweird.f32 %v4540
        %vm4657 = vweird.f32 %v4651
        %vm4658 = vmor %vm4656, %vm4657
        %v4659 = vsel %vm4658, %v4651, %v4655
        %v4660 = vand.u32 2147483647, %v4540
        %vm4661 = vcmp.eq.f32.partialorder %v4660, 8.507059e+37
        %v4662 = vand.u32 %v4540, 2147483648
        %v4663 = vor.u32 1.1754944e-38, %v4662
        %v4664 = vsel %vm4661, %v4663, %v4659
        %v4665 = vmul.f32 1.0, %v4664
        %v4666 = vrcp.pop %v4541
        %v4667 = vmul.f32 %v4541, %v4666
        %v4668 = vsub.f32 1.0, %v4667
        %v4669 = vmul.f32 %v4666, %v4668
        %v4670 = vadd.f32 %v4666, %v4669
        %vm4671 = vweird.f32 %v4541
        %vm4672 = vweird.f32 %v4666
        %vm4673 = vmor %vm4671, %vm4672
        %v4674 = vsel %vm4673, %v4666, %v4670
        %v4675 = vand.u32 2147483647, %v4541
        %vm4676 = vcmp.eq.f32.partialorder %v4675, 8.507059e+37
        %v4677 = vand.u32 %v4541, 2147483648
        %v4678 = vor.u32 1.1754944e-38, %v4677
        %v4679 = vsel %vm4676, %v4678, %v4674
        %v4680 = vmul.f32 1.0, %v4679
        %v4681 = vrcp.pop %v4542
        %v4682 = vmul.f32 %v4542, %v4681
        %v4683 = vsub.f32 1.0, %v4682
        %v4684 = vmul.f32 %v4681, %v4683
        %v4685 = vadd.f32 %v4681, %v4684
        %vm4686 = vweird.f32 %v4542
        %vm4687 = vweird.f32 %v4681
        %vm4688 = vmor %vm4686, %vm4687
        %v4689 = vsel %vm4688, %v4681, %v4685
        %v4690 = vand.u32 2147483647, %v4542
        %vm4691 = vcmp.eq.f32.partialorder %v4690, 8.507059e+37
        %v4692 = vand.u32 %v4542, 2147483648
        %v4693 = vor.u32 1.1754944e-38, %v4692
        %v4694 = vsel %vm4691, %v4693, %v4689
        %v4695 = vmul.f32 1.0, %v4694
        %v4696 = vrcp.pop %v4543
        %v4697 = vmul.f32 %v4543, %v4696
        %v4698 = vsub.f32 1.0, %v4697
        %v4699 = vmul.f32 %v4696, %v4698
        %v4700 = vadd.f32 %v4696, %v4699
        %vm4701 = vweird.f32 %v4543
        %vm4702 = vweird.f32 %v4696
        %vm4703 = vmor %vm4701, %vm4702
        %v4704 = vsel %vm4703, %v4696, %v4700
        %v4705 = vand.u32 2147483647, %v4543
        %vm4706 = vcmp.eq.f32.partialorder %v4705, 8.507059e+37
        %v4707 = vand.u32 %v4543, 2147483648
        %v4708 = vor.u32 1.1754944e-38, %v4707
        %v4709 = vsel %vm4706, %v4708, %v4704
        %v4710 = vmul.f32 1.0, %v4709
        %v4711 = vrcp.pop %v4544
        %v4712 = vmul.f32 %v4544, %v4711
        %v4713 = vsub.f32 1.0, %v4712
        %v4714 = vmul.f32 %v4711, %v4713
        %v4715 = vadd.f32 %v4711, %v4714
        %vm4716 = vweird.f32 %v4544
        %vm4717 = vweird.f32 %v4711
        %vm4718 = vmor %vm4716, %vm4717
        %v4719 = vsel %vm4718, %v4711, %v4715
        %v4720 = vand.u32 2147483647, %v4544
        %vm4721 = vcmp.eq.f32.partialorder %v4720, 8.507059e+37
        %v4722 = vand.u32 %v4544, 2147483648
        %v4723 = vor.u32 1.1754944e-38, %v4722
        %v4724 = vsel %vm4721, %v4723, %v4719
        %v4725 = vmul.f32 1.0, %v4724
        %v4726 = vrcp.pop %v4545
        %v4727 = vmul.f32 %v4545, %v4726
        %v4728 = vsub.f32 1.0, %v4727
        %v4729 = vmul.f32 %v4726, %v4728
        %v4730 = vadd.f32 %v4726, %v4729
        %vm4731 = vweird.f32 %v4545
        %vm4732 = vweird.f32 %v4726
        %vm4733 = vmor %vm4731, %vm4732
        %v4734 = vsel %vm4733, %v4726, %v4730
        %v4735 = vand.u32 2147483647, %v4545
        %vm4736 = vcmp.eq.f32.partialorder %v4735, 8.507059e+37
        %v4737 = vand.u32 %v4545, 2147483648
        %v4738 = vor.u32 1.1754944e-38, %v4737
        %v4739 = vsel %vm4736, %v4738, %v4734
        %v4740 = vmul.f32 1.0, %v4739
        %v4741 = vrcp.pop %v4546
        %v4742 = vmul.f32 %v4546, %v4741
        %v4743 = vsub.f32 1.0, %v4742
        %v4744 = vmul.f32 %v4741, %v4743
        %v4745 = vadd.f32 %v4741, %v4744
        %vm4746 = vweird.f32 %v4546
        %vm4747 = vweird.f32 %v4741
        %vm4748 = vmor %vm4746, %vm4747
        %v4749 = vsel %vm4748, %v4741, %v4745
        %v4750 = vand.u32 2147483647, %v4546
        %vm4751 = vcmp.eq.f32.partialorder %v4750, 8.507059e+37
        %v4752 = vand.u32 %v4546, 2147483648
        %v4753 = vor.u32 1.1754944e-38, %v4752
        %v4754 = vsel %vm4751, %v4753, %v4749
        %v4755 = vmul.f32 1.0, %v4754
        %v4756 = vrcp.pop %v4547
        %v4757 = vmul.f32 %v4547, %v4756
        %v4758 = vsub.f32 1.0, %v4757
        %v4759 = vmul.f32 %v4756, %v4758
        %v4760 = vadd.f32 %v4756, %v4759
        %vm4761 = vweird.f32 %v4547
        %vm4762 = vweird.f32 %v4756
        %vm4763 = vmor %vm4761, %vm4762
        %v4764 = vsel %vm4763, %v4756, %v4760
        %v4765 = vand.u32 2147483647, %v4547
        %vm4766 = vcmp.eq.f32.partialorder %v4765, 8.507059e+37
        %v4767 = vand.u32 %v4547, 2147483648
        %v4768 = vor.u32 1.1754944e-38, %v4767
        %v4769 = vsel %vm4766, %v4768, %v4764
        %v4770 = vmul.f32 1.0, %v4769
        %v4771 = vrcp.pop %v4548
        %v4772 = vmul.f32 %v4548, %v4771
        %v4773 = vsub.f32 1.0, %v4772
        %v4774 = vmul.f32 %v4771, %v4773
        %v4775 = vadd.f32 %v4771, %v4774
        %vm4776 = vweird.f32 %v4548
        %vm4777 = vweird.f32 %v4771
        %vm4778 = vmor %vm4776, %vm4777
        %v4779 = vsel %vm4778, %v4771, %v4775
        %v4780 = vand.u32 2147483647, %v4548
        %vm4781 = vcmp.eq.f32.partialorder %v4780, 8.507059e+37
        %v4782 = vand.u32 %v4548, 2147483648
        %v4783 = vor.u32 1.1754944e-38, %v4782
        %v4784 = vsel %vm4781, %v4783, %v4779
        %v4785 = vmul.f32 1.0, %v4784
        %v4786 = vrcp.pop %v4549
        %v4787 = vmul.f32 %v4549, %v4786
        %v4788 = vsub.f32 1.0, %v4787
        %v4789 = vmul.f32 %v4786, %v4788
        %v4790 = vadd.f32 %v4786, %v4789
        %vm4791 = vweird.f32 %v4549
        %vm4792 = vweird.f32 %v4786
        %vm4793 = vmor %vm4791, %vm4792
        %v4794 = vsel %vm4793, %v4786, %v4790
        %v4795 = vand.u32 2147483647, %v4549
        %vm4796 = vcmp.eq.f32.partialorder %v4795, 8.507059e+37
        %v4797 = vand.u32 %v4549, 2147483648
        %v4798 = vor.u32 1.1754944e-38, %v4797
        %v4799 = vsel %vm4796, %v4798, %v4794
        %v4800 = vmul.f32 1.0, %v4799
        %v4801 = vrcp.pop %v4550
        %v4802 = vmul.f32 %v4550, %v4801
        %v4803 = vsub.f32 1.0, %v4802
        %v4804 = vmul.f32 %v4801, %v4803
        %v4805 = vadd.f32 %v4801, %v4804
        %vm4806 = vweird.f32 %v4550
        %vm4807 = vweird.f32 %v4801
        %vm4808 = vmor %vm4806, %vm4807
        %v4809 = vsel %vm4808, %v4801, %v4805
        %v4810 = vand.u32 2147483647, %v4550
        %vm4811 = vcmp.eq.f32.partialorder %v4810, 8.507059e+37
        %v4812 = vand.u32 %v4550, 2147483648
        %v4813 = vor.u32 1.1754944e-38, %v4812
        %v4814 = vsel %vm4811, %v4813, %v4809
        %v4815 = vmul.f32 1.0, %v4814
        %v4816 = vrcp.pop %v4551
        %v4817 = vmul.f32 %v4551, %v4816
        %v4818 = vsub.f32 1.0, %v4817
        %v4819 = vmul.f32 %v4816, %v4818
        %v4820 = vadd.f32 %v4816, %v4819
        %vm4821 = vweird.f32 %v4551
        %vm4822 = vweird.f32 %v4816
        %vm4823 = vmor %vm4821, %vm4822
        %v4824 = vsel %vm4823, %v4816, %v4820
        %v4825 = vand.u32 2147483647, %v4551
        %vm4826 = vcmp.eq.f32.partialorder %v4825, 8.507059e+37
        %v4827 = vand.u32 %v4551, 2147483648
        %v4828 = vor.u32 1.1754944e-38, %v4827
        %v4829 = vsel %vm4826, %v4828, %v4824
        %v4830 = vmul.f32 1.0, %v4829
        %v4831 = vrcp.pop %v4552
        %v4832 = vmul.f32 %v4552, %v4831
        %v4833 = vsub.f32 1.0, %v4832
        %v4834 = vmul.f32 %v4831, %v4833
        %v4835 = vadd.f32 %v4831, %v4834
        %vm4836 = vweird.f32 %v4552
        %vm4837 = vweird.f32 %v4831
        %vm4838 = vmor %vm4836, %vm4837
        %v4839 = vsel %vm4838, %v4831, %v4835
        %v4840 = vand.u32 2147483647, %v4552
        %vm4841 = vcmp.eq.f32.partialorder %v4840, 8.507059e+37
        %v4842 = vand.u32 %v4552, 2147483648
        %v4843 = vor.u32 1.1754944e-38, %v4842
        %v4844 = vsel %vm4841, %v4843, %v4839
        %v4845 = vmul.f32 1.0, %v4844
        %v4846 = vrcp.pop %v4553
        %v4847 = vmul.f32 %v4553, %v4846
        %v4848 = vsub.f32 1.0, %v4847
        %v4849 = vmul.f32 %v4846, %v4848
        %v4850 = vadd.f32 %v4846, %v4849
        %vm4851 = vweird.f32 %v4553
        %vm4852 = vweird.f32 %v4846
        %vm4853 = vmor %vm4851, %vm4852
        %v4854 = vsel %vm4853, %v4846, %v4850
        %v4855 = vand.u32 2147483647, %v4553
        %vm4856 = vcmp.eq.f32.partialorder %v4855, 8.507059e+37
        %v4857 = vand.u32 %v4553, 2147483648
        %v4858 = vor.u32 1.1754944e-38, %v4857
        %v4859 = vsel %vm4856, %v4858, %v4854
        %v4860 = vmul.f32 1.0, %v4859
        %v4861 = vrcp.pop %v4554
        %v4862 = vmul.f32 %v4554, %v4861
        %v4863 = vsub.f32 1.0, %v4862
        %v4864 = vmul.f32 %v4861, %v4863
        %v4865 = vadd.f32 %v4861, %v4864
        %vm4866 = vweird.f32 %v4554
        %vm4867 = vweird.f32 %v4861
        %vm4868 = vmor %vm4866, %vm4867
        %v4869 = vsel %vm4868, %v4861, %v4865
        %v4870 = vand.u32 2147483647, %v4554
        %vm4871 = vcmp.eq.f32.partialorder %v4870, 8.507059e+37
        %v4872 = vand.u32 %v4554, 2147483648
        %v4873 = vor.u32 1.1754944e-38, %v4872
        %v4874 = vsel %vm4871, %v4873, %v4869
        %v4875 = vmul.f32 1.0, %v4874
        %v4876 = vrcp.pop %v4555
        %v4877 = vmul.f32 %v4555, %v4876
        %v4878 = vsub.f32 1.0, %v4877
        %v4879 = vmul.f32 %v4876, %v4878
        %v4880 = vadd.f32 %v4876, %v4879
        %vm4881 = vweird.f32 %v4555
        %vm4882 = vweird.f32 %v4876
        %vm4883 = vmor %vm4881, %vm4882
        %v4884 = vsel %vm4883, %v4876, %v4880
        %v4885 = vand.u32 2147483647, %v4555
        %vm4886 = vcmp.eq.f32.partialorder %v4885, 8.507059e+37
        %v4887 = vand.u32 %v4555, 2147483648
        %v4888 = vor.u32 1.1754944e-38, %v4887
        %v4889 = vsel %vm4886, %v4888, %v4884
        %v4890 = vmul.f32 1.0, %v4889
        %v4891 = vrcp.pop %v4556
        %v4892 = vmul.f32 %v4556, %v4891
        %v4893 = vsub.f32 1.0, %v4892
        %v4894 = vmul.f32 %v4891, %v4893
        %v4895 = vadd.f32 %v4891, %v4894
        %vm4896 = vweird.f32 %v4556
        %vm4897 = vweird.f32 %v4891
        %vm4898 = vmor %vm4896, %vm4897
        %v4899 = vsel %vm4898, %v4891, %v4895
        %v4900 = vand.u32 2147483647, %v4556
        %vm4901 = vcmp.eq.f32.partialorder %v4900, 8.507059e+37
        %v4902 = vand.u32 %v4556, 2147483648
        %v4903 = vor.u32 1.1754944e-38, %v4902
        %v4904 = vsel %vm4901, %v4903, %v4899
        %v4905 = vmul.f32 1.0, %v4904
        %v4906 = vrcp.pop %v4557
        %v4907 = vmul.f32 %v4557, %v4906
        %v4908 = vsub.f32 1.0, %v4907
        %v4909 = vmul.f32 %v4906, %v4908
        %v4910 = vadd.f32 %v4906, %v4909
        %vm4911 = vweird.f32 %v4557
        %vm4912 = vweird.f32 %v4906
        %vm4913 = vmor %vm4911, %vm4912
        %v4914 = vsel %vm4913, %v4906, %v4910
        %v4915 = vand.u32 2147483647, %v4557
        %vm4916 = vcmp.eq.f32.partialorder %v4915, 8.507059e+37
        %v4917 = vand.u32 %v4557, 2147483648
        %v4918 = vor.u32 1.1754944e-38, %v4917
        %v4919 = vsel %vm4916, %v4918, %v4914
        %v4920 = vmul.f32 1.0, %v4919
        %v4921 = vrcp.pop %v4558
        %v4922 = vmul.f32 %v4558, %v4921
        %v4923 = vsub.f32 1.0, %v4922
        %v4924 = vmul.f32 %v4921, %v4923
        %v4925 = vadd.f32 %v4921, %v4924
        %vm4926 = vweird.f32 %v4558
        %vm4927 = vweird.f32 %v4921
        %vm4928 = vmor %vm4926, %vm4927
        %v4929 = vsel %vm4928, %v4921, %v4925
        %v4930 = vand.u32 2147483647, %v4558
        %vm4931 = vcmp.eq.f32.partialorder %v4930, 8.507059e+37
        %v4932 = vand.u32 %v4558, 2147483648
        %v4933 = vor.u32 1.1754944e-38, %v4932
        %v4934 = vsel %vm4931, %v4933, %v4929
        %v4935 = vmul.f32 1.0, %v4934
        %v4936 = vrcp.pop %v4559
        %v4937 = vmul.f32 %v4559, %v4936
        %v4938 = vsub.f32 1.0, %v4937
        %v4939 = vmul.f32 %v4936, %v4938
        %v4940 = vadd.f32 %v4936, %v4939
        %vm4941 = vweird.f32 %v4559
        %vm4942 = vweird.f32 %v4936
        %vm4943 = vmor %vm4941, %vm4942
        %v4944 = vsel %vm4943, %v4936, %v4940
        %v4945 = vand.u32 2147483647, %v4559
        %vm4946 = vcmp.eq.f32.partialorder %v4945, 8.507059e+37
        %v4947 = vand.u32 %v4559, 2147483648
        %v4948 = vor.u32 1.1754944e-38, %v4947
        %v4949 = vsel %vm4946, %v4948, %v4944
        %v4950 = vmul.f32 1.0, %v4949
        %v4951 = vrcp.pop %v4560
        %v4952 = vmul.f32 %v4560, %v4951
        %v4953 = vsub.f32 1.0, %v4952
        %v4954 = vmul.f32 %v4951, %v4953
        %v4955 = vadd.f32 %v4951, %v4954
        %vm4956 = vweird.f32 %v4560
        %vm4957 = vweird.f32 %v4951
        %vm4958 = vmor %vm4956, %vm4957
        %v4959 = vsel %vm4958, %v4951, %v4955
        %v4960 = vand.u32 2147483647, %v4560
        %vm4961 = vcmp.eq.f32.partialorder %v4960, 8.507059e+37
        %v4962 = vand.u32 %v4560, 2147483648
        %v4963 = vor.u32 1.1754944e-38, %v4962
        %v4964 = vsel %vm4961, %v4963, %v4959
        %v4965 = vmul.f32 1.0, %v4964
        %v4966 = vrcp.pop %v4561
        %v4967 = vmul.f32 %v4561, %v4966
        %v4968 = vsub.f32 1.0, %v4967
        %v4969 = vmul.f32 %v4966, %v4968
        %v4970 = vadd.f32 %v4966, %v4969
        %vm4971 = vweird.f32 %v4561
        %vm4972 = vweird.f32 %v4966
        %vm4973 = vmor %vm4971, %vm4972
        %v4974 = vsel %vm4973, %v4966, %v4970
        %v4975 = vand.u32 2147483647, %v4561
        %vm4976 = vcmp.eq.f32.partialorder %v4975, 8.507059e+37
        %v4977 = vand.u32 %v4561, 2147483648
        %v4978 = vor.u32 1.1754944e-38, %v4977
        %v4979 = vsel %vm4976, %v4978, %v4974
        %v4980 = vmul.f32 1.0, %v4979
        %v4981 = vrcp.pop %v4562
        %v4982 = vmul.f32 %v4562, %v4981
        %v4983 = vsub.f32 1.0, %v4982
        %v4984 = vmul.f32 %v4981, %v4983
        %v4985 = vadd.f32 %v4981, %v4984
        %vm4986 = vweird.f32 %v4562
        %vm4987 = vweird.f32 %v4981
        %vm4988 = vmor %vm4986, %vm4987
        %v4989 = vsel %vm4988, %v4981, %v4985
        %v4990 = vand.u32 2147483647, %v4562
        %vm4991 = vcmp.eq.f32.partialorder %v4990, 8.507059e+37
        %v4992 = vand.u32 %v4562, 2147483648
        %v4993 = vor.u32 1.1754944e-38, %v4992
        %v4994 = vsel %vm4991, %v4993, %v4989
        %v4995 = vmul.f32 1.0, %v4994
        %v4996 = vrcp.pop %v4563
        %v4997 = vmul.f32 %v4563, %v4996
        %v4998 = vsub.f32 1.0, %v4997
        %v4999 = vmul.f32 %v4996, %v4998
        %v5000 = vadd.f32 %v4996, %v4999
        %vm5001 = vweird.f32 %v4563
        %vm5002 = vweird.f32 %v4996
        %vm5003 = vmor %vm5001, %vm5002
        %v5004 = vsel %vm5003, %v4996, %v5000
        %v5005 = vand.u32 2147483647, %v4563
        %vm5006 = vcmp.eq.f32.partialorder %v5005, 8.507059e+37
        %v5007 = vand.u32 %v4563, 2147483648
        %v5008 = vor.u32 1.1754944e-38, %v5007
        %v5009 = vsel %vm5006, %v5008, %v5004
        %v5010 = vmul.f32 1.0, %v5009
        %v5011 = vrcp.pop %v4564
        %v5012 = vmul.f32 %v4564, %v5011
        %v5013 = vsub.f32 1.0, %v5012
        %v5014 = vmul.f32 %v5011, %v5013
        %v5015 = vadd.f32 %v5011, %v5014
        %vm5016 = vweird.f32 %v4564
        %vm5017 = vweird.f32 %v5011
        %vm5018 = vmor %vm5016, %vm5017
        %v5019 = vsel %vm5018, %v5011, %v5015
        %v5020 = vand.u32 2147483647, %v4564
        %vm5021 = vcmp.eq.f32.partialorder %v5020, 8.507059e+37
        %v5022 = vand.u32 %v4564, 2147483648
        %v5023 = vor.u32 1.1754944e-38, %v5022
        %v5024 = vsel %vm5021, %v5023, %v5019
        %v5025 = vmul.f32 1.0, %v5024
        %v5026 = vrcp.pop %v4565
        %v5027 = vmul.f32 %v4565, %v5026
        %v5028 = vsub.f32 1.0, %v5027
        %v5029 = vmul.f32 %v5026, %v5028
        %v5030 = vadd.f32 %v5026, %v5029
        %vm5031 = vweird.f32 %v4565
        %vm5032 = vweird.f32 %v5026
        %vm5033 = vmor %vm5031, %vm5032
        %v5034 = vsel %vm5033, %v5026, %v5030
        %v5035 = vand.u32 2147483647, %v4565
        %vm5036 = vcmp.eq.f32.partialorder %v5035, 8.507059e+37
        %v5037 = vand.u32 %v4565, 2147483648
        %v5038 = vor.u32 1.1754944e-38, %v5037
        %v5039 = vsel %vm5036, %v5038, %v5034
        %v5040 = vmul.f32 1.0, %v5039
        %v5041 = vrcp.pop %v4566
        %v5042 = vmul.f32 %v4566, %v5041
        %v5043 = vsub.f32 1.0, %v5042
        %v5044 = vmul.f32 %v5041, %v5043
        %v5045 = vadd.f32 %v5041, %v5044
        %vm5046 = vweird.f32 %v4566
        %vm5047 = vweird.f32 %v5041
        %vm5048 = vmor %vm5046, %vm5047
        %v5049 = vsel %vm5048, %v5041, %v5045
        %v5050 = vand.u32 2147483647, %v4566
        %vm5051 = vcmp.eq.f32.partialorder %v5050, 8.507059e+37
        %v5052 = vand.u32 %v4566, 2147483648
        %v5053 = vor.u32 1.1754944e-38, %v5052
        %v5054 = vsel %vm5051, %v5053, %v5049
        %v5055 = vmul.f32 1.0, %v5054
        %v5056 = vrcp.pop %v4567
        %v5057 = vmul.f32 %v4567, %v5056
        %v5058 = vsub.f32 1.0, %v5057
        %v5059 = vmul.f32 %v5056, %v5058
        %v5060 = vadd.f32 %v5056, %v5059
        %vm5061 = vweird.f32 %v4567
        %vm5062 = vweird.f32 %v5056
        %vm5063 = vmor %vm5061, %vm5062
        %v5064 = vsel %vm5063, %v5056, %v5060
        %v5065 = vand.u32 2147483647, %v4567
        %vm5066 = vcmp.eq.f32.partialorder %v5065, 8.507059e+37
        %v5067 = vand.u32 %v4567, 2147483648
        %v5068 = vor.u32 1.1754944e-38, %v5067
        %v5069 = vsel %vm5066, %v5068, %v5064
        %v5070 = vmul.f32 1.0, %v5069
        %v5071 = vrcp.pop %v4568
        %v5072 = vmul.f32 %v4568, %v5071
        %v5073 = vsub.f32 1.0, %v5072
        %v5074 = vmul.f32 %v5071, %v5073
        %v5075 = vadd.f32 %v5071, %v5074
        %vm5076 = vweird.f32 %v4568
        %vm5077 = vweird.f32 %v5071
        %vm5078 = vmor %vm5076, %vm5077
        %v5079 = vsel %vm5078, %v5071, %v5075
        %v5080 = vand.u32 2147483647, %v4568
        %vm5081 = vcmp.eq.f32.partialorder %v5080, 8.507059e+37
        %v5082 = vand.u32 %v4568, 2147483648
        %v5083 = vor.u32 1.1754944e-38, %v5082
        %v5084 = vsel %vm5081, %v5083, %v5079
        %v5085 = vmul.f32 1.0, %v5084
        %v5086 = vrcp.pop %v4569
        %v5087 = vmul.f32 %v4569, %v5086
        %v5088 = vsub.f32 1.0, %v5087
        %v5089 = vmul.f32 %v5086, %v5088
        %v5090 = vadd.f32 %v5086, %v5089
        %vm5091 = vweird.f32 %v4569
        %vm5092 = vweird.f32 %v5086
        %vm5093 = vmor %vm5091, %vm5092
        %v5094 = vsel %vm5093, %v5086, %v5090
        %v5095 = vand.u32 2147483647, %v4569
        %vm5096 = vcmp.eq.f32.partialorder %v5095, 8.507059e+37
        %v5097 = vand.u32 %v4569, 2147483648
        %v5098 = vor.u32 1.1754944e-38, %v5097
        %v5099 = vsel %vm5096, %v5098, %v5094
        %v5100 = vmul.f32 1.0, %v5099
        %v5101 = vrcp.pop %v4570
        %v5102 = vmul.f32 %v4570, %v5101
        %v5103 = vsub.f32 1.0, %v5102
        %v5104 = vmul.f32 %v5101, %v5103
        %v5105 = vadd.f32 %v5101, %v5104
        %vm5106 = vweird.f32 %v4570
        %vm5107 = vweird.f32 %v5101
        %vm5108 = vmor %vm5106, %vm5107
        %v5109 = vsel %vm5108, %v5101, %v5105
        %v5110 = vand.u32 2147483647, %v4570
        %vm5111 = vcmp.eq.f32.partialorder %v5110, 8.507059e+37
        %v5112 = vand.u32 %v4570, 2147483648
        %v5113 = vor.u32 1.1754944e-38, %v5112
        %v5114 = vsel %vm5111, %v5113, %v5109
        %v5115 = vmul.f32 1.0, %v5114
        %v5116 = vrcp.pop %v4571
        %v5117 = vmul.f32 %v4571, %v5116
        %v5118 = vsub.f32 1.0, %v5117
        %v5119 = vmul.f32 %v5116, %v5118
        %v5120 = vadd.f32 %v5116, %v5119
        %vm5121 = vweird.f32 %v4571
        %vm5122 = vweird.f32 %v5116
        %vm5123 = vmor %vm5121, %vm5122
        %v5124 = vsel %vm5123, %v5116, %v5120
        %v5125 = vand.u32 2147483647, %v4571
        %vm5126 = vcmp.eq.f32.partialorder %v5125, 8.507059e+37
        %v5127 = vand.u32 %v4571, 2147483648
        %v5128 = vor.u32 1.1754944e-38, %v5127
        %v5129 = vsel %vm5126, %v5128, %v5124
        %v5130 = vmul.f32 1.0, %v5129
        %v5131 = vrcp.pop %v4572
        %v5132 = vmul.f32 %v4572, %v5131
        %v5133 = vsub.f32 1.0, %v5132
        %v5134 = vmul.f32 %v5131, %v5133
        %v5135 = vadd.f32 %v5131, %v5134
        %vm5136 = vweird.f32 %v4572
        %vm5137 = vweird.f32 %v5131
        %vm5138 = vmor %vm5136, %vm5137
        %v5139 = vsel %vm5138, %v5131, %v5135
        %v5140 = vand.u32 2147483647, %v4572
        %vm5141 = vcmp.eq.f32.partialorder %v5140, 8.507059e+37
        %v5142 = vand.u32 %v4572, 2147483648
        %v5143 = vor.u32 1.1754944e-38, %v5142
        %v5144 = vsel %vm5141, %v5143, %v5139
        %v5145 = vmul.f32 1.0, %v5144
        %v5146 = vrcp.pop %v4573
        %v5147 = vmul.f32 %v4573, %v5146
        %v5148 = vsub.f32 1.0, %v5147
        %v5149 = vmul.f32 %v5146, %v5148
        %v5150 = vadd.f32 %v5146, %v5149
        %vm5151 = vweird.f32 %v4573
        %vm5152 = vweird.f32 %v5146
        %vm5153 = vmor %vm5151, %vm5152
        %v5154 = vsel %vm5153, %v5146, %v5150
        %v5155 = vand.u32 2147483647, %v4573
        %vm5156 = vcmp.eq.f32.partialorder %v5155, 8.507059e+37
        %v5157 = vand.u32 %v4573, 2147483648
        %v5158 = vor.u32 1.1754944e-38, %v5157
        %v5159 = vsel %vm5156, %v5158, %v5154
        %v5160 = vmul.f32 1.0, %v5159
        %v5161 = vrcp.pop %v4574
        %v5162 = vmul.f32 %v4574, %v5161
        %v5163 = vsub.f32 1.0, %v5162
        %v5164 = vmul.f32 %v5161, %v5163
        %v5165 = vadd.f32 %v5161, %v5164
        %vm5166 = vweird.f32 %v4574
        %vm5167 = vweird.f32 %v5161
        %vm5168 = vmor %vm5166, %vm5167
        %v5169 = vsel %vm5168, %v5161, %v5165
        %v5170 = vand.u32 2147483647, %v4574
        %vm5171 = vcmp.eq.f32.partialorder %v5170, 8.507059e+37
        %v5172 = vand.u32 %v4574, 2147483648
        %v5173 = vor.u32 1.1754944e-38, %v5172
        %v5174 = vsel %vm5171, %v5173, %v5169
        %v5175 = vmul.f32 1.0, %v5174
        %v5176 = vrcp.pop %v4575
        %v5177 = vmul.f32 %v4575, %v5176
        %v5178 = vsub.f32 1.0, %v5177
        %v5179 = vmul.f32 %v5176, %v5178
        %v5180 = vadd.f32 %v5176, %v5179
        %vm5181 = vweird.f32 %v4575
        %vm5182 = vweird.f32 %v5176
        %vm5183 = vmor %vm5181, %vm5182
        %v5184 = vsel %vm5183, %v5176, %v5180
        %v5185 = vand.u32 2147483647, %v4575
        %vm5186 = vcmp.eq.f32.partialorder %v5185, 8.507059e+37
        %v5187 = vand.u32 %v4575, 2147483648
        %v5188 = vor.u32 1.1754944e-38, %v5187
        %v5189 = vsel %vm5186, %v5188, %v5184
        %v5190 = vmul.f32 1.0, %v5189
        %v5191 = vmul.f32 %v4371, %v4590
        %v5192 = vmul.f32 %v4372, %v4605
        %v5193 = vmul.f32 %v4373, %v4620
        %v5194 = vmul.f32 %v4374, %v4635
        %v5195 = vmul.f32 %v4375, %v4650
        %v5196 = vmul.f32 %v4376, %v4665
        %v5197 = vmul.f32 %v4377, %v4680
        %v5198 = vmul.f32 %v4378, %v4695
        %v5199 = vmul.f32 %v4379, %v4710
        %v5200 = vmul.f32 %v4380, %v4725
        %v5201 = vmul.f32 %v4381, %v4740
        %v5202 = vmul.f32 %v4382, %v4755
        %v5203 = vmul.f32 %v4383, %v4770
        %v5204 = vmul.f32 %v4384, %v4785
        %v5205 = vmul.f32 %v4385, %v4800
        %v5206 = vmul.f32 %v4386, %v4815
        %v5207 = vmul.f32 %v4387, %v4830
        %v5208 = vmul.f32 %v4388, %v4845
        %v5209 = vmul.f32 %v4389, %v4860
        %v5210 = vmul.f32 %v4390, %v4875
        %v5211 = vmul.f32 %v4391, %v4890
        %v5212 = vmul.f32 %v4392, %v4905
        %v5213 = vmul.f32 %v4393, %v4920
        %v5214 = vmul.f32 %v4394, %v4935
        %v5215 = vmul.f32 %v4395, %v4950
        %v5216 = vmul.f32 %v4396, %v4965
        %v5217 = vmul.f32 %v4397, %v4980
        %v5218 = vmul.f32 %v4398, %v4995
        %v5219 = vmul.f32 %v4399, %v5010
        %v5220 = vmul.f32 %v4400, %v5025
        %v5221 = vmul.f32 %v4401, %v5040
        %v5222 = vmul.f32 %v4402, %v5055
        %v5223 = vmul.f32 %v4403, %v5070
        %v5224 = vmul.f32 %v4404, %v5085
        %v5225 = vmul.f32 %v4405, %v5100
        %v5226 = vmul.f32 %v4406, %v5115
        %v5227 = vmul.f32 %v4407, %v5130
        %v5228 = vmul.f32 %v4408, %v5145
        %v5229 = vmul.f32 %v4409, %v5160
        %v5230 = vmul.f32 %v4410, %v5175
        %v5231 = vmul.f32 %v4411, %v5190
        %v5232 = vmul.f32 %v5191, %v3678
        %v5233 = vmul.f32 %v5192, %v3683
        %v5234 = vmul.f32 %v5193, %v3688
        %v5235 = vmul.f32 %v5194, %v3693
        %v5236 = vmul.f32 %v5195, %v3698
        %v5237 = vmul.f32 %v5196, %v3703
        %v5238 = vmul.f32 %v5197, %v3708
        %v5239 = vmul.f32 %v5198, %v3713
        %v5240 = vmul.f32 %v5199, %v3718
        %v5241 = vmul.f32 %v5200, %v3723
        %v5242 = vmul.f32 %v5201, %v3728
        %v5243 = vmul.f32 %v5202, %v3733
        %v5244 = vmul.f32 %v5203, %v3738
        %v5245 = vmul.f32 %v5204, %v3743
        %v5246 = vmul.f32 %v5205, %v3748
        %v5247 = vmul.f32 %v5206, %v3753
        %v5248 = vmul.f32 %v5207, %v3758
        %v5249 = vmul.f32 %v5208, %v3763
        %v5250 = vmul.f32 %v5209, %v3768
        %v5251 = vmul.f32 %v5210, %v3773
        %v5252 = vmul.f32 %v5211, %v3778
        %v5253 = vmul.f32 %v5212, %v3783
        %v5254 = vmul.f32 %v5213, %v3788
        %v5255 = vmul.f32 %v5214, %v3793
        %v5256 = vmul.f32 %v5215, %v3798
        %v5257 = vmul.f32 %v5216, %v3803
        %v5258 = vmul.f32 %v5217, %v3808
        %v5259 = vmul.f32 %v5218, %v3813
        %v5260 = vmul.f32 %v5219, %v3818
        %v5261 = vmul.f32 %v5220, %v3823
        %v5262 = vmul.f32 %v5221, %v3828
        %v5263 = vmul.f32 %v5222, %v3833
        %v5264 = vmul.f32 %v5223, %v3838
        %v5265 = vmul.f32 %v5224, %v3843
        %v5266 = vmul.f32 %v5225, %v3848
        %v5267 = vmul.f32 %v5226, %v3853
        %v5268 = vmul.f32 %v5227, %v3858
        %v5269 = vmul.f32 %v5228, %v3863
        %v5270 = vmul.f32 %v5229, %v3868
        %v5271 = vmul.f32 %v5230, %v3873
        %v5272 = vmul.f32 %v5231, %v3878
        %5273 = vst [vmem:[#allocation2] sm:$0xff] 0.0
        %5274 = vst [vmem:[#allocation2 + $0x8] sm:$0xff] 0.0
        %5275 = vst [vmem:[#allocation2 + $0x10] sm:$0x7] 0.0
        %5276 = vst [vmem:[#allocation2 + $0x157] sm:$0xff] 0.0
        %5277 = vst [vmem:[#allocation2 + $0x15f] sm:$0xff] 0.0
        %5278 = vst [vmem:[#allocation2 + $0x167] sm:$0x7] 0.0
        %5279 = vst [vmem:[#allocation2 + $0x13] sm:$0xff] %v5232
        %5280 = vst [vmem:[#allocation2 + $0x1b] sm:$0xff] %v5233
        %5281 = vst [vmem:[#allocation2 + $0x23] sm:$0xff] %v5234
        %5282 = vst [vmem:[#allocation2 + $0x2b] sm:$0xff] %v5235
        %5283 = vst [vmem:[#allocation2 + $0x33] sm:$0xff] %v5236
        %5284 = vst [vmem:[#allocation2 + $0x3b] sm:$0xff] %v5237
        %5285 = vst [vmem:[#allocation2 + $0x43] sm:$0xff] %v5238
        %5286 = vst [vmem:[#allocation2 + $0x4b] sm:$0xff] %v5239
        %5287 = vst [vmem:[#allocation2 + $0x53] sm:$0xff] %v5240
        %5288 = vst [vmem:[#allocation2 + $0x5b] sm:$0xff] %v5241
        %5289 = vst [vmem:[#allocation2 + $0x63] sm:$0xff] %v5242
        %5290 = vst [vmem:[#allocation2 + $0x6b] sm:$0xff] %v5243
        %5291 = vst [vmem:[#allocation2 + $0x73] sm:$0xff] %v5244
        %5292 = vst [vmem:[#allocation2 + $0x7b] sm:$0xff] %v5245
        %5293 = vst [vmem:[#allocation2 + $0x83] sm:$0xff] %v5246
        %5294 = vst [vmem:[#allocation2 + $0x8b] sm:$0xff] %v5247
        %5295 = vst [vmem:[#allocation2 + $0x93] sm:$0xff] %v5248
        %5296 = vst [vmem:[#allocation2 + $0x9b] sm:$0xff] %v5249
        %5297 = vst [vmem:[#allocation2 + $0xa3] sm:$0xff] %v5250
        %5298 = vst [vmem:[#allocation2 + $0xab] sm:$0xff] %v5251
        %5299 = vst [vmem:[#allocation2 + $0xb3] sm:$0xff] %v5252
        %5300 = vst [vmem:[#allocation2 + $0xbb] sm:$0xff] %v5253
        %5301 = vst [vmem:[#allocation2 + $0xc3] sm:$0xff] %v5254
        %5302 = vst [vmem:[#allocation2 + $0xcb] sm:$0xff] %v5255
        %5303 = vst [vmem:[#allocation2 + $0xd3] sm:$0xff] %v5256
        %5304 = vst [vmem:[#allocation2 + $0xdb] sm:$0xff] %v5257
        %5305 = vst [vmem:[#allocation2 + $0xe3] sm:$0xff] %v5258
        %5306 = vst [vmem:[#allocation2 + $0xeb] sm:$0xff] %v5259
        %5307 = vst [vmem:[#allocation2 + $0xf3] sm:$0xff] %v5260
        %5308 = vst [vmem:[#allocation2 + $0xfb] sm:$0xff] %v5261
        %5309 = vst [vmem:[#allocation2 + $0x103] sm:$0xff] %v5262
        %5310 = vst [vmem:[#allocation2 + $0x10b] sm:$0xff] %v5263
        %5311 = vst [vmem:[#allocation2 + $0x113] sm:$0xff] %v5264
        %5312 = vst [vmem:[#allocation2 + $0x11b] sm:$0xff] %v5265
        %5313 = vst [vmem:[#allocation2 + $0x123] sm:$0xff] %v5266
        %5314 = vst [vmem:[#allocation2 + $0x12b] sm:$0xff] %v5267
        %5315 = vst [vmem:[#allocation2 + $0x133] sm:$0xff] %v5268
        %5316 = vst [vmem:[#allocation2 + $0x13b] sm:$0xff] %v5269
        %5317 = vst [vmem:[#allocation2 + $0x143] sm:$0xff] %v5270
        %5318 = vst [vmem:[#allocation2 + $0x14b] sm:$0xff] %v5271
        %5319 = vst [vmem:[#allocation2 + $0x153] sm:$0xf] %v5272
        %v5320 = vld [vmem:[#allocation2] sm:$0xff]
        %v5321 = vld [vmem:[#allocation2 + $0x8] sm:$0xff]
        %v5322 = vld [vmem:[#allocation2 + $0x10] sm:$0xff]
        %v5323 = vld [vmem:[#allocation2 + $0x18] sm:$0xff]
        %v5324 = vld [vmem:[#allocation2 + $0x20] sm:$0xff]
        %v5325 = vld [vmem:[#allocation2 + $0x28] sm:$0xff]
        %v5326 = vld [vmem:[#allocation2 + $0x30] sm:$0xff]
        %v5327 = vld [vmem:[#allocation2 + $0x38] sm:$0xff]
        %v5328 = vld [vmem:[#allocation2 + $0x40] sm:$0xff]
        %v5329 = vld [vmem:[#allocation2 + $0x48] sm:$0xff]
        %v5330 = vld [vmem:[#allocation2 + $0x50] sm:$0xff]
        %v5331 = vld [vmem:[#allocation2 + $0x58] sm:$0xff]
        %v5332 = vld [vmem:[#allocation2 + $0x60] sm:$0xff]
        %v5333 = vld [vmem:[#allocation2 + $0x68] sm:$0xff]
        %v5334 = vld [vmem:[#allocation2 + $0x70] sm:$0xff]
        %v5335 = vld [vmem:[#allocation2 + $0x78] sm:$0xff]
        %v5336 = vld [vmem:[#allocation2 + $0x80] sm:$0xff]
        %v5337 = vld [vmem:[#allocation2 + $0x88] sm:$0xff]
        %v5338 = vld [vmem:[#allocation2 + $0x90] sm:$0xff]
        %v5339 = vld [vmem:[#allocation2 + $0x98] sm:$0xff]
        %v5340 = vld [vmem:[#allocation2 + $0xa0] sm:$0xff]
        %v5341 = vld [vmem:[#allocation2 + $0xa8] sm:$0xff]
        %v5342 = vld [vmem:[#allocation2 + $0xb0] sm:$0xff]
        %v5343 = vld [vmem:[#allocation2 + $0xb8] sm:$0xff]
        %v5344 = vld [vmem:[#allocation2 + $0xc0] sm:$0xff]
        %v5345 = vld [vmem:[#allocation2 + $0xc8] sm:$0xff]
        %v5346 = vld [vmem:[#allocation2 + $0xd0] sm:$0xff]
        %v5347 = vld [vmem:[#allocation2 + $0xd8] sm:$0xff]
        %v5348 = vld [vmem:[#allocation2 + $0xe0] sm:$0xff]
        %v5349 = vld [vmem:[#allocation2 + $0xe8] sm:$0xff]
        %v5350 = vld [vmem:[#allocation2 + $0xf0] sm:$0xff]
        %v5351 = vld [vmem:[#allocation2 + $0xf8] sm:$0xff]
        %v5352 = vld [vmem:[#allocation2 + $0x100] sm:$0xff]
        %v5353 = vld [vmem:[#allocation2 + $0x108] sm:$0xff]
        %v5354 = vld [vmem:[#allocation2 + $0x110] sm:$0xff]
        %v5355 = vld [vmem:[#allocation2 + $0x118] sm:$0xff]
        %v5356 = vld [vmem:[#allocation2 + $0x120] sm:$0xff]
        %v5357 = vld [vmem:[#allocation2 + $0x128] sm:$0xff]
        %v5358 = vld [vmem:[#allocation2 + $0x130] sm:$0xff]
        %v5359 = vld [vmem:[#allocation2 + $0x138] sm:$0xff]
        %v5360 = vld [vmem:[#allocation2 + $0x140] sm:$0xf]
        %v5361 = vld [vmem:[#allocation3] sm:$0xff]
        %v5362 = vld [vmem:[#allocation3 + $0x8] sm:$0xff]
        %v5363 = vld [vmem:[#allocation3 + $0x10] sm:$0xff]
        %v5364 = vld [vmem:[#allocation3 + $0x18] sm:$0xff]
        %v5365 = vld [vmem:[#allocation3 + $0x20] sm:$0xff]
        %v5366 = vld [vmem:[#allocation3 + $0x28] sm:$0xff]
        %v5367 = vld [vmem:[#allocation3 + $0x30] sm:$0xff]
        %v5368 = vld [vmem:[#allocation3 + $0x38] sm:$0xff]
        %v5369 = vld [vmem:[#allocation3 + $0x40] sm:$0xff]
        %v5370 = vld [vmem:[#allocation3 + $0x48] sm:$0xff]
        %v5371 = vld [vmem:[#allocation3 + $0x50] sm:$0xff]
        %v5372 = vld [vmem:[#allocation3 + $0x58] sm:$0xff]
        %v5373 = vld [vmem:[#allocation3 + $0x60] sm:$0xff]
        %v5374 = vld [vmem:[#allocation3 + $0x68] sm:$0xff]
        %v5375 = vld [vmem:[#allocation3 + $0x70] sm:$0xff]
        %v5376 = vld [vmem:[#allocation3 + $0x78] sm:$0xff]
        %v5377 = vld [vmem:[#allocation2 + $0x1] sm:$0xff]
        %v5378 = vld [vmem:[#allocation2 + $0x9] sm:$0xff]
        %v5379 = vld [vmem:[#allocation2 + $0x11] sm:$0xff]
        %v5380 = vld [vmem:[#allocation2 + $0x19] sm:$0xff]
        %v5381 = vld [vmem:[#allocation2 + $0x21] sm:$0xff]
        %v5382 = vld [vmem:[#allocation2 + $0x29] sm:$0xff]
        %v5383 = vld [vmem:[#allocation2 + $0x31] sm:$0xff]
        %v5384 = vld [vmem:[#allocation2 + $0x39] sm:$0xff]
        %v5385 = vld [vmem:[#allocation2 + $0x41] sm:$0xff]
        %v5386 = vld [vmem:[#allocation2 + $0x49] sm:$0xff]
        %v5387 = vld [vmem:[#allocation2 + $0x51] sm:$0xff]
        %v5388 = vld [vmem:[#allocation2 + $0x59] sm:$0xff]
        %v5389 = vld [vmem:[#allocation2 + $0x61] sm:$0xff]
        %v5390 = vld [vmem:[#allocation2 + $0x69] sm:$0xff]
        %v5391 = vld [vmem:[#allocation2 + $0x71] sm:$0xff]
        %v5392 = vld [vmem:[#allocation2 + $0x79] sm:$0xff]
        %v5393 = vld [vmem:[#allocation2 + $0x81] sm:$0xff]
        %v5394 = vld [vmem:[#allocation2 + $0x89] sm:$0xff]
        %v5395 = vld [vmem:[#allocation2 + $0x91] sm:$0xff]
        %v5396 = vld [vmem:[#allocation2 + $0x99] sm:$0xff]
        %v5397 = vld [vmem:[#allocation2 + $0xa1] sm:$0xff]
        %v5398 = vld [vmem:[#allocation2 + $0xa9] sm:$0xff]
        %v5399 = vld [vmem:[#allocation2 + $0xb1] sm:$0xff]
        %v5400 = vld [vmem:[#allocation2 + $0xb9] sm:$0xff]
        %v5401 = vld [vmem:[#allocation2 + $0xc1] sm:$0xff]
        %v5402 = vld [vmem:[#allocation2 + $0xc9] sm:$0xff]
        %v5403 = vld [vmem:[#allocation2 + $0xd1] sm:$0xff]
        %v5404 = vld [vmem:[#allocation2 + $0xd9] sm:$0xff]
        %v5405 = vld [vmem:[#allocation2 + $0xe1] sm:$0xff]
        %v5406 = vld [vmem:[#allocation2 + $0xe9] sm:$0xff]
        %v5407 = vld [vmem:[#allocation2 + $0xf1] sm:$0xff]
        %v5408 = vld [vmem:[#allocation2 + $0xf9] sm:$0xff]
        %v5409 = vld [vmem:[#allocation2 + $0x101] sm:$0xff]
        %v5410 = vld [vmem:[#allocation2 + $0x109] sm:$0xff]
        %v5411 = vld [vmem:[#allocation2 + $0x111] sm:$0xff]
        %v5412 = vld [vmem:[#allocation2 + $0x119] sm:$0xff]
        %v5413 = vld [vmem:[#allocation2 + $0x121] sm:$0xff]
        %v5414 = vld [vmem:[#allocation2 + $0x129] sm:$0xff]
        %v5415 = vld [vmem:[#allocation2 + $0x131] sm:$0xff]
        %v5416 = vld [vmem:[#allocation2 + $0x139] sm:$0xff]
        %v5417 = vld [vmem:[#allocation2 + $0x141] sm:$0xf]
        %s5418 = scalar_lea.vmem [#allocation3], 128
        %v5419 = vld [vmem:[%s5418] sm:$0xff]
        %v5420 = vld [vmem:[%s5418 + $0x8] sm:$0xff]
        %v5421 = vld [vmem:[%s5418 + $0x10] sm:$0xff]
        %v5422 = vld [vmem:[%s5418 + $0x18] sm:$0xff]
        %v5423 = vld [vmem:[%s5418 + $0x20] sm:$0xff]
        %v5424 = vld [vmem:[%s5418 + $0x28] sm:$0xff]
        %v5425 = vld [vmem:[%s5418 + $0x30] sm:$0xff]
        %v5426 = vld [vmem:[%s5418 + $0x38] sm:$0xff]
        %v5427 = vld [vmem:[%s5418 + $0x40] sm:$0xff]
        %v5428 = vld [vmem:[%s5418 + $0x48] sm:$0xff]
        %v5429 = vld [vmem:[%s5418 + $0x50] sm:$0xff]
        %v5430 = vld [vmem:[%s5418 + $0x58] sm:$0xff]
        %v5431 = vld [vmem:[%s5418 + $0x60] sm:$0xff]
        %v5432 = vld [vmem:[%s5418 + $0x68] sm:$0xff]
        %v5433 = vld [vmem:[%s5418 + $0x70] sm:$0xff]
        %v5434 = vld [vmem:[%s5418 + $0x78] sm:$0xff]
        %5435 = vmatpush.msra.mxu0 %v5434
        %5436 = vmatpush.msra.mxu0 %v5433
        %5437 = vmatpush.msra.mxu0 %v5432
        %5438 = vmatpush.msra.mxu0 %v5431
        %5439 = vmatpush.msra.mxu0 %v5430
        %5440 = vmatpush.msra.mxu0 %v5429
        %5441 = vmatpush.msra.mxu0 %v5428
        %5442 = vmatpush.msra.mxu0 %v5427
        %5443 = vmatpush.msra.mxu0 %v5426
        %5444 = vmatpush.msra.mxu0 %v5425
        %5445 = vmatpush.msra.mxu0 %v5424
        %5446 = vmatpush.msra.mxu0 %v5423
        %5447 = vmatpush.msra.mxu0 %v5422
        %5448 = vmatpush.msra.mxu0 %v5421
        %5449 = vmatpush.msra.mxu0 %v5420
        %5450 = vmatpush.msra.mxu0 %v5419
        %5451 = vmatmul.f32.gmra.mxu0 %v5377
        %v5452 = vpop.f32.mrf.mxu0
        %v5453 = vadd.f32 0.0, %v5452
        %5454 = vmatmul.f32.gmra.mxu0 %v5378
        %v5455 = vpop.f32.mrf.mxu0
        %v5456 = vadd.f32 0.0, %v5455
        %5457 = vmatmul.f32.gmra.mxu0 %v5379
        %v5458 = vpop.f32.mrf.mxu0
        %v5459 = vadd.f32 0.0, %v5458
        %5460 = vmatmul.f32.gmra.mxu0 %v5380
        %v5461 = vpop.f32.mrf.mxu0
        %v5462 = vadd.f32 0.0, %v5461
        %5463 = vmatmul.f32.gmra.mxu0 %v5381
        %v5464 = vpop.f32.mrf.mxu0
        %v5465 = vadd.f32 0.0, %v5464
        %5466 = vmatmul.f32.gmra.mxu0 %v5382
        %v5467 = vpop.f32.mrf.mxu0
        %v5468 = vadd.f32 0.0, %v5467
        %5469 = vmatmul.f32.gmra.mxu0 %v5383
        %v5470 = vpop.f32.mrf.mxu0
        %v5471 = vadd.f32 0.0, %v5470
        %5472 = vmatmul.f32.gmra.mxu0 %v5384
        %v5473 = vpop.f32.mrf.mxu0
        %v5474 = vadd.f32 0.0, %v5473
        %5475 = vmatmul.f32.gmra.mxu0 %v5385
        %v5476 = vpop.f32.mrf.mxu0
        %v5477 = vadd.f32 0.0, %v5476
        %5478 = vmatmul.f32.gmra.mxu0 %v5386
        %v5479 = vpop.f32.mrf.mxu0
        %v5480 = vadd.f32 0.0, %v5479
        %5481 = vmatmul.f32.gmra.mxu0 %v5387
        %v5482 = vpop.f32.mrf.mxu0
        %v5483 = vadd.f32 0.0, %v5482
        %5484 = vmatmul.f32.gmra.mxu0 %v5388
        %v5485 = vpop.f32.mrf.mxu0
        %v5486 = vadd.f32 0.0, %v5485
        %5487 = vmatmul.f32.gmra.mxu0 %v5389
        %v5488 = vpop.f32.mrf.mxu0
        %v5489 = vadd.f32 0.0, %v5488
        %5490 = vmatmul.f32.gmra.mxu0 %v5390
        %v5491 = vpop.f32.mrf.mxu0
        %v5492 = vadd.f32 0.0, %v5491
        %5493 = vmatmul.f32.gmra.mxu0 %v5391
        %v5494 = vpop.f32.mrf.mxu0
        %v5495 = vadd.f32 0.0, %v5494
        %5496 = vmatmul.f32.gmra.mxu0 %v5392
        %v5497 = vpop.f32.mrf.mxu0
        %v5498 = vadd.f32 0.0, %v5497
        %5499 = vmatmul.f32.gmra.mxu0 %v5393
        %v5500 = vpop.f32.mrf.mxu0
        %v5501 = vadd.f32 0.0, %v5500
        %5502 = vmatmul.f32.gmra.mxu0 %v5394
        %v5503 = vpop.f32.mrf.mxu0
        %v5504 = vadd.f32 0.0, %v5503
        %5505 = vmatmul.f32.gmra.mxu0 %v5395
        %v5506 = vpop.f32.mrf.mxu0
        %v5507 = vadd.f32 0.0, %v5506
        %5508 = vmatmul.f32.gmra.mxu0 %v5396
        %v5509 = vpop.f32.mrf.mxu0
        %v5510 = vadd.f32 0.0, %v5509
        %5511 = vmatmul.f32.gmra.mxu0 %v5397
        %v5512 = vpop.f32.mrf.mxu0
        %v5513 = vadd.f32 0.0, %v5512
        %5514 = vmatmul.f32.gmra.mxu0 %v5398
        %v5515 = vpop.f32.mrf.mxu0
        %v5516 = vadd.f32 0.0, %v5515
        %5517 = vmatmul.f32.gmra.mxu0 %v5399
        %v5518 = vpop.f32.mrf.mxu0
        %v5519 = vadd.f32 0.0, %v5518
        %5520 = vmatmul.f32.gmra.mxu0 %v5400
        %v5521 = vpop.f32.mrf.mxu0
        %v5522 = vadd.f32 0.0, %v5521
        %5523 = vmatmul.f32.gmra.mxu0 %v5401
        %v5524 = vpop.f32.mrf.mxu0
        %v5525 = vadd.f32 0.0, %v5524
        %5526 = vmatmul.f32.gmra.mxu0 %v5402
        %v5527 = vpop.f32.mrf.mxu0
        %v5528 = vadd.f32 0.0, %v5527
        %5529 = vmatmul.f32.gmra.mxu0 %v5403
        %v5530 = vpop.f32.mrf.mxu0
        %v5531 = vadd.f32 0.0, %v5530
        %5532 = vmatmul.f32.gmra.mxu0 %v5404
        %v5533 = vpop.f32.mrf.mxu0
        %v5534 = vadd.f32 0.0, %v5533
        %5535 = vmatmul.f32.gmra.mxu0 %v5405
        %v5536 = vpop.f32.mrf.mxu0
        %v5537 = vadd.f32 0.0, %v5536
        %5538 = vmatmul.f32.gmra.mxu0 %v5406
        %v5539 = vpop.f32.mrf.mxu0
        %v5540 = vadd.f32 0.0, %v5539
        %5541 = vmatmul.f32.gmra.mxu0 %v5407
        %v5542 = vpop.f32.mrf.mxu0
        %v5543 = vadd.f32 0.0, %v5542
        %5544 = vmatmul.f32.gmra.mxu0 %v5408
        %v5545 = vpop.f32.mrf.mxu0
        %v5546 = vadd.f32 0.0, %v5545
        %5547 = vmatmul.f32.gmra.mxu0 %v5409
        %v5548 = vpop.f32.mrf.mxu0
        %v5549 = vadd.f32 0.0, %v5548
        %5550 = vmatmul.f32.gmra.mxu0 %v5410
        %v5551 = vpop.f32.mrf.mxu0
        %v5552 = vadd.f32 0.0, %v5551
        %5553 = vmatmul.f32.gmra.mxu0 %v5411
        %v5554 = vpop.f32.mrf.mxu0
        %v5555 = vadd.f32 0.0, %v5554
        %5556 = vmatmul.f32.gmra.mxu0 %v5412
        %v5557 = vpop.f32.mrf.mxu0
        %v5558 = vadd.f32 0.0, %v5557
        %5559 = vmatmul.f32.gmra.mxu0 %v5413
        %v5560 = vpop.f32.mrf.mxu0
        %v5561 = vadd.f32 0.0, %v5560
        %5562 = vmatmul.f32.gmra.mxu0 %v5414
        %v5563 = vpop.f32.mrf.mxu0
        %v5564 = vadd.f32 0.0, %v5563
        %5565 = vmatmul.f32.gmra.mxu0 %v5415
        %v5566 = vpop.f32.mrf.mxu0
        %v5567 = vadd.f32 0.0, %v5566
        %5568 = vmatmul.f32.gmra.mxu0 %v5416
        %v5569 = vpop.f32.mrf.mxu0
        %v5570 = vadd.f32 0.0, %v5569
        %5571 = vmatmul.f32.gmra.mxu0 %v5417
        %v5572 = vpop.f32.mrf.mxu0
        %v5573 = vadd.f32 0.0, %v5572
        %5574 = vdwg.mxu0
        %5575 = vmatpush.msra.mxu0 %v5376
        %5576 = vmatpush.msra.mxu0 %v5375
        %5577 = vmatpush.msra.mxu0 %v5374
        %5578 = vmatpush.msra.mxu0 %v5373
        %5579 = vmatpush.msra.mxu0 %v5372
        %5580 = vmatpush.msra.mxu0 %v5371
        %5581 = vmatpush.msra.mxu0 %v5370
        %5582 = vmatpush.msra.mxu0 %v5369
        %5583 = vmatpush.msra.mxu0 %v5368
        %5584 = vmatpush.msra.mxu0 %v5367
        %5585 = vmatpush.msra.mxu0 %v5366
        %5586 = vmatpush.msra.mxu0 %v5365
        %5587 = vmatpush.msra.mxu0 %v5364
        %5588 = vmatpush.msra.mxu0 %v5363
        %5589 = vmatpush.msra.mxu0 %v5362
        %5590 = vmatpush.msra.mxu0 %v5361
        %5591 = vmatmul.f32.gmra.mxu0 %v5320
        %v5592 = vpop.f32.mrf.mxu0
        %v5593 = vadd.f32 %v5453, %v5592
        %5594 = vmatmul.f32.gmra.mxu0 %v5321
        %v5595 = vpop.f32.mrf.mxu0
        %v5596 = vadd.f32 %v5456, %v5595
        %5597 = vmatmul.f32.gmra.mxu0 %v5322
        %v5598 = vpop.f32.mrf.mxu0
        %v5599 = vadd.f32 %v5459, %v5598
        %5600 = vmatmul.f32.gmra.mxu0 %v5323
        %v5601 = vpop.f32.mrf.mxu0
        %v5602 = vadd.f32 %v5462, %v5601
        %5603 = vmatmul.f32.gmra.mxu0 %v5324
        %v5604 = vpop.f32.mrf.mxu0
        %v5605 = vadd.f32 %v5465, %v5604
        %5606 = vmatmul.f32.gmra.mxu0 %v5325
        %v5607 = vpop.f32.mrf.mxu0
        %v5608 = vadd.f32 %v5468, %v5607
        %5609 = vmatmul.f32.gmra.mxu0 %v5326
        %v5610 = vpop.f32.mrf.mxu0
        %v5611 = vadd.f32 %v5471, %v5610
        %5612 = vmatmul.f32.gmra.mxu0 %v5327
        %v5613 = vpop.f32.mrf.mxu0
        %v5614 = vadd.f32 %v5474, %v5613
        %5615 = vmatmul.f32.gmra.mxu0 %v5328
        %v5616 = vpop.f32.mrf.mxu0
        %v5617 = vadd.f32 %v5477, %v5616
        %5618 = vmatmul.f32.gmra.mxu0 %v5329
        %v5619 = vpop.f32.mrf.mxu0
        %v5620 = vadd.f32 %v5480, %v5619
        %5621 = vmatmul.f32.gmra.mxu0 %v5330
        %v5622 = vpop.f32.mrf.mxu0
        %v5623 = vadd.f32 %v5483, %v5622
        %5624 = vmatmul.f32.gmra.mxu0 %v5331
        %v5625 = vpop.f32.mrf.mxu0
        %v5626 = vadd.f32 %v5486, %v5625
        %5627 = vmatmul.f32.gmra.mxu0 %v5332
        %v5628 = vpop.f32.mrf.mxu0
        %v5629 = vadd.f32 %v5489, %v5628
        %5630 = vmatmul.f32.gmra.mxu0 %v5333
        %v5631 = vpop.f32.mrf.mxu0
        %v5632 = vadd.f32 %v5492, %v5631
        %5633 = vmatmul.f32.gmra.mxu0 %v5334
        %v5634 = vpop.f32.mrf.mxu0
        %v5635 = vadd.f32 %v5495, %v5634
        %5636 = vmatmul.f32.gmra.mxu0 %v5335
        %v5637 = vpop.f32.mrf.mxu0
        %v5638 = vadd.f32 %v5498, %v5637
        %5639 = vmatmul.f32.gmra.mxu0 %v5336
        %v5640 = vpop.f32.mrf.mxu0
        %v5641 = vadd.f32 %v5501, %v5640
        %5642 = vmatmul.f32.gmra.mxu0 %v5337
        %v5643 = vpop.f32.mrf.mxu0
        %v5644 = vadd.f32 %v5504, %v5643
        %5645 = vmatmul.f32.gmra.mxu0 %v5338
        %v5646 = vpop.f32.mrf.mxu0
        %v5647 = vadd.f32 %v5507, %v5646
        %5648 = vmatmul.f32.gmra.mxu0 %v5339
        %v5649 = vpop.f32.mrf.mxu0
        %v5650 = vadd.f32 %v5510, %v5649
        %5651 = vmatmul.f32.gmra.mxu0 %v5340
        %v5652 = vpop.f32.mrf.mxu0
        %v5653 = vadd.f32 %v5513, %v5652
        %5654 = vmatmul.f32.gmra.mxu0 %v5341
        %v5655 = vpop.f32.mrf.mxu0
        %v5656 = vadd.f32 %v5516, %v5655
        %5657 = vmatmul.f32.gmra.mxu0 %v5342
        %v5658 = vpop.f32.mrf.mxu0
        %v5659 = vadd.f32 %v5519, %v5658
        %5660 = vmatmul.f32.gmra.mxu0 %v5343
        %v5661 = vpop.f32.mrf.mxu0
        %v5662 = vadd.f32 %v5522, %v5661
        %5663 = vmatmul.f32.gmra.mxu0 %v5344
        %v5664 = vpop.f32.mrf.mxu0
        %v5665 = vadd.f32 %v5525, %v5664
        %5666 = vmatmul.f32.gmra.mxu0 %v5345
        %v5667 = vpop.f32.mrf.mxu0
        %v5668 = vadd.f32 %v5528, %v5667
        %5669 = vmatmul.f32.gmra.mxu0 %v5346
        %v5670 = vpop.f32.mrf.mxu0
        %v5671 = vadd.f32 %v5531, %v5670
        %5672 = vmatmul.f32.gmra.mxu0 %v5347
        %v5673 = vpop.f32.mrf.mxu0
        %v5674 = vadd.f32 %v5534, %v5673
        %5675 = vmatmul.f32.gmra.mxu0 %v5348
        %v5676 = vpop.f32.mrf.mxu0
        %v5677 = vadd.f32 %v5537, %v5676
        %5678 = vmatmul.f32.gmra.mxu0 %v5349
        %v5679 = vpop.f32.mrf.mxu0
        %v5680 = vadd.f32 %v5540, %v5679
        %5681 = vmatmul.f32.gmra.mxu0 %v5350
        %v5682 = vpop.f32.mrf.mxu0
        %v5683 = vadd.f32 %v5543, %v5682
        %5684 = vmatmul.f32.gmra.mxu0 %v5351
        %v5685 = vpop.f32.mrf.mxu0
        %v5686 = vadd.f32 %v5546, %v5685
        %5687 = vmatmul.f32.gmra.mxu0 %v5352
        %v5688 = vpop.f32.mrf.mxu0
        %v5689 = vadd.f32 %v5549, %v5688
        %5690 = vmatmul.f32.gmra.mxu0 %v5353
        %v5691 = vpop.f32.mrf.mxu0
        %v5692 = vadd.f32 %v5552, %v5691
        %5693 = vmatmul.f32.gmra.mxu0 %v5354
        %v5694 = vpop.f32.mrf.mxu0
        %v5695 = vadd.f32 %v5555, %v5694
        %5696 = vmatmul.f32.gmra.mxu0 %v5355
        %v5697 = vpop.f32.mrf.mxu0
        %v5698 = vadd.f32 %v5558, %v5697
        %5699 = vmatmul.f32.gmra.mxu0 %v5356
        %v5700 = vpop.f32.mrf.mxu0
        %v5701 = vadd.f32 %v5561, %v5700
        %5702 = vmatmul.f32.gmra.mxu0 %v5357
        %v5703 = vpop.f32.mrf.mxu0
        %v5704 = vadd.f32 %v5564, %v5703
        %5705 = vmatmul.f32.gmra.mxu0 %v5358
        %v5706 = vpop.f32.mrf.mxu0
        %v5707 = vadd.f32 %v5567, %v5706
        %5708 = vmatmul.f32.gmra.mxu0 %v5359
        %v5709 = vpop.f32.mrf.mxu0
        %v5710 = vadd.f32 %v5570, %v5709
        %5711 = vmatmul.f32.gmra.mxu0 %v5360
        %v5712 = vpop.f32.mrf.mxu0
        %v5713 = vadd.f32 %v5573, %v5712
        %5714 = vdwg.mxu0
        %v5715 = vld [vmem:[#allocation2 + $0x2] sm:$0xff]
        %v5716 = vld [vmem:[#allocation2 + $0xa] sm:$0xff]
        %v5717 = vld [vmem:[#allocation2 + $0x12] sm:$0xff]
        %v5718 = vld [vmem:[#allocation2 + $0x1a] sm:$0xff]
        %v5719 = vld [vmem:[#allocation2 + $0x22] sm:$0xff]
        %v5720 = vld [vmem:[#allocation2 + $0x2a] sm:$0xff]
        %v5721 = vld [vmem:[#allocation2 + $0x32] sm:$0xff]
        %v5722 = vld [vmem:[#allocation2 + $0x3a] sm:$0xff]
        %v5723 = vld [vmem:[#allocation2 + $0x42] sm:$0xff]
        %v5724 = vld [vmem:[#allocation2 + $0x4a] sm:$0xff]
        %v5725 = vld [vmem:[#allocation2 + $0x52] sm:$0xff]
        %v5726 = vld [vmem:[#allocation2 + $0x5a] sm:$0xff]
        %v5727 = vld [vmem:[#allocation2 + $0x62] sm:$0xff]
        %v5728 = vld [vmem:[#allocation2 + $0x6a] sm:$0xff]
        %v5729 = vld [vmem:[#allocation2 + $0x72] sm:$0xff]
        %v5730 = vld [vmem:[#allocation2 + $0x7a] sm:$0xff]
        %v5731 = vld [vmem:[#allocation2 + $0x82] sm:$0xff]
        %v5732 = vld [vmem:[#allocation2 + $0x8a] sm:$0xff]
        %v5733 = vld [vmem:[#allocation2 + $0x92] sm:$0xff]
        %v5734 = vld [vmem:[#allocation2 + $0x9a] sm:$0xff]
        %v5735 = vld [vmem:[#allocation2 + $0xa2] sm:$0xff]
        %v5736 = vld [vmem:[#allocation2 + $0xaa] sm:$0xff]
        %v5737 = vld [vmem:[#allocation2 + $0xb2] sm:$0xff]
        %v5738 = vld [vmem:[#allocation2 + $0xba] sm:$0xff]
        %v5739 = vld [vmem:[#allocation2 + $0xc2] sm:$0xff]
        %v5740 = vld [vmem:[#allocation2 + $0xca] sm:$0xff]
        %v5741 = vld [vmem:[#allocation2 + $0xd2] sm:$0xff]
        %v5742 = vld [vmem:[#allocation2 + $0xda] sm:$0xff]
        %v5743 = vld [vmem:[#allocation2 + $0xe2] sm:$0xff]
        %v5744 = vld [vmem:[#allocation2 + $0xea] sm:$0xff]
        %v5745 = vld [vmem:[#allocation2 + $0xf2] sm:$0xff]
        %v5746 = vld [vmem:[#allocation2 + $0xfa] sm:$0xff]
        %v5747 = vld [vmem:[#allocation2 + $0x102] sm:$0xff]
        %v5748 = vld [vmem:[#allocation2 + $0x10a] sm:$0xff]
        %v5749 = vld [vmem:[#allocation2 + $0x112] sm:$0xff]
        %v5750 = vld [vmem:[#allocation2 + $0x11a] sm:$0xff]
        %v5751 = vld [vmem:[#allocation2 + $0x122] sm:$0xff]
        %v5752 = vld [vmem:[#allocation2 + $0x12a] sm:$0xff]
        %v5753 = vld [vmem:[#allocation2 + $0x132] sm:$0xff]
        %v5754 = vld [vmem:[#allocation2 + $0x13a] sm:$0xff]
        %v5755 = vld [vmem:[#allocation2 + $0x142] sm:$0xf]
        %s5756 = scalar_lea.vmem [#allocation3], 256
        %v5757 = vld [vmem:[%s5756] sm:$0xff]
        %v5758 = vld [vmem:[%s5756 + $0x8] sm:$0xff]
        %v5759 = vld [vmem:[%s5756 + $0x10] sm:$0xff]
        %v5760 = vld [vmem:[%s5756 + $0x18] sm:$0xff]
        %v5761 = vld [vmem:[%s5756 + $0x20] sm:$0xff]
        %v5762 = vld [vmem:[%s5756 + $0x28] sm:$0xff]
        %v5763 = vld [vmem:[%s5756 + $0x30] sm:$0xff]
        %v5764 = vld [vmem:[%s5756 + $0x38] sm:$0xff]
        %v5765 = vld [vmem:[%s5756 + $0x40] sm:$0xff]
        %v5766 = vld [vmem:[%s5756 + $0x48] sm:$0xff]
        %v5767 = vld [vmem:[%s5756 + $0x50] sm:$0xff]
        %v5768 = vld [vmem:[%s5756 + $0x58] sm:$0xff]
        %v5769 = vld [vmem:[%s5756 + $0x60] sm:$0xff]
        %v5770 = vld [vmem:[%s5756 + $0x68] sm:$0xff]
        %v5771 = vld [vmem:[%s5756 + $0x70] sm:$0xff]
        %v5772 = vld [vmem:[%s5756 + $0x78] sm:$0xff]
        %5773 = vmatpush.msra.mxu0 %v5772
        %5774 = vmatpush.msra.mxu0 %v5771
        %5775 = vmatpush.msra.mxu0 %v5770
        %5776 = vmatpush.msra.mxu0 %v5769
        %5777 = vmatpush.msra.mxu0 %v5768
        %5778 = vmatpush.msra.mxu0 %v5767
        %5779 = vmatpush.msra.mxu0 %v5766
        %5780 = vmatpush.msra.mxu0 %v5765
        %5781 = vmatpush.msra.mxu0 %v5764
        %5782 = vmatpush.msra.mxu0 %v5763
        %5783 = vmatpush.msra.mxu0 %v5762
        %5784 = vmatpush.msra.mxu0 %v5761
        %5785 = vmatpush.msra.mxu0 %v5760
        %5786 = vmatpush.msra.mxu0 %v5759
        %5787 = vmatpush.msra.mxu0 %v5758
        %5788 = vmatpush.msra.mxu0 %v5757
        %5789 = vmatmul.f32.gmra.mxu0 %v5715
        %v5790 = vpop.f32.mrf.mxu0
        %v5791 = vadd.f32 0.0, %v5790
        %5792 = vmatmul.f32.gmra.mxu0 %v5716
        %v5793 = vpop.f32.mrf.mxu0
        %v5794 = vadd.f32 0.0, %v5793
        %5795 = vmatmul.f32.gmra.mxu0 %v5717
        %v5796 = vpop.f32.mrf.mxu0
        %v5797 = vadd.f32 0.0, %v5796
        %5798 = vmatmul.f32.gmra.mxu0 %v5718
        %v5799 = vpop.f32.mrf.mxu0
        %v5800 = vadd.f32 0.0, %v5799
        %5801 = vmatmul.f32.gmra.mxu0 %v5719
        %v5802 = vpop.f32.mrf.mxu0
        %v5803 = vadd.f32 0.0, %v5802
        %5804 = vmatmul.f32.gmra.mxu0 %v5720
        %v5805 = vpop.f32.mrf.mxu0
        %v5806 = vadd.f32 0.0, %v5805
        %5807 = vmatmul.f32.gmra.mxu0 %v5721
        %v5808 = vpop.f32.mrf.mxu0
        %v5809 = vadd.f32 0.0, %v5808
        %5810 = vmatmul.f32.gmra.mxu0 %v5722
        %v5811 = vpop.f32.mrf.mxu0
        %v5812 = vadd.f32 0.0, %v5811
        %5813 = vmatmul.f32.gmra.mxu0 %v5723
        %v5814 = vpop.f32.mrf.mxu0
        %v5815 = vadd.f32 0.0, %v5814
        %5816 = vmatmul.f32.gmra.mxu0 %v5724
        %v5817 = vpop.f32.mrf.mxu0
        %v5818 = vadd.f32 0.0, %v5817
        %5819 = vmatmul.f32.gmra.mxu0 %v5725
        %v5820 = vpop.f32.mrf.mxu0
        %v5821 = vadd.f32 0.0, %v5820
        %5822 = vmatmul.f32.gmra.mxu0 %v5726
        %v5823 = vpop.f32.mrf.mxu0
        %v5824 = vadd.f32 0.0, %v5823
        %5825 = vmatmul.f32.gmra.mxu0 %v5727
        %v5826 = vpop.f32.mrf.mxu0
        %v5827 = vadd.f32 0.0, %v5826
        %5828 = vmatmul.f32.gmra.mxu0 %v5728
        %v5829 = vpop.f32.mrf.mxu0
        %v5830 = vadd.f32 0.0, %v5829
        %5831 = vmatmul.f32.gmra.mxu0 %v5729
        %v5832 = vpop.f32.mrf.mxu0
        %v5833 = vadd.f32 0.0, %v5832
        %5834 = vmatmul.f32.gmra.mxu0 %v5730
        %v5835 = vpop.f32.mrf.mxu0
        %v5836 = vadd.f32 0.0, %v5835
        %5837 = vmatmul.f32.gmra.mxu0 %v5731
        %v5838 = vpop.f32.mrf.mxu0
        %v5839 = vadd.f32 0.0, %v5838
        %5840 = vmatmul.f32.gmra.mxu0 %v5732
        %v5841 = vpop.f32.mrf.mxu0
        %v5842 = vadd.f32 0.0, %v5841
        %5843 = vmatmul.f32.gmra.mxu0 %v5733
        %v5844 = vpop.f32.mrf.mxu0
        %v5845 = vadd.f32 0.0, %v5844
        %5846 = vmatmul.f32.gmra.mxu0 %v5734
        %v5847 = vpop.f32.mrf.mxu0
        %v5848 = vadd.f32 0.0, %v5847
        %5849 = vmatmul.f32.gmra.mxu0 %v5735
        %v5850 = vpop.f32.mrf.mxu0
        %v5851 = vadd.f32 0.0, %v5850
        %5852 = vmatmul.f32.gmra.mxu0 %v5736
        %v5853 = vpop.f32.mrf.mxu0
        %v5854 = vadd.f32 0.0, %v5853
        %5855 = vmatmul.f32.gmra.mxu0 %v5737
        %v5856 = vpop.f32.mrf.mxu0
        %v5857 = vadd.f32 0.0, %v5856
        %5858 = vmatmul.f32.gmra.mxu0 %v5738
        %v5859 = vpop.f32.mrf.mxu0
        %v5860 = vadd.f32 0.0, %v5859
        %5861 = vmatmul.f32.gmra.mxu0 %v5739
        %v5862 = vpop.f32.mrf.mxu0
        %v5863 = vadd.f32 0.0, %v5862
        %5864 = vmatmul.f32.gmra.mxu0 %v5740
        %v5865 = vpop.f32.mrf.mxu0
        %v5866 = vadd.f32 0.0, %v5865
        %5867 = vmatmul.f32.gmra.mxu0 %v5741
        %v5868 = vpop.f32.mrf.mxu0
        %v5869 = vadd.f32 0.0, %v5868
        %5870 = vmatmul.f32.gmra.mxu0 %v5742
        %v5871 = vpop.f32.mrf.mxu0
        %v5872 = vadd.f32 0.0, %v5871
        %5873 = vmatmul.f32.gmra.mxu0 %v5743
        %v5874 = vpop.f32.mrf.mxu0
        %v5875 = vadd.f32 0.0, %v5874
        %5876 = vmatmul.f32.gmra.mxu0 %v5744
        %v5877 = vpop.f32.mrf.mxu0
        %v5878 = vadd.f32 0.0, %v5877
        %5879 = vmatmul.f32.gmra.mxu0 %v5745
        %v5880 = vpop.f32.mrf.mxu0
        %v5881 = vadd.f32 0.0, %v5880
        %5882 = vmatmul.f32.gmra.mxu0 %v5746
        %v5883 = vpop.f32.mrf.mxu0
        %v5884 = vadd.f32 0.0, %v5883
        %5885 = vmatmul.f32.gmra.mxu0 %v5747
        %v5886 = vpop.f32.mrf.mxu0
        %v5887 = vadd.f32 0.0, %v5886
        %5888 = vmatmul.f32.gmra.mxu0 %v5748
        %v5889 = vpop.f32.mrf.mxu0
        %v5890 = vadd.f32 0.0, %v5889
        %5891 = vmatmul.f32.gmra.mxu0 %v5749
        %v5892 = vpop.f32.mrf.mxu0
        %v5893 = vadd.f32 0.0, %v5892
        %5894 = vmatmul.f32.gmra.mxu0 %v5750
        %v5895 = vpop.f32.mrf.mxu0
        %v5896 = vadd.f32 0.0, %v5895
        %5897 = vmatmul.f32.gmra.mxu0 %v5751
        %v5898 = vpop.f32.mrf.mxu0
        %v5899 = vadd.f32 0.0, %v5898
        %5900 = vmatmul.f32.gmra.mxu0 %v5752
        %v5901 = vpop.f32.mrf.mxu0
        %v5902 = vadd.f32 0.0, %v5901
        %5903 = vmatmul.f32.gmra.mxu0 %v5753
        %v5904 = vpop.f32.mrf.mxu0
        %v5905 = vadd.f32 0.0, %v5904
        %5906 = vmatmul.f32.gmra.mxu0 %v5754
        %v5907 = vpop.f32.mrf.mxu0
        %v5908 = vadd.f32 0.0, %v5907
        %5909 = vmatmul.f32.gmra.mxu0 %v5755
        %v5910 = vpop.f32.mrf.mxu0
        %v5911 = vadd.f32 0.0, %v5910
        %5912 = vdwg.mxu0
        %v5913 = vadd.f32 %v5593, %v5791
        %v5914 = vadd.f32 %v5596, %v5794
        %v5915 = vadd.f32 %v5599, %v5797
        %v5916 = vadd.f32 %v5602, %v5800
        %v5917 = vadd.f32 %v5605, %v5803
        %v5918 = vadd.f32 %v5608, %v5806
        %v5919 = vadd.f32 %v5611, %v5809
        %v5920 = vadd.f32 %v5614, %v5812
        %v5921 = vadd.f32 %v5617, %v5815
        %v5922 = vadd.f32 %v5620, %v5818
        %v5923 = vadd.f32 %v5623, %v5821
        %v5924 = vadd.f32 %v5626, %v5824
        %v5925 = vadd.f32 %v5629, %v5827
        %v5926 = vadd.f32 %v5632, %v5830
        %v5927 = vadd.f32 %v5635, %v5833
        %v5928 = vadd.f32 %v5638, %v5836
        %v5929 = vadd.f32 %v5641, %v5839
        %v5930 = vadd.f32 %v5644, %v5842
        %v5931 = vadd.f32 %v5647, %v5845
        %v5932 = vadd.f32 %v5650, %v5848
        %v5933 = vadd.f32 %v5653, %v5851
        %v5934 = vadd.f32 %v5656, %v5854
        %v5935 = vadd.f32 %v5659, %v5857
        %v5936 = vadd.f32 %v5662, %v5860
        %v5937 = vadd.f32 %v5665, %v5863
        %v5938 = vadd.f32 %v5668, %v5866
        %v5939 = vadd.f32 %v5671, %v5869
        %v5940 = vadd.f32 %v5674, %v5872
        %v5941 = vadd.f32 %v5677, %v5875
        %v5942 = vadd.f32 %v5680, %v5878
        %v5943 = vadd.f32 %v5683, %v5881
        %v5944 = vadd.f32 %v5686, %v5884
        %v5945 = vadd.f32 %v5689, %v5887
        %v5946 = vadd.f32 %v5692, %v5890
        %v5947 = vadd.f32 %v5695, %v5893
        %v5948 = vadd.f32 %v5698, %v5896
        %v5949 = vadd.f32 %v5701, %v5899
        %v5950 = vadd.f32 %v5704, %v5902
        %v5951 = vadd.f32 %v5707, %v5905
        %v5952 = vadd.f32 %v5710, %v5908
        %v5953 = vadd.f32 %v5713, %v5911
        %v5954 = vld [vmem:[#allocation2 + $0x12] sm:$0xff]
        %v5955 = vld [vmem:[#allocation2 + $0x1a] sm:$0xff]
        %v5956 = vld [vmem:[#allocation2 + $0x22] sm:$0xff]
        %v5957 = vld [vmem:[#allocation2 + $0x2a] sm:$0xff]
        %v5958 = vld [vmem:[#allocation2 + $0x32] sm:$0xff]
        %v5959 = vld [vmem:[#allocation2 + $0x3a] sm:$0xff]
        %v5960 = vld [vmem:[#allocation2 + $0x42] sm:$0xff]
        %v5961 = vld [vmem:[#allocation2 + $0x4a] sm:$0xff]
        %v5962 = vld [vmem:[#allocation2 + $0x52] sm:$0xff]
        %v5963 = vld [vmem:[#allocation2 + $0x5a] sm:$0xff]
        %v5964 = vld [vmem:[#allocation2 + $0x62] sm:$0xff]
        %v5965 = vld [vmem:[#allocation2 + $0x6a] sm:$0xff]
        %v5966 = vld [vmem:[#allocation2 + $0x72] sm:$0xff]
        %v5967 = vld [vmem:[#allocation2 + $0x7a] sm:$0xff]
        %v5968 = vld [vmem:[#allocation2 + $0x82] sm:$0xff]
        %v5969 = vld [vmem:[#allocation2 + $0x8a] sm:$0xff]
        %v5970 = vld [vmem:[#allocation2 + $0x92] sm:$0xff]
        %v5971 = vld [vmem:[#allocation2 + $0x9a] sm:$0xff]
        %v5972 = vld [vmem:[#allocation2 + $0xa2] sm:$0xff]
        %v5973 = vld [vmem:[#allocation2 + $0xaa] sm:$0xff]
        %v5974 = vld [vmem:[#allocation2 + $0xb2] sm:$0xff]
        %v5975 = vld [vmem:[#allocation2 + $0xba] sm:$0xff]
        %v5976 = vld [vmem:[#allocation2 + $0xc2] sm:$0xff]
        %v5977 = vld [vmem:[#allocation2 + $0xca] sm:$0xff]
        %v5978 = vld [vmem:[#allocation2 + $0xd2] sm:$0xff]
        %v5979 = vld [vmem:[#allocation2 + $0xda] sm:$0xff]
        %v5980 = vld [vmem:[#allocation2 + $0xe2] sm:$0xff]
        %v5981 = vld [vmem:[#allocation2 + $0xea] sm:$0xff]
        %v5982 = vld [vmem:[#allocation2 + $0xf2] sm:$0xff]
        %v5983 = vld [vmem:[#allocation2 + $0xfa] sm:$0xff]
        %v5984 = vld [vmem:[#allocation2 + $0x102] sm:$0xff]
        %v5985 = vld [vmem:[#allocation2 + $0x10a] sm:$0xff]
        %v5986 = vld [vmem:[#allocation2 + $0x112] sm:$0xff]
        %v5987 = vld [vmem:[#allocation2 + $0x11a] sm:$0xff]
        %v5988 = vld [vmem:[#allocation2 + $0x122] sm:$0xff]
        %v5989 = vld [vmem:[#allocation2 + $0x12a] sm:$0xff]
        %v5990 = vld [vmem:[#allocation2 + $0x132] sm:$0xff]
        %v5991 = vld [vmem:[#allocation2 + $0x13a] sm:$0xff]
        %v5992 = vld [vmem:[#allocation2 + $0x142] sm:$0xff]
        %v5993 = vld [vmem:[#allocation2 + $0x14a] sm:$0xff]
        %v5994 = vld [vmem:[#allocation2 + $0x152] sm:$0xf]
        %s5995 = scalar_lea.vmem [#allocation3], 384
        %v5996 = vld [vmem:[%s5995] sm:$0xff]
        %v5997 = vld [vmem:[%s5995 + $0x8] sm:$0xff]
        %v5998 = vld [vmem:[%s5995 + $0x10] sm:$0xff]
        %v5999 = vld [vmem:[%s5995 + $0x18] sm:$0xff]
        %v6000 = vld [vmem:[%s5995 + $0x20] sm:$0xff]
        %v6001 = vld [vmem:[%s5995 + $0x28] sm:$0xff]
        %v6002 = vld [vmem:[%s5995 + $0x30] sm:$0xff]
        %v6003 = vld [vmem:[%s5995 + $0x38] sm:$0xff]
        %v6004 = vld [vmem:[%s5995 + $0x40] sm:$0xff]
        %v6005 = vld [vmem:[%s5995 + $0x48] sm:$0xff]
        %v6006 = vld [vmem:[%s5995 + $0x50] sm:$0xff]
        %v6007 = vld [vmem:[%s5995 + $0x58] sm:$0xff]
        %v6008 = vld [vmem:[%s5995 + $0x60] sm:$0xff]
        %v6009 = vld [vmem:[%s5995 + $0x68] sm:$0xff]
        %v6010 = vld [vmem:[%s5995 + $0x70] sm:$0xff]
        %v6011 = vld [vmem:[%s5995 + $0x78] sm:$0xff]
        %6012 = vmatpush.msra.mxu0 %v6011
        %6013 = vmatpush.msra.mxu0 %v6010
        %6014 = vmatpush.msra.mxu0 %v6009
        %6015 = vmatpush.msra.mxu0 %v6008
        %6016 = vmatpush.msra.mxu0 %v6007
        %6017 = vmatpush.msra.mxu0 %v6006
        %6018 = vmatpush.msra.mxu0 %v6005
        %6019 = vmatpush.msra.mxu0 %v6004
        %6020 = vmatpush.msra.mxu0 %v6003
        %6021 = vmatpush.msra.mxu0 %v6002
        %6022 = vmatpush.msra.mxu0 %v6001
        %6023 = vmatpush.msra.mxu0 %v6000
        %6024 = vmatpush.msra.mxu0 %v5999
        %6025 = vmatpush.msra.mxu0 %v5998
        %6026 = vmatpush.msra.mxu0 %v5997
        %6027 = vmatpush.msra.mxu0 %v5996
        %6028 = vmatmul.f32.gmra.mxu0 %v5954
        %v6029 = vpop.f32.mrf.mxu0
        %v6030 = vadd.f32 0.0, %v6029
        %6031 = vmatmul.f32.gmra.mxu0 %v5955
        %v6032 = vpop.f32.mrf.mxu0
        %v6033 = vadd.f32 0.0, %v6032
        %6034 = vmatmul.f32.gmra.mxu0 %v5956
        %v6035 = vpop.f32.mrf.mxu0
        %v6036 = vadd.f32 0.0, %v6035
        %6037 = vmatmul.f32.gmra.mxu0 %v5957
        %v6038 = vpop.f32.mrf.mxu0
        %v6039 = vadd.f32 0.0, %v6038
        %6040 = vmatmul.f32.gmra.mxu0 %v5958
        %v6041 = vpop.f32.mrf.mxu0
        %v6042 = vadd.f32 0.0, %v6041
        %6043 = vmatmul.f32.gmra.mxu0 %v5959
        %v6044 = vpop.f32.mrf.mxu0
        %v6045 = vadd.f32 0.0, %v6044
        %6046 = vmatmul.f32.gmra.mxu0 %v5960
        %v6047 = vpop.f32.mrf.mxu0
        %v6048 = vadd.f32 0.0, %v6047
        %6049 = vmatmul.f32.gmra.mxu0 %v5961
        %v6050 = vpop.f32.mrf.mxu0
        %v6051 = vadd.f32 0.0, %v6050
        %6052 = vmatmul.f32.gmra.mxu0 %v5962
        %v6053 = vpop.f32.mrf.mxu0
        %v6054 = vadd.f32 0.0, %v6053
        %6055 = vmatmul.f32.gmra.mxu0 %v5963
        %v6056 = vpop.f32.mrf.mxu0
        %v6057 = vadd.f32 0.0, %v6056
        %6058 = vmatmul.f32.gmra.mxu0 %v5964
        %v6059 = vpop.f32.mrf.mxu0
        %v6060 = vadd.f32 0.0, %v6059
        %6061 = vmatmul.f32.gmra.mxu0 %v5965
        %v6062 = vpop.f32.mrf.mxu0
        %v6063 = vadd.f32 0.0, %v6062
        %6064 = vmatmul.f32.gmra.mxu0 %v5966
        %v6065 = vpop.f32.mrf.mxu0
        %v6066 = vadd.f32 0.0, %v6065
        %6067 = vmatmul.f32.gmra.mxu0 %v5967
        %v6068 = vpop.f32.mrf.mxu0
        %v6069 = vadd.f32 0.0, %v6068
        %6070 = vmatmul.f32.gmra.mxu0 %v5968
        %v6071 = vpop.f32.mrf.mxu0
        %v6072 = vadd.f32 0.0, %v6071
        %6073 = vmatmul.f32.gmra.mxu0 %v5969
        %v6074 = vpop.f32.mrf.mxu0
        %v6075 = vadd.f32 0.0, %v6074
        %6076 = vmatmul.f32.gmra.mxu0 %v5970
        %v6077 = vpop.f32.mrf.mxu0
        %v6078 = vadd.f32 0.0, %v6077
        %6079 = vmatmul.f32.gmra.mxu0 %v5971
        %v6080 = vpop.f32.mrf.mxu0
        %v6081 = vadd.f32 0.0, %v6080
        %6082 = vmatmul.f32.gmra.mxu0 %v5972
        %v6083 = vpop.f32.mrf.mxu0
        %v6084 = vadd.f32 0.0, %v6083
        %6085 = vmatmul.f32.gmra.mxu0 %v5973
        %v6086 = vpop.f32.mrf.mxu0
        %v6087 = vadd.f32 0.0, %v6086
        %6088 = vmatmul.f32.gmra.mxu0 %v5974
        %v6089 = vpop.f32.mrf.mxu0
        %v6090 = vadd.f32 0.0, %v6089
        %6091 = vmatmul.f32.gmra.mxu0 %v5975
        %v6092 = vpop.f32.mrf.mxu0
        %v6093 = vadd.f32 0.0, %v6092
        %6094 = vmatmul.f32.gmra.mxu0 %v5976
        %v6095 = vpop.f32.mrf.mxu0
        %v6096 = vadd.f32 0.0, %v6095
        %6097 = vmatmul.f32.gmra.mxu0 %v5977
        %v6098 = vpop.f32.mrf.mxu0
        %v6099 = vadd.f32 0.0, %v6098
        %6100 = vmatmul.f32.gmra.mxu0 %v5978
        %v6101 = vpop.f32.mrf.mxu0
        %v6102 = vadd.f32 0.0, %v6101
        %6103 = vmatmul.f32.gmra.mxu0 %v5979
        %v6104 = vpop.f32.mrf.mxu0
        %v6105 = vadd.f32 0.0, %v6104
        %6106 = vmatmul.f32.gmra.mxu0 %v5980
        %v6107 = vpop.f32.mrf.mxu0
        %v6108 = vadd.f32 0.0, %v6107
        %6109 = vmatmul.f32.gmra.mxu0 %v5981
        %v6110 = vpop.f32.mrf.mxu0
        %v6111 = vadd.f32 0.0, %v6110
        %6112 = vmatmul.f32.gmra.mxu0 %v5982
        %v6113 = vpop.f32.mrf.mxu0
        %v6114 = vadd.f32 0.0, %v6113
        %6115 = vmatmul.f32.gmra.mxu0 %v5983
        %v6116 = vpop.f32.mrf.mxu0
        %v6117 = vadd.f32 0.0, %v6116
        %6118 = vmatmul.f32.gmra.mxu0 %v5984
        %v6119 = vpop.f32.mrf.mxu0
        %v6120 = vadd.f32 0.0, %v6119
        %6121 = vmatmul.f32.gmra.mxu0 %v5985
        %v6122 = vpop.f32.mrf.mxu0
        %v6123 = vadd.f32 0.0, %v6122
        %6124 = vmatmul.f32.gmra.mxu0 %v5986
        %v6125 = vpop.f32.mrf.mxu0
        %v6126 = vadd.f32 0.0, %v6125
        %6127 = vmatmul.f32.gmra.mxu0 %v5987
        %v6128 = vpop.f32.mrf.mxu0
        %v6129 = vadd.f32 0.0, %v6128
        %6130 = vmatmul.f32.gmra.mxu0 %v5988
        %v6131 = vpop.f32.mrf.mxu0
        %v6132 = vadd.f32 0.0, %v6131
        %6133 = vmatmul.f32.gmra.mxu0 %v5989
        %v6134 = vpop.f32.mrf.mxu0
        %v6135 = vadd.f32 0.0, %v6134
        %6136 = vmatmul.f32.gmra.mxu0 %v5990
        %v6137 = vpop.f32.mrf.mxu0
        %v6138 = vadd.f32 0.0, %v6137
        %6139 = vmatmul.f32.gmra.mxu0 %v5991
        %v6140 = vpop.f32.mrf.mxu0
        %v6141 = vadd.f32 0.0, %v6140
        %6142 = vmatmul.f32.gmra.mxu0 %v5992
        %v6143 = vpop.f32.mrf.mxu0
        %v6144 = vadd.f32 0.0, %v6143
        %6145 = vmatmul.f32.gmra.mxu0 %v5993
        %v6146 = vpop.f32.mrf.mxu0
        %v6147 = vadd.f32 0.0, %v6146
        %6148 = vmatmul.f32.gmra.mxu0 %v5994
        %v6149 = vpop.f32.mrf.mxu0
        %v6150 = vadd.f32 0.0, %v6149
        %6151 = vdwg.mxu0
        %v6152 = vadd.f32 %v5913, %v6030
        %v6153 = vadd.f32 %v5914, %v6033
        %v6154 = vadd.f32 %v5915, %v6036
        %v6155 = vadd.f32 %v5916, %v6039
        %v6156 = vadd.f32 %v5917, %v6042
        %v6157 = vadd.f32 %v5918, %v6045
        %v6158 = vadd.f32 %v5919, %v6048
        %v6159 = vadd.f32 %v5920, %v6051
        %v6160 = vadd.f32 %v5921, %v6054
        %v6161 = vadd.f32 %v5922, %v6057
        %v6162 = vadd.f32 %v5923, %v6060
        %v6163 = vadd.f32 %v5924, %v6063
        %v6164 = vadd.f32 %v5925, %v6066
        %v6165 = vadd.f32 %v5926, %v6069
        %v6166 = vadd.f32 %v5927, %v6072
        %v6167 = vadd.f32 %v5928, %v6075
        %v6168 = vadd.f32 %v5929, %v6078
        %v6169 = vadd.f32 %v5930, %v6081
        %v6170 = vadd.f32 %v5931, %v6084
        %v6171 = vadd.f32 %v5932, %v6087
        %v6172 = vadd.f32 %v5933, %v6090
        %v6173 = vadd.f32 %v5934, %v6093
        %v6174 = vadd.f32 %v5935, %v6096
        %v6175 = vadd.f32 %v5936, %v6099
        %v6176 = vadd.f32 %v5937, %v6102
        %v6177 = vadd.f32 %v5938, %v6105
        %v6178 = vadd.f32 %v5939, %v6108
        %v6179 = vadd.f32 %v5940, %v6111
        %v6180 = vadd.f32 %v5941, %v6114
        %v6181 = vadd.f32 %v5942, %v6117
        %v6182 = vadd.f32 %v5943, %v6120
        %v6183 = vadd.f32 %v5944, %v6123
        %v6184 = vadd.f32 %v5945, %v6126
        %v6185 = vadd.f32 %v5946, %v6129
        %v6186 = vadd.f32 %v5947, %v6132
        %v6187 = vadd.f32 %v5948, %v6135
        %v6188 = vadd.f32 %v5949, %v6138
        %v6189 = vadd.f32 %v5950, %v6141
        %v6190 = vadd.f32 %v5951, %v6144
        %v6191 = vadd.f32 %v5952, %v6147
        %v6192 = vadd.f32 %v5953, %v6150
        %v6193 = vld [vmem:[#allocation2 + $0x13] sm:$0xff]
        %v6194 = vld [vmem:[#allocation2 + $0x1b] sm:$0xff]
        %v6195 = vld [vmem:[#allocation2 + $0x23] sm:$0xff]
        %v6196 = vld [vmem:[#allocation2 + $0x2b] sm:$0xff]
        %v6197 = vld [vmem:[#allocation2 + $0x33] sm:$0xff]
        %v6198 = vld [vmem:[#allocation2 + $0x3b] sm:$0xff]
        %v6199 = vld [vmem:[#allocation2 + $0x43] sm:$0xff]
        %v6200 = vld [vmem:[#allocation2 + $0x4b] sm:$0xff]
        %v6201 = vld [vmem:[#allocation2 + $0x53] sm:$0xff]
        %v6202 = vld [vmem:[#allocation2 + $0x5b] sm:$0xff]
        %v6203 = vld [vmem:[#allocation2 + $0x63] sm:$0xff]
        %v6204 = vld [vmem:[#allocation2 + $0x6b] sm:$0xff]
        %v6205 = vld [vmem:[#allocation2 + $0x73] sm:$0xff]
        %v6206 = vld [vmem:[#allocation2 + $0x7b] sm:$0xff]
        %v6207 = vld [vmem:[#allocation2 + $0x83] sm:$0xff]
        %v6208 = vld [vmem:[#allocation2 + $0x8b] sm:$0xff]
        %v6209 = vld [vmem:[#allocation2 + $0x93] sm:$0xff]
        %v6210 = vld [vmem:[#allocation2 + $0x9b] sm:$0xff]
        %v6211 = vld [vmem:[#allocation2 + $0xa3] sm:$0xff]
        %v6212 = vld [vmem:[#allocation2 + $0xab] sm:$0xff]
        %v6213 = vld [vmem:[#allocation2 + $0xb3] sm:$0xff]
        %v6214 = vld [vmem:[#allocation2 + $0xbb] sm:$0xff]
        %v6215 = vld [vmem:[#allocation2 + $0xc3] sm:$0xff]
        %v6216 = vld [vmem:[#allocation2 + $0xcb] sm:$0xff]
        %v6217 = vld [vmem:[#allocation2 + $0xd3] sm:$0xff]
        %v6218 = vld [vmem:[#allocation2 + $0xdb] sm:$0xff]
        %v6219 = vld [vmem:[#allocation2 + $0xe3] sm:$0xff]
        %v6220 = vld [vmem:[#allocation2 + $0xeb] sm:$0xff]
        %v6221 = vld [vmem:[#allocation2 + $0xf3] sm:$0xff]
        %v6222 = vld [vmem:[#allocation2 + $0xfb] sm:$0xff]
        %v6223 = vld [vmem:[#allocation2 + $0x103] sm:$0xff]
        %v6224 = vld [vmem:[#allocation2 + $0x10b] sm:$0xff]
        %v6225 = vld [vmem:[#allocation2 + $0x113] sm:$0xff]
        %v6226 = vld [vmem:[#allocation2 + $0x11b] sm:$0xff]
        %v6227 = vld [vmem:[#allocation2 + $0x123] sm:$0xff]
        %v6228 = vld [vmem:[#allocation2 + $0x12b] sm:$0xff]
        %v6229 = vld [vmem:[#allocation2 + $0x133] sm:$0xff]
        %v6230 = vld [vmem:[#allocation2 + $0x13b] sm:$0xff]
        %v6231 = vld [vmem:[#allocation2 + $0x143] sm:$0xff]
        %v6232 = vld [vmem:[#allocation2 + $0x14b] sm:$0xff]
        %v6233 = vld [vmem:[#allocation2 + $0x153] sm:$0xf]
        %s6234 = scalar_lea.vmem [#allocation3], 512
        %v6235 = vld [vmem:[%s6234] sm:$0xff]
        %v6236 = vld [vmem:[%s6234 + $0x8] sm:$0xff]
        %v6237 = vld [vmem:[%s6234 + $0x10] sm:$0xff]
        %v6238 = vld [vmem:[%s6234 + $0x18] sm:$0xff]
        %v6239 = vld [vmem:[%s6234 + $0x20] sm:$0xff]
        %v6240 = vld [vmem:[%s6234 + $0x28] sm:$0xff]
        %v6241 = vld [vmem:[%s6234 + $0x30] sm:$0xff]
        %v6242 = vld [vmem:[%s6234 + $0x38] sm:$0xff]
        %v6243 = vld [vmem:[%s6234 + $0x40] sm:$0xff]
        %v6244 = vld [vmem:[%s6234 + $0x48] sm:$0xff]
        %v6245 = vld [vmem:[%s6234 + $0x50] sm:$0xff]
        %v6246 = vld [vmem:[%s6234 + $0x58] sm:$0xff]
        %v6247 = vld [vmem:[%s6234 + $0x60] sm:$0xff]
        %v6248 = vld [vmem:[%s6234 + $0x68] sm:$0xff]
        %v6249 = vld [vmem:[%s6234 + $0x70] sm:$0xff]
        %v6250 = vld [vmem:[%s6234 + $0x78] sm:$0xff]
        %6251 = vmatpush.msra.mxu0 %v6250
        %6252 = vmatpush.msra.mxu0 %v6249
        %6253 = vmatpush.msra.mxu0 %v6248
        %6254 = vmatpush.msra.mxu0 %v6247
        %6255 = vmatpush.msra.mxu0 %v6246
        %6256 = vmatpush.msra.mxu0 %v6245
        %6257 = vmatpush.msra.mxu0 %v6244
        %6258 = vmatpush.msra.mxu0 %v6243
        %6259 = vmatpush.msra.mxu0 %v6242
        %6260 = vmatpush.msra.mxu0 %v6241
        %6261 = vmatpush.msra.mxu0 %v6240
        %6262 = vmatpush.msra.mxu0 %v6239
        %6263 = vmatpush.msra.mxu0 %v6238
        %6264 = vmatpush.msra.mxu0 %v6237
        %6265 = vmatpush.msra.mxu0 %v6236
        %6266 = vmatpush.msra.mxu0 %v6235
        %6267 = vmatmul.f32.gmra.mxu0 %v6193
        %v6268 = vpop.f32.mrf.mxu0
        %v6269 = vadd.f32 0.0, %v6268
        %6270 = vmatmul.f32.gmra.mxu0 %v6194
        %v6271 = vpop.f32.mrf.mxu0
        %v6272 = vadd.f32 0.0, %v6271
        %6273 = vmatmul.f32.gmra.mxu0 %v6195
        %v6274 = vpop.f32.mrf.mxu0
        %v6275 = vadd.f32 0.0, %v6274
        %6276 = vmatmul.f32.gmra.mxu0 %v6196
        %v6277 = vpop.f32.mrf.mxu0
        %v6278 = vadd.f32 0.0, %v6277
        %6279 = vmatmul.f32.gmra.mxu0 %v6197
        %v6280 = vpop.f32.mrf.mxu0
        %v6281 = vadd.f32 0.0, %v6280
        %6282 = vmatmul.f32.gmra.mxu0 %v6198
        %v6283 = vpop.f32.mrf.mxu0
        %v6284 = vadd.f32 0.0, %v6283
        %6285 = vmatmul.f32.gmra.mxu0 %v6199
        %v6286 = vpop.f32.mrf.mxu0
        %v6287 = vadd.f32 0.0, %v6286
        %6288 = vmatmul.f32.gmra.mxu0 %v6200
        %v6289 = vpop.f32.mrf.mxu0
        %v6290 = vadd.f32 0.0, %v6289
        %6291 = vmatmul.f32.gmra.mxu0 %v6201
        %v6292 = vpop.f32.mrf.mxu0
        %v6293 = vadd.f32 0.0, %v6292
        %6294 = vmatmul.f32.gmra.mxu0 %v6202
        %v6295 = vpop.f32.mrf.mxu0
        %v6296 = vadd.f32 0.0, %v6295
        %6297 = vmatmul.f32.gmra.mxu0 %v6203
        %v6298 = vpop.f32.mrf.mxu0
        %v6299 = vadd.f32 0.0, %v6298
        %6300 = vmatmul.f32.gmra.mxu0 %v6204
        %v6301 = vpop.f32.mrf.mxu0
        %v6302 = vadd.f32 0.0, %v6301
        %6303 = vmatmul.f32.gmra.mxu0 %v6205
        %v6304 = vpop.f32.mrf.mxu0
        %v6305 = vadd.f32 0.0, %v6304
        %6306 = vmatmul.f32.gmra.mxu0 %v6206
        %v6307 = vpop.f32.mrf.mxu0
        %v6308 = vadd.f32 0.0, %v6307
        %6309 = vmatmul.f32.gmra.mxu0 %v6207
        %v6310 = vpop.f32.mrf.mxu0
        %v6311 = vadd.f32 0.0, %v6310
        %6312 = vmatmul.f32.gmra.mxu0 %v6208
        %v6313 = vpop.f32.mrf.mxu0
        %v6314 = vadd.f32 0.0, %v6313
        %6315 = vmatmul.f32.gmra.mxu0 %v6209
        %v6316 = vpop.f32.mrf.mxu0
        %v6317 = vadd.f32 0.0, %v6316
        %6318 = vmatmul.f32.gmra.mxu0 %v6210
        %v6319 = vpop.f32.mrf.mxu0
        %v6320 = vadd.f32 0.0, %v6319
        %6321 = vmatmul.f32.gmra.mxu0 %v6211
        %v6322 = vpop.f32.mrf.mxu0
        %v6323 = vadd.f32 0.0, %v6322
        %6324 = vmatmul.f32.gmra.mxu0 %v6212
        %v6325 = vpop.f32.mrf.mxu0
        %v6326 = vadd.f32 0.0, %v6325
        %6327 = vmatmul.f32.gmra.mxu0 %v6213
        %v6328 = vpop.f32.mrf.mxu0
        %v6329 = vadd.f32 0.0, %v6328
        %6330 = vmatmul.f32.gmra.mxu0 %v6214
        %v6331 = vpop.f32.mrf.mxu0
        %v6332 = vadd.f32 0.0, %v6331
        %6333 = vmatmul.f32.gmra.mxu0 %v6215
        %v6334 = vpop.f32.mrf.mxu0
        %v6335 = vadd.f32 0.0, %v6334
        %6336 = vmatmul.f32.gmra.mxu0 %v6216
        %v6337 = vpop.f32.mrf.mxu0
        %v6338 = vadd.f32 0.0, %v6337
        %6339 = vmatmul.f32.gmra.mxu0 %v6217
        %v6340 = vpop.f32.mrf.mxu0
        %v6341 = vadd.f32 0.0, %v6340
        %6342 = vmatmul.f32.gmra.mxu0 %v6218
        %v6343 = vpop.f32.mrf.mxu0
        %v6344 = vadd.f32 0.0, %v6343
        %6345 = vmatmul.f32.gmra.mxu0 %v6219
        %v6346 = vpop.f32.mrf.mxu0
        %v6347 = vadd.f32 0.0, %v6346
        %6348 = vmatmul.f32.gmra.mxu0 %v6220
        %v6349 = vpop.f32.mrf.mxu0
        %v6350 = vadd.f32 0.0, %v6349
        %6351 = vmatmul.f32.gmra.mxu0 %v6221
        %v6352 = vpop.f32.mrf.mxu0
        %v6353 = vadd.f32 0.0, %v6352
        %6354 = vmatmul.f32.gmra.mxu0 %v6222
        %v6355 = vpop.f32.mrf.mxu0
        %v6356 = vadd.f32 0.0, %v6355
        %6357 = vmatmul.f32.gmra.mxu0 %v6223
        %v6358 = vpop.f32.mrf.mxu0
        %v6359 = vadd.f32 0.0, %v6358
        %6360 = vmatmul.f32.gmra.mxu0 %v6224
        %v6361 = vpop.f32.mrf.mxu0
        %v6362 = vadd.f32 0.0, %v6361
        %6363 = vmatmul.f32.gmra.mxu0 %v6225
        %v6364 = vpop.f32.mrf.mxu0
        %v6365 = vadd.f32 0.0, %v6364
        %6366 = vmatmul.f32.gmra.mxu0 %v6226
        %v6367 = vpop.f32.mrf.mxu0
        %v6368 = vadd.f32 0.0, %v6367
        %6369 = vmatmul.f32.gmra.mxu0 %v6227
        %v6370 = vpop.f32.mrf.mxu0
        %v6371 = vadd.f32 0.0, %v6370
        %6372 = vmatmul.f32.gmra.mxu0 %v6228
        %v6373 = vpop.f32.mrf.mxu0
        %v6374 = vadd.f32 0.0, %v6373
        %6375 = vmatmul.f32.gmra.mxu0 %v6229
        %v6376 = vpop.f32.mrf.mxu0
        %v6377 = vadd.f32 0.0, %v6376
        %6378 = vmatmul.f32.gmra.mxu0 %v6230
        %v6379 = vpop.f32.mrf.mxu0
        %v6380 = vadd.f32 0.0, %v6379
        %6381 = vmatmul.f32.gmra.mxu0 %v6231
        %v6382 = vpop.f32.mrf.mxu0
        %v6383 = vadd.f32 0.0, %v6382
        %6384 = vmatmul.f32.gmra.mxu0 %v6232
        %v6385 = vpop.f32.mrf.mxu0
        %v6386 = vadd.f32 0.0, %v6385
        %6387 = vmatmul.f32.gmra.mxu0 %v6233
        %v6388 = vpop.f32.mrf.mxu0
        %v6389 = vadd.f32 0.0, %v6388
        %6390 = vdwg.mxu0
        %v6391 = vadd.f32 %v6152, %v6269
        %v6392 = vadd.f32 %v6153, %v6272
        %v6393 = vadd.f32 %v6154, %v6275
        %v6394 = vadd.f32 %v6155, %v6278
        %v6395 = vadd.f32 %v6156, %v6281
        %v6396 = vadd.f32 %v6157, %v6284
        %v6397 = vadd.f32 %v6158, %v6287
        %v6398 = vadd.f32 %v6159, %v6290
        %v6399 = vadd.f32 %v6160, %v6293
        %v6400 = vadd.f32 %v6161, %v6296
        %v6401 = vadd.f32 %v6162, %v6299
        %v6402 = vadd.f32 %v6163, %v6302
        %v6403 = vadd.f32 %v6164, %v6305
        %v6404 = vadd.f32 %v6165, %v6308
        %v6405 = vadd.f32 %v6166, %v6311
        %v6406 = vadd.f32 %v6167, %v6314
        %v6407 = vadd.f32 %v6168, %v6317
        %v6408 = vadd.f32 %v6169, %v6320
        %v6409 = vadd.f32 %v6170, %v6323
        %v6410 = vadd.f32 %v6171, %v6326
        %v6411 = vadd.f32 %v6172, %v6329
        %v6412 = vadd.f32 %v6173, %v6332
        %v6413 = vadd.f32 %v6174, %v6335
        %v6414 = vadd.f32 %v6175, %v6338
        %v6415 = vadd.f32 %v6176, %v6341
        %v6416 = vadd.f32 %v6177, %v6344
        %v6417 = vadd.f32 %v6178, %v6347
        %v6418 = vadd.f32 %v6179, %v6350
        %v6419 = vadd.f32 %v6180, %v6353
        %v6420 = vadd.f32 %v6181, %v6356
        %v6421 = vadd.f32 %v6182, %v6359
        %v6422 = vadd.f32 %v6183, %v6362
        %v6423 = vadd.f32 %v6184, %v6365
        %v6424 = vadd.f32 %v6185, %v6368
        %v6425 = vadd.f32 %v6186, %v6371
        %v6426 = vadd.f32 %v6187, %v6374
        %v6427 = vadd.f32 %v6188, %v6377
        %v6428 = vadd.f32 %v6189, %v6380
        %v6429 = vadd.f32 %v6190, %v6383
        %v6430 = vadd.f32 %v6191, %v6386
        %v6431 = vadd.f32 %v6192, %v6389
        %v6432 = vld [vmem:[#allocation2 + $0x14] sm:$0xff]
        %v6433 = vld [vmem:[#allocation2 + $0x1c] sm:$0xff]
        %v6434 = vld [vmem:[#allocation2 + $0x24] sm:$0xff]
        %v6435 = vld [vmem:[#allocation2 + $0x2c] sm:$0xff]
        %v6436 = vld [vmem:[#allocation2 + $0x34] sm:$0xff]
        %v6437 = vld [vmem:[#allocation2 + $0x3c] sm:$0xff]
        %v6438 = vld [vmem:[#allocation2 + $0x44] sm:$0xff]
        %v6439 = vld [vmem:[#allocation2 + $0x4c] sm:$0xff]
        %v6440 = vld [vmem:[#allocation2 + $0x54] sm:$0xff]
        %v6441 = vld [vmem:[#allocation2 + $0x5c] sm:$0xff]
        %v6442 = vld [vmem:[#allocation2 + $0x64] sm:$0xff]
        %v6443 = vld [vmem:[#allocation2 + $0x6c] sm:$0xff]
        %v6444 = vld [vmem:[#allocation2 + $0x74] sm:$0xff]
        %v6445 = vld [vmem:[#allocation2 + $0x7c] sm:$0xff]
        %v6446 = vld [vmem:[#allocation2 + $0x84] sm:$0xff]
        %v6447 = vld [vmem:[#allocation2 + $0x8c] sm:$0xff]
        %v6448 = vld [vmem:[#allocation2 + $0x94] sm:$0xff]
        %v6449 = vld [vmem:[#allocation2 + $0x9c] sm:$0xff]
        %v6450 = vld [vmem:[#allocation2 + $0xa4] sm:$0xff]
        %v6451 = vld [vmem:[#allocation2 + $0xac] sm:$0xff]
        %v6452 = vld [vmem:[#allocation2 + $0xb4] sm:$0xff]
        %v6453 = vld [vmem:[#allocation2 + $0xbc] sm:$0xff]
        %v6454 = vld [vmem:[#allocation2 + $0xc4] sm:$0xff]
        %v6455 = vld [vmem:[#allocation2 + $0xcc] sm:$0xff]
        %v6456 = vld [vmem:[#allocation2 + $0xd4] sm:$0xff]
        %v6457 = vld [vmem:[#allocation2 + $0xdc] sm:$0xff]
        %v6458 = vld [vmem:[#allocation2 + $0xe4] sm:$0xff]
        %v6459 = vld [vmem:[#allocation2 + $0xec] sm:$0xff]
        %v6460 = vld [vmem:[#allocation2 + $0xf4] sm:$0xff]
        %v6461 = vld [vmem:[#allocation2 + $0xfc] sm:$0xff]
        %v6462 = vld [vmem:[#allocation2 + $0x104] sm:$0xff]
        %v6463 = vld [vmem:[#allocation2 + $0x10c] sm:$0xff]
        %v6464 = vld [vmem:[#allocation2 + $0x114] sm:$0xff]
        %v6465 = vld [vmem:[#allocation2 + $0x11c] sm:$0xff]
        %v6466 = vld [vmem:[#allocation2 + $0x124] sm:$0xff]
        %v6467 = vld [vmem:[#allocation2 + $0x12c] sm:$0xff]
        %v6468 = vld [vmem:[#allocation2 + $0x134] sm:$0xff]
        %v6469 = vld [vmem:[#allocation2 + $0x13c] sm:$0xff]
        %v6470 = vld [vmem:[#allocation2 + $0x144] sm:$0xff]
        %v6471 = vld [vmem:[#allocation2 + $0x14c] sm:$0xff]
        %v6472 = vld [vmem:[#allocation2 + $0x154] sm:$0xf]
        %s6473 = scalar_lea.vmem [#allocation3], 640
        %v6474 = vld [vmem:[%s6473] sm:$0xff]
        %v6475 = vld [vmem:[%s6473 + $0x8] sm:$0xff]
        %v6476 = vld [vmem:[%s6473 + $0x10] sm:$0xff]
        %v6477 = vld [vmem:[%s6473 + $0x18] sm:$0xff]
        %v6478 = vld [vmem:[%s6473 + $0x20] sm:$0xff]
        %v6479 = vld [vmem:[%s6473 + $0x28] sm:$0xff]
        %v6480 = vld [vmem:[%s6473 + $0x30] sm:$0xff]
        %v6481 = vld [vmem:[%s6473 + $0x38] sm:$0xff]
        %v6482 = vld [vmem:[%s6473 + $0x40] sm:$0xff]
        %v6483 = vld [vmem:[%s6473 + $0x48] sm:$0xff]
        %v6484 = vld [vmem:[%s6473 + $0x50] sm:$0xff]
        %v6485 = vld [vmem:[%s6473 + $0x58] sm:$0xff]
        %v6486 = vld [vmem:[%s6473 + $0x60] sm:$0xff]
        %v6487 = vld [vmem:[%s6473 + $0x68] sm:$0xff]
        %v6488 = vld [vmem:[%s6473 + $0x70] sm:$0xff]
        %v6489 = vld [vmem:[%s6473 + $0x78] sm:$0xff]
        %6490 = vmatpush.msra.mxu0 %v6489
        %6491 = vmatpush.msra.mxu0 %v6488
        %6492 = vmatpush.msra.mxu0 %v6487
        %6493 = vmatpush.msra.mxu0 %v6486
        %6494 = vmatpush.msra.mxu0 %v6485
        %6495 = vmatpush.msra.mxu0 %v6484
        %6496 = vmatpush.msra.mxu0 %v6483
        %6497 = vmatpush.msra.mxu0 %v6482
        %6498 = vmatpush.msra.mxu0 %v6481
        %6499 = vmatpush.msra.mxu0 %v6480
        %6500 = vmatpush.msra.mxu0 %v6479
        %6501 = vmatpush.msra.mxu0 %v6478
        %6502 = vmatpush.msra.mxu0 %v6477
        %6503 = vmatpush.msra.mxu0 %v6476
        %6504 = vmatpush.msra.mxu0 %v6475
        %6505 = vmatpush.msra.mxu0 %v6474
        %6506 = vmatmul.f32.gmra.mxu0 %v6432
        %v6507 = vpop.f32.mrf.mxu0
        %v6508 = vadd.f32 0.0, %v6507
        %6509 = vmatmul.f32.gmra.mxu0 %v6433
        %v6510 = vpop.f32.mrf.mxu0
        %v6511 = vadd.f32 0.0, %v6510
        %6512 = vmatmul.f32.gmra.mxu0 %v6434
        %v6513 = vpop.f32.mrf.mxu0
        %v6514 = vadd.f32 0.0, %v6513
        %6515 = vmatmul.f32.gmra.mxu0 %v6435
        %v6516 = vpop.f32.mrf.mxu0
        %v6517 = vadd.f32 0.0, %v6516
        %6518 = vmatmul.f32.gmra.mxu0 %v6436
        %v6519 = vpop.f32.mrf.mxu0
        %v6520 = vadd.f32 0.0, %v6519
        %6521 = vmatmul.f32.gmra.mxu0 %v6437
        %v6522 = vpop.f32.mrf.mxu0
        %v6523 = vadd.f32 0.0, %v6522
        %6524 = vmatmul.f32.gmra.mxu0 %v6438
        %v6525 = vpop.f32.mrf.mxu0
        %v6526 = vadd.f32 0.0, %v6525
        %6527 = vmatmul.f32.gmra.mxu0 %v6439
        %v6528 = vpop.f32.mrf.mxu0
        %v6529 = vadd.f32 0.0, %v6528
        %6530 = vmatmul.f32.gmra.mxu0 %v6440
        %v6531 = vpop.f32.mrf.mxu0
        %v6532 = vadd.f32 0.0, %v6531
        %6533 = vmatmul.f32.gmra.mxu0 %v6441
        %v6534 = vpop.f32.mrf.mxu0
        %v6535 = vadd.f32 0.0, %v6534
        %6536 = vmatmul.f32.gmra.mxu0 %v6442
        %v6537 = vpop.f32.mrf.mxu0
        %v6538 = vadd.f32 0.0, %v6537
        %6539 = vmatmul.f32.gmra.mxu0 %v6443
        %v6540 = vpop.f32.mrf.mxu0
        %v6541 = vadd.f32 0.0, %v6540
        %6542 = vmatmul.f32.gmra.mxu0 %v6444
        %v6543 = vpop.f32.mrf.mxu0
        %v6544 = vadd.f32 0.0, %v6543
        %6545 = vmatmul.f32.gmra.mxu0 %v6445
        %v6546 = vpop.f32.mrf.mxu0
        %v6547 = vadd.f32 0.0, %v6546
        %6548 = vmatmul.f32.gmra.mxu0 %v6446
        %v6549 = vpop.f32.mrf.mxu0
        %v6550 = vadd.f32 0.0, %v6549
        %6551 = vmatmul.f32.gmra.mxu0 %v6447
        %v6552 = vpop.f32.mrf.mxu0
        %v6553 = vadd.f32 0.0, %v6552
        %6554 = vmatmul.f32.gmra.mxu0 %v6448
        %v6555 = vpop.f32.mrf.mxu0
        %v6556 = vadd.f32 0.0, %v6555
        %6557 = vmatmul.f32.gmra.mxu0 %v6449
        %v6558 = vpop.f32.mrf.mxu0
        %v6559 = vadd.f32 0.0, %v6558
        %6560 = vmatmul.f32.gmra.mxu0 %v6450
        %v6561 = vpop.f32.mrf.mxu0
        %v6562 = vadd.f32 0.0, %v6561
        %6563 = vmatmul.f32.gmra.mxu0 %v6451
        %v6564 = vpop.f32.mrf.mxu0
        %v6565 = vadd.f32 0.0, %v6564
        %6566 = vmatmul.f32.gmra.mxu0 %v6452
        %v6567 = vpop.f32.mrf.mxu0
        %v6568 = vadd.f32 0.0, %v6567
        %6569 = vmatmul.f32.gmra.mxu0 %v6453
        %v6570 = vpop.f32.mrf.mxu0
        %v6571 = vadd.f32 0.0, %v6570
        %6572 = vmatmul.f32.gmra.mxu0 %v6454
        %v6573 = vpop.f32.mrf.mxu0
        %v6574 = vadd.f32 0.0, %v6573
        %6575 = vmatmul.f32.gmra.mxu0 %v6455
        %v6576 = vpop.f32.mrf.mxu0
        %v6577 = vadd.f32 0.0, %v6576
        %6578 = vmatmul.f32.gmra.mxu0 %v6456
        %v6579 = vpop.f32.mrf.mxu0
        %v6580 = vadd.f32 0.0, %v6579
        %6581 = vmatmul.f32.gmra.mxu0 %v6457
        %v6582 = vpop.f32.mrf.mxu0
        %v6583 = vadd.f32 0.0, %v6582
        %6584 = vmatmul.f32.gmra.mxu0 %v6458
        %v6585 = vpop.f32.mrf.mxu0
        %v6586 = vadd.f32 0.0, %v6585
        %6587 = vmatmul.f32.gmra.mxu0 %v6459
        %v6588 = vpop.f32.mrf.mxu0
        %v6589 = vadd.f32 0.0, %v6588
        %6590 = vmatmul.f32.gmra.mxu0 %v6460
        %v6591 = vpop.f32.mrf.mxu0
        %v6592 = vadd.f32 0.0, %v6591
        %6593 = vmatmul.f32.gmra.mxu0 %v6461
        %v6594 = vpop.f32.mrf.mxu0
        %v6595 = vadd.f32 0.0, %v6594
        %6596 = vmatmul.f32.gmra.mxu0 %v6462
        %v6597 = vpop.f32.mrf.mxu0
        %v6598 = vadd.f32 0.0, %v6597
        %6599 = vmatmul.f32.gmra.mxu0 %v6463
        %v6600 = vpop.f32.mrf.mxu0
        %v6601 = vadd.f32 0.0, %v6600
        %6602 = vmatmul.f32.gmra.mxu0 %v6464
        %v6603 = vpop.f32.mrf.mxu0
        %v6604 = vadd.f32 0.0, %v6603
        %6605 = vmatmul.f32.gmra.mxu0 %v6465
        %v6606 = vpop.f32.mrf.mxu0
        %v6607 = vadd.f32 0.0, %v6606
        %6608 = vmatmul.f32.gmra.mxu0 %v6466
        %v6609 = vpop.f32.mrf.mxu0
        %v6610 = vadd.f32 0.0, %v6609
        %6611 = vmatmul.f32.gmra.mxu0 %v6467
        %v6612 = vpop.f32.mrf.mxu0
        %v6613 = vadd.f32 0.0, %v6612
        %6614 = vmatmul.f32.gmra.mxu0 %v6468
        %v6615 = vpop.f32.mrf.mxu0
        %v6616 = vadd.f32 0.0, %v6615
        %6617 = vmatmul.f32.gmra.mxu0 %v6469
        %v6618 = vpop.f32.mrf.mxu0
        %v6619 = vadd.f32 0.0, %v6618
        %6620 = vmatmul.f32.gmra.mxu0 %v6470
        %v6621 = vpop.f32.mrf.mxu0
        %v6622 = vadd.f32 0.0, %v6621
        %6623 = vmatmul.f32.gmra.mxu0 %v6471
        %v6624 = vpop.f32.mrf.mxu0
        %v6625 = vadd.f32 0.0, %v6624
        %6626 = vmatmul.f32.gmra.mxu0 %v6472
        %v6627 = vpop.f32.mrf.mxu0
        %v6628 = vadd.f32 0.0, %v6627
        %6629 = vdwg.mxu0
        %v6630 = vadd.f32 %v6391, %v6508
        %v6631 = vadd.f32 %v6392, %v6511
        %v6632 = vadd.f32 %v6393, %v6514
        %v6633 = vadd.f32 %v6394, %v6517
        %v6634 = vadd.f32 %v6395, %v6520
        %v6635 = vadd.f32 %v6396, %v6523
        %v6636 = vadd.f32 %v6397, %v6526
        %v6637 = vadd.f32 %v6398, %v6529
        %v6638 = vadd.f32 %v6399, %v6532
        %v6639 = vadd.f32 %v6400, %v6535
        %v6640 = vadd.f32 %v6401, %v6538
        %v6641 = vadd.f32 %v6402, %v6541
        %v6642 = vadd.f32 %v6403, %v6544
        %v6643 = vadd.f32 %v6404, %v6547
        %v6644 = vadd.f32 %v6405, %v6550
        %v6645 = vadd.f32 %v6406, %v6553
        %v6646 = vadd.f32 %v6407, %v6556
        %v6647 = vadd.f32 %v6408, %v6559
        %v6648 = vadd.f32 %v6409, %v6562
        %v6649 = vadd.f32 %v6410, %v6565
        %v6650 = vadd.f32 %v6411, %v6568
        %v6651 = vadd.f32 %v6412, %v6571
        %v6652 = vadd.f32 %v6413, %v6574
        %v6653 = vadd.f32 %v6414, %v6577
        %v6654 = vadd.f32 %v6415, %v6580
        %v6655 = vadd.f32 %v6416, %v6583
        %v6656 = vadd.f32 %v6417, %v6586
        %v6657 = vadd.f32 %v6418, %v6589
        %v6658 = vadd.f32 %v6419, %v6592
        %v6659 = vadd.f32 %v6420, %v6595
        %v6660 = vadd.f32 %v6421, %v6598
        %v6661 = vadd.f32 %v6422, %v6601
        %v6662 = vadd.f32 %v6423, %v6604
        %v6663 = vadd.f32 %v6424, %v6607
        %v6664 = vadd.f32 %v6425, %v6610
        %v6665 = vadd.f32 %v6426, %v6613
        %v6666 = vadd.f32 %v6427, %v6616
        %v6667 = vadd.f32 %v6428, %v6619
        %v6668 = vadd.f32 %v6429, %v6622
        %v6669 = vadd.f32 %v6430, %v6625
        %v6670 = vadd.f32 %v6431, %v6628
        %v6671 = vld [vmem:[#allocation2 + $0x24] sm:$0xff]
        %v6672 = vld [vmem:[#allocation2 + $0x2c] sm:$0xff]
        %v6673 = vld [vmem:[#allocation2 + $0x34] sm:$0xff]
        %v6674 = vld [vmem:[#allocation2 + $0x3c] sm:$0xff]
        %v6675 = vld [vmem:[#allocation2 + $0x44] sm:$0xff]
        %v6676 = vld [vmem:[#allocation2 + $0x4c] sm:$0xff]
        %v6677 = vld [vmem:[#allocation2 + $0x54] sm:$0xff]
        %v6678 = vld [vmem:[#allocation2 + $0x5c] sm:$0xff]
        %v6679 = vld [vmem:[#allocation2 + $0x64] sm:$0xff]
        %v6680 = vld [vmem:[#allocation2 + $0x6c] sm:$0xff]
        %v6681 = vld [vmem:[#allocation2 + $0x74] sm:$0xff]
        %v6682 = vld [vmem:[#allocation2 + $0x7c] sm:$0xff]
        %v6683 = vld [vmem:[#allocation2 + $0x84] sm:$0xff]
        %v6684 = vld [vmem:[#allocation2 + $0x8c] sm:$0xff]
        %v6685 = vld [vmem:[#allocation2 + $0x94] sm:$0xff]
        %v6686 = vld [vmem:[#allocation2 + $0x9c] sm:$0xff]
        %v6687 = vld [vmem:[#allocation2 + $0xa4] sm:$0xff]
        %v6688 = vld [vmem:[#allocation2 + $0xac] sm:$0xff]
        %v6689 = vld [vmem:[#allocation2 + $0xb4] sm:$0xff]
        %v6690 = vld [vmem:[#allocation2 + $0xbc] sm:$0xff]
        %v6691 = vld [vmem:[#allocation2 + $0xc4] sm:$0xff]
        %v6692 = vld [vmem:[#allocation2 + $0xcc] sm:$0xff]
        %v6693 = vld [vmem:[#allocation2 + $0xd4] sm:$0xff]
        %v6694 = vld [vmem:[#allocation2 + $0xdc] sm:$0xff]
        %v6695 = vld [vmem:[#allocation2 + $0xe4] sm:$0xff]
        %v6696 = vld [vmem:[#allocation2 + $0xec] sm:$0xff]
        %v6697 = vld [vmem:[#allocation2 + $0xf4] sm:$0xff]
        %v6698 = vld [vmem:[#allocation2 + $0xfc] sm:$0xff]
        %v6699 = vld [vmem:[#allocation2 + $0x104] sm:$0xff]
        %v6700 = vld [vmem:[#allocation2 + $0x10c] sm:$0xff]
        %v6701 = vld [vmem:[#allocation2 + $0x114] sm:$0xff]
        %v6702 = vld [vmem:[#allocation2 + $0x11c] sm:$0xff]
        %v6703 = vld [vmem:[#allocation2 + $0x124] sm:$0xff]
        %v6704 = vld [vmem:[#allocation2 + $0x12c] sm:$0xff]
        %v6705 = vld [vmem:[#allocation2 + $0x134] sm:$0xff]
        %v6706 = vld [vmem:[#allocation2 + $0x13c] sm:$0xff]
        %v6707 = vld [vmem:[#allocation2 + $0x144] sm:$0xff]
        %v6708 = vld [vmem:[#allocation2 + $0x14c] sm:$0xff]
        %v6709 = vld [vmem:[#allocation2 + $0x154] sm:$0xff]
        %v6710 = vld [vmem:[#allocation2 + $0x15c] sm:$0xff]
        %v6711 = vld [vmem:[#allocation2 + $0x164] sm:$0xf]
        %s6712 = scalar_lea.vmem [#allocation3], 768
        %v6713 = vld [vmem:[%s6712] sm:$0xff]
        %v6714 = vld [vmem:[%s6712 + $0x8] sm:$0xff]
        %v6715 = vld [vmem:[%s6712 + $0x10] sm:$0xff]
        %v6716 = vld [vmem:[%s6712 + $0x18] sm:$0xff]
        %v6717 = vld [vmem:[%s6712 + $0x20] sm:$0xff]
        %v6718 = vld [vmem:[%s6712 + $0x28] sm:$0xff]
        %v6719 = vld [vmem:[%s6712 + $0x30] sm:$0xff]
        %v6720 = vld [vmem:[%s6712 + $0x38] sm:$0xff]
        %v6721 = vld [vmem:[%s6712 + $0x40] sm:$0xff]
        %v6722 = vld [vmem:[%s6712 + $0x48] sm:$0xff]
        %v6723 = vld [vmem:[%s6712 + $0x50] sm:$0xff]
        %v6724 = vld [vmem:[%s6712 + $0x58] sm:$0xff]
        %v6725 = vld [vmem:[%s6712 + $0x60] sm:$0xff]
        %v6726 = vld [vmem:[%s6712 + $0x68] sm:$0xff]
        %v6727 = vld [vmem:[%s6712 + $0x70] sm:$0xff]
        %v6728 = vld [vmem:[%s6712 + $0x78] sm:$0xff]
        %6729 = vmatpush.msra.mxu0 %v6728
        %6730 = vmatpush.msra.mxu0 %v6727
        %6731 = vmatpush.msra.mxu0 %v6726
        %6732 = vmatpush.msra.mxu0 %v6725
        %6733 = vmatpush.msra.mxu0 %v6724
        %6734 = vmatpush.msra.mxu0 %v6723
        %6735 = vmatpush.msra.mxu0 %v6722
        %6736 = vmatpush.msra.mxu0 %v6721
        %6737 = vmatpush.msra.mxu0 %v6720
        %6738 = vmatpush.msra.mxu0 %v6719
        %6739 = vmatpush.msra.mxu0 %v6718
        %6740 = vmatpush.msra.mxu0 %v6717
        %6741 = vmatpush.msra.mxu0 %v6716
        %6742 = vmatpush.msra.mxu0 %v6715
        %6743 = vmatpush.msra.mxu0 %v6714
        %6744 = vmatpush.msra.mxu0 %v6713
        %6745 = vmatmul.f32.gmra.mxu0 %v6671
        %v6746 = vpop.f32.mrf.mxu0
        %v6747 = vadd.f32 0.0, %v6746
        %6748 = vmatmul.f32.gmra.mxu0 %v6672
        %v6749 = vpop.f32.mrf.mxu0
        %v6750 = vadd.f32 0.0, %v6749
        %6751 = vmatmul.f32.gmra.mxu0 %v6673
        %v6752 = vpop.f32.mrf.mxu0
        %v6753 = vadd.f32 0.0, %v6752
        %6754 = vmatmul.f32.gmra.mxu0 %v6674
        %v6755 = vpop.f32.mrf.mxu0
        %v6756 = vadd.f32 0.0, %v6755
        %6757 = vmatmul.f32.gmra.mxu0 %v6675
        %v6758 = vpop.f32.mrf.mxu0
        %v6759 = vadd.f32 0.0, %v6758
        %6760 = vmatmul.f32.gmra.mxu0 %v6676
        %v6761 = vpop.f32.mrf.mxu0
        %v6762 = vadd.f32 0.0, %v6761
        %6763 = vmatmul.f32.gmra.mxu0 %v6677
        %v6764 = vpop.f32.mrf.mxu0
        %v6765 = vadd.f32 0.0, %v6764
        %6766 = vmatmul.f32.gmra.mxu0 %v6678
        %v6767 = vpop.f32.mrf.mxu0
        %v6768 = vadd.f32 0.0, %v6767
        %6769 = vmatmul.f32.gmra.mxu0 %v6679
        %v6770 = vpop.f32.mrf.mxu0
        %v6771 = vadd.f32 0.0, %v6770
        %6772 = vmatmul.f32.gmra.mxu0 %v6680
        %v6773 = vpop.f32.mrf.mxu0
        %v6774 = vadd.f32 0.0, %v6773
        %6775 = vmatmul.f32.gmra.mxu0 %v6681
        %v6776 = vpop.f32.mrf.mxu0
        %v6777 = vadd.f32 0.0, %v6776
        %6778 = vmatmul.f32.gmra.mxu0 %v6682
        %v6779 = vpop.f32.mrf.mxu0
        %v6780 = vadd.f32 0.0, %v6779
        %6781 = vmatmul.f32.gmra.mxu0 %v6683
        %v6782 = vpop.f32.mrf.mxu0
        %v6783 = vadd.f32 0.0, %v6782
        %6784 = vmatmul.f32.gmra.mxu0 %v6684
        %v6785 = vpop.f32.mrf.mxu0
        %v6786 = vadd.f32 0.0, %v6785
        %6787 = vmatmul.f32.gmra.mxu0 %v6685
        %v6788 = vpop.f32.mrf.mxu0
        %v6789 = vadd.f32 0.0, %v6788
        %6790 = vmatmul.f32.gmra.mxu0 %v6686
        %v6791 = vpop.f32.mrf.mxu0
        %v6792 = vadd.f32 0.0, %v6791
        %6793 = vmatmul.f32.gmra.mxu0 %v6687
        %v6794 = vpop.f32.mrf.mxu0
        %v6795 = vadd.f32 0.0, %v6794
        %6796 = vmatmul.f32.gmra.mxu0 %v6688
        %v6797 = vpop.f32.mrf.mxu0
        %v6798 = vadd.f32 0.0, %v6797
        %6799 = vmatmul.f32.gmra.mxu0 %v6689
        %v6800 = vpop.f32.mrf.mxu0
        %v6801 = vadd.f32 0.0, %v6800
        %6802 = vmatmul.f32.gmra.mxu0 %v6690
        %v6803 = vpop.f32.mrf.mxu0
        %v6804 = vadd.f32 0.0, %v6803
        %6805 = vmatmul.f32.gmra.mxu0 %v6691
        %v6806 = vpop.f32.mrf.mxu0
        %v6807 = vadd.f32 0.0, %v6806
        %6808 = vmatmul.f32.gmra.mxu0 %v6692
        %v6809 = vpop.f32.mrf.mxu0
        %v6810 = vadd.f32 0.0, %v6809
        %6811 = vmatmul.f32.gmra.mxu0 %v6693
        %v6812 = vpop.f32.mrf.mxu0
        %v6813 = vadd.f32 0.0, %v6812
        %6814 = vmatmul.f32.gmra.mxu0 %v6694
        %v6815 = vpop.f32.mrf.mxu0
        %v6816 = vadd.f32 0.0, %v6815
        %6817 = vmatmul.f32.gmra.mxu0 %v6695
        %v6818 = vpop.f32.mrf.mxu0
        %v6819 = vadd.f32 0.0, %v6818
        %6820 = vmatmul.f32.gmra.mxu0 %v6696
        %v6821 = vpop.f32.mrf.mxu0
        %v6822 = vadd.f32 0.0, %v6821
        %6823 = vmatmul.f32.gmra.mxu0 %v6697
        %v6824 = vpop.f32.mrf.mxu0
        %v6825 = vadd.f32 0.0, %v6824
        %6826 = vmatmul.f32.gmra.mxu0 %v6698
        %v6827 = vpop.f32.mrf.mxu0
        %v6828 = vadd.f32 0.0, %v6827
        %6829 = vmatmul.f32.gmra.mxu0 %v6699
        %v6830 = vpop.f32.mrf.mxu0
        %v6831 = vadd.f32 0.0, %v6830
        %6832 = vmatmul.f32.gmra.mxu0 %v6700
        %v6833 = vpop.f32.mrf.mxu0
        %v6834 = vadd.f32 0.0, %v6833
        %6835 = vmatmul.f32.gmra.mxu0 %v6701
        %v6836 = vpop.f32.mrf.mxu0
        %v6837 = vadd.f32 0.0, %v6836
        %6838 = vmatmul.f32.gmra.mxu0 %v6702
        %v6839 = vpop.f32.mrf.mxu0
        %v6840 = vadd.f32 0.0, %v6839
        %6841 = vmatmul.f32.gmra.mxu0 %v6703
        %v6842 = vpop.f32.mrf.mxu0
        %v6843 = vadd.f32 0.0, %v6842
        %6844 = vmatmul.f32.gmra.mxu0 %v6704
        %v6845 = vpop.f32.mrf.mxu0
        %v6846 = vadd.f32 0.0, %v6845
        %6847 = vmatmul.f32.gmra.mxu0 %v6705
        %v6848 = vpop.f32.mrf.mxu0
        %v6849 = vadd.f32 0.0, %v6848
        %6850 = vmatmul.f32.gmra.mxu0 %v6706
        %v6851 = vpop.f32.mrf.mxu0
        %v6852 = vadd.f32 0.0, %v6851
        %6853 = vmatmul.f32.gmra.mxu0 %v6707
        %v6854 = vpop.f32.mrf.mxu0
        %v6855 = vadd.f32 0.0, %v6854
        %6856 = vmatmul.f32.gmra.mxu0 %v6708
        %v6857 = vpop.f32.mrf.mxu0
        %v6858 = vadd.f32 0.0, %v6857
        %6859 = vmatmul.f32.gmra.mxu0 %v6709
        %v6860 = vpop.f32.mrf.mxu0
        %v6861 = vadd.f32 0.0, %v6860
        %6862 = vmatmul.f32.gmra.mxu0 %v6710
        %v6863 = vpop.f32.mrf.mxu0
        %v6864 = vadd.f32 0.0, %v6863
        %6865 = vmatmul.f32.gmra.mxu0 %v6711
        %v6866 = vpop.f32.mrf.mxu0
        %v6867 = vadd.f32 0.0, %v6866
        %6868 = vdwg.mxu0
        %v6869 = vadd.f32 %v6630, %v6747
        %v6870 = vadd.f32 %v6631, %v6750
        %v6871 = vadd.f32 %v6632, %v6753
        %v6872 = vadd.f32 %v6633, %v6756
        %v6873 = vadd.f32 %v6634, %v6759
        %v6874 = vadd.f32 %v6635, %v6762
        %v6875 = vadd.f32 %v6636, %v6765
        %v6876 = vadd.f32 %v6637, %v6768
        %v6877 = vadd.f32 %v6638, %v6771
        %v6878 = vadd.f32 %v6639, %v6774
        %v6879 = vadd.f32 %v6640, %v6777
        %v6880 = vadd.f32 %v6641, %v6780
        %v6881 = vadd.f32 %v6642, %v6783
        %v6882 = vadd.f32 %v6643, %v6786
        %v6883 = vadd.f32 %v6644, %v6789
        %v6884 = vadd.f32 %v6645, %v6792
        %v6885 = vadd.f32 %v6646, %v6795
        %v6886 = vadd.f32 %v6647, %v6798
        %v6887 = vadd.f32 %v6648, %v6801
        %v6888 = vadd.f32 %v6649, %v6804
        %v6889 = vadd.f32 %v6650, %v6807
        %v6890 = vadd.f32 %v6651, %v6810
        %v6891 = vadd.f32 %v6652, %v6813
        %v6892 = vadd.f32 %v6653, %v6816
        %v6893 = vadd.f32 %v6654, %v6819
        %v6894 = vadd.f32 %v6655, %v6822
        %v6895 = vadd.f32 %v6656, %v6825
        %v6896 = vadd.f32 %v6657, %v6828
        %v6897 = vadd.f32 %v6658, %v6831
        %v6898 = vadd.f32 %v6659, %v6834
        %v6899 = vadd.f32 %v6660, %v6837
        %v6900 = vadd.f32 %v6661, %v6840
        %v6901 = vadd.f32 %v6662, %v6843
        %v6902 = vadd.f32 %v6663, %v6846
        %v6903 = vadd.f32 %v6664, %v6849
        %v6904 = vadd.f32 %v6665, %v6852
        %v6905 = vadd.f32 %v6666, %v6855
        %v6906 = vadd.f32 %v6667, %v6858
        %v6907 = vadd.f32 %v6668, %v6861
        %v6908 = vadd.f32 %v6669, %v6864
        %v6909 = vadd.f32 %v6670, %v6867
        %v6910 = vld [vmem:[#allocation2 + $0x25] sm:$0xff]
        %v6911 = vld [vmem:[#allocation2 + $0x2d] sm:$0xff]
        %v6912 = vld [vmem:[#allocation2 + $0x35] sm:$0xff]
        %v6913 = vld [vmem:[#allocation2 + $0x3d] sm:$0xff]
        %v6914 = vld [vmem:[#allocation2 + $0x45] sm:$0xff]
        %v6915 = vld [vmem:[#allocation2 + $0x4d] sm:$0xff]
        %v6916 = vld [vmem:[#allocation2 + $0x55] sm:$0xff]
        %v6917 = vld [vmem:[#allocation2 + $0x5d] sm:$0xff]
        %v6918 = vld [vmem:[#allocation2 + $0x65] sm:$0xff]
        %v6919 = vld [vmem:[#allocation2 + $0x6d] sm:$0xff]
        %v6920 = vld [vmem:[#allocation2 + $0x75] sm:$0xff]
        %v6921 = vld [vmem:[#allocation2 + $0x7d] sm:$0xff]
        %v6922 = vld [vmem:[#allocation2 + $0x85] sm:$0xff]
        %v6923 = vld [vmem:[#allocation2 + $0x8d] sm:$0xff]
        %v6924 = vld [vmem:[#allocation2 + $0x95] sm:$0xff]
        %v6925 = vld [vmem:[#allocation2 + $0x9d] sm:$0xff]
        %v6926 = vld [vmem:[#allocation2 + $0xa5] sm:$0xff]
        %v6927 = vld [vmem:[#allocation2 + $0xad] sm:$0xff]
        %v6928 = vld [vmem:[#allocation2 + $0xb5] sm:$0xff]
        %v6929 = vld [vmem:[#allocation2 + $0xbd] sm:$0xff]
        %v6930 = vld [vmem:[#allocation2 + $0xc5] sm:$0xff]
        %v6931 = vld [vmem:[#allocation2 + $0xcd] sm:$0xff]
        %v6932 = vld [vmem:[#allocation2 + $0xd5] sm:$0xff]
        %v6933 = vld [vmem:[#allocation2 + $0xdd] sm:$0xff]
        %v6934 = vld [vmem:[#allocation2 + $0xe5] sm:$0xff]
        %v6935 = vld [vmem:[#allocation2 + $0xed] sm:$0xff]
        %v6936 = vld [vmem:[#allocation2 + $0xf5] sm:$0xff]
        %v6937 = vld [vmem:[#allocation2 + $0xfd] sm:$0xff]
        %v6938 = vld [vmem:[#allocation2 + $0x105] sm:$0xff]
        %v6939 = vld [vmem:[#allocation2 + $0x10d] sm:$0xff]
        %v6940 = vld [vmem:[#allocation2 + $0x115] sm:$0xff]
        %v6941 = vld [vmem:[#allocation2 + $0x11d] sm:$0xff]
        %v6942 = vld [vmem:[#allocation2 + $0x125] sm:$0xff]
        %v6943 = vld [vmem:[#allocation2 + $0x12d] sm:$0xff]
        %v6944 = vld [vmem:[#allocation2 + $0x135] sm:$0xff]
        %v6945 = vld [vmem:[#allocation2 + $0x13d] sm:$0xff]
        %v6946 = vld [vmem:[#allocation2 + $0x145] sm:$0xff]
        %v6947 = vld [vmem:[#allocation2 + $0x14d] sm:$0xff]
        %v6948 = vld [vmem:[#allocation2 + $0x155] sm:$0xff]
        %v6949 = vld [vmem:[#allocation2 + $0x15d] sm:$0xff]
        %v6950 = vld [vmem:[#allocation2 + $0x165] sm:$0xf]
        %s6951 = scalar_lea.vmem [#allocation3], 896
        %v6952 = vld [vmem:[%s6951] sm:$0xff]
        %v6953 = vld [vmem:[%s6951 + $0x8] sm:$0xff]
        %v6954 = vld [vmem:[%s6951 + $0x10] sm:$0xff]
        %v6955 = vld [vmem:[%s6951 + $0x18] sm:$0xff]
        %v6956 = vld [vmem:[%s6951 + $0x20] sm:$0xff]
        %v6957 = vld [vmem:[%s6951 + $0x28] sm:$0xff]
        %v6958 = vld [vmem:[%s6951 + $0x30] sm:$0xff]
        %v6959 = vld [vmem:[%s6951 + $0x38] sm:$0xff]
        %v6960 = vld [vmem:[%s6951 + $0x40] sm:$0xff]
        %v6961 = vld [vmem:[%s6951 + $0x48] sm:$0xff]
        %v6962 = vld [vmem:[%s6951 + $0x50] sm:$0xff]
        %v6963 = vld [vmem:[%s6951 + $0x58] sm:$0xff]
        %v6964 = vld [vmem:[%s6951 + $0x60] sm:$0xff]
        %v6965 = vld [vmem:[%s6951 + $0x68] sm:$0xff]
        %v6966 = vld [vmem:[%s6951 + $0x70] sm:$0xff]
        %v6967 = vld [vmem:[%s6951 + $0x78] sm:$0xff]
        %6968 = vmatpush.msra.mxu0 %v6967
        %6969 = vmatpush.msra.mxu0 %v6966
        %6970 = vmatpush.msra.mxu0 %v6965
        %6971 = vmatpush.msra.mxu0 %v6964
        %6972 = vmatpush.msra.mxu0 %v6963
        %6973 = vmatpush.msra.mxu0 %v6962
        %6974 = vmatpush.msra.mxu0 %v6961
        %6975 = vmatpush.msra.mxu0 %v6960
        %6976 = vmatpush.msra.mxu0 %v6959
        %6977 = vmatpush.msra.mxu0 %v6958
        %6978 = vmatpush.msra.mxu0 %v6957
        %6979 = vmatpush.msra.mxu0 %v6956
        %6980 = vmatpush.msra.mxu0 %v6955
        %6981 = vmatpush.msra.mxu0 %v6954
        %6982 = vmatpush.msra.mxu0 %v6953
        %6983 = vmatpush.msra.mxu0 %v6952
        %6984 = vmatmul.f32.gmra.mxu0 %v6910
        %v6985 = vpop.f32.mrf.mxu0
        %v6986 = vadd.f32 0.0, %v6985
        %6987 = vmatmul.f32.gmra.mxu0 %v6911
        %v6988 = vpop.f32.mrf.mxu0
        %v6989 = vadd.f32 0.0, %v6988
        %6990 = vmatmul.f32.gmra.mxu0 %v6912
        %v6991 = vpop.f32.mrf.mxu0
        %v6992 = vadd.f32 0.0, %v6991
        %6993 = vmatmul.f32.gmra.mxu0 %v6913
        %v6994 = vpop.f32.mrf.mxu0
        %v6995 = vadd.f32 0.0, %v6994
        %6996 = vmatmul.f32.gmra.mxu0 %v6914
        %v6997 = vpop.f32.mrf.mxu0
        %v6998 = vadd.f32 0.0, %v6997
        %6999 = vmatmul.f32.gmra.mxu0 %v6915
        %v7000 = vpop.f32.mrf.mxu0
        %v7001 = vadd.f32 0.0, %v7000
        %7002 = vmatmul.f32.gmra.mxu0 %v6916
        %v7003 = vpop.f32.mrf.mxu0
        %v7004 = vadd.f32 0.0, %v7003
        %7005 = vmatmul.f32.gmra.mxu0 %v6917
        %v7006 = vpop.f32.mrf.mxu0
        %v7007 = vadd.f32 0.0, %v7006
        %7008 = vmatmul.f32.gmra.mxu0 %v6918
        %v7009 = vpop.f32.mrf.mxu0
        %v7010 = vadd.f32 0.0, %v7009
        %7011 = vmatmul.f32.gmra.mxu0 %v6919
        %v7012 = vpop.f32.mrf.mxu0
        %v7013 = vadd.f32 0.0, %v7012
        %7014 = vmatmul.f32.gmra.mxu0 %v6920
        %v7015 = vpop.f32.mrf.mxu0
        %v7016 = vadd.f32 0.0, %v7015
        %7017 = vmatmul.f32.gmra.mxu0 %v6921
        %v7018 = vpop.f32.mrf.mxu0
        %v7019 = vadd.f32 0.0, %v7018
        %7020 = vmatmul.f32.gmra.mxu0 %v6922
        %v7021 = vpop.f32.mrf.mxu0
        %v7022 = vadd.f32 0.0, %v7021
        %7023 = vmatmul.f32.gmra.mxu0 %v6923
        %v7024 = vpop.f32.mrf.mxu0
        %v7025 = vadd.f32 0.0, %v7024
        %7026 = vmatmul.f32.gmra.mxu0 %v6924
        %v7027 = vpop.f32.mrf.mxu0
        %v7028 = vadd.f32 0.0, %v7027
        %7029 = vmatmul.f32.gmra.mxu0 %v6925
        %v7030 = vpop.f32.mrf.mxu0
        %v7031 = vadd.f32 0.0, %v7030
        %7032 = vmatmul.f32.gmra.mxu0 %v6926
        %v7033 = vpop.f32.mrf.mxu0
        %v7034 = vadd.f32 0.0, %v7033
        %7035 = vmatmul.f32.gmra.mxu0 %v6927
        %v7036 = vpop.f32.mrf.mxu0
        %v7037 = vadd.f32 0.0, %v7036
        %7038 = vmatmul.f32.gmra.mxu0 %v6928
        %v7039 = vpop.f32.mrf.mxu0
        %v7040 = vadd.f32 0.0, %v7039
        %7041 = vmatmul.f32.gmra.mxu0 %v6929
        %v7042 = vpop.f32.mrf.mxu0
        %v7043 = vadd.f32 0.0, %v7042
        %7044 = vmatmul.f32.gmra.mxu0 %v6930
        %v7045 = vpop.f32.mrf.mxu0
        %v7046 = vadd.f32 0.0, %v7045
        %7047 = vmatmul.f32.gmra.mxu0 %v6931
        %v7048 = vpop.f32.mrf.mxu0
        %v7049 = vadd.f32 0.0, %v7048
        %7050 = vmatmul.f32.gmra.mxu0 %v6932
        %v7051 = vpop.f32.mrf.mxu0
        %v7052 = vadd.f32 0.0, %v7051
        %7053 = vmatmul.f32.gmra.mxu0 %v6933
        %v7054 = vpop.f32.mrf.mxu0
        %v7055 = vadd.f32 0.0, %v7054
        %7056 = vmatmul.f32.gmra.mxu0 %v6934
        %v7057 = vpop.f32.mrf.mxu0
        %v7058 = vadd.f32 0.0, %v7057
        %7059 = vmatmul.f32.gmra.mxu0 %v6935
        %v7060 = vpop.f32.mrf.mxu0
        %v7061 = vadd.f32 0.0, %v7060
        %7062 = vmatmul.f32.gmra.mxu0 %v6936
        %v7063 = vpop.f32.mrf.mxu0
        %v7064 = vadd.f32 0.0, %v7063
        %7065 = vmatmul.f32.gmra.mxu0 %v6937
        %v7066 = vpop.f32.mrf.mxu0
        %v7067 = vadd.f32 0.0, %v7066
        %7068 = vmatmul.f32.gmra.mxu0 %v6938
        %v7069 = vpop.f32.mrf.mxu0
        %v7070 = vadd.f32 0.0, %v7069
        %7071 = vmatmul.f32.gmra.mxu0 %v6939
        %v7072 = vpop.f32.mrf.mxu0
        %v7073 = vadd.f32 0.0, %v7072
        %7074 = vmatmul.f32.gmra.mxu0 %v6940
        %v7075 = vpop.f32.mrf.mxu0
        %v7076 = vadd.f32 0.0, %v7075
        %7077 = vmatmul.f32.gmra.mxu0 %v6941
        %v7078 = vpop.f32.mrf.mxu0
        %v7079 = vadd.f32 0.0, %v7078
        %7080 = vmatmul.f32.gmra.mxu0 %v6942
        %v7081 = vpop.f32.mrf.mxu0
        %v7082 = vadd.f32 0.0, %v7081
        %7083 = vmatmul.f32.gmra.mxu0 %v6943
        %v7084 = vpop.f32.mrf.mxu0
        %v7085 = vadd.f32 0.0, %v7084
        %7086 = vmatmul.f32.gmra.mxu0 %v6944
        %v7087 = vpop.f32.mrf.mxu0
        %v7088 = vadd.f32 0.0, %v7087
        %7089 = vmatmul.f32.gmra.mxu0 %v6945
        %v7090 = vpop.f32.mrf.mxu0
        %v7091 = vadd.f32 0.0, %v7090
        %7092 = vmatmul.f32.gmra.mxu0 %v6946
        %v7093 = vpop.f32.mrf.mxu0
        %v7094 = vadd.f32 0.0, %v7093
        %7095 = vmatmul.f32.gmra.mxu0 %v6947
        %v7096 = vpop.f32.mrf.mxu0
        %v7097 = vadd.f32 0.0, %v7096
        %7098 = vmatmul.f32.gmra.mxu0 %v6948
        %v7099 = vpop.f32.mrf.mxu0
        %v7100 = vadd.f32 0.0, %v7099
        %7101 = vmatmul.f32.gmra.mxu0 %v6949
        %v7102 = vpop.f32.mrf.mxu0
        %v7103 = vadd.f32 0.0, %v7102
        %7104 = vmatmul.f32.gmra.mxu0 %v6950
        %v7105 = vpop.f32.mrf.mxu0
        %v7106 = vadd.f32 0.0, %v7105
        %7107 = vdwg.mxu0
        %v7108 = vadd.f32 %v6869, %v6986
        %v7109 = vadd.f32 %v6870, %v6989
        %v7110 = vadd.f32 %v6871, %v6992
        %v7111 = vadd.f32 %v6872, %v6995
        %v7112 = vadd.f32 %v6873, %v6998
        %v7113 = vadd.f32 %v6874, %v7001
        %v7114 = vadd.f32 %v6875, %v7004
        %v7115 = vadd.f32 %v6876, %v7007
        %v7116 = vadd.f32 %v6877, %v7010
        %v7117 = vadd.f32 %v6878, %v7013
        %v7118 = vadd.f32 %v6879, %v7016
        %v7119 = vadd.f32 %v6880, %v7019
        %v7120 = vadd.f32 %v6881, %v7022
        %v7121 = vadd.f32 %v6882, %v7025
        %v7122 = vadd.f32 %v6883, %v7028
        %v7123 = vadd.f32 %v6884, %v7031
        %v7124 = vadd.f32 %v6885, %v7034
        %v7125 = vadd.f32 %v6886, %v7037
        %v7126 = vadd.f32 %v6887, %v7040
        %v7127 = vadd.f32 %v6888, %v7043
        %v7128 = vadd.f32 %v6889, %v7046
        %v7129 = vadd.f32 %v6890, %v7049
        %v7130 = vadd.f32 %v6891, %v7052
        %v7131 = vadd.f32 %v6892, %v7055
        %v7132 = vadd.f32 %v6893, %v7058
        %v7133 = vadd.f32 %v6894, %v7061
        %v7134 = vadd.f32 %v6895, %v7064
        %v7135 = vadd.f32 %v6896, %v7067
        %v7136 = vadd.f32 %v6897, %v7070
        %v7137 = vadd.f32 %v6898, %v7073
        %v7138 = vadd.f32 %v6899, %v7076
        %v7139 = vadd.f32 %v6900, %v7079
        %v7140 = vadd.f32 %v6901, %v7082
        %v7141 = vadd.f32 %v6902, %v7085
        %v7142 = vadd.f32 %v6903, %v7088
        %v7143 = vadd.f32 %v6904, %v7091
        %v7144 = vadd.f32 %v6905, %v7094
        %v7145 = vadd.f32 %v6906, %v7097
        %v7146 = vadd.f32 %v6907, %v7100
        %v7147 = vadd.f32 %v6908, %v7103
        %v7148 = vadd.f32 %v6909, %v7106
        %v7149 = vld [vmem:[#allocation2 + $0x26] sm:$0xff]
        %v7150 = vld [vmem:[#allocation2 + $0x2e] sm:$0xff]
        %v7151 = vld [vmem:[#allocation2 + $0x36] sm:$0xff]
        %v7152 = vld [vmem:[#allocation2 + $0x3e] sm:$0xff]
        %v7153 = vld [vmem:[#allocation2 + $0x46] sm:$0xff]
        %v7154 = vld [vmem:[#allocation2 + $0x4e] sm:$0xff]
        %v7155 = vld [vmem:[#allocation2 + $0x56] sm:$0xff]
        %v7156 = vld [vmem:[#allocation2 + $0x5e] sm:$0xff]
        %v7157 = vld [vmem:[#allocation2 + $0x66] sm:$0xff]
        %v7158 = vld [vmem:[#allocation2 + $0x6e] sm:$0xff]
        %v7159 = vld [vmem:[#allocation2 + $0x76] sm:$0xff]
        %v7160 = vld [vmem:[#allocation2 + $0x7e] sm:$0xff]
        %v7161 = vld [vmem:[#allocation2 + $0x86] sm:$0xff]
        %v7162 = vld [vmem:[#allocation2 + $0x8e] sm:$0xff]
        %v7163 = vld [vmem:[#allocation2 + $0x96] sm:$0xff]
        %v7164 = vld [vmem:[#allocation2 + $0x9e] sm:$0xff]
        %v7165 = vld [vmem:[#allocation2 + $0xa6] sm:$0xff]
        %v7166 = vld [vmem:[#allocation2 + $0xae] sm:$0xff]
        %v7167 = vld [vmem:[#allocation2 + $0xb6] sm:$0xff]
        %v7168 = vld [vmem:[#allocation2 + $0xbe] sm:$0xff]
        %v7169 = vld [vmem:[#allocation2 + $0xc6] sm:$0xff]
        %v7170 = vld [vmem:[#allocation2 + $0xce] sm:$0xff]
        %v7171 = vld [vmem:[#allocation2 + $0xd6] sm:$0xff]
        %v7172 = vld [vmem:[#allocation2 + $0xde] sm:$0xff]
        %v7173 = vld [vmem:[#allocation2 + $0xe6] sm:$0xff]
        %v7174 = vld [vmem:[#allocation2 + $0xee] sm:$0xff]
        %v7175 = vld [vmem:[#allocation2 + $0xf6] sm:$0xff]
        %v7176 = vld [vmem:[#allocation2 + $0xfe] sm:$0xff]
        %v7177 = vld [vmem:[#allocation2 + $0x106] sm:$0xff]
        %v7178 = vld [vmem:[#allocation2 + $0x10e] sm:$0xff]
        %v7179 = vld [vmem:[#allocation2 + $0x116] sm:$0xff]
        %v7180 = vld [vmem:[#allocation2 + $0x11e] sm:$0xff]
        %v7181 = vld [vmem:[#allocation2 + $0x126] sm:$0xff]
        %v7182 = vld [vmem:[#allocation2 + $0x12e] sm:$0xff]
        %v7183 = vld [vmem:[#allocation2 + $0x136] sm:$0xff]
        %v7184 = vld [vmem:[#allocation2 + $0x13e] sm:$0xff]
        %v7185 = vld [vmem:[#allocation2 + $0x146] sm:$0xff]
        %v7186 = vld [vmem:[#allocation2 + $0x14e] sm:$0xff]
        %v7187 = vld [vmem:[#allocation2 + $0x156] sm:$0xff]
        %v7188 = vld [vmem:[#allocation2 + $0x15e] sm:$0xff]
        %v7189 = vld [vmem:[#allocation2 + $0x166] sm:$0xf]
        %s7190 = scalar_lea.vmem [#allocation3], 1024
        %v7191 = vld [vmem:[%s7190] sm:$0xff]
        %v7192 = vld [vmem:[%s7190 + $0x8] sm:$0xff]
        %v7193 = vld [vmem:[%s7190 + $0x10] sm:$0xff]
        %v7194 = vld [vmem:[%s7190 + $0x18] sm:$0xff]
        %v7195 = vld [vmem:[%s7190 + $0x20] sm:$0xff]
        %v7196 = vld [vmem:[%s7190 + $0x28] sm:$0xff]
        %v7197 = vld [vmem:[%s7190 + $0x30] sm:$0xff]
        %v7198 = vld [vmem:[%s7190 + $0x38] sm:$0xff]
        %v7199 = vld [vmem:[%s7190 + $0x40] sm:$0xff]
        %v7200 = vld [vmem:[%s7190 + $0x48] sm:$0xff]
        %v7201 = vld [vmem:[%s7190 + $0x50] sm:$0xff]
        %v7202 = vld [vmem:[%s7190 + $0x58] sm:$0xff]
        %v7203 = vld [vmem:[%s7190 + $0x60] sm:$0xff]
        %v7204 = vld [vmem:[%s7190 + $0x68] sm:$0xff]
        %v7205 = vld [vmem:[%s7190 + $0x70] sm:$0xff]
        %v7206 = vld [vmem:[%s7190 + $0x78] sm:$0xff]
        %7207 = vmatpush.msra.mxu0 %v7206
        %7208 = vmatpush.msra.mxu0 %v7205
        %7209 = vmatpush.msra.mxu0 %v7204
        %7210 = vmatpush.msra.mxu0 %v7203
        %7211 = vmatpush.msra.mxu0 %v7202
        %7212 = vmatpush.msra.mxu0 %v7201
        %7213 = vmatpush.msra.mxu0 %v7200
        %7214 = vmatpush.msra.mxu0 %v7199
        %7215 = vmatpush.msra.mxu0 %v7198
        %7216 = vmatpush.msra.mxu0 %v7197
        %7217 = vmatpush.msra.mxu0 %v7196
        %7218 = vmatpush.msra.mxu0 %v7195
        %7219 = vmatpush.msra.mxu0 %v7194
        %7220 = vmatpush.msra.mxu0 %v7193
        %7221 = vmatpush.msra.mxu0 %v7192
        %7222 = vmatpush.msra.mxu0 %v7191
        %7223 = vmatmul.f32.gmra.mxu0 %v7149
        %v7224 = vpop.f32.mrf.mxu0
        %v7225 = vadd.f32 0.0, %v7224
        %7226 = vmatmul.f32.gmra.mxu0 %v7150
        %v7227 = vpop.f32.mrf.mxu0
        %v7228 = vadd.f32 0.0, %v7227
        %7229 = vmatmul.f32.gmra.mxu0 %v7151
        %v7230 = vpop.f32.mrf.mxu0
        %v7231 = vadd.f32 0.0, %v7230
        %7232 = vmatmul.f32.gmra.mxu0 %v7152
        %v7233 = vpop.f32.mrf.mxu0
        %v7234 = vadd.f32 0.0, %v7233
        %7235 = vmatmul.f32.gmra.mxu0 %v7153
        %v7236 = vpop.f32.mrf.mxu0
        %v7237 = vadd.f32 0.0, %v7236
        %7238 = vmatmul.f32.gmra.mxu0 %v7154
        %v7239 = vpop.f32.mrf.mxu0
        %v7240 = vadd.f32 0.0, %v7239
        %7241 = vmatmul.f32.gmra.mxu0 %v7155
        %v7242 = vpop.f32.mrf.mxu0
        %v7243 = vadd.f32 0.0, %v7242
        %7244 = vmatmul.f32.gmra.mxu0 %v7156
        %v7245 = vpop.f32.mrf.mxu0
        %v7246 = vadd.f32 0.0, %v7245
        %7247 = vmatmul.f32.gmra.mxu0 %v7157
        %v7248 = vpop.f32.mrf.mxu0
        %v7249 = vadd.f32 0.0, %v7248
        %7250 = vmatmul.f32.gmra.mxu0 %v7158
        %v7251 = vpop.f32.mrf.mxu0
        %v7252 = vadd.f32 0.0, %v7251
        %7253 = vmatmul.f32.gmra.mxu0 %v7159
        %v7254 = vpop.f32.mrf.mxu0
        %v7255 = vadd.f32 0.0, %v7254
        %7256 = vmatmul.f32.gmra.mxu0 %v7160
        %v7257 = vpop.f32.mrf.mxu0
        %v7258 = vadd.f32 0.0, %v7257
        %7259 = vmatmul.f32.gmra.mxu0 %v7161
        %v7260 = vpop.f32.mrf.mxu0
        %v7261 = vadd.f32 0.0, %v7260
        %7262 = vmatmul.f32.gmra.mxu0 %v7162
        %v7263 = vpop.f32.mrf.mxu0
        %v7264 = vadd.f32 0.0, %v7263
        %7265 = vmatmul.f32.gmra.mxu0 %v7163
        %v7266 = vpop.f32.mrf.mxu0
        %v7267 = vadd.f32 0.0, %v7266
        %7268 = vmatmul.f32.gmra.mxu0 %v7164
        %v7269 = vpop.f32.mrf.mxu0
        %v7270 = vadd.f32 0.0, %v7269
        %7271 = vmatmul.f32.gmra.mxu0 %v7165
        %v7272 = vpop.f32.mrf.mxu0
        %v7273 = vadd.f32 0.0, %v7272
        %7274 = vmatmul.f32.gmra.mxu0 %v7166
        %v7275 = vpop.f32.mrf.mxu0
        %v7276 = vadd.f32 0.0, %v7275
        %7277 = vmatmul.f32.gmra.mxu0 %v7167
        %v7278 = vpop.f32.mrf.mxu0
        %v7279 = vadd.f32 0.0, %v7278
        %7280 = vmatmul.f32.gmra.mxu0 %v7168
        %v7281 = vpop.f32.mrf.mxu0
        %v7282 = vadd.f32 0.0, %v7281
        %7283 = vmatmul.f32.gmra.mxu0 %v7169
        %v7284 = vpop.f32.mrf.mxu0
        %v7285 = vadd.f32 0.0, %v7284
        %7286 = vmatmul.f32.gmra.mxu0 %v7170
        %v7287 = vpop.f32.mrf.mxu0
        %v7288 = vadd.f32 0.0, %v7287
        %7289 = vmatmul.f32.gmra.mxu0 %v7171
        %v7290 = vpop.f32.mrf.mxu0
        %v7291 = vadd.f32 0.0, %v7290
        %7292 = vmatmul.f32.gmra.mxu0 %v7172
        %v7293 = vpop.f32.mrf.mxu0
        %v7294 = vadd.f32 0.0, %v7293
        %7295 = vmatmul.f32.gmra.mxu0 %v7173
        %v7296 = vpop.f32.mrf.mxu0
        %v7297 = vadd.f32 0.0, %v7296
        %7298 = vmatmul.f32.gmra.mxu0 %v7174
        %v7299 = vpop.f32.mrf.mxu0
        %v7300 = vadd.f32 0.0, %v7299
        %7301 = vmatmul.f32.gmra.mxu0 %v7175
        %v7302 = vpop.f32.mrf.mxu0
        %v7303 = vadd.f32 0.0, %v7302
        %7304 = vmatmul.f32.gmra.mxu0 %v7176
        %v7305 = vpop.f32.mrf.mxu0
        %v7306 = vadd.f32 0.0, %v7305
        %7307 = vmatmul.f32.gmra.mxu0 %v7177
        %v7308 = vpop.f32.mrf.mxu0
        %v7309 = vadd.f32 0.0, %v7308
        %7310 = vmatmul.f32.gmra.mxu0 %v7178
        %v7311 = vpop.f32.mrf.mxu0
        %v7312 = vadd.f32 0.0, %v7311
        %7313 = vmatmul.f32.gmra.mxu0 %v7179
        %v7314 = vpop.f32.mrf.mxu0
        %v7315 = vadd.f32 0.0, %v7314
        %7316 = vmatmul.f32.gmra.mxu0 %v7180
        %v7317 = vpop.f32.mrf.mxu0
        %v7318 = vadd.f32 0.0, %v7317
        %7319 = vmatmul.f32.gmra.mxu0 %v7181
        %v7320 = vpop.f32.mrf.mxu0
        %v7321 = vadd.f32 0.0, %v7320
        %7322 = vmatmul.f32.gmra.mxu0 %v7182
        %v7323 = vpop.f32.mrf.mxu0
        %v7324 = vadd.f32 0.0, %v7323
        %7325 = vmatmul.f32.gmra.mxu0 %v7183
        %v7326 = vpop.f32.mrf.mxu0
        %v7327 = vadd.f32 0.0, %v7326
        %7328 = vmatmul.f32.gmra.mxu0 %v7184
        %v7329 = vpop.f32.mrf.mxu0
        %v7330 = vadd.f32 0.0, %v7329
        %7331 = vmatmul.f32.gmra.mxu0 %v7185
        %v7332 = vpop.f32.mrf.mxu0
        %v7333 = vadd.f32 0.0, %v7332
        %7334 = vmatmul.f32.gmra.mxu0 %v7186
        %v7335 = vpop.f32.mrf.mxu0
        %v7336 = vadd.f32 0.0, %v7335
        %7337 = vmatmul.f32.gmra.mxu0 %v7187
        %v7338 = vpop.f32.mrf.mxu0
        %v7339 = vadd.f32 0.0, %v7338
        %7340 = vmatmul.f32.gmra.mxu0 %v7188
        %v7341 = vpop.f32.mrf.mxu0
        %v7342 = vadd.f32 0.0, %v7341
        %7343 = vmatmul.f32.gmra.mxu0 %v7189
        %v7344 = vpop.f32.mrf.mxu0
        %v7345 = vadd.f32 0.0, %v7344
        %7346 = vdwg.mxu0
        %v7347 = vadd.f32 %v7108, %v7225
        %v7348 = vadd.f32 %v7109, %v7228
        %v7349 = vadd.f32 %v7110, %v7231
        %v7350 = vadd.f32 %v7111, %v7234
        %v7351 = vadd.f32 %v7112, %v7237
        %v7352 = vadd.f32 %v7113, %v7240
        %v7353 = vadd.f32 %v7114, %v7243
        %v7354 = vadd.f32 %v7115, %v7246
        %v7355 = vadd.f32 %v7116, %v7249
        %v7356 = vadd.f32 %v7117, %v7252
        %v7357 = vadd.f32 %v7118, %v7255
        %v7358 = vadd.f32 %v7119, %v7258
        %v7359 = vadd.f32 %v7120, %v7261
        %v7360 = vadd.f32 %v7121, %v7264
        %v7361 = vadd.f32 %v7122, %v7267
        %v7362 = vadd.f32 %v7123, %v7270
        %v7363 = vadd.f32 %v7124, %v7273
        %v7364 = vadd.f32 %v7125, %v7276
        %v7365 = vadd.f32 %v7126, %v7279
        %v7366 = vadd.f32 %v7127, %v7282
        %v7367 = vadd.f32 %v7128, %v7285
        %v7368 = vadd.f32 %v7129, %v7288
        %v7369 = vadd.f32 %v7130, %v7291
        %v7370 = vadd.f32 %v7131, %v7294
        %v7371 = vadd.f32 %v7132, %v7297
        %v7372 = vadd.f32 %v7133, %v7300
        %v7373 = vadd.f32 %v7134, %v7303
        %v7374 = vadd.f32 %v7135, %v7306
        %v7375 = vadd.f32 %v7136, %v7309
        %v7376 = vadd.f32 %v7137, %v7312
        %v7377 = vadd.f32 %v7138, %v7315
        %v7378 = vadd.f32 %v7139, %v7318
        %v7379 = vadd.f32 %v7140, %v7321
        %v7380 = vadd.f32 %v7141, %v7324
        %v7381 = vadd.f32 %v7142, %v7327
        %v7382 = vadd.f32 %v7143, %v7330
        %v7383 = vadd.f32 %v7144, %v7333
        %v7384 = vadd.f32 %v7145, %v7336
        %v7385 = vadd.f32 %v7146, %v7339
        %v7386 = vadd.f32 %v7147, %v7342
        %v7387 = vadd.f32 %v7148, %v7345
        %v7388 = vld [vmem:[%s7] sm:$0x1]
        %v7390 = vperm.slane %v7388, 0
        %v7392 = vadd.f32 %v7347, %v7390
        %v7393 = vadd.f32 %v7348, %v7390
        %v7394 = vadd.f32 %v7349, %v7390
        %v7395 = vadd.f32 %v7350, %v7390
        %v7396 = vadd.f32 %v7351, %v7390
        %v7397 = vadd.f32 %v7352, %v7390
        %v7398 = vadd.f32 %v7353, %v7390
        %v7399 = vadd.f32 %v7354, %v7390
        %v7400 = vadd.f32 %v7355, %v7390
        %v7401 = vadd.f32 %v7356, %v7390
        %v7402 = vadd.f32 %v7357, %v7390
        %v7403 = vadd.f32 %v7358, %v7390
        %v7404 = vadd.f32 %v7359, %v7390
        %v7405 = vadd.f32 %v7360, %v7390
        %v7406 = vadd.f32 %v7361, %v7390
        %v7407 = vadd.f32 %v7362, %v7390
        %v7408 = vadd.f32 %v7363, %v7390
        %v7409 = vadd.f32 %v7364, %v7390
        %v7410 = vadd.f32 %v7365, %v7390
        %v7411 = vadd.f32 %v7366, %v7390
        %v7412 = vadd.f32 %v7367, %v7390
        %v7413 = vadd.f32 %v7368, %v7390
        %v7414 = vadd.f32 %v7369, %v7390
        %v7415 = vadd.f32 %v7370, %v7390
        %v7416 = vadd.f32 %v7371, %v7390
        %v7417 = vadd.f32 %v7372, %v7390
        %v7418 = vadd.f32 %v7373, %v7390
        %v7419 = vadd.f32 %v7374, %v7390
        %v7420 = vadd.f32 %v7375, %v7390
        %v7421 = vadd.f32 %v7376, %v7390
        %v7422 = vadd.f32 %v7377, %v7390
        %v7423 = vadd.f32 %v7378, %v7390
        %v7424 = vadd.f32 %v7379, %v7390
        %v7425 = vadd.f32 %v7380, %v7390
        %v7426 = vadd.f32 %v7381, %v7390
        %v7427 = vadd.f32 %v7382, %v7390
        %v7428 = vadd.f32 %v7383, %v7390
        %v7429 = vadd.f32 %v7384, %v7390
        %v7430 = vadd.f32 %v7385, %v7390
        %v7431 = vadd.f32 %v7386, %v7390
        %v7432 = vadd.f32 %v7387, %v7390
        %v7433 = vld [vmem:[%s8] sm:$0x1]
        %v7434 = vld [vmem:[%s9] sm:$0x1]
        %v7435 = vmul.f32 %v7392, %v3678
        %v7436 = vmul.f32 %v7393, %v3683
        %v7437 = vmul.f32 %v7394, %v3688
        %v7438 = vmul.f32 %v7395, %v3693
        %v7439 = vmul.f32 %v7396, %v3698
        %v7440 = vmul.f32 %v7397, %v3703
        %v7441 = vmul.f32 %v7398, %v3708
        %v7442 = vmul.f32 %v7399, %v3713
        %v7443 = vmul.f32 %v7400, %v3718
        %v7444 = vmul.f32 %v7401, %v3723
        %v7445 = vmul.f32 %v7402, %v3728
        %v7446 = vmul.f32 %v7403, %v3733
        %v7447 = vmul.f32 %v7404, %v3738
        %v7448 = vmul.f32 %v7405, %v3743
        %v7449 = vmul.f32 %v7406, %v3748
        %v7450 = vmul.f32 %v7407, %v3753
        %v7451 = vmul.f32 %v7408, %v3758
        %v7452 = vmul.f32 %v7409, %v3763
        %v7453 = vmul.f32 %v7410, %v3768
        %v7454 = vmul.f32 %v7411, %v3773
        %v7455 = vmul.f32 %v7412, %v3778
        %v7456 = vmul.f32 %v7413, %v3783
        %v7457 = vmul.f32 %v7414, %v3788
        %v7458 = vmul.f32 %v7415, %v3793
        %v7459 = vmul.f32 %v7416, %v3798
        %v7460 = vmul.f32 %v7417, %v3803
        %v7461 = vmul.f32 %v7418, %v3808
        %v7462 = vmul.f32 %v7419, %v3813
        %v7463 = vmul.f32 %v7420, %v3818
        %v7464 = vmul.f32 %v7421, %v3823
        %v7465 = vmul.f32 %v7422, %v3828
        %v7466 = vmul.f32 %v7423, %v3833
        %v7467 = vmul.f32 %v7424, %v3838
        %v7468 = vmul.f32 %v7425, %v3843
        %v7469 = vmul.f32 %v7426, %v3848
        %v7470 = vmul.f32 %v7427, %v3853
        %v7471 = vmul.f32 %v7428, %v3858
        %v7472 = vmul.f32 %v7429, %v3863
        %v7473 = vmul.f32 %v7430, %v3868
        %v7474 = vmul.f32 %v7431, %v3873
        %v7475 = vmul.f32 %v7432, %v3878
        %v7476 = vadd.f32 %v7435, %v7436
        %v7477 = vadd.f32 %v7476, %v7437
        %v7478 = vadd.f32 %v7477, %v7438
        %v7479 = vadd.f32 %v7478, %v7439
        %v7480 = vadd.f32 %v7479, %v7440
        %v7481 = vadd.f32 %v7480, %v7441
        %v7482 = vadd.f32 %v7481, %v7442
        %v7483 = vadd.f32 %v7482, %v7443
        %v7484 = vadd.f32 %v7483, %v7444
        %v7485 = vadd.f32 %v7484, %v7445
        %v7486 = vadd.f32 %v7485, %v7446
        %v7487 = vadd.f32 %v7486, %v7447
        %v7488 = vadd.f32 %v7487, %v7448
        %v7489 = vadd.f32 %v7488, %v7449
        %v7490 = vadd.f32 %v7489, %v7450
        %v7491 = vadd.f32 %v7490, %v7451
        %v7492 = vadd.f32 %v7491, %v7452
        %v7493 = vadd.f32 %v7492, %v7453
        %v7494 = vadd.f32 %v7493, %v7454
        %v7495 = vadd.f32 %v7494, %v7455
        %v7496 = vadd.f32 %v7495, %v7456
        %v7497 = vadd.f32 %v7496, %v7457
        %v7498 = vadd.f32 %v7497, %v7458
        %v7499 = vadd.f32 %v7498, %v7459
        %v7500 = vadd.f32 %v7499, %v7460
        %v7501 = vadd.f32 %v7500, %v7461
        %v7502 = vadd.f32 %v7501, %v7462
        %v7503 = vadd.f32 %v7502, %v7463
        %v7504 = vadd.f32 %v7503, %v7464
        %v7505 = vadd.f32 %v7504, %v7465
        %v7506 = vadd.f32 %v7505, %v7466
        %v7507 = vadd.f32 %v7506, %v7467
        %v7508 = vadd.f32 %v7507, %v7468
        %v7509 = vadd.f32 %v7508, %v7469
        %v7510 = vadd.f32 %v7509, %v7470
        %v7511 = vadd.f32 %v7510, %v7471
        %v7512 = vadd.f32 %v7511, %v7472
        %v7513 = vadd.f32 %v7512, %v7473
        %v7514 = vadd.f32 %v7513, %v7474
        %v7515 = vsel %vm768, %v7475, 0.0
        %v7516 = vadd.f32 %v7514, %v7515
        %v7517 = vrot.slane %v7516, 4
        %v7518 = vadd.f32 %v7516, %v7517
        %v7519 = vrot.slane %v7518, 2
        %v7520 = vadd.f32 %v7518, %v7519
        %v7521 = vrot.slane %v7520, 1
        %v7522 = vadd.f32 %v7520, %v7521
        %v7523 = vmul.f32 %v7522, 0.00390625
        %7524 = vmatpush.msra.mxu0 %v558
        %7525 = vmatpush.msra.mxu0 %v557
        %7526 = vmatpush.msra.mxu0 %v556
        %7527 = vmatpush.msra.mxu0 %v555
        %7528 = vmatpush.msra.mxu0 %v554
        %7529 = vmatpush.msra.mxu0 %v553
        %7530 = vmatpush.msra.mxu0 %v552
        %7531 = vmatpush.msra.mxu0 %v551
        %7532 = vmatpush.msra.mxu0 %v550
        %7533 = vmatpush.msra.mxu0 %v549
        %7534 = vmatpush.msra.mxu0 %v548
        %7535 = vmatpush.msra.mxu0 %v547
        %7536 = vmatpush.msra.mxu0 %v546
        %7537 = vmatpush.msra.mxu0 %v545
        %7538 = vmatpush.msra.mxu0 %v544
        %7539 = vmatpush.msra.mxu0 %v543
        %7540 = vmatmul.f32.gmra.mxu0 %v7523
        %v7541 = vpop.f32.mrf.mxu0
        %v7542 = vadd.f32 0.0, %v7541
        %7543 = vdwg.mxu0
        %v7544 = vperm.slane %v7542, 0
        %v7545 = vsub.f32 %v7392, %v7544
        %v7546 = vsub.f32 %v7393, %v7544
        %v7547 = vsub.f32 %v7394, %v7544
        %v7548 = vsub.f32 %v7395, %v7544
        %v7549 = vsub.f32 %v7396, %v7544
        %v7550 = vsub.f32 %v7397, %v7544
        %v7551 = vsub.f32 %v7398, %v7544
        %v7552 = vsub.f32 %v7399, %v7544
        %v7553 = vsub.f32 %v7400, %v7544
        %v7554 = vsub.f32 %v7401, %v7544
        %v7555 = vsub.f32 %v7402, %v7544
        %v7556 = vsub.f32 %v7403, %v7544
        %v7557 = vsub.f32 %v7404, %v7544
        %v7558 = vsub.f32 %v7405, %v7544
        %v7559 = vsub.f32 %v7406, %v7544
        %v7560 = vsub.f32 %v7407, %v7544
        %v7561 = vsub.f32 %v7408, %v7544
        %v7562 = vsub.f32 %v7409, %v7544
        %v7563 = vsub.f32 %v7410, %v7544
        %v7564 = vsub.f32 %v7411, %v7544
        %v7565 = vsub.f32 %v7412, %v7544
        %v7566 = vsub.f32 %v7413, %v7544
        %v7567 = vsub.f32 %v7414, %v7544
        %v7568 = vsub.f32 %v7415, %v7544
        %v7569 = vsub.f32 %v7416, %v7544
        %v7570 = vsub.f32 %v7417, %v7544
        %v7571 = vsub.f32 %v7418, %v7544
        %v7572 = vsub.f32 %v7419, %v7544
        %v7573 = vsub.f32 %v7420, %v7544
        %v7574 = vsub.f32 %v7421, %v7544
        %v7575 = vsub.f32 %v7422, %v7544
        %v7576 = vsub.f32 %v7423, %v7544
        %v7577 = vsub.f32 %v7424, %v7544
        %v7578 = vsub.f32 %v7425, %v7544
        %v7579 = vsub.f32 %v7426, %v7544
        %v7580 = vsub.f32 %v7427, %v7544
        %v7581 = vsub.f32 %v7428, %v7544
        %v7582 = vsub.f32 %v7429, %v7544
        %v7583 = vsub.f32 %v7430, %v7544
        %v7584 = vsub.f32 %v7431, %v7544
        %v7585 = vsub.f32 %v7432, %v7544
        %v7586 = vmul.f32 %v7545, %v3678
        %v7587 = vmul.f32 %v7546, %v3683
        %v7588 = vmul.f32 %v7547, %v3688
        %v7589 = vmul.f32 %v7548, %v3693
        %v7590 = vmul.f32 %v7549, %v3698
        %v7591 = vmul.f32 %v7550, %v3703
        %v7592 = vmul.f32 %v7551, %v3708
        %v7593 = vmul.f32 %v7552, %v3713
        %v7594 = vmul.f32 %v7553, %v3718
        %v7595 = vmul.f32 %v7554, %v3723
        %v7596 = vmul.f32 %v7555, %v3728
        %v7597 = vmul.f32 %v7556, %v3733
        %v7598 = vmul.f32 %v7557, %v3738
        %v7599 = vmul.f32 %v7558, %v3743
        %v7600 = vmul.f32 %v7559, %v3748
        %v7601 = vmul.f32 %v7560, %v3753
        %v7602 = vmul.f32 %v7561, %v3758
        %v7603 = vmul.f32 %v7562, %v3763
        %v7604 = vmul.f32 %v7563, %v3768
        %v7605 = vmul.f32 %v7564, %v3773
        %v7606 = vmul.f32 %v7565, %v3778
        %v7607 = vmul.f32 %v7566, %v3783
        %v7608 = vmul.f32 %v7567, %v3788
        %v7609 = vmul.f32 %v7568, %v3793
        %v7610 = vmul.f32 %v7569, %v3798
        %v7611 = vmul.f32 %v7570, %v3803
        %v7612 = vmul.f32 %v7571, %v3808
        %v7613 = vmul.f32 %v7572, %v3813
        %v7614 = vmul.f32 %v7573, %v3818
        %v7615 = vmul.f32 %v7574, %v3823
        %v7616 = vmul.f32 %v7575, %v3828
        %v7617 = vmul.f32 %v7576, %v3833
        %v7618 = vmul.f32 %v7577, %v3838
        %v7619 = vmul.f32 %v7578, %v3843
        %v7620 = vmul.f32 %v7579, %v3848
        %v7621 = vmul.f32 %v7580, %v3853
        %v7622 = vmul.f32 %v7581, %v3858
        %v7623 = vmul.f32 %v7582, %v3863
        %v7624 = vmul.f32 %v7583, %v3868
        %v7625 = vmul.f32 %v7584, %v3873
        %v7626 = vmul.f32 %v7585, %v3878
        %v7627 = vmul.f32 %v7586, %v7586
        %v7628 = vmul.f32 %v7587, %v7587
        %v7629 = vmul.f32 %v7588, %v7588
        %v7630 = vmul.f32 %v7589, %v7589
        %v7631 = vmul.f32 %v7590, %v7590
        %v7632 = vmul.f32 %v7591, %v7591
        %v7633 = vmul.f32 %v7592, %v7592
        %v7634 = vmul.f32 %v7593, %v7593
        %v7635 = vmul.f32 %v7594, %v7594
        %v7636 = vmul.f32 %v7595, %v7595
        %v7637 = vmul.f32 %v7596, %v7596
        %v7638 = vmul.f32 %v7597, %v7597
        %v7639 = vmul.f32 %v7598, %v7598
        %v7640 = vmul.f32 %v7599, %v7599
        %v7641 = vmul.f32 %v7600, %v7600
        %v7642 = vmul.f32 %v7601, %v7601
        %v7643 = vmul.f32 %v7602, %v7602
        %v7644 = vmul.f32 %v7603, %v7603
        %v7645 = vmul.f32 %v7604, %v7604
        %v7646 = vmul.f32 %v7605, %v7605
        %v7647 = vmul.f32 %v7606, %v7606
        %v7648 = vmul.f32 %v7607, %v7607
        %v7649 = vmul.f32 %v7608, %v7608
        %v7650 = vmul.f32 %v7609, %v7609
        %v7651 = vmul.f32 %v7610, %v7610
        %v7652 = vmul.f32 %v7611, %v7611
        %v7653 = vmul.f32 %v7612, %v7612
        %v7654 = vmul.f32 %v7613, %v7613
        %v7655 = vmul.f32 %v7614, %v7614
        %v7656 = vmul.f32 %v7615, %v7615
        %v7657 = vmul.f32 %v7616, %v7616
        %v7658 = vmul.f32 %v7617, %v7617
        %v7659 = vmul.f32 %v7618, %v7618
        %v7660 = vmul.f32 %v7619, %v7619
        %v7661 = vmul.f32 %v7620, %v7620
        %v7662 = vmul.f32 %v7621, %v7621
        %v7663 = vmul.f32 %v7622, %v7622
        %v7664 = vmul.f32 %v7623, %v7623
        %v7665 = vmul.f32 %v7624, %v7624
        %v7666 = vmul.f32 %v7625, %v7625
        %v7667 = vmul.f32 %v7626, %v7626
        %v7668 = vadd.f32 %v7627, %v7628
        %v7669 = vadd.f32 %v7668, %v7629
        %v7670 = vadd.f32 %v7669, %v7630
        %v7671 = vadd.f32 %v7670, %v7631
        %v7672 = vadd.f32 %v7671, %v7632
        %v7673 = vadd.f32 %v7672, %v7633
        %v7674 = vadd.f32 %v7673, %v7634
        %v7675 = vadd.f32 %v7674, %v7635
        %v7676 = vadd.f32 %v7675, %v7636
        %v7677 = vadd.f32 %v7676, %v7637
        %v7678 = vadd.f32 %v7677, %v7638
        %v7679 = vadd.f32 %v7678, %v7639
        %v7680 = vadd.f32 %v7679, %v7640
        %v7681 = vadd.f32 %v7680, %v7641
        %v7682 = vadd.f32 %v7681, %v7642
        %v7683 = vadd.f32 %v7682, %v7643
        %v7684 = vadd.f32 %v7683, %v7644
        %v7685 = vadd.f32 %v7684, %v7645
        %v7686 = vadd.f32 %v7685, %v7646
        %v7687 = vadd.f32 %v7686, %v7647
        %v7688 = vadd.f32 %v7687, %v7648
        %v7689 = vadd.f32 %v7688, %v7649
        %v7690 = vadd.f32 %v7689, %v7650
        %v7691 = vadd.f32 %v7690, %v7651
        %v7692 = vadd.f32 %v7691, %v7652
        %v7693 = vadd.f32 %v7692, %v7653
        %v7694 = vadd.f32 %v7693, %v7654
        %v7695 = vadd.f32 %v7694, %v7655
        %v7696 = vadd.f32 %v7695, %v7656
        %v7697 = vadd.f32 %v7696, %v7657
        %v7698 = vadd.f32 %v7697, %v7658
        %v7699 = vadd.f32 %v7698, %v7659
        %v7700 = vadd.f32 %v7699, %v7660
        %v7701 = vadd.f32 %v7700, %v7661
        %v7702 = vadd.f32 %v7701, %v7662
        %v7703 = vadd.f32 %v7702, %v7663
        %v7704 = vadd.f32 %v7703, %v7664
        %v7705 = vadd.f32 %v7704, %v7665
        %v7706 = vadd.f32 %v7705, %v7666
        %v7707 = vsel %vm768, %v7667, 0.0
        %v7708 = vadd.f32 %v7706, %v7707
        %v7709 = vrot.slane %v7708, 4
        %v7710 = vadd.f32 %v7708, %v7709
        %v7711 = vrot.slane %v7710, 2
        %v7712 = vadd.f32 %v7710, %v7711
        %v7713 = vrot.slane %v7712, 1
        %v7714 = vadd.f32 %v7712, %v7713
        %v7715 = vmul.f32 %v7714, 0.00390625
        %7716 = vmatpush.msra.mxu0 %v558
        %7717 = vmatpush.msra.mxu0 %v557
        %7718 = vmatpush.msra.mxu0 %v556
        %7719 = vmatpush.msra.mxu0 %v555
        %7720 = vmatpush.msra.mxu0 %v554
        %7721 = vmatpush.msra.mxu0 %v553
        %7722 = vmatpush.msra.mxu0 %v552
        %7723 = vmatpush.msra.mxu0 %v551
        %7724 = vmatpush.msra.mxu0 %v550
        %7725 = vmatpush.msra.mxu0 %v549
        %7726 = vmatpush.msra.mxu0 %v548
        %7727 = vmatpush.msra.mxu0 %v547
        %7728 = vmatpush.msra.mxu0 %v546
        %7729 = vmatpush.msra.mxu0 %v545
        %7730 = vmatpush.msra.mxu0 %v544
        %7731 = vmatpush.msra.mxu0 %v543
        %7732 = vmatmul.f32.gmra.mxu0 %v7715
        %v7733 = vpop.f32.mrf.mxu0
        %v7734 = vadd.f32 1e-05, %v7733
        %7735 = vdwg.mxu0
        %v7736 = vrsqrt.pop %v7734
        %v7737 = vmul.f32 %v7736, %v7734
        %v7738 = vmul.f32 %v7737, %v7736
        %v7739 = vmul.f32 0.5, %v7738
        %v7740 = vsub.f32 1.5, %v7739
        %v7741 = vmul.f32 %v7736, %v7740
        %vm7742 = vweird.f32 %v7734
        %vm7743 = vweird.f32 %v7736
        %vm7744 = vmor %vm7742, %vm7743
        %v7745 = vsel %vm7744, %v7736, %v7741
        %v7746 = vperm.slane %v7745, 0
        %v7747 = vmul.f32 %v7545, %v7746
        %v7748 = vmul.f32 %v7546, %v7746
        %v7749 = vmul.f32 %v7547, %v7746
        %v7750 = vmul.f32 %v7548, %v7746
        %v7751 = vmul.f32 %v7549, %v7746
        %v7752 = vmul.f32 %v7550, %v7746
        %v7753 = vmul.f32 %v7551, %v7746
        %v7754 = vmul.f32 %v7552, %v7746
        %v7755 = vmul.f32 %v7553, %v7746
        %v7756 = vmul.f32 %v7554, %v7746
        %v7757 = vmul.f32 %v7555, %v7746
        %v7758 = vmul.f32 %v7556, %v7746
        %v7759 = vmul.f32 %v7557, %v7746
        %v7760 = vmul.f32 %v7558, %v7746
        %v7761 = vmul.f32 %v7559, %v7746
        %v7762 = vmul.f32 %v7560, %v7746
        %v7763 = vmul.f32 %v7561, %v7746
        %v7764 = vmul.f32 %v7562, %v7746
        %v7765 = vmul.f32 %v7563, %v7746
        %v7766 = vmul.f32 %v7564, %v7746
        %v7767 = vmul.f32 %v7565, %v7746
        %v7768 = vmul.f32 %v7566, %v7746
        %v7769 = vmul.f32 %v7567, %v7746
        %v7770 = vmul.f32 %v7568, %v7746
        %v7771 = vmul.f32 %v7569, %v7746
        %v7772 = vmul.f32 %v7570, %v7746
        %v7773 = vmul.f32 %v7571, %v7746
        %v7774 = vmul.f32 %v7572, %v7746
        %v7775 = vmul.f32 %v7573, %v7746
        %v7776 = vmul.f32 %v7574, %v7746
        %v7777 = vmul.f32 %v7575, %v7746
        %v7778 = vmul.f32 %v7576, %v7746
        %v7779 = vmul.f32 %v7577, %v7746
        %v7780 = vmul.f32 %v7578, %v7746
        %v7781 = vmul.f32 %v7579, %v7746
        %v7782 = vmul.f32 %v7580, %v7746
        %v7783 = vmul.f32 %v7581, %v7746
        %v7784 = vmul.f32 %v7582, %v7746
        %v7785 = vmul.f32 %v7583, %v7746
        %v7786 = vmul.f32 %v7584, %v7746
        %v7787 = vmul.f32 %v7585, %v7746
        %v7789 = vperm.slane %v7433, 0
        %v7791 = vmul.f32 %v7747, %v7789
        %v7792 = vmul.f32 %v7748, %v7789
        %v7793 = vmul.f32 %v7749, %v7789
        %v7794 = vmul.f32 %v7750, %v7789
        %v7795 = vmul.f32 %v7751, %v7789
        %v7796 = vmul.f32 %v7752, %v7789
        %v7797 = vmul.f32 %v7753, %v7789
        %v7798 = vmul.f32 %v7754, %v7789
        %v7799 = vmul.f32 %v7755, %v7789
        %v7800 = vmul.f32 %v7756, %v7789
        %v7801 = vmul.f32 %v7757, %v7789
        %v7802 = vmul.f32 %v7758, %v7789
        %v7803 = vmul.f32 %v7759, %v7789
        %v7804 = vmul.f32 %v7760, %v7789
        %v7805 = vmul.f32 %v7761, %v7789
        %v7806 = vmul.f32 %v7762, %v7789
        %v7807 = vmul.f32 %v7763, %v7789
        %v7808 = vmul.f32 %v7764, %v7789
        %v7809 = vmul.f32 %v7765, %v7789
        %v7810 = vmul.f32 %v7766, %v7789
        %v7811 = vmul.f32 %v7767, %v7789
        %v7812 = vmul.f32 %v7768, %v7789
        %v7813 = vmul.f32 %v7769, %v7789
        %v7814 = vmul.f32 %v7770, %v7789
        %v7815 = vmul.f32 %v7771, %v7789
        %v7816 = vmul.f32 %v7772, %v7789
        %v7817 = vmul.f32 %v7773, %v7789
        %v7818 = vmul.f32 %v7774, %v7789
        %v7819 = vmul.f32 %v7775, %v7789
        %v7820 = vmul.f32 %v7776, %v7789
        %v7821 = vmul.f32 %v7777, %v7789
        %v7822 = vmul.f32 %v7778, %v7789
        %v7823 = vmul.f32 %v7779, %v7789
        %v7824 = vmul.f32 %v7780, %v7789
        %v7825 = vmul.f32 %v7781, %v7789
        %v7826 = vmul.f32 %v7782, %v7789
        %v7827 = vmul.f32 %v7783, %v7789
        %v7828 = vmul.f32 %v7784, %v7789
        %v7829 = vmul.f32 %v7785, %v7789
        %v7830 = vmul.f32 %v7786, %v7789
        %v7831 = vmul.f32 %v7787, %v7789
        %v7833 = vperm.slane %v7434, 0
        %v7835 = vadd.f32 %v7791, %v7833
        %v7836 = vadd.f32 %v7792, %v7833
        %v7837 = vadd.f32 %v7793, %v7833
        %v7838 = vadd.f32 %v7794, %v7833
        %v7839 = vadd.f32 %v7795, %v7833
        %v7840 = vadd.f32 %v7796, %v7833
        %v7841 = vadd.f32 %v7797, %v7833
        %v7842 = vadd.f32 %v7798, %v7833
        %v7843 = vadd.f32 %v7799, %v7833
        %v7844 = vadd.f32 %v7800, %v7833
        %v7845 = vadd.f32 %v7801, %v7833
        %v7846 = vadd.f32 %v7802, %v7833
        %v7847 = vadd.f32 %v7803, %v7833
        %v7848 = vadd.f32 %v7804, %v7833
        %v7849 = vadd.f32 %v7805, %v7833
        %v7850 = vadd.f32 %v7806, %v7833
        %v7851 = vadd.f32 %v7807, %v7833
        %v7852 = vadd.f32 %v7808, %v7833
        %v7853 = vadd.f32 %v7809, %v7833
        %v7854 = vadd.f32 %v7810, %v7833
        %v7855 = vadd.f32 %v7811, %v7833
        %v7856 = vadd.f32 %v7812, %v7833
        %v7857 = vadd.f32 %v7813, %v7833
        %v7858 = vadd.f32 %v7814, %v7833
        %v7859 = vadd.f32 %v7815, %v7833
        %v7860 = vadd.f32 %v7816, %v7833
        %v7861 = vadd.f32 %v7817, %v7833
        %v7862 = vadd.f32 %v7818, %v7833
        %v7863 = vadd.f32 %v7819, %v7833
        %v7864 = vadd.f32 %v7820, %v7833
        %v7865 = vadd.f32 %v7821, %v7833
        %v7866 = vadd.f32 %v7822, %v7833
        %v7867 = vadd.f32 %v7823, %v7833
        %v7868 = vadd.f32 %v7824, %v7833
        %v7869 = vadd.f32 %v7825, %v7833
        %v7870 = vadd.f32 %v7826, %v7833
        %v7871 = vadd.f32 %v7827, %v7833
        %v7872 = vadd.f32 %v7828, %v7833
        %v7873 = vadd.f32 %v7829, %v7833
        %v7874 = vadd.f32 %v7830, %v7833
        %v7875 = vadd.f32 %v7831, %v7833
        %v7876 = vxor.u32 %v7835, 2147483648
        %v7877 = vxor.u32 %v7836, 2147483648
        %v7878 = vxor.u32 %v7837, 2147483648
        %v7879 = vxor.u32 %v7838, 2147483648
        %v7880 = vxor.u32 %v7839, 2147483648
        %v7881 = vxor.u32 %v7840, 2147483648
        %v7882 = vxor.u32 %v7841, 2147483648
        %v7883 = vxor.u32 %v7842, 2147483648
        %v7884 = vxor.u32 %v7843, 2147483648
        %v7885 = vxor.u32 %v7844, 2147483648
        %v7886 = vxor.u32 %v7845, 2147483648
        %v7887 = vxor.u32 %v7846, 2147483648
        %v7888 = vxor.u32 %v7847, 2147483648
        %v7889 = vxor.u32 %v7848, 2147483648
        %v7890 = vxor.u32 %v7849, 2147483648
        %v7891 = vxor.u32 %v7850, 2147483648
        %v7892 = vxor.u32 %v7851, 2147483648
        %v7893 = vxor.u32 %v7852, 2147483648
        %v7894 = vxor.u32 %v7853, 2147483648
        %v7895 = vxor.u32 %v7854, 2147483648
        %v7896 = vxor.u32 %v7855, 2147483648
        %v7897 = vxor.u32 %v7856, 2147483648
        %v7898 = vxor.u32 %v7857, 2147483648
        %v7899 = vxor.u32 %v7858, 2147483648
        %v7900 = vxor.u32 %v7859, 2147483648
        %v7901 = vxor.u32 %v7860, 2147483648
        %v7902 = vxor.u32 %v7861, 2147483648
        %v7903 = vxor.u32 %v7862, 2147483648
        %v7904 = vxor.u32 %v7863, 2147483648
        %v7905 = vxor.u32 %v7864, 2147483648
        %v7906 = vxor.u32 %v7865, 2147483648
        %v7907 = vxor.u32 %v7866, 2147483648
        %v7908 = vxor.u32 %v7867, 2147483648
        %v7909 = vxor.u32 %v7868, 2147483648
        %v7910 = vxor.u32 %v7869, 2147483648
        %v7911 = vxor.u32 %v7870, 2147483648
        %v7912 = vxor.u32 %v7871, 2147483648
        %v7913 = vxor.u32 %v7872, 2147483648
        %v7914 = vxor.u32 %v7873, 2147483648
        %v7915 = vxor.u32 %v7874, 2147483648
        %v7916 = vxor.u32 %v7875, 2147483648
        %v7917 = vmul.f32 %v7876, 1.442695
        %v7918 = vpow.pop %v7917
        %v7919 = vmul.f32 %v7877, 1.442695
        %v7920 = vpow.pop %v7919
        %v7921 = vmul.f32 %v7878, 1.442695
        %v7922 = vpow.pop %v7921
        %v7923 = vmul.f32 %v7879, 1.442695
        %v7924 = vpow.pop %v7923
        %v7925 = vmul.f32 %v7880, 1.442695
        %v7926 = vpow.pop %v7925
        %v7927 = vmul.f32 %v7881, 1.442695
        %v7928 = vpow.pop %v7927
        %v7929 = vmul.f32 %v7882, 1.442695
        %v7930 = vpow.pop %v7929
        %v7931 = vmul.f32 %v7883, 1.442695
        %v7932 = vpow.pop %v7931
        %v7933 = vmul.f32 %v7884, 1.442695
        %v7934 = vpow.pop %v7933
        %v7935 = vmul.f32 %v7885, 1.442695
        %v7936 = vpow.pop %v7935
        %v7937 = vmul.f32 %v7886, 1.442695
        %v7938 = vpow.pop %v7937
        %v7939 = vmul.f32 %v7887, 1.442695
        %v7940 = vpow.pop %v7939
        %v7941 = vmul.f32 %v7888, 1.442695
        %v7942 = vpow.pop %v7941
        %v7943 = vmul.f32 %v7889, 1.442695
        %v7944 = vpow.pop %v7943
        %v7945 = vmul.f32 %v7890, 1.442695
        %v7946 = vpow.pop %v7945
        %v7947 = vmul.f32 %v7891, 1.442695
        %v7948 = vpow.pop %v7947
        %v7949 = vmul.f32 %v7892, 1.442695
        %v7950 = vpow.pop %v7949
        %v7951 = vmul.f32 %v7893, 1.442695
        %v7952 = vpow.pop %v7951
        %v7953 = vmul.f32 %v7894, 1.442695
        %v7954 = vpow.pop %v7953
        %v7955 = vmul.f32 %v7895, 1.442695
        %v7956 = vpow.pop %v7955
        %v7957 = vmul.f32 %v7896, 1.442695
        %v7958 = vpow.pop %v7957
        %v7959 = vmul.f32 %v7897, 1.442695
        %v7960 = vpow.pop %v7959
        %v7961 = vmul.f32 %v7898, 1.442695
        %v7962 = vpow.pop %v7961
        %v7963 = vmul.f32 %v7899, 1.442695
        %v7964 = vpow.pop %v7963
        %v7965 = vmul.f32 %v7900, 1.442695
        %v7966 = vpow.pop %v7965
        %v7967 = vmul.f32 %v7901, 1.442695
        %v7968 = vpow.pop %v7967
        %v7969 = vmul.f32 %v7902, 1.442695
        %v7970 = vpow.pop %v7969
        %v7971 = vmul.f32 %v7903, 1.442695
        %v7972 = vpow.pop %v7971
        %v7973 = vmul.f32 %v7904, 1.442695
        %v7974 = vpow.pop %v7973
        %v7975 = vmul.f32 %v7905, 1.442695
        %v7976 = vpow.pop %v7975
        %v7977 = vmul.f32 %v7906, 1.442695
        %v7978 = vpow.pop %v7977
        %v7979 = vmul.f32 %v7907, 1.442695
        %v7980 = vpow.pop %v7979
        %v7981 = vmul.f32 %v7908, 1.442695
        %v7982 = vpow.pop %v7981
        %v7983 = vmul.f32 %v7909, 1.442695
        %v7984 = vpow.pop %v7983
        %v7985 = vmul.f32 %v7910, 1.442695
        %v7986 = vpow.pop %v7985
        %v7987 = vmul.f32 %v7911, 1.442695
        %v7988 = vpow.pop %v7987
        %v7989 = vmul.f32 %v7912, 1.442695
        %v7990 = vpow.pop %v7989
        %v7991 = vmul.f32 %v7913, 1.442695
        %v7992 = vpow.pop %v7991
        %v7993 = vmul.f32 %v7914, 1.442695
        %v7994 = vpow.pop %v7993
        %v7995 = vmul.f32 %v7915, 1.442695
        %v7996 = vpow.pop %v7995
        %v7997 = vmul.f32 %v7916, 1.442695
        %v7998 = vpow.pop %v7997
        %v7999 = vadd.f32 %v7918, 1.0
        %v8000 = vadd.f32 %v7920, 1.0
        %v8001 = vadd.f32 %v7922, 1.0
        %v8002 = vadd.f32 %v7924, 1.0
        %v8003 = vadd.f32 %v7926, 1.0
        %v8004 = vadd.f32 %v7928, 1.0
        %v8005 = vadd.f32 %v7930, 1.0
        %v8006 = vadd.f32 %v7932, 1.0
        %v8007 = vadd.f32 %v7934, 1.0
        %v8008 = vadd.f32 %v7936, 1.0
        %v8009 = vadd.f32 %v7938, 1.0
        %v8010 = vadd.f32 %v7940, 1.0
        %v8011 = vadd.f32 %v7942, 1.0
        %v8012 = vadd.f32 %v7944, 1.0
        %v8013 = vadd.f32 %v7946, 1.0
        %v8014 = vadd.f32 %v7948, 1.0
        %v8015 = vadd.f32 %v7950, 1.0
        %v8016 = vadd.f32 %v7952, 1.0
        %v8017 = vadd.f32 %v7954, 1.0
        %v8018 = vadd.f32 %v7956, 1.0
        %v8019 = vadd.f32 %v7958, 1.0
        %v8020 = vadd.f32 %v7960, 1.0
        %v8021 = vadd.f32 %v7962, 1.0
        %v8022 = vadd.f32 %v7964, 1.0
        %v8023 = vadd.f32 %v7966, 1.0
        %v8024 = vadd.f32 %v7968, 1.0
        %v8025 = vadd.f32 %v7970, 1.0
        %v8026 = vadd.f32 %v7972, 1.0
        %v8027 = vadd.f32 %v7974, 1.0
        %v8028 = vadd.f32 %v7976, 1.0
        %v8029 = vadd.f32 %v7978, 1.0
        %v8030 = vadd.f32 %v7980, 1.0
        %v8031 = vadd.f32 %v7982, 1.0
        %v8032 = vadd.f32 %v7984, 1.0
        %v8033 = vadd.f32 %v7986, 1.0
        %v8034 = vadd.f32 %v7988, 1.0
        %v8035 = vadd.f32 %v7990, 1.0
        %v8036 = vadd.f32 %v7992, 1.0
        %v8037 = vadd.f32 %v7994, 1.0
        %v8038 = vadd.f32 %v7996, 1.0
        %v8039 = vadd.f32 %v7998, 1.0
        %v8040 = vrcp.pop %v7999
        %v8041 = vmul.f32 %v7999, %v8040
        %v8042 = vsub.f32 1.0, %v8041
        %v8043 = vmul.f32 %v8040, %v8042
        %v8044 = vadd.f32 %v8040, %v8043
        %vm8045 = vweird.f32 %v7999
        %vm8046 = vweird.f32 %v8040
        %vm8047 = vmor %vm8045, %vm8046
        %v8048 = vsel %vm8047, %v8040, %v8044
        %v8049 = vand.u32 2147483647, %v7999
        %vm8050 = vcmp.eq.f32.partialorder %v8049, 8.507059e+37
        %v8051 = vand.u32 %v7999, 2147483648
        %v8052 = vor.u32 1.1754944e-38, %v8051
        %v8053 = vsel %vm8050, %v8052, %v8048
        %v8054 = vmul.f32 1.0, %v8053
        %v8055 = vrcp.pop %v8000
        %v8056 = vmul.f32 %v8000, %v8055
        %v8057 = vsub.f32 1.0, %v8056
        %v8058 = vmul.f32 %v8055, %v8057
        %v8059 = vadd.f32 %v8055, %v8058
        %vm8060 = vweird.f32 %v8000
        %vm8061 = vweird.f32 %v8055
        %vm8062 = vmor %vm8060, %vm8061
        %v8063 = vsel %vm8062, %v8055, %v8059
        %v8064 = vand.u32 2147483647, %v8000
        %vm8065 = vcmp.eq.f32.partialorder %v8064, 8.507059e+37
        %v8066 = vand.u32 %v8000, 2147483648
        %v8067 = vor.u32 1.1754944e-38, %v8066
        %v8068 = vsel %vm8065, %v8067, %v8063
        %v8069 = vmul.f32 1.0, %v8068
        %v8070 = vrcp.pop %v8001
        %v8071 = vmul.f32 %v8001, %v8070
        %v8072 = vsub.f32 1.0, %v8071
        %v8073 = vmul.f32 %v8070, %v8072
        %v8074 = vadd.f32 %v8070, %v8073
        %vm8075 = vweird.f32 %v8001
        %vm8076 = vweird.f32 %v8070
        %vm8077 = vmor %vm8075, %vm8076
        %v8078 = vsel %vm8077, %v8070, %v8074
        %v8079 = vand.u32 2147483647, %v8001
        %vm8080 = vcmp.eq.f32.partialorder %v8079, 8.507059e+37
        %v8081 = vand.u32 %v8001, 2147483648
        %v8082 = vor.u32 1.1754944e-38, %v8081
        %v8083 = vsel %vm8080, %v8082, %v8078
        %v8084 = vmul.f32 1.0, %v8083
        %v8085 = vrcp.pop %v8002
        %v8086 = vmul.f32 %v8002, %v8085
        %v8087 = vsub.f32 1.0, %v8086
        %v8088 = vmul.f32 %v8085, %v8087
        %v8089 = vadd.f32 %v8085, %v8088
        %vm8090 = vweird.f32 %v8002
        %vm8091 = vweird.f32 %v8085
        %vm8092 = vmor %vm8090, %vm8091
        %v8093 = vsel %vm8092, %v8085, %v8089
        %v8094 = vand.u32 2147483647, %v8002
        %vm8095 = vcmp.eq.f32.partialorder %v8094, 8.507059e+37
        %v8096 = vand.u32 %v8002, 2147483648
        %v8097 = vor.u32 1.1754944e-38, %v8096
        %v8098 = vsel %vm8095, %v8097, %v8093
        %v8099 = vmul.f32 1.0, %v8098
        %v8100 = vrcp.pop %v8003
        %v8101 = vmul.f32 %v8003, %v8100
        %v8102 = vsub.f32 1.0, %v8101
        %v8103 = vmul.f32 %v8100, %v8102
        %v8104 = vadd.f32 %v8100, %v8103
        %vm8105 = vweird.f32 %v8003
        %vm8106 = vweird.f32 %v8100
        %vm8107 = vmor %vm8105, %vm8106
        %v8108 = vsel %vm8107, %v8100, %v8104
        %v8109 = vand.u32 2147483647, %v8003
        %vm8110 = vcmp.eq.f32.partialorder %v8109, 8.507059e+37
        %v8111 = vand.u32 %v8003, 2147483648
        %v8112 = vor.u32 1.1754944e-38, %v8111
        %v8113 = vsel %vm8110, %v8112, %v8108
        %v8114 = vmul.f32 1.0, %v8113
        %v8115 = vrcp.pop %v8004
        %v8116 = vmul.f32 %v8004, %v8115
        %v8117 = vsub.f32 1.0, %v8116
        %v8118 = vmul.f32 %v8115, %v8117
        %v8119 = vadd.f32 %v8115, %v8118
        %vm8120 = vweird.f32 %v8004
        %vm8121 = vweird.f32 %v8115
        %vm8122 = vmor %vm8120, %vm8121
        %v8123 = vsel %vm8122, %v8115, %v8119
        %v8124 = vand.u32 2147483647, %v8004
        %vm8125 = vcmp.eq.f32.partialorder %v8124, 8.507059e+37
        %v8126 = vand.u32 %v8004, 2147483648
        %v8127 = vor.u32 1.1754944e-38, %v8126
        %v8128 = vsel %vm8125, %v8127, %v8123
        %v8129 = vmul.f32 1.0, %v8128
        %v8130 = vrcp.pop %v8005
        %v8131 = vmul.f32 %v8005, %v8130
        %v8132 = vsub.f32 1.0, %v8131
        %v8133 = vmul.f32 %v8130, %v8132
        %v8134 = vadd.f32 %v8130, %v8133
        %vm8135 = vweird.f32 %v8005
        %vm8136 = vweird.f32 %v8130
        %vm8137 = vmor %vm8135, %vm8136
        %v8138 = vsel %vm8137, %v8130, %v8134
        %v8139 = vand.u32 2147483647, %v8005
        %vm8140 = vcmp.eq.f32.partialorder %v8139, 8.507059e+37
        %v8141 = vand.u32 %v8005, 2147483648
        %v8142 = vor.u32 1.1754944e-38, %v8141
        %v8143 = vsel %vm8140, %v8142, %v8138
        %v8144 = vmul.f32 1.0, %v8143
        %v8145 = vrcp.pop %v8006
        %v8146 = vmul.f32 %v8006, %v8145
        %v8147 = vsub.f32 1.0, %v8146
        %v8148 = vmul.f32 %v8145, %v8147
        %v8149 = vadd.f32 %v8145, %v8148
        %vm8150 = vweird.f32 %v8006
        %vm8151 = vweird.f32 %v8145
        %vm8152 = vmor %vm8150, %vm8151
        %v8153 = vsel %vm8152, %v8145, %v8149
        %v8154 = vand.u32 2147483647, %v8006
        %vm8155 = vcmp.eq.f32.partialorder %v8154, 8.507059e+37
        %v8156 = vand.u32 %v8006, 2147483648
        %v8157 = vor.u32 1.1754944e-38, %v8156
        %v8158 = vsel %vm8155, %v8157, %v8153
        %v8159 = vmul.f32 1.0, %v8158
        %v8160 = vrcp.pop %v8007
        %v8161 = vmul.f32 %v8007, %v8160
        %v8162 = vsub.f32 1.0, %v8161
        %v8163 = vmul.f32 %v8160, %v8162
        %v8164 = vadd.f32 %v8160, %v8163
        %vm8165 = vweird.f32 %v8007
        %vm8166 = vweird.f32 %v8160
        %vm8167 = vmor %vm8165, %vm8166
        %v8168 = vsel %vm8167, %v8160, %v8164
        %v8169 = vand.u32 2147483647, %v8007
        %vm8170 = vcmp.eq.f32.partialorder %v8169, 8.507059e+37
        %v8171 = vand.u32 %v8007, 2147483648
        %v8172 = vor.u32 1.1754944e-38, %v8171
        %v8173 = vsel %vm8170, %v8172, %v8168
        %v8174 = vmul.f32 1.0, %v8173
        %v8175 = vrcp.pop %v8008
        %v8176 = vmul.f32 %v8008, %v8175
        %v8177 = vsub.f32 1.0, %v8176
        %v8178 = vmul.f32 %v8175, %v8177
        %v8179 = vadd.f32 %v8175, %v8178
        %vm8180 = vweird.f32 %v8008
        %vm8181 = vweird.f32 %v8175
        %vm8182 = vmor %vm8180, %vm8181
        %v8183 = vsel %vm8182, %v8175, %v8179
        %v8184 = vand.u32 2147483647, %v8008
        %vm8185 = vcmp.eq.f32.partialorder %v8184, 8.507059e+37
        %v8186 = vand.u32 %v8008, 2147483648
        %v8187 = vor.u32 1.1754944e-38, %v8186
        %v8188 = vsel %vm8185, %v8187, %v8183
        %v8189 = vmul.f32 1.0, %v8188
        %v8190 = vrcp.pop %v8009
        %v8191 = vmul.f32 %v8009, %v8190
        %v8192 = vsub.f32 1.0, %v8191
        %v8193 = vmul.f32 %v8190, %v8192
        %v8194 = vadd.f32 %v8190, %v8193
        %vm8195 = vweird.f32 %v8009
        %vm8196 = vweird.f32 %v8190
        %vm8197 = vmor %vm8195, %vm8196
        %v8198 = vsel %vm8197, %v8190, %v8194
        %v8199 = vand.u32 2147483647, %v8009
        %vm8200 = vcmp.eq.f32.partialorder %v8199, 8.507059e+37
        %v8201 = vand.u32 %v8009, 2147483648
        %v8202 = vor.u32 1.1754944e-38, %v8201
        %v8203 = vsel %vm8200, %v8202, %v8198
        %v8204 = vmul.f32 1.0, %v8203
        %v8205 = vrcp.pop %v8010
        %v8206 = vmul.f32 %v8010, %v8205
        %v8207 = vsub.f32 1.0, %v8206
        %v8208 = vmul.f32 %v8205, %v8207
        %v8209 = vadd.f32 %v8205, %v8208
        %vm8210 = vweird.f32 %v8010
        %vm8211 = vweird.f32 %v8205
        %vm8212 = vmor %vm8210, %vm8211
        %v8213 = vsel %vm8212, %v8205, %v8209
        %v8214 = vand.u32 2147483647, %v8010
        %vm8215 = vcmp.eq.f32.partialorder %v8214, 8.507059e+37
        %v8216 = vand.u32 %v8010, 2147483648
        %v8217 = vor.u32 1.1754944e-38, %v8216
        %v8218 = vsel %vm8215, %v8217, %v8213
        %v8219 = vmul.f32 1.0, %v8218
        %v8220 = vrcp.pop %v8011
        %v8221 = vmul.f32 %v8011, %v8220
        %v8222 = vsub.f32 1.0, %v8221
        %v8223 = vmul.f32 %v8220, %v8222
        %v8224 = vadd.f32 %v8220, %v8223
        %vm8225 = vweird.f32 %v8011
        %vm8226 = vweird.f32 %v8220
        %vm8227 = vmor %vm8225, %vm8226
        %v8228 = vsel %vm8227, %v8220, %v8224
        %v8229 = vand.u32 2147483647, %v8011
        %vm8230 = vcmp.eq.f32.partialorder %v8229, 8.507059e+37
        %v8231 = vand.u32 %v8011, 2147483648
        %v8232 = vor.u32 1.1754944e-38, %v8231
        %v8233 = vsel %vm8230, %v8232, %v8228
        %v8234 = vmul.f32 1.0, %v8233
        %v8235 = vrcp.pop %v8012
        %v8236 = vmul.f32 %v8012, %v8235
        %v8237 = vsub.f32 1.0, %v8236
        %v8238 = vmul.f32 %v8235, %v8237
        %v8239 = vadd.f32 %v8235, %v8238
        %vm8240 = vweird.f32 %v8012
        %vm8241 = vweird.f32 %v8235
        %vm8242 = vmor %vm8240, %vm8241
        %v8243 = vsel %vm8242, %v8235, %v8239
        %v8244 = vand.u32 2147483647, %v8012
        %vm8245 = vcmp.eq.f32.partialorder %v8244, 8.507059e+37
        %v8246 = vand.u32 %v8012, 2147483648
        %v8247 = vor.u32 1.1754944e-38, %v8246
        %v8248 = vsel %vm8245, %v8247, %v8243
        %v8249 = vmul.f32 1.0, %v8248
        %v8250 = vrcp.pop %v8013
        %v8251 = vmul.f32 %v8013, %v8250
        %v8252 = vsub.f32 1.0, %v8251
        %v8253 = vmul.f32 %v8250, %v8252
        %v8254 = vadd.f32 %v8250, %v8253
        %vm8255 = vweird.f32 %v8013
        %vm8256 = vweird.f32 %v8250
        %vm8257 = vmor %vm8255, %vm8256
        %v8258 = vsel %vm8257, %v8250, %v8254
        %v8259 = vand.u32 2147483647, %v8013
        %vm8260 = vcmp.eq.f32.partialorder %v8259, 8.507059e+37
        %v8261 = vand.u32 %v8013, 2147483648
        %v8262 = vor.u32 1.1754944e-38, %v8261
        %v8263 = vsel %vm8260, %v8262, %v8258
        %v8264 = vmul.f32 1.0, %v8263
        %v8265 = vrcp.pop %v8014
        %v8266 = vmul.f32 %v8014, %v8265
        %v8267 = vsub.f32 1.0, %v8266
        %v8268 = vmul.f32 %v8265, %v8267
        %v8269 = vadd.f32 %v8265, %v8268
        %vm8270 = vweird.f32 %v8014
        %vm8271 = vweird.f32 %v8265
        %vm8272 = vmor %vm8270, %vm8271
        %v8273 = vsel %vm8272, %v8265, %v8269
        %v8274 = vand.u32 2147483647, %v8014
        %vm8275 = vcmp.eq.f32.partialorder %v8274, 8.507059e+37
        %v8276 = vand.u32 %v8014, 2147483648
        %v8277 = vor.u32 1.1754944e-38, %v8276
        %v8278 = vsel %vm8275, %v8277, %v8273
        %v8279 = vmul.f32 1.0, %v8278
        %v8280 = vrcp.pop %v8015
        %v8281 = vmul.f32 %v8015, %v8280
        %v8282 = vsub.f32 1.0, %v8281
        %v8283 = vmul.f32 %v8280, %v8282
        %v8284 = vadd.f32 %v8280, %v8283
        %vm8285 = vweird.f32 %v8015
        %vm8286 = vweird.f32 %v8280
        %vm8287 = vmor %vm8285, %vm8286
        %v8288 = vsel %vm8287, %v8280, %v8284
        %v8289 = vand.u32 2147483647, %v8015
        %vm8290 = vcmp.eq.f32.partialorder %v8289, 8.507059e+37
        %v8291 = vand.u32 %v8015, 2147483648
        %v8292 = vor.u32 1.1754944e-38, %v8291
        %v8293 = vsel %vm8290, %v8292, %v8288
        %v8294 = vmul.f32 1.0, %v8293
        %v8295 = vrcp.pop %v8016
        %v8296 = vmul.f32 %v8016, %v8295
        %v8297 = vsub.f32 1.0, %v8296
        %v8298 = vmul.f32 %v8295, %v8297
        %v8299 = vadd.f32 %v8295, %v8298
        %vm8300 = vweird.f32 %v8016
        %vm8301 = vweird.f32 %v8295
        %vm8302 = vmor %vm8300, %vm8301
        %v8303 = vsel %vm8302, %v8295, %v8299
        %v8304 = vand.u32 2147483647, %v8016
        %vm8305 = vcmp.eq.f32.partialorder %v8304, 8.507059e+37
        %v8306 = vand.u32 %v8016, 2147483648
        %v8307 = vor.u32 1.1754944e-38, %v8306
        %v8308 = vsel %vm8305, %v8307, %v8303
        %v8309 = vmul.f32 1.0, %v8308
        %v8310 = vrcp.pop %v8017
        %v8311 = vmul.f32 %v8017, %v8310
        %v8312 = vsub.f32 1.0, %v8311
        %v8313 = vmul.f32 %v8310, %v8312
        %v8314 = vadd.f32 %v8310, %v8313
        %vm8315 = vweird.f32 %v8017
        %vm8316 = vweird.f32 %v8310
        %vm8317 = vmor %vm8315, %vm8316
        %v8318 = vsel %vm8317, %v8310, %v8314
        %v8319 = vand.u32 2147483647, %v8017
        %vm8320 = vcmp.eq.f32.partialorder %v8319, 8.507059e+37
        %v8321 = vand.u32 %v8017, 2147483648
        %v8322 = vor.u32 1.1754944e-38, %v8321
        %v8323 = vsel %vm8320, %v8322, %v8318
        %v8324 = vmul.f32 1.0, %v8323
        %v8325 = vrcp.pop %v8018
        %v8326 = vmul.f32 %v8018, %v8325
        %v8327 = vsub.f32 1.0, %v8326
        %v8328 = vmul.f32 %v8325, %v8327
        %v8329 = vadd.f32 %v8325, %v8328
        %vm8330 = vweird.f32 %v8018
        %vm8331 = vweird.f32 %v8325
        %vm8332 = vmor %vm8330, %vm8331
        %v8333 = vsel %vm8332, %v8325, %v8329
        %v8334 = vand.u32 2147483647, %v8018
        %vm8335 = vcmp.eq.f32.partialorder %v8334, 8.507059e+37
        %v8336 = vand.u32 %v8018, 2147483648
        %v8337 = vor.u32 1.1754944e-38, %v8336
        %v8338 = vsel %vm8335, %v8337, %v8333
        %v8339 = vmul.f32 1.0, %v8338
        %v8340 = vrcp.pop %v8019
        %v8341 = vmul.f32 %v8019, %v8340
        %v8342 = vsub.f32 1.0, %v8341
        %v8343 = vmul.f32 %v8340, %v8342
        %v8344 = vadd.f32 %v8340, %v8343
        %vm8345 = vweird.f32 %v8019
        %vm8346 = vweird.f32 %v8340
        %vm8347 = vmor %vm8345, %vm8346
        %v8348 = vsel %vm8347, %v8340, %v8344
        %v8349 = vand.u32 2147483647, %v8019
        %vm8350 = vcmp.eq.f32.partialorder %v8349, 8.507059e+37
        %v8351 = vand.u32 %v8019, 2147483648
        %v8352 = vor.u32 1.1754944e-38, %v8351
        %v8353 = vsel %vm8350, %v8352, %v8348
        %v8354 = vmul.f32 1.0, %v8353
        %v8355 = vrcp.pop %v8020
        %v8356 = vmul.f32 %v8020, %v8355
        %v8357 = vsub.f32 1.0, %v8356
        %v8358 = vmul.f32 %v8355, %v8357
        %v8359 = vadd.f32 %v8355, %v8358
        %vm8360 = vweird.f32 %v8020
        %vm8361 = vweird.f32 %v8355
        %vm8362 = vmor %vm8360, %vm8361
        %v8363 = vsel %vm8362, %v8355, %v8359
        %v8364 = vand.u32 2147483647, %v8020
        %vm8365 = vcmp.eq.f32.partialorder %v8364, 8.507059e+37
        %v8366 = vand.u32 %v8020, 2147483648
        %v8367 = vor.u32 1.1754944e-38, %v8366
        %v8368 = vsel %vm8365, %v8367, %v8363
        %v8369 = vmul.f32 1.0, %v8368
        %v8370 = vrcp.pop %v8021
        %v8371 = vmul.f32 %v8021, %v8370
        %v8372 = vsub.f32 1.0, %v8371
        %v8373 = vmul.f32 %v8370, %v8372
        %v8374 = vadd.f32 %v8370, %v8373
        %vm8375 = vweird.f32 %v8021
        %vm8376 = vweird.f32 %v8370
        %vm8377 = vmor %vm8375, %vm8376
        %v8378 = vsel %vm8377, %v8370, %v8374
        %v8379 = vand.u32 2147483647, %v8021
        %vm8380 = vcmp.eq.f32.partialorder %v8379, 8.507059e+37
        %v8381 = vand.u32 %v8021, 2147483648
        %v8382 = vor.u32 1.1754944e-38, %v8381
        %v8383 = vsel %vm8380, %v8382, %v8378
        %v8384 = vmul.f32 1.0, %v8383
        %v8385 = vrcp.pop %v8022
        %v8386 = vmul.f32 %v8022, %v8385
        %v8387 = vsub.f32 1.0, %v8386
        %v8388 = vmul.f32 %v8385, %v8387
        %v8389 = vadd.f32 %v8385, %v8388
        %vm8390 = vweird.f32 %v8022
        %vm8391 = vweird.f32 %v8385
        %vm8392 = vmor %vm8390, %vm8391
        %v8393 = vsel %vm8392, %v8385, %v8389
        %v8394 = vand.u32 2147483647, %v8022
        %vm8395 = vcmp.eq.f32.partialorder %v8394, 8.507059e+37
        %v8396 = vand.u32 %v8022, 2147483648
        %v8397 = vor.u32 1.1754944e-38, %v8396
        %v8398 = vsel %vm8395, %v8397, %v8393
        %v8399 = vmul.f32 1.0, %v8398
        %v8400 = vrcp.pop %v8023
        %v8401 = vmul.f32 %v8023, %v8400
        %v8402 = vsub.f32 1.0, %v8401
        %v8403 = vmul.f32 %v8400, %v8402
        %v8404 = vadd.f32 %v8400, %v8403
        %vm8405 = vweird.f32 %v8023
        %vm8406 = vweird.f32 %v8400
        %vm8407 = vmor %vm8405, %vm8406
        %v8408 = vsel %vm8407, %v8400, %v8404
        %v8409 = vand.u32 2147483647, %v8023
        %vm8410 = vcmp.eq.f32.partialorder %v8409, 8.507059e+37
        %v8411 = vand.u32 %v8023, 2147483648
        %v8412 = vor.u32 1.1754944e-38, %v8411
        %v8413 = vsel %vm8410, %v8412, %v8408
        %v8414 = vmul.f32 1.0, %v8413
        %v8415 = vrcp.pop %v8024
        %v8416 = vmul.f32 %v8024, %v8415
        %v8417 = vsub.f32 1.0, %v8416
        %v8418 = vmul.f32 %v8415, %v8417
        %v8419 = vadd.f32 %v8415, %v8418
        %vm8420 = vweird.f32 %v8024
        %vm8421 = vweird.f32 %v8415
        %vm8422 = vmor %vm8420, %vm8421
        %v8423 = vsel %vm8422, %v8415, %v8419
        %v8424 = vand.u32 2147483647, %v8024
        %vm8425 = vcmp.eq.f32.partialorder %v8424, 8.507059e+37
        %v8426 = vand.u32 %v8024, 2147483648
        %v8427 = vor.u32 1.1754944e-38, %v8426
        %v8428 = vsel %vm8425, %v8427, %v8423
        %v8429 = vmul.f32 1.0, %v8428
        %v8430 = vrcp.pop %v8025
        %v8431 = vmul.f32 %v8025, %v8430
        %v8432 = vsub.f32 1.0, %v8431
        %v8433 = vmul.f32 %v8430, %v8432
        %v8434 = vadd.f32 %v8430, %v8433
        %vm8435 = vweird.f32 %v8025
        %vm8436 = vweird.f32 %v8430
        %vm8437 = vmor %vm8435, %vm8436
        %v8438 = vsel %vm8437, %v8430, %v8434
        %v8439 = vand.u32 2147483647, %v8025
        %vm8440 = vcmp.eq.f32.partialorder %v8439, 8.507059e+37
        %v8441 = vand.u32 %v8025, 2147483648
        %v8442 = vor.u32 1.1754944e-38, %v8441
        %v8443 = vsel %vm8440, %v8442, %v8438
        %v8444 = vmul.f32 1.0, %v8443
        %v8445 = vrcp.pop %v8026
        %v8446 = vmul.f32 %v8026, %v8445
        %v8447 = vsub.f32 1.0, %v8446
        %v8448 = vmul.f32 %v8445, %v8447
        %v8449 = vadd.f32 %v8445, %v8448
        %vm8450 = vweird.f32 %v8026
        %vm8451 = vweird.f32 %v8445
        %vm8452 = vmor %vm8450, %vm8451
        %v8453 = vsel %vm8452, %v8445, %v8449
        %v8454 = vand.u32 2147483647, %v8026
        %vm8455 = vcmp.eq.f32.partialorder %v8454, 8.507059e+37
        %v8456 = vand.u32 %v8026, 2147483648
        %v8457 = vor.u32 1.1754944e-38, %v8456
        %v8458 = vsel %vm8455, %v8457, %v8453
        %v8459 = vmul.f32 1.0, %v8458
        %v8460 = vrcp.pop %v8027
        %v8461 = vmul.f32 %v8027, %v8460
        %v8462 = vsub.f32 1.0, %v8461
        %v8463 = vmul.f32 %v8460, %v8462
        %v8464 = vadd.f32 %v8460, %v8463
        %vm8465 = vweird.f32 %v8027
        %vm8466 = vweird.f32 %v8460
        %vm8467 = vmor %vm8465, %vm8466
        %v8468 = vsel %vm8467, %v8460, %v8464
        %v8469 = vand.u32 2147483647, %v8027
        %vm8470 = vcmp.eq.f32.partialorder %v8469, 8.507059e+37
        %v8471 = vand.u32 %v8027, 2147483648
        %v8472 = vor.u32 1.1754944e-38, %v8471
        %v8473 = vsel %vm8470, %v8472, %v8468
        %v8474 = vmul.f32 1.0, %v8473
        %v8475 = vrcp.pop %v8028
        %v8476 = vmul.f32 %v8028, %v8475
        %v8477 = vsub.f32 1.0, %v8476
        %v8478 = vmul.f32 %v8475, %v8477
        %v8479 = vadd.f32 %v8475, %v8478
        %vm8480 = vweird.f32 %v8028
        %vm8481 = vweird.f32 %v8475
        %vm8482 = vmor %vm8480, %vm8481
        %v8483 = vsel %vm8482, %v8475, %v8479
        %v8484 = vand.u32 2147483647, %v8028
        %vm8485 = vcmp.eq.f32.partialorder %v8484, 8.507059e+37
        %v8486 = vand.u32 %v8028, 2147483648
        %v8487 = vor.u32 1.1754944e-38, %v8486
        %v8488 = vsel %vm8485, %v8487, %v8483
        %v8489 = vmul.f32 1.0, %v8488
        %v8490 = vrcp.pop %v8029
        %v8491 = vmul.f32 %v8029, %v8490
        %v8492 = vsub.f32 1.0, %v8491
        %v8493 = vmul.f32 %v8490, %v8492
        %v8494 = vadd.f32 %v8490, %v8493
        %vm8495 = vweird.f32 %v8029
        %vm8496 = vweird.f32 %v8490
        %vm8497 = vmor %vm8495, %vm8496
        %v8498 = vsel %vm8497, %v8490, %v8494
        %v8499 = vand.u32 2147483647, %v8029
        %vm8500 = vcmp.eq.f32.partialorder %v8499, 8.507059e+37
        %v8501 = vand.u32 %v8029, 2147483648
        %v8502 = vor.u32 1.1754944e-38, %v8501
        %v8503 = vsel %vm8500, %v8502, %v8498
        %v8504 = vmul.f32 1.0, %v8503
        %v8505 = vrcp.pop %v8030
        %v8506 = vmul.f32 %v8030, %v8505
        %v8507 = vsub.f32 1.0, %v8506
        %v8508 = vmul.f32 %v8505, %v8507
        %v8509 = vadd.f32 %v8505, %v8508
        %vm8510 = vweird.f32 %v8030
        %vm8511 = vweird.f32 %v8505
        %vm8512 = vmor %vm8510, %vm8511
        %v8513 = vsel %vm8512, %v8505, %v8509
        %v8514 = vand.u32 2147483647, %v8030
        %vm8515 = vcmp.eq.f32.partialorder %v8514, 8.507059e+37
        %v8516 = vand.u32 %v8030, 2147483648
        %v8517 = vor.u32 1.1754944e-38, %v8516
        %v8518 = vsel %vm8515, %v8517, %v8513
        %v8519 = vmul.f32 1.0, %v8518
        %v8520 = vrcp.pop %v8031
        %v8521 = vmul.f32 %v8031, %v8520
        %v8522 = vsub.f32 1.0, %v8521
        %v8523 = vmul.f32 %v8520, %v8522
        %v8524 = vadd.f32 %v8520, %v8523
        %vm8525 = vweird.f32 %v8031
        %vm8526 = vweird.f32 %v8520
        %vm8527 = vmor %vm8525, %vm8526
        %v8528 = vsel %vm8527, %v8520, %v8524
        %v8529 = vand.u32 2147483647, %v8031
        %vm8530 = vcmp.eq.f32.partialorder %v8529, 8.507059e+37
        %v8531 = vand.u32 %v8031, 2147483648
        %v8532 = vor.u32 1.1754944e-38, %v8531
        %v8533 = vsel %vm8530, %v8532, %v8528
        %v8534 = vmul.f32 1.0, %v8533
        %v8535 = vrcp.pop %v8032
        %v8536 = vmul.f32 %v8032, %v8535
        %v8537 = vsub.f32 1.0, %v8536
        %v8538 = vmul.f32 %v8535, %v8537
        %v8539 = vadd.f32 %v8535, %v8538
        %vm8540 = vweird.f32 %v8032
        %vm8541 = vweird.f32 %v8535
        %vm8542 = vmor %vm8540, %vm8541
        %v8543 = vsel %vm8542, %v8535, %v8539
        %v8544 = vand.u32 2147483647, %v8032
        %vm8545 = vcmp.eq.f32.partialorder %v8544, 8.507059e+37
        %v8546 = vand.u32 %v8032, 2147483648
        %v8547 = vor.u32 1.1754944e-38, %v8546
        %v8548 = vsel %vm8545, %v8547, %v8543
        %v8549 = vmul.f32 1.0, %v8548
        %v8550 = vrcp.pop %v8033
        %v8551 = vmul.f32 %v8033, %v8550
        %v8552 = vsub.f32 1.0, %v8551
        %v8553 = vmul.f32 %v8550, %v8552
        %v8554 = vadd.f32 %v8550, %v8553
        %vm8555 = vweird.f32 %v8033
        %vm8556 = vweird.f32 %v8550
        %vm8557 = vmor %vm8555, %vm8556
        %v8558 = vsel %vm8557, %v8550, %v8554
        %v8559 = vand.u32 2147483647, %v8033
        %vm8560 = vcmp.eq.f32.partialorder %v8559, 8.507059e+37
        %v8561 = vand.u32 %v8033, 2147483648
        %v8562 = vor.u32 1.1754944e-38, %v8561
        %v8563 = vsel %vm8560, %v8562, %v8558
        %v8564 = vmul.f32 1.0, %v8563
        %v8565 = vrcp.pop %v8034
        %v8566 = vmul.f32 %v8034, %v8565
        %v8567 = vsub.f32 1.0, %v8566
        %v8568 = vmul.f32 %v8565, %v8567
        %v8569 = vadd.f32 %v8565, %v8568
        %vm8570 = vweird.f32 %v8034
        %vm8571 = vweird.f32 %v8565
        %vm8572 = vmor %vm8570, %vm8571
        %v8573 = vsel %vm8572, %v8565, %v8569
        %v8574 = vand.u32 2147483647, %v8034
        %vm8575 = vcmp.eq.f32.partialorder %v8574, 8.507059e+37
        %v8576 = vand.u32 %v8034, 2147483648
        %v8577 = vor.u32 1.1754944e-38, %v8576
        %v8578 = vsel %vm8575, %v8577, %v8573
        %v8579 = vmul.f32 1.0, %v8578
        %v8580 = vrcp.pop %v8035
        %v8581 = vmul.f32 %v8035, %v8580
        %v8582 = vsub.f32 1.0, %v8581
        %v8583 = vmul.f32 %v8580, %v8582
        %v8584 = vadd.f32 %v8580, %v8583
        %vm8585 = vweird.f32 %v8035
        %vm8586 = vweird.f32 %v8580
        %vm8587 = vmor %vm8585, %vm8586
        %v8588 = vsel %vm8587, %v8580, %v8584
        %v8589 = vand.u32 2147483647, %v8035
        %vm8590 = vcmp.eq.f32.partialorder %v8589, 8.507059e+37
        %v8591 = vand.u32 %v8035, 2147483648
        %v8592 = vor.u32 1.1754944e-38, %v8591
        %v8593 = vsel %vm8590, %v8592, %v8588
        %v8594 = vmul.f32 1.0, %v8593
        %v8595 = vrcp.pop %v8036
        %v8596 = vmul.f32 %v8036, %v8595
        %v8597 = vsub.f32 1.0, %v8596
        %v8598 = vmul.f32 %v8595, %v8597
        %v8599 = vadd.f32 %v8595, %v8598
        %vm8600 = vweird.f32 %v8036
        %vm8601 = vweird.f32 %v8595
        %vm8602 = vmor %vm8600, %vm8601
        %v8603 = vsel %vm8602, %v8595, %v8599
        %v8604 = vand.u32 2147483647, %v8036
        %vm8605 = vcmp.eq.f32.partialorder %v8604, 8.507059e+37
        %v8606 = vand.u32 %v8036, 2147483648
        %v8607 = vor.u32 1.1754944e-38, %v8606
        %v8608 = vsel %vm8605, %v8607, %v8603
        %v8609 = vmul.f32 1.0, %v8608
        %v8610 = vrcp.pop %v8037
        %v8611 = vmul.f32 %v8037, %v8610
        %v8612 = vsub.f32 1.0, %v8611
        %v8613 = vmul.f32 %v8610, %v8612
        %v8614 = vadd.f32 %v8610, %v8613
        %vm8615 = vweird.f32 %v8037
        %vm8616 = vweird.f32 %v8610
        %vm8617 = vmor %vm8615, %vm8616
        %v8618 = vsel %vm8617, %v8610, %v8614
        %v8619 = vand.u32 2147483647, %v8037
        %vm8620 = vcmp.eq.f32.partialorder %v8619, 8.507059e+37
        %v8621 = vand.u32 %v8037, 2147483648
        %v8622 = vor.u32 1.1754944e-38, %v8621
        %v8623 = vsel %vm8620, %v8622, %v8618
        %v8624 = vmul.f32 1.0, %v8623
        %v8625 = vrcp.pop %v8038
        %v8626 = vmul.f32 %v8038, %v8625
        %v8627 = vsub.f32 1.0, %v8626
        %v8628 = vmul.f32 %v8625, %v8627
        %v8629 = vadd.f32 %v8625, %v8628
        %vm8630 = vweird.f32 %v8038
        %vm8631 = vweird.f32 %v8625
        %vm8632 = vmor %vm8630, %vm8631
        %v8633 = vsel %vm8632, %v8625, %v8629
        %v8634 = vand.u32 2147483647, %v8038
        %vm8635 = vcmp.eq.f32.partialorder %v8634, 8.507059e+37
        %v8636 = vand.u32 %v8038, 2147483648
        %v8637 = vor.u32 1.1754944e-38, %v8636
        %v8638 = vsel %vm8635, %v8637, %v8633
        %v8639 = vmul.f32 1.0, %v8638
        %v8640 = vrcp.pop %v8039
        %v8641 = vmul.f32 %v8039, %v8640
        %v8642 = vsub.f32 1.0, %v8641
        %v8643 = vmul.f32 %v8640, %v8642
        %v8644 = vadd.f32 %v8640, %v8643
        %vm8645 = vweird.f32 %v8039
        %vm8646 = vweird.f32 %v8640
        %vm8647 = vmor %vm8645, %vm8646
        %v8648 = vsel %vm8647, %v8640, %v8644
        %v8649 = vand.u32 2147483647, %v8039
        %vm8650 = vcmp.eq.f32.partialorder %v8649, 8.507059e+37
        %v8651 = vand.u32 %v8039, 2147483648
        %v8652 = vor.u32 1.1754944e-38, %v8651
        %v8653 = vsel %vm8650, %v8652, %v8648
        %v8654 = vmul.f32 1.0, %v8653
        %v8655 = vmul.f32 %v7835, %v8054
        %v8656 = vmul.f32 %v7836, %v8069
        %v8657 = vmul.f32 %v7837, %v8084
        %v8658 = vmul.f32 %v7838, %v8099
        %v8659 = vmul.f32 %v7839, %v8114
        %v8660 = vmul.f32 %v7840, %v8129
        %v8661 = vmul.f32 %v7841, %v8144
        %v8662 = vmul.f32 %v7842, %v8159
        %v8663 = vmul.f32 %v7843, %v8174
        %v8664 = vmul.f32 %v7844, %v8189
        %v8665 = vmul.f32 %v7845, %v8204
        %v8666 = vmul.f32 %v7846, %v8219
        %v8667 = vmul.f32 %v7847, %v8234
        %v8668 = vmul.f32 %v7848, %v8249
        %v8669 = vmul.f32 %v7849, %v8264
        %v8670 = vmul.f32 %v7850, %v8279
        %v8671 = vmul.f32 %v7851, %v8294
        %v8672 = vmul.f32 %v7852, %v8309
        %v8673 = vmul.f32 %v7853, %v8324
        %v8674 = vmul.f32 %v7854, %v8339
        %v8675 = vmul.f32 %v7855, %v8354
        %v8676 = vmul.f32 %v7856, %v8369
        %v8677 = vmul.f32 %v7857, %v8384
        %v8678 = vmul.f32 %v7858, %v8399
        %v8679 = vmul.f32 %v7859, %v8414
        %v8680 = vmul.f32 %v7860, %v8429
        %v8681 = vmul.f32 %v7861, %v8444
        %v8682 = vmul.f32 %v7862, %v8459
        %v8683 = vmul.f32 %v7863, %v8474
        %v8684 = vmul.f32 %v7864, %v8489
        %v8685 = vmul.f32 %v7865, %v8504
        %v8686 = vmul.f32 %v7866, %v8519
        %v8687 = vmul.f32 %v7867, %v8534
        %v8688 = vmul.f32 %v7868, %v8549
        %v8689 = vmul.f32 %v7869, %v8564
        %v8690 = vmul.f32 %v7870, %v8579
        %v8691 = vmul.f32 %v7871, %v8594
        %v8692 = vmul.f32 %v7872, %v8609
        %v8693 = vmul.f32 %v7873, %v8624
        %v8694 = vmul.f32 %v7874, %v8639
        %v8695 = vmul.f32 %v7875, %v8654
        %v8696 = vld [vmem:[%s496 + $0x13] sm:$0xff]
        %v8697 = vld [vmem:[%s496 + $0x1b] sm:$0xff]
        %v8698 = vld [vmem:[%s496 + $0x23] sm:$0xff]
        %v8699 = vld [vmem:[%s496 + $0x2b] sm:$0xff]
        %v8700 = vld [vmem:[%s496 + $0x33] sm:$0xff]
        %v8701 = vld [vmem:[%s496 + $0x3b] sm:$0xff]
        %v8702 = vld [vmem:[%s496 + $0x43] sm:$0xff]
        %v8703 = vld [vmem:[%s496 + $0x4b] sm:$0xff]
        %v8704 = vld [vmem:[%s496 + $0x53] sm:$0xff]
        %v8705 = vld [vmem:[%s496 + $0x5b] sm:$0xff]
        %v8706 = vld [vmem:[%s496 + $0x63] sm:$0xff]
        %v8707 = vld [vmem:[%s496 + $0x6b] sm:$0xff]
        %v8708 = vld [vmem:[%s496 + $0x73] sm:$0xff]
        %v8709 = vld [vmem:[%s496 + $0x7b] sm:$0xff]
        %v8710 = vld [vmem:[%s496 + $0x83] sm:$0xff]
        %v8711 = vld [vmem:[%s496 + $0x8b] sm:$0xff]
        %v8712 = vld [vmem:[%s496 + $0x93] sm:$0xff]
        %v8713 = vld [vmem:[%s496 + $0x9b] sm:$0xff]
        %v8714 = vld [vmem:[%s496 + $0xa3] sm:$0xff]
        %v8715 = vld [vmem:[%s496 + $0xab] sm:$0xff]
        %v8716 = vld [vmem:[%s496 + $0xb3] sm:$0xff]
        %v8717 = vld [vmem:[%s496 + $0xbb] sm:$0xff]
        %v8718 = vld [vmem:[%s496 + $0xc3] sm:$0xff]
        %v8719 = vld [vmem:[%s496 + $0xcb] sm:$0xff]
        %v8720 = vld [vmem:[%s496 + $0xd3] sm:$0xff]
        %v8721 = vld [vmem:[%s496 + $0xdb] sm:$0xff]
        %v8722 = vld [vmem:[%s496 + $0xe3] sm:$0xff]
        %v8723 = vld [vmem:[%s496 + $0xeb] sm:$0xff]
        %v8724 = vld [vmem:[%s496 + $0xf3] sm:$0xff]
        %v8725 = vld [vmem:[%s496 + $0xfb] sm:$0xff]
        %v8726 = vld [vmem:[%s496 + $0x103] sm:$0xff]
        %v8727 = vld [vmem:[%s496 + $0x10b] sm:$0xff]
        %v8728 = vld [vmem:[%s496 + $0x113] sm:$0xff]
        %v8729 = vld [vmem:[%s496 + $0x11b] sm:$0xff]
        %v8730 = vld [vmem:[%s496 + $0x123] sm:$0xff]
        %v8731 = vld [vmem:[%s496 + $0x12b] sm:$0xff]
        %v8732 = vld [vmem:[%s496 + $0x133] sm:$0xff]
        %v8733 = vld [vmem:[%s496 + $0x13b] sm:$0xff]
        %v8734 = vld [vmem:[%s496 + $0x143] sm:$0xff]
        %v8735 = vld [vmem:[%s496 + $0x14b] sm:$0xff]
        %v8736 = vld [vmem:[%s496 + $0x153] sm:$0xf]
        %v8737 = vld [vmem:[%s10] sm:$0xf]
        %v8738 = vld [vmem:[%s11] sm:$0x1]
        %v8740 = vperm.slane %v8738, 0
        %v8743 = vsel %vm644, %v8696, 0
        %v8746 = vsel %vm644, %v8697, 0
        %v8749 = vsel %vm644, %v8698, 0
        %v8752 = vsel %vm644, %v8699, 0
        %v8755 = vsel %vm644, %v8700, 0
        %v8758 = vsel %vm644, %v8701, 0
        %v8761 = vsel %vm644, %v8702, 0
        %v8764 = vsel %vm644, %v8703, 0
        %v8767 = vsel %vm644, %v8704, 0
        %v8770 = vsel %vm644, %v8705, 0
        %v8773 = vsel %vm644, %v8706, 0
        %v8776 = vsel %vm644, %v8707, 0
        %v8779 = vsel %vm644, %v8708, 0
        %v8782 = vsel %vm644, %v8709, 0
        %v8785 = vsel %vm644, %v8710, 0
        %v8788 = vsel %vm644, %v8711, 0
        %v8791 = vsel %vm644, %v8712, 0
        %v8794 = vsel %vm644, %v8713, 0
        %v8797 = vsel %vm644, %v8714, 0
        %v8800 = vsel %vm644, %v8715, 0
        %v8803 = vsel %vm644, %v8716, 0
        %v8806 = vsel %vm644, %v8717, 0
        %v8809 = vsel %vm644, %v8718, 0
        %v8812 = vsel %vm644, %v8719, 0
        %v8815 = vsel %vm644, %v8720, 0
        %v8818 = vsel %vm644, %v8721, 0
        %v8821 = vsel %vm644, %v8722, 0
        %v8824 = vsel %vm644, %v8723, 0
        %v8827 = vsel %vm644, %v8724, 0
        %v8830 = vsel %vm644, %v8725, 0
        %v8833 = vsel %vm644, %v8726, 0
        %v8836 = vsel %vm644, %v8727, 0
        %v8839 = vsel %vm644, %v8728, 0
        %v8842 = vsel %vm644, %v8729, 0
        %v8845 = vsel %vm644, %v8730, 0
        %v8848 = vsel %vm644, %v8731, 0
        %v8851 = vsel %vm644, %v8732, 0
        %v8854 = vsel %vm644, %v8733, 0
        %v8857 = vsel %vm644, %v8734, 0
        %v8860 = vsel %vm644, %v8735, 0
        %v8863 = vsel %vm644, %v8736, 0
        %v8866 = vsel %vm768, %v8737, 0
        %8868 = vmatpush.msra.mxu0 0.0
        %8869 = vmatpush.msra.mxu0 0.0
        %8870 = vmatpush.msra.mxu0 0.0
        %8871 = vmatpush.msra.mxu0 0.0
        %8872 = vmatpush.msra.mxu0 0.0
        %8873 = vmatpush.msra.mxu0 0.0
        %8874 = vmatpush.msra.mxu0 0.0
        %8875 = vmatpush.msra.mxu0 0.0
        %8876 = vmatpush.msra.mxu0 0.0
        %8877 = vmatpush.msra.mxu0 0.0
        %8878 = vmatpush.msra.mxu0 0.0
        %8879 = vmatpush.msra.mxu0 0.0
        %8880 = vmatpush.msra.mxu0 0.0
        %8881 = vmatpush.msra.mxu0 0.0
        %8882 = vmatpush.msra.mxu0 0.0
        %8883 = vmatpush.msra.mxu0 %v8866
        %8884 = vmatmul.f32.gmra.mxu0 %v8743
        %v8885 = vpop.f32.mrf.mxu0
        %v8886 = vadd.f32 %v8740, %v8885
        %8887 = vmatmul.f32.gmra.mxu0 %v8746
        %v8888 = vpop.f32.mrf.mxu0
        %v8889 = vadd.f32 %v8740, %v8888
        %8890 = vmatmul.f32.gmra.mxu0 %v8749
        %v8891 = vpop.f32.mrf.mxu0
        %v8892 = vadd.f32 %v8740, %v8891
        %8893 = vmatmul.f32.gmra.mxu0 %v8752
        %v8894 = vpop.f32.mrf.mxu0
        %v8895 = vadd.f32 %v8740, %v8894
        %8896 = vmatmul.f32.gmra.mxu0 %v8755
        %v8897 = vpop.f32.mrf.mxu0
        %v8898 = vadd.f32 %v8740, %v8897
        %8899 = vmatmul.f32.gmra.mxu0 %v8758
        %v8900 = vpop.f32.mrf.mxu0
        %v8901 = vadd.f32 %v8740, %v8900
        %8902 = vmatmul.f32.gmra.mxu0 %v8761
        %v8903 = vpop.f32.mrf.mxu0
        %v8904 = vadd.f32 %v8740, %v8903
        %8905 = vmatmul.f32.gmra.mxu0 %v8764
        %v8906 = vpop.f32.mrf.mxu0
        %v8907 = vadd.f32 %v8740, %v8906
        %8908 = vmatmul.f32.gmra.mxu0 %v8767
        %v8909 = vpop.f32.mrf.mxu0
        %v8910 = vadd.f32 %v8740, %v8909
        %8911 = vmatmul.f32.gmra.mxu0 %v8770
        %v8912 = vpop.f32.mrf.mxu0
        %v8913 = vadd.f32 %v8740, %v8912
        %8914 = vmatmul.f32.gmra.mxu0 %v8773
        %v8915 = vpop.f32.mrf.mxu0
        %v8916 = vadd.f32 %v8740, %v8915
        %8917 = vmatmul.f32.gmra.mxu0 %v8776
        %v8918 = vpop.f32.mrf.mxu0
        %v8919 = vadd.f32 %v8740, %v8918
        %8920 = vmatmul.f32.gmra.mxu0 %v8779
        %v8921 = vpop.f32.mrf.mxu0
        %v8922 = vadd.f32 %v8740, %v8921
        %8923 = vmatmul.f32.gmra.mxu0 %v8782
        %v8924 = vpop.f32.mrf.mxu0
        %v8925 = vadd.f32 %v8740, %v8924
        %8926 = vmatmul.f32.gmra.mxu0 %v8785
        %v8927 = vpop.f32.mrf.mxu0
        %v8928 = vadd.f32 %v8740, %v8927
        %8929 = vmatmul.f32.gmra.mxu0 %v8788
        %v8930 = vpop.f32.mrf.mxu0
        %v8931 = vadd.f32 %v8740, %v8930
        %8932 = vmatmul.f32.gmra.mxu0 %v8791
        %v8933 = vpop.f32.mrf.mxu0
        %v8934 = vadd.f32 %v8740, %v8933
        %8935 = vmatmul.f32.gmra.mxu0 %v8794
        %v8936 = vpop.f32.mrf.mxu0
        %v8937 = vadd.f32 %v8740, %v8936
        %8938 = vmatmul.f32.gmra.mxu0 %v8797
        %v8939 = vpop.f32.mrf.mxu0
        %v8940 = vadd.f32 %v8740, %v8939
        %8941 = vmatmul.f32.gmra.mxu0 %v8800
        %v8942 = vpop.f32.mrf.mxu0
        %v8943 = vadd.f32 %v8740, %v8942
        %8944 = vmatmul.f32.gmra.mxu0 %v8803
        %v8945 = vpop.f32.mrf.mxu0
        %v8946 = vadd.f32 %v8740, %v8945
        %8947 = vmatmul.f32.gmra.mxu0 %v8806
        %v8948 = vpop.f32.mrf.mxu0
        %v8949 = vadd.f32 %v8740, %v8948
        %8950 = vmatmul.f32.gmra.mxu0 %v8809
        %v8951 = vpop.f32.mrf.mxu0
        %v8952 = vadd.f32 %v8740, %v8951
        %8953 = vmatmul.f32.gmra.mxu0 %v8812
        %v8954 = vpop.f32.mrf.mxu0
        %v8955 = vadd.f32 %v8740, %v8954
        %8956 = vmatmul.f32.gmra.mxu0 %v8815
        %v8957 = vpop.f32.mrf.mxu0
        %v8958 = vadd.f32 %v8740, %v8957
        %8959 = vmatmul.f32.gmra.mxu0 %v8818
        %v8960 = vpop.f32.mrf.mxu0
        %v8961 = vadd.f32 %v8740, %v8960
        %8962 = vmatmul.f32.gmra.mxu0 %v8821
        %v8963 = vpop.f32.mrf.mxu0
        %v8964 = vadd.f32 %v8740, %v8963
        %8965 = vmatmul.f32.gmra.mxu0 %v8824
        %v8966 = vpop.f32.mrf.mxu0
        %v8967 = vadd.f32 %v8740, %v8966
        %8968 = vmatmul.f32.gmra.mxu0 %v8827
        %v8969 = vpop.f32.mrf.mxu0
        %v8970 = vadd.f32 %v8740, %v8969
        %8971 = vmatmul.f32.gmra.mxu0 %v8830
        %v8972 = vpop.f32.mrf.mxu0
        %v8973 = vadd.f32 %v8740, %v8972
        %8974 = vmatmul.f32.gmra.mxu0 %v8833
        %v8975 = vpop.f32.mrf.mxu0
        %v8976 = vadd.f32 %v8740, %v8975
        %8977 = vmatmul.f32.gmra.mxu0 %v8836
        %v8978 = vpop.f32.mrf.mxu0
        %v8979 = vadd.f32 %v8740, %v8978
        %8980 = vmatmul.f32.gmra.mxu0 %v8839
        %v8981 = vpop.f32.mrf.mxu0
        %v8982 = vadd.f32 %v8740, %v8981
        %8983 = vmatmul.f32.gmra.mxu0 %v8842
        %v8984 = vpop.f32.mrf.mxu0
        %v8985 = vadd.f32 %v8740, %v8984
        %8986 = vmatmul.f32.gmra.mxu0 %v8845
        %v8987 = vpop.f32.mrf.mxu0
        %v8988 = vadd.f32 %v8740, %v8987
        %8989 = vmatmul.f32.gmra.mxu0 %v8848
        %v8990 = vpop.f32.mrf.mxu0
        %v8991 = vadd.f32 %v8740, %v8990
        %8992 = vmatmul.f32.gmra.mxu0 %v8851
        %v8993 = vpop.f32.mrf.mxu0
        %v8994 = vadd.f32 %v8740, %v8993
        %8995 = vmatmul.f32.gmra.mxu0 %v8854
        %v8996 = vpop.f32.mrf.mxu0
        %v8997 = vadd.f32 %v8740, %v8996
        %8998 = vmatmul.f32.gmra.mxu0 %v8857
        %v8999 = vpop.f32.mrf.mxu0
        %v9000 = vadd.f32 %v8740, %v8999
        %9001 = vmatmul.f32.gmra.mxu0 %v8860
        %v9002 = vpop.f32.mrf.mxu0
        %v9003 = vadd.f32 %v8740, %v9002
        %9004 = vmatmul.f32.gmra.mxu0 %v8863
        %v9005 = vpop.f32.mrf.mxu0
        %v9006 = vadd.f32 %v8740, %v9005
        %9007 = vdwg.mxu0
        %v9008 = vadd.f32 %v8655, %v8886
        %v9009 = vadd.f32 %v8656, %v8889
        %v9010 = vadd.f32 %v8657, %v8892
        %v9011 = vadd.f32 %v8658, %v8895
        %v9012 = vadd.f32 %v8659, %v8898
        %v9013 = vadd.f32 %v8660, %v8901
        %v9014 = vadd.f32 %v8661, %v8904
        %v9015 = vadd.f32 %v8662, %v8907
        %v9016 = vadd.f32 %v8663, %v8910
        %v9017 = vadd.f32 %v8664, %v8913
        %v9018 = vadd.f32 %v8665, %v8916
        %v9019 = vadd.f32 %v8666, %v8919
        %v9020 = vadd.f32 %v8667, %v8922
        %v9021 = vadd.f32 %v8668, %v8925
        %v9022 = vadd.f32 %v8669, %v8928
        %v9023 = vadd.f32 %v8670, %v8931
        %v9024 = vadd.f32 %v8671, %v8934
        %v9025 = vadd.f32 %v8672, %v8937
        %v9026 = vadd.f32 %v8673, %v8940
        %v9027 = vadd.f32 %v8674, %v8943
        %v9028 = vadd.f32 %v8675, %v8946
        %v9029 = vadd.f32 %v8676, %v8949
        %v9030 = vadd.f32 %v8677, %v8952
        %v9031 = vadd.f32 %v8678, %v8955
        %v9032 = vadd.f32 %v8679, %v8958
        %v9033 = vadd.f32 %v8680, %v8961
        %v9034 = vadd.f32 %v8681, %v8964
        %v9035 = vadd.f32 %v8682, %v8967
        %v9036 = vadd.f32 %v8683, %v8970
        %v9037 = vadd.f32 %v8684, %v8973
        %v9038 = vadd.f32 %v8685, %v8976
        %v9039 = vadd.f32 %v8686, %v8979
        %v9040 = vadd.f32 %v8687, %v8982
        %v9041 = vadd.f32 %v8688, %v8985
        %v9042 = vadd.f32 %v8689, %v8988
        %v9043 = vadd.f32 %v8690, %v8991
        %v9044 = vadd.f32 %v8691, %v8994
        %v9045 = vadd.f32 %v8692, %v8997
        %v9046 = vadd.f32 %v8693, %v9000
        %v9047 = vadd.f32 %v8694, %v9003
        %v9048 = vadd.f32 %v8695, %v9006
        %9049 = vst [vmem:[%s501] sm:$0xff] %v9008
        %9050 = vst [vmem:[%s501 + $0x8] sm:$0xff] %v9009
        %9051 = vst [vmem:[%s501 + $0x10] sm:$0xff] %v9010
        %9052 = vst [vmem:[%s501 + $0x18] sm:$0xff] %v9011
        %9053 = vst [vmem:[%s501 + $0x20] sm:$0xff] %v9012
        %9054 = vst [vmem:[%s501 + $0x28] sm:$0xff] %v9013
        %9055 = vst [vmem:[%s501 + $0x30] sm:$0xff] %v9014
        %9056 = vst [vmem:[%s501 + $0x38] sm:$0xff] %v9015
        %9057 = vst [vmem:[%s501 + $0x40] sm:$0xff] %v9016
        %9058 = vst [vmem:[%s501 + $0x48] sm:$0xff] %v9017
        %9059 = vst [vmem:[%s501 + $0x50] sm:$0xff] %v9018
        %9060 = vst [vmem:[%s501 + $0x58] sm:$0xff] %v9019
        %9061 = vst [vmem:[%s501 + $0x60] sm:$0xff] %v9020
        %9062 = vst [vmem:[%s501 + $0x68] sm:$0xff] %v9021
        %9063 = vst [vmem:[%s501 + $0x70] sm:$0xff] %v9022
        %9064 = vst [vmem:[%s501 + $0x78] sm:$0xff] %v9023
        %9065 = vst [vmem:[%s501 + $0x80] sm:$0xff] %v9024
        %9066 = vst [vmem:[%s501 + $0x88] sm:$0xff] %v9025
        %9067 = vst [vmem:[%s501 + $0x90] sm:$0xff] %v9026
        %9068 = vst [vmem:[%s501 + $0x98] sm:$0xff] %v9027
        %9069 = vst [vmem:[%s501 + $0xa0] sm:$0xff] %v9028
        %9070 = vst [vmem:[%s501 + $0xa8] sm:$0xff] %v9029
        %9071 = vst [vmem:[%s501 + $0xb0] sm:$0xff] %v9030
        %9072 = vst [vmem:[%s501 + $0xb8] sm:$0xff] %v9031
        %9073 = vst [vmem:[%s501 + $0xc0] sm:$0xff] %v9032
        %9074 = vst [vmem:[%s501 + $0xc8] sm:$0xff] %v9033
        %9075 = vst [vmem:[%s501 + $0xd0] sm:$0xff] %v9034
        %9076 = vst [vmem:[%s501 + $0xd8] sm:$0xff] %v9035
        %9077 = vst [vmem:[%s501 + $0xe0] sm:$0xff] %v9036
        %9078 = vst [vmem:[%s501 + $0xe8] sm:$0xff] %v9037
        %9079 = vst [vmem:[%s501 + $0xf0] sm:$0xff] %v9038
        %9080 = vst [vmem:[%s501 + $0xf8] sm:$0xff] %v9039
        %9081 = vst [vmem:[%s501 + $0x100] sm:$0xff] %v9040
        %9082 = vst [vmem:[%s501 + $0x108] sm:$0xff] %v9041
        %9083 = vst [vmem:[%s501 + $0x110] sm:$0xff] %v9042
        %9084 = vst [vmem:[%s501 + $0x118] sm:$0xff] %v9043
        %9085 = vst [vmem:[%s501 + $0x120] sm:$0xff] %v9044
        %9086 = vst [vmem:[%s501 + $0x128] sm:$0xff] %v9045
        %9087 = vst [vmem:[%s501 + $0x130] sm:$0xff] %v9046
        %9088 = vst [vmem:[%s501 + $0x138] sm:$0xff] %v9047
        %9089 = vst [vmem:[%s501 + $0x140] sm:$0xf] %v9048
        %p9090 = scmp.lt.s32.totalorder %s26, 1
        %s9091 = scalar_select %p9090, %s26, 1
        %s9092 = smul.addr %s9091, 41
        %s9093 = smul.addr %s9092, 8
        %s9094 = scalar_lea.vmem %s14, %s9093
        // Predicated region
        $region81: #{tpu_custom_call.1} parent=75 // pred_check
          %p9095 = pneg %p348
        $region82: #{tpu_custom_call.1} parent=75 // pred_check_branch
          %9097 = sbr.rel (%p9095) target = $region84
        $region83: #{tpu_custom_call.1} parent=75 // pred_region
          _
        $region84: #{tpu_custom_call.1} parent=75 // pred_fallthru
          _
      $region76: #{tpu_custom_call.1} parent=5 // pred_fallthru
        _
      %p9098 = scmp.le.s32.totalorder 2, %s21
      // Predicated region
      $region85: #{tpu_custom_call.1} parent=5 // pred_check
        %p9099 = pneg %p9098
      $region86: #{tpu_custom_call.1} parent=5 // pred_check_branch
        %9101 = sbr.rel (%p9099) target = $region88
      $region87: #{tpu_custom_call.1} parent=5 // pred_region
        %s9102 = ssub.s32 %s21, 2
        // Predicated region
        $region89: #{tpu_custom_call.1} parent=87 // pred_check
          %p9103 = pneg %p354
        $region90: #{tpu_custom_call.1} parent=87 // pred_check_branch
          %9105 = sbr.rel (%p9103) target = $region92
        $region91: #{tpu_custom_call.1} parent=87 // pred_region
          %p9106 = scmp.lt.s32.totalorder %s27, 1
          %s9107 = scalar_select %p9106, %s27, 1
          %s9108 = smul.addr %s9107, 41
          %s9109 = smul.addr %s9108, 8
          %s9110 = scalar_lea.vmem %s14, %s9109
        $region92: #{tpu_custom_call.1} parent=87 // pred_fallthru
          _
      $region88: #{tpu_custom_call.1} parent=5 // pred_fallthru
        _
    $region6: #{tpu_custom_call.1} parent=1 // loop_footer
      %s25 = sadd.s32 1, %s21
    $region7: #{tpu_custom_call.1} parent=1 // loop_footer_branch
      %20 = sbr.rel target = $region3
    $region8: #{tpu_custom_call.1} parent=1 // loop_exit
      _
    %9111 = vsyncpa [#allocation4], 1
    %s9112 = scalar_lea.sflag [#allocation4], 1
    %9113 = vsyncpa %s9112, 1

</llo_original>
